<compile_context>
chip_gen: v7x
topology: tpu7x:2x2x1
jax: 0.10.0
libtpu: 0.0.40
codegen_flags: <defaults>
</compile_context>

<pallas_src>
import jax
import jax.numpy as jnp
from jax.experimental import pallas as pl
from jax.experimental.pallas import tpu as pltpu


# ---------------------------------------------------------------------------
# Fused matmul + BN(shift) + LeakyReLU(0.2) kernel (BN scale pre-folded into W)
# ---------------------------------------------------------------------------
def _matmul_bn_lrelu_kernel(a_ref, w_ref, shift_ref, o_ref):
    y = jnp.dot(a_ref[...], w_ref[...], preferred_element_type=jnp.float32)
    y = y + shift_ref[...]
    o_ref[...] = jnp.where(y >= 0, y, 0.2 * y).astype(o_ref.dtype)


def fused_matmul_bn_lrelu(a, w, shift, out_dtype=jnp.float32):
    """a: (M, K) bf16 patches, w: (K, N) bf16 scaled weights, shift: (N,) f32."""
    M, K = a.shape
    _, N = w.shape
    shift2 = shift.reshape(1, N)

    # Whole-M tile by default (single grid step -> minimal per-step overhead);
    # split into 2 parallel M tiles when M is large and both halves stay
    # sublane-aligned, so the two TensorCores on v7x both get a shard.
    # Full-dim K/N blocks: no padding, no post-kernel slice.
    gm = 2 if (M >= 512 and M % 16 == 0) else 1
    tm = M // gm

    return pl.pallas_call(
        _matmul_bn_lrelu_kernel,
        out_shape=jax.ShapeDtypeStruct((M, N), out_dtype),
        grid_spec=pltpu.PrefetchScalarGridSpec(
            num_scalar_prefetch=0,
            grid=(gm,),
            in_specs=[
                pl.BlockSpec((tm, K), lambda i: (i, 0)),   # patches (full K)
                pl.BlockSpec((K, N), lambda i: (0, 0)),    # weights (resident)
                pl.BlockSpec((1, N), lambda i: (0, 0)),    # BN shift row
            ],
            out_specs=pl.BlockSpec((tm, N), lambda i: (i, 0)),
        ),
        compiler_params=pltpu.CompilerParams(
            dimension_semantics=("parallel",)),
    )(a, w, shift2)


# ---------------------------------------------------------------------------
# Final layer: matmul + BN + LeakyReLU + 2x2 max-pool fused into one kernel.
# The LHS is the four pool-window-corner patch matrices stacked along rows
# (each block padded to a multiple of 8 rows so the row-block slices are
# sublane-aligned). ONE MXU matmul covers all four corners; the epilogue
# max-reduces the four activated row-blocks.
# ---------------------------------------------------------------------------
def _matmul_bn_lrelu_max4_kernel(a_ref, w_ref, shift_ref, o_ref):
    y = jnp.dot(a_ref[...], w_ref[...], preferred_element_type=jnp.float32)
    y = y + shift_ref[...]
    y = jnp.where(y >= 0, y, 0.2 * y)
    mp = o_ref.shape[0]                       # padded rows per corner block
    pooled = jnp.maximum(
        jnp.maximum(y[0 * mp:1 * mp], y[1 * mp:2 * mp]),
        jnp.maximum(y[2 * mp:3 * mp], y[3 * mp:4 * mp]))
    o_ref[...] = pooled.astype(o_ref.dtype)


# ---------------------------------------------------------------------------
# im2col + BN folding glue (XLA; tiny, fused under jit)
# ---------------------------------------------------------------------------
def _im2col(x_nhwc, kh, kw, stride, pad):
    if pad:
        x_nhwc = jnp.pad(x_nhwc, ((0, 0), (pad, pad), (pad, pad), (0, 0)))
    N, H, W, C = x_nhwc.shape
    Ho = (H - kh) // stride + 1
    Wo = (W - kw) // stride + 1
    cols = []
    for i in range(kh):
        for j in range(kw):
            cols.append(x_nhwc[:, i:i + stride * (Ho - 1) + 1:stride,
                               j:j + stride * (Wo - 1) + 1:stride, :])
    # (N, Ho, Wo, kh*kw*C) with column order (kh, kw, Cin)
    return jnp.concatenate(cols, axis=-1), (N, Ho, Wo)


def _fold_bn(w_oihw, bias, gamma, beta, mean, var, eps=1e-5):
    """Fold inference-mode BN into (scaled bf16 weight matrix, f32 shift)."""
    Cout, Cin, kh, kw = w_oihw.shape
    s = gamma / jnp.sqrt(var + eps)
    w_mat = jnp.transpose(w_oihw, (2, 3, 1, 0)).reshape(kh * kw * Cin, Cout)
    w_mat = (w_mat * s[None, :]).astype(jnp.bfloat16)
    shift = ((bias - mean) * s + beta).astype(jnp.float32)
    return w_mat, shift


def conv_bn_lrelu(x_nhwc, p, stride, pad, out_dtype=jnp.bfloat16):
    w_oihw = p["w"]
    Cout, Cin, kh, kw = w_oihw.shape
    x = x_nhwc.astype(jnp.bfloat16)
    patches, (N, Ho, Wo) = _im2col(x, kh, kw, stride, pad)
    a = patches.reshape(N * Ho * Wo, kh * kw * Cin)
    w_mat, shift = _fold_bn(w_oihw, p["b"], p["gamma"], p["beta"],
                            p["mean"], p["var"])
    out = fused_matmul_bn_lrelu(a, w_mat, shift, out_dtype=out_dtype)
    return out.reshape(N, Ho, Wo, Cout)


def conv_bn_lrelu_maxpool(x_nhwc, p, stride):
    """Conv2d(240,240,3,s=2) + BN + LeakyReLU + MaxPool2d(2) in one kernel."""
    w_oihw = p["w"]
    Cout, Cin, kh, kw = w_oihw.shape
    K = kh * kw * Cin
    x = x_nhwc.astype(jnp.bfloat16)
    patches, (N, Ho, Wo) = _im2col(x, kh, kw, stride, 0)
    Hp, Wp = Ho // 2, Wo // 2
    patches = patches[:, :2 * Hp, :2 * Wp, :]
    Mp = N * Hp * Wp
    # One patch matrix per 2x2 pool-window corner; rows ordered (n, ho, wo)
    # exactly like the pooled output rows.
    corners = [patches[:, dy::2, dx::2, :].reshape(Mp, K)
               for dy in (0, 1) for dx in (0, 1)]
    # Pad each corner block to a multiple of 8 rows so the in-kernel row-block
    # slices stay sublane-aligned, then stack into one LHS (single MXU pass).
    Mp_pad = (Mp + 7) // 8 * 8
    if Mp_pad != Mp:
        corners = [jnp.pad(c, ((0, Mp_pad - Mp), (0, 0))) for c in corners]
    stacked = jnp.concatenate(corners, axis=0)          # (4*Mp_pad, K) bf16

    w_mat, shift = _fold_bn(w_oihw, p["b"], p["gamma"], p["beta"],
                            p["mean"], p["var"])
    out = pl.pallas_call(
        _matmul_bn_lrelu_max4_kernel,
        out_shape=jax.ShapeDtypeStruct((Mp_pad, Cout), jnp.float32),
    )(stacked, w_mat, shift.reshape(1, Cout))
    return out[:Mp].reshape(N, Hp, Wp, Cout)


# ---------------------------------------------------------------------------
# Encoder: parameter init + forward
# ---------------------------------------------------------------------------
_LAYER_CFG = (
    # (Cin, Cout, k, stride, pad)  -- chnum_in filled at init time for layer 0
    (None, 32, 3, 2, 1),
    (32,   16, 3, 2, 1),
    (16,  240, 3, 1, 0),
    (240, 240, 3, 2, 0),   # followed by MaxPool2d(2), fused into its kernel
)


def init_encoder_params(key, chnum_in=3):
    params = []
    for li, (cin, cout, k, _stride, _pad) in enumerate(_LAYER_CFG):
        if li == 0:
            cin = chnum_in
        key, kw_, kb_ = jax.random.split(key, 3)
        fan_in = cin * k * k
        bound = 1.0 / (fan_in ** 0.5)
        w = jax.random.uniform(kw_, (cout, cin, k, k), jnp.float32, -bound, bound)
        b = jax.random.uniform(kb_, (cout,), jnp.float32, -bound, bound)
        params.append(dict(
            w=w, b=b,
            gamma=jnp.ones((cout,), jnp.float32),
            beta=jnp.zeros((cout,), jnp.float32),
            mean=jnp.zeros((cout,), jnp.float32),
            var=jnp.ones((cout,), jnp.float32),
        ))
    return params


def encoder_forward(x_nchw, params):
    # NCHW -> NHWC for the kernels (channel on the lane axis)
    x = jnp.transpose(x_nchw, (0, 2, 3, 1))
    for li in range(3):
        _, _, _, stride, pad = _LAYER_CFG[li]
        x = conv_bn_lrelu(x, params[li], stride, pad, out_dtype=jnp.bfloat16)
    _, _, _, stride4, _ = _LAYER_CFG[3]
    x = conv_bn_lrelu_maxpool(x, params[3], stride4)
    # NHWC -> NCHW to match PyTorch output layout
    return jnp.transpose(x, (0, 3, 1, 2))


if __name__ == "__main__":
    key = jax.random.PRNGKey(0)
    kp, kx = jax.random.split(key)
    params = init_encoder_params(kp, chnum_in=3)

    # input: (N=2, C=3, H=64, W=64) -> output: (2, 240, 3, 3)
    x = jax.random.normal(kx, (2, 3, 64, 64), dtype=jnp.float32)

    fwd = jax.jit(encoder_forward)
    out = jax.block_until_ready(fwd(x, params))

    assert out.shape == (2, 240, 3, 3), out.shape
    assert bool(jnp.all(jnp.isfinite(out)))
    print("KERNEL_OK")
</pallas_src>

<mosaic_0001>
module attributes {stable_mosaic.version = 11 : i64} {
  func.func @_matmul_bn_lrelu_kernel(%arg0: i32, %arg1: memref<1024x27xbf16, #tpu.memory_space<vmem>>, %arg2: memref<27x32xbf16, #tpu.memory_space<vmem>>, %arg3: memref<1x32xf32, #tpu.memory_space<vmem>>, %arg4: memref<1024x32xbf16, #tpu.memory_space<vmem>>) attributes {dimension_semantics = [#tpu.dimension_semantics<parallel>], iteration_bounds = array<i64: 2>, scalar_prefetch = 0 : i64, scratch_operands = 0 : i64, tpu.core_type = #tpu.core_type<tc>, window_params = [{transform_indices = @transform_0, window_bounds = array<i64: 1024, 27>}, {pipeline_mode = #tpu.pipeline_mode<synchronous>, transform_indices = @transform_1, window_bounds = array<i64: 27, 32>}, {pipeline_mode = #tpu.pipeline_mode<synchronous>, transform_indices = @transform_2, window_bounds = array<i64: 1, 32>}, {transform_indices = @transform_3, window_bounds = array<i64: 1024, 32>}]} {
    %c0 = arith.constant 0 : index
    %c0_0 = arith.constant 0 : index
    %0 = vector.load %arg1[%c0, %c0_0] : memref<1024x27xbf16, #tpu.memory_space<vmem>>, vector<1024x27xbf16>
    %c0_1 = arith.constant 0 : index
    %c0_2 = arith.constant 0 : index
    %1 = vector.load %arg2[%c0_1, %c0_2] : memref<27x32xbf16, #tpu.memory_space<vmem>>, vector<27x32xbf16>
    %cst = arith.constant dense<0.000000e+00> : vector<1024x32xf32>
    %2 = tpu.matmul %0, %1, %cst {dimension_numbers = #tpu.dot_dimension_numbers<[1], [0], [0], [1], [0, 0, 1, 1], [], []>} : vector<1024x27xbf16>, vector<27x32xbf16>, vector<1024x32xf32> -> vector<1024x32xf32>
    %c0_3 = arith.constant 0 : index
    %c0_4 = arith.constant 0 : index
    %3 = vector.load %arg3[%c0_3, %c0_4] : memref<1x32xf32, #tpu.memory_space<vmem>>, vector<1x32xf32>
    %4 = vector.broadcast %3 : vector<1x32xf32> to vector<1024x32xf32>
    %5 = arith.addf %2, %4 : vector<1024x32xf32>
    %cst_5 = arith.constant 0.000000e+00 : f32
    %6 = vector.broadcast %cst_5 : f32 to vector<1024x32xf32>
    %7 = arith.cmpf oge, %5, %6 : vector<1024x32xf32>
    %cst_6 = arith.constant 2.000000e-01 : f32
    %8 = vector.broadcast %cst_6 : f32 to vector<1024x32xf32>
    %9 = arith.mulf %8, %5 : vector<1024x32xf32>
    %10 = arith.select %7, %5, %9 : vector<1024x32xi1>, vector<1024x32xf32>
    %11 = arith.truncf %10 : vector<1024x32xf32> to vector<1024x32xbf16>
    %c0_7 = arith.constant 0 : index
    %c0_8 = arith.constant 0 : index
    %12 = vector.load %arg4[%c0_7, %c0_8] : memref<1024x32xbf16, #tpu.memory_space<vmem>>, vector<1024x32xbf16>
    tpu.vector_store %arg4[%c0_7, %c0_8], %11 {strides = array<i32>} : memref<1024x32xbf16, #tpu.memory_space<vmem>>, vector<1024x32xbf16>,
    return
  }
  func.func @transform_0(%arg0: i32) -> (i32, i32) {
    %c0_i32 = arith.constant 0 : i32
    %c0_i32_0 = arith.constant 0 : i32
    return %arg0, %c0_i32 : i32, i32
  }
  func.func @transform_1(%arg0: i32) -> (i32, i32) {
    %c0_i32 = arith.constant 0 : i32
    %c0_i32_0 = arith.constant 0 : i32
    %c0_i32_1 = arith.constant 0 : i32
    return %c0_i32, %c0_i32_0 : i32, i32
  }
  func.func @transform_2(%arg0: i32) -> (i32, i32) {
    %c0_i32 = arith.constant 0 : i32
    %c0_i32_0 = arith.constant 0 : i32
    %c0_i32_1 = arith.constant 0 : i32
    return %c0_i32, %c0_i32_0 : i32, i32
  }
  func.func @transform_3(%arg0: i32) -> (i32, i32) {
    %c0_i32 = arith.constant 0 : i32
    %c0_i32_0 = arith.constant 0 : i32
    return %arg0, %c0_i32 : i32, i32
  }
}

module attributes {stable_mosaic.version = 11 : i64} {
  func.func @_matmul_bn_lrelu_kernel(%arg0: i32, %arg1: memref<256x288xbf16, #tpu.memory_space<vmem>>, %arg2: memref<288x16xbf16, #tpu.memory_space<vmem>>, %arg3: memref<1x16xf32, #tpu.memory_space<vmem>>, %arg4: memref<256x16xbf16, #tpu.memory_space<vmem>>) attributes {dimension_semantics = [#tpu.dimension_semantics<parallel>], iteration_bounds = array<i64: 2>, scalar_prefetch = 0 : i64, scratch_operands = 0 : i64, tpu.core_type = #tpu.core_type<tc>, window_params = [{transform_indices = @transform_0, window_bounds = array<i64: 256, 288>}, {pipeline_mode = #tpu.pipeline_mode<synchronous>, transform_indices = @transform_1, window_bounds = array<i64: 288, 16>}, {pipeline_mode = #tpu.pipeline_mode<synchronous>, transform_indices = @transform_2, window_bounds = array<i64: 1, 16>}, {transform_indices = @transform_3, window_bounds = array<i64: 256, 16>}]} {
    %c0 = arith.constant 0 : index
    %c0_0 = arith.constant 0 : index
    %0 = vector.load %arg1[%c0, %c0_0] : memref<256x288xbf16, #tpu.memory_space<vmem>>, vector<256x288xbf16>
    %c0_1 = arith.constant 0 : index
    %c0_2 = arith.constant 0 : index
    %1 = vector.load %arg2[%c0_1, %c0_2] : memref<288x16xbf16, #tpu.memory_space<vmem>>, vector<288x16xbf16>
    %cst = arith.constant dense<0.000000e+00> : vector<256x16xf32>
    %2 = tpu.matmul %0, %1, %cst {dimension_numbers = #tpu.dot_dimension_numbers<[1], [0], [0], [1], [0, 0, 1, 1], [], []>} : vector<256x288xbf16>, vector<288x16xbf16>, vector<256x16xf32> -> vector<256x16xf32>
    %c0_3 = arith.constant 0 : index
    %c0_4 = arith.constant 0 : index
    %3 = vector.load %arg3[%c0_3, %c0_4] : memref<1x16xf32, #tpu.memory_space<vmem>>, vector<1x16xf32>
    %4 = vector.broadcast %3 : vector<1x16xf32> to vector<256x16xf32>
    %5 = arith.addf %2, %4 : vector<256x16xf32>
    %cst_5 = arith.constant 0.000000e+00 : f32
    %6 = vector.broadcast %cst_5 : f32 to vector<256x16xf32>
    %7 = arith.cmpf oge, %5, %6 : vector<256x16xf32>
    %cst_6 = arith.constant 2.000000e-01 : f32
    %8 = vector.broadcast %cst_6 : f32 to vector<256x16xf32>
    %9 = arith.mulf %8, %5 : vector<256x16xf32>
    %10 = arith.select %7, %5, %9 : vector<256x16xi1>, vector<256x16xf32>
    %11 = arith.truncf %10 : vector<256x16xf32> to vector<256x16xbf16>
    %c0_7 = arith.constant 0 : index
    %c0_8 = arith.constant 0 : index
    %12 = vector.load %arg4[%c0_7, %c0_8] : memref<256x16xbf16, #tpu.memory_space<vmem>>, vector<256x16xbf16>
    tpu.vector_store %arg4[%c0_7, %c0_8], %11 {strides = array<i32>} : memref<256x16xbf16, #tpu.memory_space<vmem>>, vector<256x16xbf16>,
    return
  }
  func.func @transform_0(%arg0: i32) -> (i32, i32) {
    %c0_i32 = arith.constant 0 : i32
    %c0_i32_0 = arith.constant 0 : i32
    return %arg0, %c0_i32 : i32, i32
  }
  func.func @transform_1(%arg0: i32) -> (i32, i32) {
    %c0_i32 = arith.constant 0 : i32
    %c0_i32_0 = arith.constant 0 : i32
    %c0_i32_1 = arith.constant 0 : i32
    return %c0_i32, %c0_i32_0 : i32, i32
  }
  func.func @transform_2(%arg0: i32) -> (i32, i32) {
    %c0_i32 = arith.constant 0 : i32
    %c0_i32_0 = arith.constant 0 : i32
    %c0_i32_1 = arith.constant 0 : i32
    return %c0_i32, %c0_i32_0 : i32, i32
  }
  func.func @transform_3(%arg0: i32) -> (i32, i32) {
    %c0_i32 = arith.constant 0 : i32
    %c0_i32_0 = arith.constant 0 : i32
    return %arg0, %c0_i32 : i32, i32
  }
}

module attributes {stable_mosaic.version = 11 : i64} {
  func.func @_matmul_bn_lrelu_kernel(%arg0: i32, %arg1: memref<392x144xbf16, #tpu.memory_space<vmem>>, %arg2: memref<144x240xbf16, #tpu.memory_space<vmem>>, %arg3: memref<1x240xf32, #tpu.memory_space<vmem>>, %arg4: memref<392x240xbf16, #tpu.memory_space<vmem>>) attributes {dimension_semantics = [#tpu.dimension_semantics<parallel>], iteration_bounds = array<i64: 1>, scalar_prefetch = 0 : i64, scratch_operands = 0 : i64, tpu.core_type = #tpu.core_type<tc>, window_params = [{transform_indices = @transform_0, window_bounds = array<i64: 392, 144>}, {pipeline_mode = #tpu.pipeline_mode<synchronous>, transform_indices = @transform_1, window_bounds = array<i64: 144, 240>}, {pipeline_mode = #tpu.pipeline_mode<synchronous>, transform_indices = @transform_2, window_bounds = array<i64: 1, 240>}, {transform_indices = @transform_3, window_bounds = array<i64: 392, 240>}]} {
    %c0 = arith.constant 0 : index
    %c0_0 = arith.constant 0 : index
    %0 = vector.load %arg1[%c0, %c0_0] : memref<392x144xbf16, #tpu.memory_space<vmem>>, vector<392x144xbf16>
    %c0_1 = arith.constant 0 : index
    %c0_2 = arith.constant 0 : index
    %1 = vector.load %arg2[%c0_1, %c0_2] : memref<144x240xbf16, #tpu.memory_space<vmem>>, vector<144x240xbf16>
    %cst = arith.constant dense<0.000000e+00> : vector<392x240xf32>
    %2 = tpu.matmul %0, %1, %cst {dimension_numbers = #tpu.dot_dimension_numbers<[1], [0], [0], [1], [0, 0, 1, 1], [], []>} : vector<392x144xbf16>, vector<144x240xbf16>, vector<392x240xf32> -> vector<392x240xf32>
    %c0_3 = arith.constant 0 : index
    %c0_4 = arith.constant 0 : index
    %3 = vector.load %arg3[%c0_3, %c0_4] : memref<1x240xf32, #tpu.memory_space<vmem>>, vector<1x240xf32>
    %4 = vector.broadcast %3 : vector<1x240xf32> to vector<392x240xf32>
    %5 = arith.addf %2, %4 : vector<392x240xf32>
    %cst_5 = arith.constant 0.000000e+00 : f32
    %6 = vector.broadcast %cst_5 : f32 to vector<392x240xf32>
    %7 = arith.cmpf oge, %5, %6 : vector<392x240xf32>
    %cst_6 = arith.constant 2.000000e-01 : f32
    %8 = vector.broadcast %cst_6 : f32 to vector<392x240xf32>
    %9 = arith.mulf %8, %5 : vector<392x240xf32>
    %10 = arith.select %7, %5, %9 : vector<392x240xi1>, vector<392x240xf32>
    %11 = arith.truncf %10 : vector<392x240xf32> to vector<392x240xbf16>
    %c0_7 = arith.constant 0 : index
    %c0_8 = arith.constant 0 : index
    %12 = vector.load %arg4[%c0_7, %c0_8] : memref<392x240xbf16, #tpu.memory_space<vmem>>, vector<392x240xbf16>
    tpu.vector_store %arg4[%c0_7, %c0_8], %11 {strides = array<i32>} : memref<392x240xbf16, #tpu.memory_space<vmem>>, vector<392x240xbf16>,
    return
  }
  func.func @transform_0(%arg0: i32) -> (i32, i32) {
    %c0_i32 = arith.constant 0 : i32
    %c0_i32_0 = arith.constant 0 : i32
    return %arg0, %c0_i32 : i32, i32
  }
  func.func @transform_1(%arg0: i32) -> (i32, i32) {
    %c0_i32 = arith.constant 0 : i32
    %c0_i32_0 = arith.constant 0 : i32
    %c0_i32_1 = arith.constant 0 : i32
    return %c0_i32, %c0_i32_0 : i32, i32
  }
  func.func @transform_2(%arg0: i32) -> (i32, i32) {
    %c0_i32 = arith.constant 0 : i32
    %c0_i32_0 = arith.constant 0 : i32
    %c0_i32_1 = arith.constant 0 : i32
    return %c0_i32, %c0_i32_0 : i32, i32
  }
  func.func @transform_3(%arg0: i32) -> (i32, i32) {
    %c0_i32 = arith.constant 0 : i32
    %c0_i32_0 = arith.constant 0 : i32
    return %arg0, %c0_i32 : i32, i32
  }
}

module attributes {stable_mosaic.version = 11 : i64} {
  func.func @_matmul_bn_lrelu_max4_kernel(%arg0: memref<96x2160xbf16, #tpu.memory_space<vmem>>, %arg1: memref<2160x240xbf16, #tpu.memory_space<vmem>>, %arg2: memref<1x240xf32, #tpu.memory_space<vmem>>, %arg3: memref<24x240xf32, #tpu.memory_space<vmem>>) attributes {dimension_semantics = [], scalar_prefetch = 0 : i64, scratch_operands = 0 : i64, tpu.core_type = #tpu.core_type<tc>} {
    %c0 = arith.constant 0 : index
    %c0_0 = arith.constant 0 : index
    %0 = vector.load %arg0[%c0, %c0_0] : memref<96x2160xbf16, #tpu.memory_space<vmem>>, vector<96x2160xbf16>
    %c0_1 = arith.constant 0 : index
    %c0_2 = arith.constant 0 : index
    %1 = vector.load %arg1[%c0_1, %c0_2] : memref<2160x240xbf16, #tpu.memory_space<vmem>>, vector<2160x240xbf16>
    %cst = arith.constant dense<0.000000e+00> : vector<96x240xf32>
    %2 = tpu.matmul %0, %1, %cst {dimension_numbers = #tpu.dot_dimension_numbers<[1], [0], [0], [1], [0, 0, 1, 1], [], []>} : vector<96x2160xbf16>, vector<2160x240xbf16>, vector<96x240xf32> -> vector<96x240xf32>
    %c0_3 = arith.constant 0 : index
    %c0_4 = arith.constant 0 : index
    %3 = vector.load %arg2[%c0_3, %c0_4] : memref<1x240xf32, #tpu.memory_space<vmem>>, vector<1x240xf32>
    %4 = vector.broadcast %3 : vector<1x240xf32> to vector<96x240xf32>
    %5 = arith.addf %2, %4 : vector<96x240xf32>
    %cst_5 = arith.constant 0.000000e+00 : f32
    %6 = vector.broadcast %cst_5 : f32 to vector<96x240xf32>
    %7 = arith.cmpf oge, %5, %6 : vector<96x240xf32>
    %cst_6 = arith.constant 2.000000e-01 : f32
    %8 = vector.broadcast %cst_6 : f32 to vector<96x240xf32>
    %9 = arith.mulf %8, %5 : vector<96x240xf32>
    %10 = arith.select %7, %5, %9 : vector<96x240xi1>, vector<96x240xf32>
    %11 = vector.extract_strided_slice %10 {offsets = [0, 0], sizes = [24, 240], strides = [1, 1]} : vector<96x240xf32> to vector<24x240xf32>
    %12 = vector.extract_strided_slice %10 {offsets = [24, 0], sizes = [24, 240], strides = [1, 1]} : vector<96x240xf32> to vector<24x240xf32>
    %13 = arith.maximumf %11, %12 : vector<24x240xf32>
    %14 = vector.extract_strided_slice %10 {offsets = [48, 0], sizes = [24, 240], strides = [1, 1]} : vector<96x240xf32> to vector<24x240xf32>
    %15 = vector.extract_strided_slice %10 {offsets = [72, 0], sizes = [24, 240], strides = [1, 1]} : vector<96x240xf32> to vector<24x240xf32>
    %16 = arith.maximumf %14, %15 : vector<24x240xf32>
    %17 = arith.maximumf %13, %16 : vector<24x240xf32>
    %c0_7 = arith.constant 0 : index
    %c0_8 = arith.constant 0 : index
    %18 = vector.load %arg3[%c0_7, %c0_8] : memref<24x240xf32, #tpu.memory_space<vmem>>, vector<24x240xf32>
    tpu.vector_store %arg3[%c0_7, %c0_8], %17 {strides = array<i32>} : memref<24x240xf32, #tpu.memory_space<vmem>>, vector<24x240xf32>,
    return
  }
}

</mosaic_0001>

<llo_original>
// kernel: encoder_forward.4
$region0: #{encoder_forward.4}
  #allocation0 [shape = 'u32[]', space=smem, size = 0x4, offset = 0x4, fixed_abs, tag = 'smem constant byte address 0x4 - core index']
  #allocation1 [shape = 'u32[144,128]{1,0:T(1,128)}', space=vmem, size = 0x12000, scoped, tag = 'internal scratch']
  %s0 = inlined_call_operand.vmem [shape: bf16[2048,27], index: 0, kind: input, shape index: {}]
  %s1 = inlined_call_operand.vmem [shape: bf16[27,32], index: 1, kind: input, shape index: {}]
  %s2 = inlined_call_operand.vmem [shape: f32[1,32], index: 2, kind: input, shape index: {}]
  %s3 = inlined_call_operand.vmem [shape: bf16[2048,32], index: 3, kind: output, shape index: {}]
  %s4 = sld [smem:[#allocation0]]
  $region45: #{encoder_forward.4} parent=0
    _
  %s6 = ssub.s32 1, %s4
  %s7 = scalar_select 0, %s6, %s4
  loop: start=0, step=1, limit=4
  $region2: #{encoder_forward.4} parent=0 // loop_pre_header
    _
  $region3: #{encoder_forward.4} parent=0 // loop_header
    %s9 = sphi 0, %s13
    %p10 = scmp.ge.s32.totalorder %s9, 4
    %s19 = sphi 0, %s21
    %s22 = sphi 0, %s19
    %s23 = sphi 0, %s22
    %s39 = sphi 0, %s23
    %s43 = sphi 0, %s43
    %s45 = sphi 0, %s43
    %s46 = sphi 0, %s45
    %s60 = sphi 0, %s46
    %s64 = sphi 0, %s64
    %s66 = sphi 0, %s64
    %s67 = sphi 0, %s66
    %s81 = sphi 0, %s67
    %s87 = sphi 0, %s89
    %s90 = sphi 0, %s87
    %s91 = sphi 0, %s90
    %s107 = sphi 0, %s91
  $region4: #{encoder_forward.4} parent=0 // loop_header_branch
    %12 = sbr.rel (%p10) target = $region8
  $region5: #{encoder_forward.4} parent=0 // loop_body
    %s14 = ssub.s32 %s9, 1
    %s15 = ssub.s32 %s9, 2
    %s16 = sadd.s32 %s9, 1
    %s17 = ssub.s32 %s9, %s16
    %p18 = scmp.eq.s32.totalorder %s17, 0
    %s20 = sadd.s32 %s19, 1
    %s21 = scalar_select %p18, %s19, %s20
    %p24 = pneg %p18
    %p25 = scmp.eq.s32.totalorder %s9, 1
    %p26 = por %p24, %p25
    %p27 = scmp.ne.s32.totalorder %s19, %s22
    %p28 = scmp.eq.s32.totalorder %s9, 0
    %p29 = por %p27, %p28
    %p30 = scmp.ne.s32.totalorder %s19, %s22
    %p31 = scmp.eq.s32.totalorder %s14, 1
    %p32 = por %p30, %p31
    %p33 = scmp.ne.s32.totalorder %s22, %s23
    %p34 = scmp.eq.s32.totalorder %s14, 0
    %p35 = por %p33, %p34
    %p36 = scmp.ne.s32.totalorder %s22, %s23
    %p37 = scmp.eq.s32.totalorder %s15, 1
    %p38 = por %p36, %p37
    %p40 = scmp.ne.s32.totalorder %s23, %s39
    %p41 = scmp.eq.s32.totalorder %s15, 0
    %p42 = por %p40, %p41
    %s44 = sadd.s32 %s43, 1
    %p47 = scmp.eq.s32.totalorder %s9, 1
    %p48 = scmp.ne.s32.totalorder %s43, %s45
    %p49 = scmp.eq.s32.totalorder %s9, 0
    %p50 = por %p48, %p49
    %p51 = scmp.ne.s32.totalorder %s43, %s45
    %p52 = scmp.eq.s32.totalorder %s14, 1
    %p53 = por %p51, %p52
    %p54 = scmp.ne.s32.totalorder %s45, %s46
    %p55 = scmp.eq.s32.totalorder %s14, 0
    %p56 = por %p54, %p55
    %p57 = scmp.ne.s32.totalorder %s45, %s46
    %p58 = scmp.eq.s32.totalorder %s15, 1
    %p59 = por %p57, %p58
    %p61 = scmp.ne.s32.totalorder %s46, %s60
    %p62 = scmp.eq.s32.totalorder %s15, 0
    %p63 = por %p61, %p62
    %s65 = sadd.s32 %s64, 1
    %p68 = scmp.eq.s32.totalorder %s9, 1
    %p69 = scmp.ne.s32.totalorder %s64, %s66
    %p70 = scmp.eq.s32.totalorder %s9, 0
    %p71 = por %p69, %p70
    %p72 = scmp.ne.s32.totalorder %s64, %s66
    %p73 = scmp.eq.s32.totalorder %s14, 1
    %p74 = por %p72, %p73
    %p75 = scmp.ne.s32.totalorder %s66, %s67
    %p76 = scmp.eq.s32.totalorder %s14, 0
    %p77 = por %p75, %p76
    %p78 = scmp.ne.s32.totalorder %s66, %s67
    %p79 = scmp.eq.s32.totalorder %s15, 1
    %p80 = por %p78, %p79
    %p82 = scmp.ne.s32.totalorder %s67, %s81
    %p83 = scmp.eq.s32.totalorder %s15, 0
    %p84 = por %p82, %p83
    %s85 = ssub.s32 %s9, %s16
    %p86 = scmp.eq.s32.totalorder %s85, 0
    %s88 = sadd.s32 %s87, 1
    %s89 = scalar_select %p86, %s87, %s88
    %p92 = pneg %p86
    %p93 = scmp.eq.s32.totalorder %s9, 1
    %p94 = por %p92, %p93
    %p95 = scmp.ne.s32.totalorder %s87, %s90
    %p96 = scmp.eq.s32.totalorder %s9, 0
    %p97 = por %p95, %p96
    %p98 = scmp.ne.s32.totalorder %s87, %s90
    %p99 = scmp.eq.s32.totalorder %s14, 1
    %p100 = por %p98, %p99
    %p101 = scmp.ne.s32.totalorder %s90, %s91
    %p102 = scmp.eq.s32.totalorder %s14, 0
    %p103 = por %p101, %p102
    %p104 = scmp.ne.s32.totalorder %s90, %s91
    %p105 = scmp.eq.s32.totalorder %s15, 1
    %p106 = por %p104, %p105
    %p108 = scmp.ne.s32.totalorder %s91, %s107
    %p109 = scmp.eq.s32.totalorder %s15, 0
    %p110 = por %p108, %p109
    %p111 = scmp.le.s32.totalorder 1, %s9
    %p112 = scmp.lt.s32.totalorder %s9, 3
    %p113 = pnand %p111, %p112
    %p114 = pneg %p113
    // Predicated region
    $region9: #{encoder_forward.4} parent=5 // pred_check
      _
    $region10: #{encoder_forward.4} parent=5 // pred_check_branch
      %116 = sbr.rel (%p113) target = $region12
    $region11: #{encoder_forward.4} parent=5 // pred_region
      %s117 = ssub.s32 %s9, 1
      // Predicated region
      $region13: #{encoder_forward.4} parent=11 // pred_check
        %p118 = pneg %p56
      $region14: #{encoder_forward.4} parent=11 // pred_check_branch
        %120 = sbr.rel (%p118) target = $region16
      $region15: #{encoder_forward.4} parent=11 // pred_region
        _
      $region16: #{encoder_forward.4} parent=11 // pred_fallthru
        _
      // Predicated region
      $region17: #{encoder_forward.4} parent=11 // pred_check
        %p121 = pneg %p77
      $region18: #{encoder_forward.4} parent=11 // pred_check_branch
        %123 = sbr.rel (%p121) target = $region20
      $region19: #{encoder_forward.4} parent=11 // pred_region
        _
      $region20: #{encoder_forward.4} parent=11 // pred_fallthru
        _
    $region12: #{encoder_forward.4} parent=5 // pred_fallthru
      _
    %p124 = scmp.lt.s32.totalorder %s9, 2
    // Predicated region
    $region21: #{encoder_forward.4} parent=5 // pred_check
      %p125 = pneg %p124
    $region22: #{encoder_forward.4} parent=5 // pred_check_branch
      %127 = sbr.rel (%p125) target = $region24
    $region23: #{encoder_forward.4} parent=5 // pred_region
      // Predicated region
      $region25: #{encoder_forward.4} parent=23 // pred_check
        %p128 = pneg %p29
      $region26: #{encoder_forward.4} parent=23 // pred_check_branch
        %130 = sbr.rel (%p128) target = $region28
      $region27: #{encoder_forward.4} parent=23 // pred_region
        %s131 = smul.u32 128, %s9
        %p132 = scmp.lt.s32.totalorder %s131, 255
        %s133 = scalar_select %p132, %s131, 255
        %s134 = smul.addr %s133, 4
        %s135 = scalar_lea.vmem %s0, %s134
        %s136 = smul.u32 128, %s9
      $region28: #{encoder_forward.4} parent=23 // pred_fallthru
        _
    $region24: #{encoder_forward.4} parent=5 // pred_fallthru
      _
    %p137 = scmp.le.s32.totalorder 1, %s9
    %p138 = scmp.lt.s32.totalorder %s9, 3
    %p139 = pnand %p137, %p138
    %p140 = pneg %p139
    // Predicated region
    $region29: #{encoder_forward.4} parent=5 // pred_check
      _
    $region30: #{encoder_forward.4} parent=5 // pred_check_branch
      %142 = sbr.rel (%p139) target = $region32
    $region31: #{encoder_forward.4} parent=5 // pred_region
      %s143 = ssub.s32 %s9, 1
      %s144 = smul.u32 128, %s14
      %p145 = scmp.lt.s32.totalorder %s144, 255
      %s146 = scalar_select %p145, %s144, 255
      %s147 = smul.addr %s146, 4
      %s148 = scalar_lea.vmem %s0, %s147
      %p149 = pneg %p35
      %p150 = pneg %p32
      %p151 = pneg %p56
      %p152 = pneg %p53
      %p153 = pneg %p77
      %p154 = pneg %p74
      %p155 = pneg %p103
      %p156 = pneg %p100
      %s157 = smul.u32 128, %s14
      %p158 = scmp.lt.s32.totalorder %s157, 255
      %s159 = scalar_select %p158, %s157, 255
      %s160 = smul.addr %s159, 4
      %s161 = scalar_lea.vmem %s3, %s160
      %s162 = smul.u32 128, %s14
      %p163 = scmp.lt.s32.totalorder %s162, 255
      %s164 = scalar_select %p163, %s162, 255
      %s165 = smul.addr %s164, 4
      %s166 = scalar_lea.vmem %s0, %s165
      %s167 = smul.u32 128, %s14
      %s168 = smul.u32 128, %s14
      %p169 = scmp.lt.s32.totalorder %s168, 255
      %s170 = scalar_select %p169, %s168, 255
      %s171 = smul.addr %s170, 4
      %s172 = scalar_lea.vmem %s3, %s171
      %s173 = smul.u32 128, %s14
      %v175 = vld [vmem:[%s166] sm:$0xf]
      %v176 = vld [vmem:[%s166 + $0x4] sm:$0xf]
      %v177 = vld [vmem:[%s166 + $0x8] sm:$0xf]
      %v178 = vld [vmem:[%s166 + $0xc] sm:$0xf]
      %v179 = vld [vmem:[%s166 + $0x10] sm:$0xf]
      %v180 = vld [vmem:[%s166 + $0x14] sm:$0xf]
      %v181 = vld [vmem:[%s166 + $0x18] sm:$0xf]
      %v182 = vld [vmem:[%s166 + $0x1c] sm:$0xf]
      %v183 = vld [vmem:[%s166 + $0x20] sm:$0xf]
      %v184 = vld [vmem:[%s166 + $0x24] sm:$0xf]
      %v185 = vld [vmem:[%s166 + $0x28] sm:$0xf]
      %v186 = vld [vmem:[%s166 + $0x2c] sm:$0xf]
      %v187 = vld [vmem:[%s166 + $0x30] sm:$0xf]
      %v188 = vld [vmem:[%s166 + $0x34] sm:$0xf]
      %v189 = vld [vmem:[%s166 + $0x38] sm:$0xf]
      %v190 = vld [vmem:[%s166 + $0x3c] sm:$0xf]
      %v191 = vld [vmem:[%s166 + $0x40] sm:$0xf]
      %v192 = vld [vmem:[%s166 + $0x44] sm:$0xf]
      %v193 = vld [vmem:[%s166 + $0x48] sm:$0xf]
      %v194 = vld [vmem:[%s166 + $0x4c] sm:$0xf]
      %v195 = vld [vmem:[%s166 + $0x50] sm:$0xf]
      %v196 = vld [vmem:[%s166 + $0x54] sm:$0xf]
      %v197 = vld [vmem:[%s166 + $0x58] sm:$0xf]
      %v198 = vld [vmem:[%s166 + $0x5c] sm:$0xf]
      %v199 = vld [vmem:[%s166 + $0x60] sm:$0xf]
      %v200 = vld [vmem:[%s166 + $0x64] sm:$0xf]
      %v201 = vld [vmem:[%s166 + $0x68] sm:$0xf]
      %v202 = vld [vmem:[%s166 + $0x6c] sm:$0xf]
      %v203 = vld [vmem:[%s166 + $0x70] sm:$0xf]
      %v204 = vld [vmem:[%s166 + $0x74] sm:$0xf]
      %v205 = vld [vmem:[%s166 + $0x78] sm:$0xf]
      %v206 = vld [vmem:[%s166 + $0x7c] sm:$0xf]
      %v207 = vld [vmem:[%s166 + $0x80] sm:$0xf]
      %v208 = vld [vmem:[%s166 + $0x84] sm:$0xf]
      %v209 = vld [vmem:[%s166 + $0x88] sm:$0xf]
      %v210 = vld [vmem:[%s166 + $0x8c] sm:$0xf]
      %v211 = vld [vmem:[%s166 + $0x90] sm:$0xf]
      %v212 = vld [vmem:[%s166 + $0x94] sm:$0xf]
      %v213 = vld [vmem:[%s166 + $0x98] sm:$0xf]
      %v214 = vld [vmem:[%s166 + $0x9c] sm:$0xf]
      %v215 = vld [vmem:[%s166 + $0xa0] sm:$0xf]
      %v216 = vld [vmem:[%s166 + $0xa4] sm:$0xf]
      %v217 = vld [vmem:[%s166 + $0xa8] sm:$0xf]
      %v218 = vld [vmem:[%s166 + $0xac] sm:$0xf]
      %v219 = vld [vmem:[%s166 + $0xb0] sm:$0xf]
      %v220 = vld [vmem:[%s166 + $0xb4] sm:$0xf]
      %v221 = vld [vmem:[%s166 + $0xb8] sm:$0xf]
      %v222 = vld [vmem:[%s166 + $0xbc] sm:$0xf]
      %v223 = vld [vmem:[%s166 + $0xc0] sm:$0xf]
      %v224 = vld [vmem:[%s166 + $0xc4] sm:$0xf]
      %v225 = vld [vmem:[%s166 + $0xc8] sm:$0xf]
      %v226 = vld [vmem:[%s166 + $0xcc] sm:$0xf]
      %v227 = vld [vmem:[%s166 + $0xd0] sm:$0xf]
      %v228 = vld [vmem:[%s166 + $0xd4] sm:$0xf]
      %v229 = vld [vmem:[%s166 + $0xd8] sm:$0xf]
      %v230 = vld [vmem:[%s166 + $0xdc] sm:$0xf]
      %v231 = vld [vmem:[%s166 + $0xe0] sm:$0xf]
      %v232 = vld [vmem:[%s166 + $0xe4] sm:$0xf]
      %v233 = vld [vmem:[%s166 + $0xe8] sm:$0xf]
      %v234 = vld [vmem:[%s166 + $0xec] sm:$0xf]
      %v235 = vld [vmem:[%s166 + $0xf0] sm:$0xf]
      %v236 = vld [vmem:[%s166 + $0xf4] sm:$0xf]
      %v237 = vld [vmem:[%s166 + $0xf8] sm:$0xf]
      %v238 = vld [vmem:[%s166 + $0xfc] sm:$0xf]
      %v239 = vld [vmem:[%s166 + $0x100] sm:$0xf]
      %v240 = vld [vmem:[%s166 + $0x104] sm:$0xf]
      %v241 = vld [vmem:[%s166 + $0x108] sm:$0xf]
      %v242 = vld [vmem:[%s166 + $0x10c] sm:$0xf]
      %v243 = vld [vmem:[%s166 + $0x110] sm:$0xf]
      %v244 = vld [vmem:[%s166 + $0x114] sm:$0xf]
      %v245 = vld [vmem:[%s166 + $0x118] sm:$0xf]
      %v246 = vld [vmem:[%s166 + $0x11c] sm:$0xf]
      %v247 = vld [vmem:[%s166 + $0x120] sm:$0xf]
      %v248 = vld [vmem:[%s166 + $0x124] sm:$0xf]
      %v249 = vld [vmem:[%s166 + $0x128] sm:$0xf]
      %v250 = vld [vmem:[%s166 + $0x12c] sm:$0xf]
      %v251 = vld [vmem:[%s166 + $0x130] sm:$0xf]
      %v252 = vld [vmem:[%s166 + $0x134] sm:$0xf]
      %v253 = vld [vmem:[%s166 + $0x138] sm:$0xf]
      %v254 = vld [vmem:[%s166 + $0x13c] sm:$0xf]
      %v255 = vld [vmem:[%s166 + $0x140] sm:$0xf]
      %v256 = vld [vmem:[%s166 + $0x144] sm:$0xf]
      %v257 = vld [vmem:[%s166 + $0x148] sm:$0xf]
      %v258 = vld [vmem:[%s166 + $0x14c] sm:$0xf]
      %v259 = vld [vmem:[%s166 + $0x150] sm:$0xf]
      %v260 = vld [vmem:[%s166 + $0x154] sm:$0xf]
      %v261 = vld [vmem:[%s166 + $0x158] sm:$0xf]
      %v262 = vld [vmem:[%s166 + $0x15c] sm:$0xf]
      %v263 = vld [vmem:[%s166 + $0x160] sm:$0xf]
      %v264 = vld [vmem:[%s166 + $0x164] sm:$0xf]
      %v265 = vld [vmem:[%s166 + $0x168] sm:$0xf]
      %v266 = vld [vmem:[%s166 + $0x16c] sm:$0xf]
      %v267 = vld [vmem:[%s166 + $0x170] sm:$0xf]
      %v268 = vld [vmem:[%s166 + $0x174] sm:$0xf]
      %v269 = vld [vmem:[%s166 + $0x178] sm:$0xf]
      %v270 = vld [vmem:[%s166 + $0x17c] sm:$0xf]
      %v271 = vld [vmem:[%s166 + $0x180] sm:$0xf]
      %v272 = vld [vmem:[%s166 + $0x184] sm:$0xf]
      %v273 = vld [vmem:[%s166 + $0x188] sm:$0xf]
      %v274 = vld [vmem:[%s166 + $0x18c] sm:$0xf]
      %v275 = vld [vmem:[%s166 + $0x190] sm:$0xf]
      %v276 = vld [vmem:[%s166 + $0x194] sm:$0xf]
      %v277 = vld [vmem:[%s166 + $0x198] sm:$0xf]
      %v278 = vld [vmem:[%s166 + $0x19c] sm:$0xf]
      %v279 = vld [vmem:[%s166 + $0x1a0] sm:$0xf]
      %v280 = vld [vmem:[%s166 + $0x1a4] sm:$0xf]
      %v281 = vld [vmem:[%s166 + $0x1a8] sm:$0xf]
      %v282 = vld [vmem:[%s166 + $0x1ac] sm:$0xf]
      %v283 = vld [vmem:[%s166 + $0x1b0] sm:$0xf]
      %v284 = vld [vmem:[%s166 + $0x1b4] sm:$0xf]
      %v285 = vld [vmem:[%s166 + $0x1b8] sm:$0xf]
      %v286 = vld [vmem:[%s166 + $0x1bc] sm:$0xf]
      %v287 = vld [vmem:[%s166 + $0x1c0] sm:$0xf]
      %v288 = vld [vmem:[%s166 + $0x1c4] sm:$0xf]
      %v289 = vld [vmem:[%s166 + $0x1c8] sm:$0xf]
      %v290 = vld [vmem:[%s166 + $0x1cc] sm:$0xf]
      %v291 = vld [vmem:[%s166 + $0x1d0] sm:$0xf]
      %v292 = vld [vmem:[%s166 + $0x1d4] sm:$0xf]
      %v293 = vld [vmem:[%s166 + $0x1d8] sm:$0xf]
      %v294 = vld [vmem:[%s166 + $0x1dc] sm:$0xf]
      %v295 = vld [vmem:[%s166 + $0x1e0] sm:$0xf]
      %v296 = vld [vmem:[%s166 + $0x1e4] sm:$0xf]
      %v297 = vld [vmem:[%s166 + $0x1e8] sm:$0xf]
      %v298 = vld [vmem:[%s166 + $0x1ec] sm:$0xf]
      %v299 = vld [vmem:[%s166 + $0x1f0] sm:$0xf]
      %v300 = vld [vmem:[%s166 + $0x1f4] sm:$0xf]
      %v301 = vld [vmem:[%s166 + $0x1f8] sm:$0xf]
      %v302 = vld [vmem:[%s166 + $0x1fc] sm:$0xf]
      %v303 = vld [vmem:[%s1] sm:$0xf]
      %v304 = vld [vmem:[%s1 + $0x4] sm:$0xf]
      %v305 = vld [vmem:[%s1 + $0x8] sm:$0xf]
      %v306 = vld [vmem:[%s1 + $0xc] sm:$0x3]
      %v307 = vld [vmem:[%s2] sm:$0x1]
      %v309 = vlaneseq
      %v310 = vshrl.u32 %v309, 7
      %v311 = vsub.s32 0, %v310
      %v312 = vrot.slane %v307, %v311
      %v442 = vunpack.c.l.b16 %v175
      %v443 = vunpack.c.l.b16 %v176
      %v444 = vunpack.c.l.b16 %v177
      %v445 = vunpack.c.l.b16 %v178
      %v446 = vunpack.c.l.b16 %v179
      %v447 = vunpack.c.l.b16 %v180
      %v448 = vunpack.c.l.b16 %v181
      %v449 = vunpack.c.l.b16 %v182
      %v450 = vunpack.c.l.b16 %v183
      %v451 = vunpack.c.l.b16 %v184
      %v452 = vunpack.c.l.b16 %v185
      %v453 = vunpack.c.l.b16 %v186
      %v454 = vunpack.c.l.b16 %v187
      %v455 = vunpack.c.l.b16 %v188
      %v456 = vunpack.c.l.b16 %v189
      %v457 = vunpack.c.l.b16 %v190
      %v458 = vunpack.c.l.b16 %v191
      %v459 = vunpack.c.l.b16 %v192
      %v460 = vunpack.c.l.b16 %v193
      %v461 = vunpack.c.l.b16 %v194
      %v462 = vunpack.c.l.b16 %v195
      %v463 = vunpack.c.l.b16 %v196
      %v464 = vunpack.c.l.b16 %v197
      %v465 = vunpack.c.l.b16 %v198
      %v466 = vunpack.c.l.b16 %v199
      %v467 = vunpack.c.l.b16 %v200
      %v468 = vunpack.c.l.b16 %v201
      %v469 = vunpack.c.l.b16 %v202
      %v470 = vunpack.c.l.b16 %v203
      %v471 = vunpack.c.l.b16 %v204
      %v472 = vunpack.c.l.b16 %v205
      %v473 = vunpack.c.l.b16 %v206
      %v474 = vunpack.c.l.b16 %v207
      %v475 = vunpack.c.l.b16 %v208
      %v476 = vunpack.c.l.b16 %v209
      %v477 = vunpack.c.l.b16 %v210
      %v478 = vunpack.c.l.b16 %v211
      %v479 = vunpack.c.l.b16 %v212
      %v480 = vunpack.c.l.b16 %v213
      %v481 = vunpack.c.l.b16 %v214
      %v482 = vunpack.c.l.b16 %v215
      %v483 = vunpack.c.l.b16 %v216
      %v484 = vunpack.c.l.b16 %v217
      %v485 = vunpack.c.l.b16 %v218
      %v486 = vunpack.c.l.b16 %v219
      %v487 = vunpack.c.l.b16 %v220
      %v488 = vunpack.c.l.b16 %v221
      %v489 = vunpack.c.l.b16 %v222
      %v490 = vunpack.c.l.b16 %v223
      %v491 = vunpack.c.l.b16 %v224
      %v492 = vunpack.c.l.b16 %v225
      %v493 = vunpack.c.l.b16 %v226
      %v494 = vunpack.c.l.b16 %v227
      %v495 = vunpack.c.l.b16 %v228
      %v496 = vunpack.c.l.b16 %v229
      %v497 = vunpack.c.l.b16 %v230
      %v498 = vunpack.c.l.b16 %v231
      %v499 = vunpack.c.l.b16 %v232
      %v500 = vunpack.c.l.b16 %v233
      %v501 = vunpack.c.l.b16 %v234
      %v502 = vunpack.c.l.b16 %v235
      %v503 = vunpack.c.l.b16 %v236
      %v504 = vunpack.c.l.b16 %v237
      %v505 = vunpack.c.l.b16 %v238
      %v506 = vunpack.c.l.b16 %v239
      %v507 = vunpack.c.l.b16 %v240
      %v508 = vunpack.c.l.b16 %v241
      %v509 = vunpack.c.l.b16 %v242
      %v510 = vunpack.c.l.b16 %v243
      %v511 = vunpack.c.l.b16 %v244
      %v512 = vunpack.c.l.b16 %v245
      %v513 = vunpack.c.l.b16 %v246
      %v514 = vunpack.c.l.b16 %v247
      %v515 = vunpack.c.l.b16 %v248
      %v516 = vunpack.c.l.b16 %v249
      %v517 = vunpack.c.l.b16 %v250
      %v518 = vunpack.c.l.b16 %v251
      %v519 = vunpack.c.l.b16 %v252
      %v520 = vunpack.c.l.b16 %v253
      %v521 = vunpack.c.l.b16 %v254
      %v522 = vunpack.c.l.b16 %v255
      %v523 = vunpack.c.l.b16 %v256
      %v524 = vunpack.c.l.b16 %v257
      %v525 = vunpack.c.l.b16 %v258
      %v526 = vunpack.c.l.b16 %v259
      %v527 = vunpack.c.l.b16 %v260
      %v528 = vunpack.c.l.b16 %v261
      %v529 = vunpack.c.l.b16 %v262
      %v530 = vunpack.c.l.b16 %v263
      %v531 = vunpack.c.l.b16 %v264
      %v532 = vunpack.c.l.b16 %v265
      %v533 = vunpack.c.l.b16 %v266
      %v534 = vunpack.c.l.b16 %v267
      %v535 = vunpack.c.l.b16 %v268
      %v536 = vunpack.c.l.b16 %v269
      %v537 = vunpack.c.l.b16 %v270
      %v538 = vunpack.c.l.b16 %v271
      %v539 = vunpack.c.l.b16 %v272
      %v540 = vunpack.c.l.b16 %v273
      %v541 = vunpack.c.l.b16 %v274
      %v542 = vunpack.c.l.b16 %v275
      %v543 = vunpack.c.l.b16 %v276
      %v544 = vunpack.c.l.b16 %v277
      %v545 = vunpack.c.l.b16 %v278
      %v546 = vunpack.c.l.b16 %v279
      %v547 = vunpack.c.l.b16 %v280
      %v548 = vunpack.c.l.b16 %v281
      %v549 = vunpack.c.l.b16 %v282
      %v550 = vunpack.c.l.b16 %v283
      %v551 = vunpack.c.l.b16 %v284
      %v552 = vunpack.c.l.b16 %v285
      %v553 = vunpack.c.l.b16 %v286
      %v554 = vunpack.c.l.b16 %v287
      %v555 = vunpack.c.l.b16 %v288
      %v556 = vunpack.c.l.b16 %v289
      %v557 = vunpack.c.l.b16 %v290
      %v558 = vunpack.c.l.b16 %v291
      %v559 = vunpack.c.l.b16 %v292
      %v560 = vunpack.c.l.b16 %v293
      %v561 = vunpack.c.l.b16 %v294
      %v562 = vunpack.c.l.b16 %v295
      %v563 = vunpack.c.l.b16 %v296
      %v564 = vunpack.c.l.b16 %v297
      %v565 = vunpack.c.l.b16 %v298
      %v566 = vunpack.c.l.b16 %v299
      %v567 = vunpack.c.l.b16 %v300
      %v568 = vunpack.c.l.b16 %v301
      %v569 = vunpack.c.l.b16 %v302
      %v570 = vpack.c.b16 %v443, %v442
      %v571 = vpack.c.b16 %v445, %v444
      %v572 = vpack.c.b16 %v447, %v446
      %v573 = vpack.c.b16 %v449, %v448
      %v574 = vpack.c.b16 %v451, %v450
      %v575 = vpack.c.b16 %v453, %v452
      %v576 = vpack.c.b16 %v455, %v454
      %v577 = vpack.c.b16 %v457, %v456
      %v578 = vpack.c.b16 %v459, %v458
      %v579 = vpack.c.b16 %v461, %v460
      %v580 = vpack.c.b16 %v463, %v462
      %v581 = vpack.c.b16 %v465, %v464
      %v582 = vpack.c.b16 %v467, %v466
      %v583 = vpack.c.b16 %v469, %v468
      %v584 = vpack.c.b16 %v471, %v470
      %v585 = vpack.c.b16 %v473, %v472
      %v586 = vpack.c.b16 %v475, %v474
      %v587 = vpack.c.b16 %v477, %v476
      %v588 = vpack.c.b16 %v479, %v478
      %v589 = vpack.c.b16 %v481, %v480
      %v590 = vpack.c.b16 %v483, %v482
      %v591 = vpack.c.b16 %v485, %v484
      %v592 = vpack.c.b16 %v487, %v486
      %v593 = vpack.c.b16 %v489, %v488
      %v594 = vpack.c.b16 %v491, %v490
      %v595 = vpack.c.b16 %v493, %v492
      %v596 = vpack.c.b16 %v495, %v494
      %v597 = vpack.c.b16 %v497, %v496
      %v598 = vpack.c.b16 %v499, %v498
      %v599 = vpack.c.b16 %v501, %v500
      %v600 = vpack.c.b16 %v503, %v502
      %v601 = vpack.c.b16 %v505, %v504
      %v602 = vpack.c.b16 %v507, %v506
      %v603 = vpack.c.b16 %v509, %v508
      %v604 = vpack.c.b16 %v511, %v510
      %v605 = vpack.c.b16 %v513, %v512
      %v606 = vpack.c.b16 %v515, %v514
      %v607 = vpack.c.b16 %v517, %v516
      %v608 = vpack.c.b16 %v519, %v518
      %v609 = vpack.c.b16 %v521, %v520
      %v610 = vpack.c.b16 %v523, %v522
      %v611 = vpack.c.b16 %v525, %v524
      %v612 = vpack.c.b16 %v527, %v526
      %v613 = vpack.c.b16 %v529, %v528
      %v614 = vpack.c.b16 %v531, %v530
      %v615 = vpack.c.b16 %v533, %v532
      %v616 = vpack.c.b16 %v535, %v534
      %v617 = vpack.c.b16 %v537, %v536
      %v618 = vpack.c.b16 %v539, %v538
      %v619 = vpack.c.b16 %v541, %v540
      %v620 = vpack.c.b16 %v543, %v542
      %v621 = vpack.c.b16 %v545, %v544
      %v622 = vpack.c.b16 %v547, %v546
      %v623 = vpack.c.b16 %v549, %v548
      %v624 = vpack.c.b16 %v551, %v550
      %v625 = vpack.c.b16 %v553, %v552
      %v626 = vpack.c.b16 %v555, %v554
      %v627 = vpack.c.b16 %v557, %v556
      %v628 = vpack.c.b16 %v559, %v558
      %v629 = vpack.c.b16 %v561, %v560
      %v630 = vpack.c.b16 %v563, %v562
      %v631 = vpack.c.b16 %v565, %v564
      %v632 = vpack.c.b16 %v567, %v566
      %v633 = vpack.c.b16 %v569, %v568
      %v638 = vunpack.c.l.b16 %v303
      %v639 = vunpack.c.l.b16 %v304
      %v640 = vunpack.c.l.b16 %v305
      %v641 = vunpack.c.l.b16 %v306
      %v642 = vpack.c.b16 %v639, %v638
      %v643 = vpack.c.b16 %v641, %v640
      %vm645 = vcmask 220160
      %v647 = vsel %vm645, %v570, 0
      %v650 = vsel %vm645, %v571, 0
      %v653 = vsel %vm645, %v572, 0
      %v656 = vsel %vm645, %v573, 0
      %v659 = vsel %vm645, %v574, 0
      %v662 = vsel %vm645, %v575, 0
      %v665 = vsel %vm645, %v576, 0
      %v668 = vsel %vm645, %v577, 0
      %v671 = vsel %vm645, %v578, 0
      %v674 = vsel %vm645, %v579, 0
      %v677 = vsel %vm645, %v580, 0
      %v680 = vsel %vm645, %v581, 0
      %v683 = vsel %vm645, %v582, 0
      %v686 = vsel %vm645, %v583, 0
      %v689 = vsel %vm645, %v584, 0
      %v692 = vsel %vm645, %v585, 0
      %v695 = vsel %vm645, %v586, 0
      %v698 = vsel %vm645, %v587, 0
      %v701 = vsel %vm645, %v588, 0
      %v704 = vsel %vm645, %v589, 0
      %v707 = vsel %vm645, %v590, 0
      %v710 = vsel %vm645, %v591, 0
      %v713 = vsel %vm645, %v592, 0
      %v716 = vsel %vm645, %v593, 0
      %v719 = vsel %vm645, %v594, 0
      %v722 = vsel %vm645, %v595, 0
      %v725 = vsel %vm645, %v596, 0
      %v728 = vsel %vm645, %v597, 0
      %v731 = vsel %vm645, %v598, 0
      %v734 = vsel %vm645, %v599, 0
      %v737 = vsel %vm645, %v600, 0
      %v740 = vsel %vm645, %v601, 0
      %v743 = vsel %vm645, %v602, 0
      %v746 = vsel %vm645, %v603, 0
      %v749 = vsel %vm645, %v604, 0
      %v752 = vsel %vm645, %v605, 0
      %v755 = vsel %vm645, %v606, 0
      %v758 = vsel %vm645, %v607, 0
      %v761 = vsel %vm645, %v608, 0
      %v764 = vsel %vm645, %v609, 0
      %v767 = vsel %vm645, %v610, 0
      %v770 = vsel %vm645, %v611, 0
      %v773 = vsel %vm645, %v612, 0
      %v776 = vsel %vm645, %v613, 0
      %v779 = vsel %vm645, %v614, 0
      %v782 = vsel %vm645, %v615, 0
      %v785 = vsel %vm645, %v616, 0
      %v788 = vsel %vm645, %v617, 0
      %v791 = vsel %vm645, %v618, 0
      %v794 = vsel %vm645, %v619, 0
      %v797 = vsel %vm645, %v620, 0
      %v800 = vsel %vm645, %v621, 0
      %v803 = vsel %vm645, %v622, 0
      %v806 = vsel %vm645, %v623, 0
      %v809 = vsel %vm645, %v624, 0
      %v812 = vsel %vm645, %v625, 0
      %v815 = vsel %vm645, %v626, 0
      %v818 = vsel %vm645, %v627, 0
      %v821 = vsel %vm645, %v628, 0
      %v824 = vsel %vm645, %v629, 0
      %v827 = vsel %vm645, %v630, 0
      %v830 = vsel %vm645, %v631, 0
      %v833 = vsel %vm645, %v632, 0
      %v836 = vsel %vm645, %v633, 0
      %vm838 = vcmask 1044480
      %vm839 = vcmask 1045504
      %v840 = vsel %vm838, 4294967295, 65535
      %v841 = vsel %vm839, %v840, 0
      %v843 = vand.u32 %v643, %v841
      %845 = vmatprep.subr.bf16.mxu0 0
      %846 = vmatpush1.bf16.msra.mxu0 %v642
      %847 = vmatprep.subr.bf16.mxu0 0
      %848 = vmatpush1.bf16.msra.mxu0 %v843
      %849 = vmatprep.subr.bf16.mxu0 0
      %850 = vmatpush1.bf16.msra.mxu0 0
      %851 = vmatprep.subr.bf16.mxu0 0
      %852 = vmatpush1.bf16.msra.mxu0 0
      %853 = vmatprep.subr.bf16.mxu0 0
      %854 = vmatpush1.bf16.msra.mxu0 0
      %855 = vmatprep.subr.bf16.mxu0 0
      %856 = vmatpush1.bf16.msra.mxu0 0
      %857 = vmatprep.subr.bf16.mxu0 0
      %858 = vmatpush1.bf16.msra.mxu0 0
      %859 = vmatprep.subr.bf16.mxu0 0
      %860 = vmatpush1.bf16.msra.mxu0 0
      %861 = vmatprep.subr.bf16.mxu0 0
      %862 = vmatpush1.bf16.msra.mxu0 0
      %863 = vmatprep.subr.bf16.mxu0 0
      %864 = vmatpush1.bf16.msra.mxu0 0
      %865 = vmatprep.subr.bf16.mxu0 0
      %866 = vmatpush1.bf16.msra.mxu0 0
      %867 = vmatprep.subr.bf16.mxu0 0
      %868 = vmatpush1.bf16.msra.mxu0 0
      %869 = vmatprep.subr.bf16.mxu0 0
      %870 = vmatpush1.bf16.msra.mxu0 0
      %871 = vmatprep.subr.bf16.mxu0 0
      %872 = vmatpush1.bf16.msra.mxu0 0
      %873 = vmatprep.subr.bf16.mxu0 0
      %874 = vmatpush1.bf16.msra.mxu0 0
      %875 = vmatprep.subr.bf16.mxu0 0
      %876 = vmatpush1.bf16.msra.mxu0 0
      %877 = vmatprep.mubr.bf16.mxu0 0
      %878 = vmatmul.mubr.bf16.gmra.mrb[0].mxu0 %v647
      %v879 = vpop.f32.mrb[0].mxu0
      %v880 = vadd.f32 %v312, %v879
      %v881 = vpop.f32.mrb[0].mxu0
      %v882 = vpop.f32.mrb[0].mxu0
      %v883 = vadd.f32 %v312, %v882
      %v884 = vpop.f32.mrb[0].mxu0
      %885 = vmatprep.mubr.bf16.mxu0 0
      %886 = vmatmul.mubr.bf16.gmra.mrb[0].mxu0 %v650
      %v887 = vpop.f32.mrb[0].mxu0
      %v888 = vadd.f32 %v312, %v887
      %v889 = vpop.f32.mrb[0].mxu0
      %v890 = vpop.f32.mrb[0].mxu0
      %v891 = vadd.f32 %v312, %v890
      %v892 = vpop.f32.mrb[0].mxu0
      %893 = vmatprep.mubr.bf16.mxu0 0
      %894 = vmatmul.mubr.bf16.gmra.mrb[0].mxu0 %v653
      %v895 = vpop.f32.mrb[0].mxu0
      %v896 = vadd.f32 %v312, %v895
      %v897 = vpop.f32.mrb[0].mxu0
      %v898 = vpop.f32.mrb[0].mxu0
      %v899 = vadd.f32 %v312, %v898
      %v900 = vpop.f32.mrb[0].mxu0
      %901 = vmatprep.mubr.bf16.mxu0 0
      %902 = vmatmul.mubr.bf16.gmra.mrb[0].mxu0 %v656
      %v903 = vpop.f32.mrb[0].mxu0
      %v904 = vadd.f32 %v312, %v903
      %v905 = vpop.f32.mrb[0].mxu0
      %v906 = vpop.f32.mrb[0].mxu0
      %v907 = vadd.f32 %v312, %v906
      %v908 = vpop.f32.mrb[0].mxu0
      %909 = vmatprep.mubr.bf16.mxu0 0
      %910 = vmatmul.mubr.bf16.gmra.mrb[0].mxu0 %v659
      %v911 = vpop.f32.mrb[0].mxu0
      %v912 = vadd.f32 %v312, %v911
      %v913 = vpop.f32.mrb[0].mxu0
      %v914 = vpop.f32.mrb[0].mxu0
      %v915 = vadd.f32 %v312, %v914
      %v916 = vpop.f32.mrb[0].mxu0
      %917 = vmatprep.mubr.bf16.mxu0 0
      %918 = vmatmul.mubr.bf16.gmra.mrb[0].mxu0 %v662
      %v919 = vpop.f32.mrb[0].mxu0
      %v920 = vadd.f32 %v312, %v919
      %v921 = vpop.f32.mrb[0].mxu0
      %v922 = vpop.f32.mrb[0].mxu0
      %v923 = vadd.f32 %v312, %v922
      %v924 = vpop.f32.mrb[0].mxu0
      %925 = vmatprep.mubr.bf16.mxu0 0
      %926 = vmatmul.mubr.bf16.gmra.mrb[0].mxu0 %v665
      %v927 = vpop.f32.mrb[0].mxu0
      %v928 = vadd.f32 %v312, %v927
      %v929 = vpop.f32.mrb[0].mxu0
      %v930 = vpop.f32.mrb[0].mxu0
      %v931 = vadd.f32 %v312, %v930
      %v932 = vpop.f32.mrb[0].mxu0
      %933 = vmatprep.mubr.bf16.mxu0 0
      %934 = vmatmul.mubr.bf16.gmra.mrb[0].mxu0 %v668
      %v935 = vpop.f32.mrb[0].mxu0
      %v936 = vadd.f32 %v312, %v935
      %v937 = vpop.f32.mrb[0].mxu0
      %v938 = vpop.f32.mrb[0].mxu0
      %v939 = vadd.f32 %v312, %v938
      %v940 = vpop.f32.mrb[0].mxu0
      %941 = vmatprep.mubr.bf16.mxu0 0
      %942 = vmatmul.mubr.bf16.gmra.mrb[0].mxu0 %v671
      %v943 = vpop.f32.mrb[0].mxu0
      %v944 = vadd.f32 %v312, %v943
      %v945 = vpop.f32.mrb[0].mxu0
      %v946 = vpop.f32.mrb[0].mxu0
      %v947 = vadd.f32 %v312, %v946
      %v948 = vpop.f32.mrb[0].mxu0
      %949 = vmatprep.mubr.bf16.mxu0 0
      %950 = vmatmul.mubr.bf16.gmra.mrb[0].mxu0 %v674
      %v951 = vpop.f32.mrb[0].mxu0
      %v952 = vadd.f32 %v312, %v951
      %v953 = vpop.f32.mrb[0].mxu0
      %v954 = vpop.f32.mrb[0].mxu0
      %v955 = vadd.f32 %v312, %v954
      %v956 = vpop.f32.mrb[0].mxu0
      %957 = vmatprep.mubr.bf16.mxu0 0
      %958 = vmatmul.mubr.bf16.gmra.mrb[0].mxu0 %v677
      %v959 = vpop.f32.mrb[0].mxu0
      %v960 = vadd.f32 %v312, %v959
      %v961 = vpop.f32.mrb[0].mxu0
      %v962 = vpop.f32.mrb[0].mxu0
      %v963 = vadd.f32 %v312, %v962
      %v964 = vpop.f32.mrb[0].mxu0
      %965 = vmatprep.mubr.bf16.mxu0 0
      %966 = vmatmul.mubr.bf16.gmra.mrb[0].mxu0 %v680
      %v967 = vpop.f32.mrb[0].mxu0
      %v968 = vadd.f32 %v312, %v967
      %v969 = vpop.f32.mrb[0].mxu0
      %v970 = vpop.f32.mrb[0].mxu0
      %v971 = vadd.f32 %v312, %v970
      %v972 = vpop.f32.mrb[0].mxu0
      %973 = vmatprep.mubr.bf16.mxu0 0
      %974 = vmatmul.mubr.bf16.gmra.mrb[0].mxu0 %v683
      %v975 = vpop.f32.mrb[0].mxu0
      %v976 = vadd.f32 %v312, %v975
      %v977 = vpop.f32.mrb[0].mxu0
      %v978 = vpop.f32.mrb[0].mxu0
      %v979 = vadd.f32 %v312, %v978
      %v980 = vpop.f32.mrb[0].mxu0
      %981 = vmatprep.mubr.bf16.mxu0 0
      %982 = vmatmul.mubr.bf16.gmra.mrb[0].mxu0 %v686
      %v983 = vpop.f32.mrb[0].mxu0
      %v984 = vadd.f32 %v312, %v983
      %v985 = vpop.f32.mrb[0].mxu0
      %v986 = vpop.f32.mrb[0].mxu0
      %v987 = vadd.f32 %v312, %v986
      %v988 = vpop.f32.mrb[0].mxu0
      %989 = vmatprep.mubr.bf16.mxu0 0
      %990 = vmatmul.mubr.bf16.gmra.mrb[0].mxu0 %v689
      %v991 = vpop.f32.mrb[0].mxu0
      %v992 = vadd.f32 %v312, %v991
      %v993 = vpop.f32.mrb[0].mxu0
      %v994 = vpop.f32.mrb[0].mxu0
      %v995 = vadd.f32 %v312, %v994
      %v996 = vpop.f32.mrb[0].mxu0
      %997 = vmatprep.mubr.bf16.mxu0 0
      %998 = vmatmul.mubr.bf16.gmra.mrb[0].mxu0 %v692
      %v999 = vpop.f32.mrb[0].mxu0
      %v1000 = vadd.f32 %v312, %v999
      %v1001 = vpop.f32.mrb[0].mxu0
      %v1002 = vpop.f32.mrb[0].mxu0
      %v1003 = vadd.f32 %v312, %v1002
      %v1004 = vpop.f32.mrb[0].mxu0
      %1005 = vmatprep.mubr.bf16.mxu0 0
      %1006 = vmatmul.mubr.bf16.gmra.mrb[0].mxu0 %v695
      %v1007 = vpop.f32.mrb[0].mxu0
      %v1008 = vadd.f32 %v312, %v1007
      %v1009 = vpop.f32.mrb[0].mxu0
      %v1010 = vpop.f32.mrb[0].mxu0
      %v1011 = vadd.f32 %v312, %v1010
      %v1012 = vpop.f32.mrb[0].mxu0
      %1013 = vmatprep.mubr.bf16.mxu0 0
      %1014 = vmatmul.mubr.bf16.gmra.mrb[0].mxu0 %v698
      %v1015 = vpop.f32.mrb[0].mxu0
      %v1016 = vadd.f32 %v312, %v1015
      %v1017 = vpop.f32.mrb[0].mxu0
      %v1018 = vpop.f32.mrb[0].mxu0
      %v1019 = vadd.f32 %v312, %v1018
      %v1020 = vpop.f32.mrb[0].mxu0
      %1021 = vmatprep.mubr.bf16.mxu0 0
      %1022 = vmatmul.mubr.bf16.gmra.mrb[0].mxu0 %v701
      %v1023 = vpop.f32.mrb[0].mxu0
      %v1024 = vadd.f32 %v312, %v1023
      %v1025 = vpop.f32.mrb[0].mxu0
      %v1026 = vpop.f32.mrb[0].mxu0
      %v1027 = vadd.f32 %v312, %v1026
      %v1028 = vpop.f32.mrb[0].mxu0
      %1029 = vmatprep.mubr.bf16.mxu0 0
      %1030 = vmatmul.mubr.bf16.gmra.mrb[0].mxu0 %v704
      %v1031 = vpop.f32.mrb[0].mxu0
      %v1032 = vadd.f32 %v312, %v1031
      %v1033 = vpop.f32.mrb[0].mxu0
      %v1034 = vpop.f32.mrb[0].mxu0
      %v1035 = vadd.f32 %v312, %v1034
      %v1036 = vpop.f32.mrb[0].mxu0
      %1037 = vmatprep.mubr.bf16.mxu0 0
      %1038 = vmatmul.mubr.bf16.gmra.mrb[0].mxu0 %v707
      %v1039 = vpop.f32.mrb[0].mxu0
      %v1040 = vadd.f32 %v312, %v1039
      %v1041 = vpop.f32.mrb[0].mxu0
      %v1042 = vpop.f32.mrb[0].mxu0
      %v1043 = vadd.f32 %v312, %v1042
      %v1044 = vpop.f32.mrb[0].mxu0
      %1045 = vmatprep.mubr.bf16.mxu0 0
      %1046 = vmatmul.mubr.bf16.gmra.mrb[0].mxu0 %v710
      %v1047 = vpop.f32.mrb[0].mxu0
      %v1048 = vadd.f32 %v312, %v1047
      %v1049 = vpop.f32.mrb[0].mxu0
      %v1050 = vpop.f32.mrb[0].mxu0
      %v1051 = vadd.f32 %v312, %v1050
      %v1052 = vpop.f32.mrb[0].mxu0
      %1053 = vmatprep.mubr.bf16.mxu0 0
      %1054 = vmatmul.mubr.bf16.gmra.mrb[0].mxu0 %v713
      %v1055 = vpop.f32.mrb[0].mxu0
      %v1056 = vadd.f32 %v312, %v1055
      %v1057 = vpop.f32.mrb[0].mxu0
      %v1058 = vpop.f32.mrb[0].mxu0
      %v1059 = vadd.f32 %v312, %v1058
      %v1060 = vpop.f32.mrb[0].mxu0
      %1061 = vmatprep.mubr.bf16.mxu0 0
      %1062 = vmatmul.mubr.bf16.gmra.mrb[0].mxu0 %v716
      %v1063 = vpop.f32.mrb[0].mxu0
      %v1064 = vadd.f32 %v312, %v1063
      %v1065 = vpop.f32.mrb[0].mxu0
      %v1066 = vpop.f32.mrb[0].mxu0
      %v1067 = vadd.f32 %v312, %v1066
      %v1068 = vpop.f32.mrb[0].mxu0
      %1069 = vmatprep.mubr.bf16.mxu0 0
      %1070 = vmatmul.mubr.bf16.gmra.mrb[0].mxu0 %v719
      %v1071 = vpop.f32.mrb[0].mxu0
      %v1072 = vadd.f32 %v312, %v1071
      %v1073 = vpop.f32.mrb[0].mxu0
      %v1074 = vpop.f32.mrb[0].mxu0
      %v1075 = vadd.f32 %v312, %v1074
      %v1076 = vpop.f32.mrb[0].mxu0
      %1077 = vmatprep.mubr.bf16.mxu0 0
      %1078 = vmatmul.mubr.bf16.gmra.mrb[0].mxu0 %v722
      %v1079 = vpop.f32.mrb[0].mxu0
      %v1080 = vadd.f32 %v312, %v1079
      %v1081 = vpop.f32.mrb[0].mxu0
      %v1082 = vpop.f32.mrb[0].mxu0
      %v1083 = vadd.f32 %v312, %v1082
      %v1084 = vpop.f32.mrb[0].mxu0
      %1085 = vmatprep.mubr.bf16.mxu0 0
      %1086 = vmatmul.mubr.bf16.gmra.mrb[0].mxu0 %v725
      %v1087 = vpop.f32.mrb[0].mxu0
      %v1088 = vadd.f32 %v312, %v1087
      %v1089 = vpop.f32.mrb[0].mxu0
      %v1090 = vpop.f32.mrb[0].mxu0
      %v1091 = vadd.f32 %v312, %v1090
      %v1092 = vpop.f32.mrb[0].mxu0
      %1093 = vmatprep.mubr.bf16.mxu0 0
      %1094 = vmatmul.mubr.bf16.gmra.mrb[0].mxu0 %v728
      %v1095 = vpop.f32.mrb[0].mxu0
      %v1096 = vadd.f32 %v312, %v1095
      %v1097 = vpop.f32.mrb[0].mxu0
      %v1098 = vpop.f32.mrb[0].mxu0
      %v1099 = vadd.f32 %v312, %v1098
      %v1100 = vpop.f32.mrb[0].mxu0
      %1101 = vmatprep.mubr.bf16.mxu0 0
      %1102 = vmatmul.mubr.bf16.gmra.mrb[0].mxu0 %v731
      %v1103 = vpop.f32.mrb[0].mxu0
      %v1104 = vadd.f32 %v312, %v1103
      %v1105 = vpop.f32.mrb[0].mxu0
      %v1106 = vpop.f32.mrb[0].mxu0
      %v1107 = vadd.f32 %v312, %v1106
      %v1108 = vpop.f32.mrb[0].mxu0
      %1109 = vmatprep.mubr.bf16.mxu0 0
      %1110 = vmatmul.mubr.bf16.gmra.mrb[0].mxu0 %v734
      %v1111 = vpop.f32.mrb[0].mxu0
      %v1112 = vadd.f32 %v312, %v1111
      %v1113 = vpop.f32.mrb[0].mxu0
      %v1114 = vpop.f32.mrb[0].mxu0
      %v1115 = vadd.f32 %v312, %v1114
      %v1116 = vpop.f32.mrb[0].mxu0
      %1117 = vmatprep.mubr.bf16.mxu0 0
      %1118 = vmatmul.mubr.bf16.gmra.mrb[0].mxu0 %v737
      %v1119 = vpop.f32.mrb[0].mxu0
      %v1120 = vadd.f32 %v312, %v1119
      %v1121 = vpop.f32.mrb[0].mxu0
      %v1122 = vpop.f32.mrb[0].mxu0
      %v1123 = vadd.f32 %v312, %v1122
      %v1124 = vpop.f32.mrb[0].mxu0
      %1125 = vmatprep.mubr.bf16.mxu0 0
      %1126 = vmatmul.mubr.bf16.gmra.mrb[0].mxu0 %v740
      %v1127 = vpop.f32.mrb[0].mxu0
      %v1128 = vadd.f32 %v312, %v1127
      %v1129 = vpop.f32.mrb[0].mxu0
      %v1130 = vpop.f32.mrb[0].mxu0
      %v1131 = vadd.f32 %v312, %v1130
      %v1132 = vpop.f32.mrb[0].mxu0
      %1133 = vmatprep.mubr.bf16.mxu0 0
      %1134 = vmatmul.mubr.bf16.gmra.mrb[0].mxu0 %v743
      %v1135 = vpop.f32.mrb[0].mxu0
      %v1136 = vadd.f32 %v312, %v1135
      %v1137 = vpop.f32.mrb[0].mxu0
      %v1138 = vpop.f32.mrb[0].mxu0
      %v1139 = vadd.f32 %v312, %v1138
      %v1140 = vpop.f32.mrb[0].mxu0
      %1141 = vmatprep.mubr.bf16.mxu0 0
      %1142 = vmatmul.mubr.bf16.gmra.mrb[0].mxu0 %v746
      %v1143 = vpop.f32.mrb[0].mxu0
      %v1144 = vadd.f32 %v312, %v1143
      %v1145 = vpop.f32.mrb[0].mxu0
      %v1146 = vpop.f32.mrb[0].mxu0
      %v1147 = vadd.f32 %v312, %v1146
      %v1148 = vpop.f32.mrb[0].mxu0
      %1149 = vmatprep.mubr.bf16.mxu0 0
      %1150 = vmatmul.mubr.bf16.gmra.mrb[0].mxu0 %v749
      %v1151 = vpop.f32.mrb[0].mxu0
      %v1152 = vadd.f32 %v312, %v1151
      %v1153 = vpop.f32.mrb[0].mxu0
      %v1154 = vpop.f32.mrb[0].mxu0
      %v1155 = vadd.f32 %v312, %v1154
      %v1156 = vpop.f32.mrb[0].mxu0
      %1157 = vmatprep.mubr.bf16.mxu0 0
      %1158 = vmatmul.mubr.bf16.gmra.mrb[0].mxu0 %v752
      %v1159 = vpop.f32.mrb[0].mxu0
      %v1160 = vadd.f32 %v312, %v1159
      %v1161 = vpop.f32.mrb[0].mxu0
      %v1162 = vpop.f32.mrb[0].mxu0
      %v1163 = vadd.f32 %v312, %v1162
      %v1164 = vpop.f32.mrb[0].mxu0
      %1165 = vmatprep.mubr.bf16.mxu0 0
      %1166 = vmatmul.mubr.bf16.gmra.mrb[0].mxu0 %v755
      %v1167 = vpop.f32.mrb[0].mxu0
      %v1168 = vadd.f32 %v312, %v1167
      %v1169 = vpop.f32.mrb[0].mxu0
      %v1170 = vpop.f32.mrb[0].mxu0
      %v1171 = vadd.f32 %v312, %v1170
      %v1172 = vpop.f32.mrb[0].mxu0
      %1173 = vmatprep.mubr.bf16.mxu0 0
      %1174 = vmatmul.mubr.bf16.gmra.mrb[0].mxu0 %v758
      %v1175 = vpop.f32.mrb[0].mxu0
      %v1176 = vadd.f32 %v312, %v1175
      %v1177 = vpop.f32.mrb[0].mxu0
      %v1178 = vpop.f32.mrb[0].mxu0
      %v1179 = vadd.f32 %v312, %v1178
      %v1180 = vpop.f32.mrb[0].mxu0
      %1181 = vmatprep.mubr.bf16.mxu0 0
      %1182 = vmatmul.mubr.bf16.gmra.mrb[0].mxu0 %v761
      %v1183 = vpop.f32.mrb[0].mxu0
      %v1184 = vadd.f32 %v312, %v1183
      %v1185 = vpop.f32.mrb[0].mxu0
      %v1186 = vpop.f32.mrb[0].mxu0
      %v1187 = vadd.f32 %v312, %v1186
      %v1188 = vpop.f32.mrb[0].mxu0
      %1189 = vmatprep.mubr.bf16.mxu0 0
      %1190 = vmatmul.mubr.bf16.gmra.mrb[0].mxu0 %v764
      %v1191 = vpop.f32.mrb[0].mxu0
      %v1192 = vadd.f32 %v312, %v1191
      %v1193 = vpop.f32.mrb[0].mxu0
      %v1194 = vpop.f32.mrb[0].mxu0
      %v1195 = vadd.f32 %v312, %v1194
      %v1196 = vpop.f32.mrb[0].mxu0
      %1197 = vmatprep.mubr.bf16.mxu0 0
      %1198 = vmatmul.mubr.bf16.gmra.mrb[0].mxu0 %v767
      %v1199 = vpop.f32.mrb[0].mxu0
      %v1200 = vadd.f32 %v312, %v1199
      %v1201 = vpop.f32.mrb[0].mxu0
      %v1202 = vpop.f32.mrb[0].mxu0
      %v1203 = vadd.f32 %v312, %v1202
      %v1204 = vpop.f32.mrb[0].mxu0
      %1205 = vmatprep.mubr.bf16.mxu0 0
      %1206 = vmatmul.mubr.bf16.gmra.mrb[0].mxu0 %v770
      %v1207 = vpop.f32.mrb[0].mxu0
      %v1208 = vadd.f32 %v312, %v1207
      %v1209 = vpop.f32.mrb[0].mxu0
      %v1210 = vpop.f32.mrb[0].mxu0
      %v1211 = vadd.f32 %v312, %v1210
      %v1212 = vpop.f32.mrb[0].mxu0
      %1213 = vmatprep.mubr.bf16.mxu0 0
      %1214 = vmatmul.mubr.bf16.gmra.mrb[0].mxu0 %v773
      %v1215 = vpop.f32.mrb[0].mxu0
      %v1216 = vadd.f32 %v312, %v1215
      %v1217 = vpop.f32.mrb[0].mxu0
      %v1218 = vpop.f32.mrb[0].mxu0
      %v1219 = vadd.f32 %v312, %v1218
      %v1220 = vpop.f32.mrb[0].mxu0
      %1221 = vmatprep.mubr.bf16.mxu0 0
      %1222 = vmatmul.mubr.bf16.gmra.mrb[0].mxu0 %v776
      %v1223 = vpop.f32.mrb[0].mxu0
      %v1224 = vadd.f32 %v312, %v1223
      %v1225 = vpop.f32.mrb[0].mxu0
      %v1226 = vpop.f32.mrb[0].mxu0
      %v1227 = vadd.f32 %v312, %v1226
      %v1228 = vpop.f32.mrb[0].mxu0
      %1229 = vmatprep.mubr.bf16.mxu0 0
      %1230 = vmatmul.mubr.bf16.gmra.mrb[0].mxu0 %v779
      %v1231 = vpop.f32.mrb[0].mxu0
      %v1232 = vadd.f32 %v312, %v1231
      %v1233 = vpop.f32.mrb[0].mxu0
      %v1234 = vpop.f32.mrb[0].mxu0
      %v1235 = vadd.f32 %v312, %v1234
      %v1236 = vpop.f32.mrb[0].mxu0
      %1237 = vmatprep.mubr.bf16.mxu0 0
      %1238 = vmatmul.mubr.bf16.gmra.mrb[0].mxu0 %v782
      %v1239 = vpop.f32.mrb[0].mxu0
      %v1240 = vadd.f32 %v312, %v1239
      %v1241 = vpop.f32.mrb[0].mxu0
      %v1242 = vpop.f32.mrb[0].mxu0
      %v1243 = vadd.f32 %v312, %v1242
      %v1244 = vpop.f32.mrb[0].mxu0
      %1245 = vmatprep.mubr.bf16.mxu0 0
      %1246 = vmatmul.mubr.bf16.gmra.mrb[0].mxu0 %v785
      %v1247 = vpop.f32.mrb[0].mxu0
      %v1248 = vadd.f32 %v312, %v1247
      %v1249 = vpop.f32.mrb[0].mxu0
      %v1250 = vpop.f32.mrb[0].mxu0
      %v1251 = vadd.f32 %v312, %v1250
      %v1252 = vpop.f32.mrb[0].mxu0
      %1253 = vmatprep.mubr.bf16.mxu0 0
      %1254 = vmatmul.mubr.bf16.gmra.mrb[0].mxu0 %v788
      %v1255 = vpop.f32.mrb[0].mxu0
      %v1256 = vadd.f32 %v312, %v1255
      %v1257 = vpop.f32.mrb[0].mxu0
      %v1258 = vpop.f32.mrb[0].mxu0
      %v1259 = vadd.f32 %v312, %v1258
      %v1260 = vpop.f32.mrb[0].mxu0
      %1261 = vmatprep.mubr.bf16.mxu0 0
      %1262 = vmatmul.mubr.bf16.gmra.mrb[0].mxu0 %v791
      %v1263 = vpop.f32.mrb[0].mxu0
      %v1264 = vadd.f32 %v312, %v1263
      %v1265 = vpop.f32.mrb[0].mxu0
      %v1266 = vpop.f32.mrb[0].mxu0
      %v1267 = vadd.f32 %v312, %v1266
      %v1268 = vpop.f32.mrb[0].mxu0
      %1269 = vmatprep.mubr.bf16.mxu0 0
      %1270 = vmatmul.mubr.bf16.gmra.mrb[0].mxu0 %v794
      %v1271 = vpop.f32.mrb[0].mxu0
      %v1272 = vadd.f32 %v312, %v1271
      %v1273 = vpop.f32.mrb[0].mxu0
      %v1274 = vpop.f32.mrb[0].mxu0
      %v1275 = vadd.f32 %v312, %v1274
      %v1276 = vpop.f32.mrb[0].mxu0
      %1277 = vmatprep.mubr.bf16.mxu0 0
      %1278 = vmatmul.mubr.bf16.gmra.mrb[0].mxu0 %v797
      %v1279 = vpop.f32.mrb[0].mxu0
      %v1280 = vadd.f32 %v312, %v1279
      %v1281 = vpop.f32.mrb[0].mxu0
      %v1282 = vpop.f32.mrb[0].mxu0
      %v1283 = vadd.f32 %v312, %v1282
      %v1284 = vpop.f32.mrb[0].mxu0
      %1285 = vmatprep.mubr.bf16.mxu0 0
      %1286 = vmatmul.mubr.bf16.gmra.mrb[0].mxu0 %v800
      %v1287 = vpop.f32.mrb[0].mxu0
      %v1288 = vadd.f32 %v312, %v1287
      %v1289 = vpop.f32.mrb[0].mxu0
      %v1290 = vpop.f32.mrb[0].mxu0
      %v1291 = vadd.f32 %v312, %v1290
      %v1292 = vpop.f32.mrb[0].mxu0
      %1293 = vmatprep.mubr.bf16.mxu0 0
      %1294 = vmatmul.mubr.bf16.gmra.mrb[0].mxu0 %v803
      %v1295 = vpop.f32.mrb[0].mxu0
      %v1296 = vadd.f32 %v312, %v1295
      %v1297 = vpop.f32.mrb[0].mxu0
      %v1298 = vpop.f32.mrb[0].mxu0
      %v1299 = vadd.f32 %v312, %v1298
      %v1300 = vpop.f32.mrb[0].mxu0
      %1301 = vmatprep.mubr.bf16.mxu0 0
      %1302 = vmatmul.mubr.bf16.gmra.mrb[0].mxu0 %v806
      %v1303 = vpop.f32.mrb[0].mxu0
      %v1304 = vadd.f32 %v312, %v1303
      %v1305 = vpop.f32.mrb[0].mxu0
      %v1306 = vpop.f32.mrb[0].mxu0
      %v1307 = vadd.f32 %v312, %v1306
      %v1308 = vpop.f32.mrb[0].mxu0
      %1309 = vmatprep.mubr.bf16.mxu0 0
      %1310 = vmatmul.mubr.bf16.gmra.mrb[0].mxu0 %v809
      %v1311 = vpop.f32.mrb[0].mxu0
      %v1312 = vadd.f32 %v312, %v1311
      %v1313 = vpop.f32.mrb[0].mxu0
      %v1314 = vpop.f32.mrb[0].mxu0
      %v1315 = vadd.f32 %v312, %v1314
      %v1316 = vpop.f32.mrb[0].mxu0
      %1317 = vmatprep.mubr.bf16.mxu0 0
      %1318 = vmatmul.mubr.bf16.gmra.mrb[0].mxu0 %v812
      %v1319 = vpop.f32.mrb[0].mxu0
      %v1320 = vadd.f32 %v312, %v1319
      %v1321 = vpop.f32.mrb[0].mxu0
      %v1322 = vpop.f32.mrb[0].mxu0
      %v1323 = vadd.f32 %v312, %v1322
      %v1324 = vpop.f32.mrb[0].mxu0
      %1325 = vmatprep.mubr.bf16.mxu0 0
      %1326 = vmatmul.mubr.bf16.gmra.mrb[0].mxu0 %v815
      %v1327 = vpop.f32.mrb[0].mxu0
      %v1328 = vadd.f32 %v312, %v1327
      %v1329 = vpop.f32.mrb[0].mxu0
      %v1330 = vpop.f32.mrb[0].mxu0
      %v1331 = vadd.f32 %v312, %v1330
      %v1332 = vpop.f32.mrb[0].mxu0
      %1333 = vmatprep.mubr.bf16.mxu0 0
      %1334 = vmatmul.mubr.bf16.gmra.mrb[0].mxu0 %v818
      %v1335 = vpop.f32.mrb[0].mxu0
      %v1336 = vadd.f32 %v312, %v1335
      %v1337 = vpop.f32.mrb[0].mxu0
      %v1338 = vpop.f32.mrb[0].mxu0
      %v1339 = vadd.f32 %v312, %v1338
      %v1340 = vpop.f32.mrb[0].mxu0
      %1341 = vmatprep.mubr.bf16.mxu0 0
      %1342 = vmatmul.mubr.bf16.gmra.mrb[0].mxu0 %v821
      %v1343 = vpop.f32.mrb[0].mxu0
      %v1344 = vadd.f32 %v312, %v1343
      %v1345 = vpop.f32.mrb[0].mxu0
      %v1346 = vpop.f32.mrb[0].mxu0
      %v1347 = vadd.f32 %v312, %v1346
      %v1348 = vpop.f32.mrb[0].mxu0
      %1349 = vmatprep.mubr.bf16.mxu0 0
      %1350 = vmatmul.mubr.bf16.gmra.mrb[0].mxu0 %v824
      %v1351 = vpop.f32.mrb[0].mxu0
      %v1352 = vadd.f32 %v312, %v1351
      %v1353 = vpop.f32.mrb[0].mxu0
      %v1354 = vpop.f32.mrb[0].mxu0
      %v1355 = vadd.f32 %v312, %v1354
      %v1356 = vpop.f32.mrb[0].mxu0
      %1357 = vmatprep.mubr.bf16.mxu0 0
      %1358 = vmatmul.mubr.bf16.gmra.mrb[0].mxu0 %v827
      %v1359 = vpop.f32.mrb[0].mxu0
      %v1360 = vadd.f32 %v312, %v1359
      %v1361 = vpop.f32.mrb[0].mxu0
      %v1362 = vpop.f32.mrb[0].mxu0
      %v1363 = vadd.f32 %v312, %v1362
      %v1364 = vpop.f32.mrb[0].mxu0
      %1365 = vmatprep.mubr.bf16.mxu0 0
      %1366 = vmatmul.mubr.bf16.gmra.mrb[0].mxu0 %v830
      %v1367 = vpop.f32.mrb[0].mxu0
      %v1368 = vadd.f32 %v312, %v1367
      %v1369 = vpop.f32.mrb[0].mxu0
      %v1370 = vpop.f32.mrb[0].mxu0
      %v1371 = vadd.f32 %v312, %v1370
      %v1372 = vpop.f32.mrb[0].mxu0
      %1373 = vmatprep.mubr.bf16.mxu0 0
      %1374 = vmatmul.mubr.bf16.gmra.mrb[0].mxu0 %v833
      %v1375 = vpop.f32.mrb[0].mxu0
      %v1376 = vadd.f32 %v312, %v1375
      %v1377 = vpop.f32.mrb[0].mxu0
      %v1378 = vpop.f32.mrb[0].mxu0
      %v1379 = vadd.f32 %v312, %v1378
      %v1380 = vpop.f32.mrb[0].mxu0
      %1381 = vmatprep.mubr.bf16.mxu0 0
      %1382 = vmatmul.mubr.bf16.gmra.mrb[0].mxu0 %v836
      %v1383 = vpop.f32.mrb[0].mxu0
      %v1384 = vadd.f32 %v312, %v1383
      %v1385 = vpop.f32.mrb[0].mxu0
      %v1386 = vpop.f32.mrb[0].mxu0
      %v1387 = vadd.f32 %v312, %v1386
      %v1388 = vpop.f32.mrb[0].mxu0
      %1389 = vdwg.mxu0
      %vm1390 = vcmp.ge.f32.partialorder %v880, 0.0
      %vm1391 = vcmp.ge.f32.partialorder %v883, 0.0
      %vm1392 = vcmp.ge.f32.partialorder %v888, 0.0
      %vm1393 = vcmp.ge.f32.partialorder %v891, 0.0
      %vm1394 = vcmp.ge.f32.partialorder %v896, 0.0
      %vm1395 = vcmp.ge.f32.partialorder %v899, 0.0
      %vm1396 = vcmp.ge.f32.partialorder %v904, 0.0
      %vm1397 = vcmp.ge.f32.partialorder %v907, 0.0
      %vm1398 = vcmp.ge.f32.partialorder %v912, 0.0
      %vm1399 = vcmp.ge.f32.partialorder %v915, 0.0
      %vm1400 = vcmp.ge.f32.partialorder %v920, 0.0
      %vm1401 = vcmp.ge.f32.partialorder %v923, 0.0
      %vm1402 = vcmp.ge.f32.partialorder %v928, 0.0
      %vm1403 = vcmp.ge.f32.partialorder %v931, 0.0
      %vm1404 = vcmp.ge.f32.partialorder %v936, 0.0
      %vm1405 = vcmp.ge.f32.partialorder %v939, 0.0
      %vm1406 = vcmp.ge.f32.partialorder %v944, 0.0
      %vm1407 = vcmp.ge.f32.partialorder %v947, 0.0
      %vm1408 = vcmp.ge.f32.partialorder %v952, 0.0
      %vm1409 = vcmp.ge.f32.partialorder %v955, 0.0
      %vm1410 = vcmp.ge.f32.partialorder %v960, 0.0
      %vm1411 = vcmp.ge.f32.partialorder %v963, 0.0
      %vm1412 = vcmp.ge.f32.partialorder %v968, 0.0
      %vm1413 = vcmp.ge.f32.partialorder %v971, 0.0
      %vm1414 = vcmp.ge.f32.partialorder %v976, 0.0
      %vm1415 = vcmp.ge.f32.partialorder %v979, 0.0
      %vm1416 = vcmp.ge.f32.partialorder %v984, 0.0
      %vm1417 = vcmp.ge.f32.partialorder %v987, 0.0
      %vm1418 = vcmp.ge.f32.partialorder %v992, 0.0
      %vm1419 = vcmp.ge.f32.partialorder %v995, 0.0
      %vm1420 = vcmp.ge.f32.partialorder %v1000, 0.0
      %vm1421 = vcmp.ge.f32.partialorder %v1003, 0.0
      %vm1422 = vcmp.ge.f32.partialorder %v1008, 0.0
      %vm1423 = vcmp.ge.f32.partialorder %v1011, 0.0
      %vm1424 = vcmp.ge.f32.partialorder %v1016, 0.0
      %vm1425 = vcmp.ge.f32.partialorder %v1019, 0.0
      %vm1426 = vcmp.ge.f32.partialorder %v1024, 0.0
      %vm1427 = vcmp.ge.f32.partialorder %v1027, 0.0
      %vm1428 = vcmp.ge.f32.partialorder %v1032, 0.0
      %vm1429 = vcmp.ge.f32.partialorder %v1035, 0.0
      %vm1430 = vcmp.ge.f32.partialorder %v1040, 0.0
      %vm1431 = vcmp.ge.f32.partialorder %v1043, 0.0
      %vm1432 = vcmp.ge.f32.partialorder %v1048, 0.0
      %vm1433 = vcmp.ge.f32.partialorder %v1051, 0.0
      %vm1434 = vcmp.ge.f32.partialorder %v1056, 0.0
      %vm1435 = vcmp.ge.f32.partialorder %v1059, 0.0
      %vm1436 = vcmp.ge.f32.partialorder %v1064, 0.0
      %vm1437 = vcmp.ge.f32.partialorder %v1067, 0.0
      %vm1438 = vcmp.ge.f32.partialorder %v1072, 0.0
      %vm1439 = vcmp.ge.f32.partialorder %v1075, 0.0
      %vm1440 = vcmp.ge.f32.partialorder %v1080, 0.0
      %vm1441 = vcmp.ge.f32.partialorder %v1083, 0.0
      %vm1442 = vcmp.ge.f32.partialorder %v1088, 0.0
      %vm1443 = vcmp.ge.f32.partialorder %v1091, 0.0
      %vm1444 = vcmp.ge.f32.partialorder %v1096, 0.0
      %vm1445 = vcmp.ge.f32.partialorder %v1099, 0.0
      %vm1446 = vcmp.ge.f32.partialorder %v1104, 0.0
      %vm1447 = vcmp.ge.f32.partialorder %v1107, 0.0
      %vm1448 = vcmp.ge.f32.partialorder %v1112, 0.0
      %vm1449 = vcmp.ge.f32.partialorder %v1115, 0.0
      %vm1450 = vcmp.ge.f32.partialorder %v1120, 0.0
      %vm1451 = vcmp.ge.f32.partialorder %v1123, 0.0
      %vm1452 = vcmp.ge.f32.partialorder %v1128, 0.0
      %vm1453 = vcmp.ge.f32.partialorder %v1131, 0.0
      %vm1454 = vcmp.ge.f32.partialorder %v1136, 0.0
      %vm1455 = vcmp.ge.f32.partialorder %v1139, 0.0
      %vm1456 = vcmp.ge.f32.partialorder %v1144, 0.0
      %vm1457 = vcmp.ge.f32.partialorder %v1147, 0.0
      %vm1458 = vcmp.ge.f32.partialorder %v1152, 0.0
      %vm1459 = vcmp.ge.f32.partialorder %v1155, 0.0
      %vm1460 = vcmp.ge.f32.partialorder %v1160, 0.0
      %vm1461 = vcmp.ge.f32.partialorder %v1163, 0.0
      %vm1462 = vcmp.ge.f32.partialorder %v1168, 0.0
      %vm1463 = vcmp.ge.f32.partialorder %v1171, 0.0
      %vm1464 = vcmp.ge.f32.partialorder %v1176, 0.0
      %vm1465 = vcmp.ge.f32.partialorder %v1179, 0.0
      %vm1466 = vcmp.ge.f32.partialorder %v1184, 0.0
      %vm1467 = vcmp.ge.f32.partialorder %v1187, 0.0
      %vm1468 = vcmp.ge.f32.partialorder %v1192, 0.0
      %vm1469 = vcmp.ge.f32.partialorder %v1195, 0.0
      %vm1470 = vcmp.ge.f32.partialorder %v1200, 0.0
      %vm1471 = vcmp.ge.f32.partialorder %v1203, 0.0
      %vm1472 = vcmp.ge.f32.partialorder %v1208, 0.0
      %vm1473 = vcmp.ge.f32.partialorder %v1211, 0.0
      %vm1474 = vcmp.ge.f32.partialorder %v1216, 0.0
      %vm1475 = vcmp.ge.f32.partialorder %v1219, 0.0
      %vm1476 = vcmp.ge.f32.partialorder %v1224, 0.0
      %vm1477 = vcmp.ge.f32.partialorder %v1227, 0.0
      %vm1478 = vcmp.ge.f32.partialorder %v1232, 0.0
      %vm1479 = vcmp.ge.f32.partialorder %v1235, 0.0
      %vm1480 = vcmp.ge.f32.partialorder %v1240, 0.0
      %vm1481 = vcmp.ge.f32.partialorder %v1243, 0.0
      %vm1482 = vcmp.ge.f32.partialorder %v1248, 0.0
      %vm1483 = vcmp.ge.f32.partialorder %v1251, 0.0
      %vm1484 = vcmp.ge.f32.partialorder %v1256, 0.0
      %vm1485 = vcmp.ge.f32.partialorder %v1259, 0.0
      %vm1486 = vcmp.ge.f32.partialorder %v1264, 0.0
      %vm1487 = vcmp.ge.f32.partialorder %v1267, 0.0
      %vm1488 = vcmp.ge.f32.partialorder %v1272, 0.0
      %vm1489 = vcmp.ge.f32.partialorder %v1275, 0.0
      %vm1490 = vcmp.ge.f32.partialorder %v1280, 0.0
      %vm1491 = vcmp.ge.f32.partialorder %v1283, 0.0
      %vm1492 = vcmp.ge.f32.partialorder %v1288, 0.0
      %vm1493 = vcmp.ge.f32.partialorder %v1291, 0.0
      %vm1494 = vcmp.ge.f32.partialorder %v1296, 0.0
      %vm1495 = vcmp.ge.f32.partialorder %v1299, 0.0
      %vm1496 = vcmp.ge.f32.partialorder %v1304, 0.0
      %vm1497 = vcmp.ge.f32.partialorder %v1307, 0.0
      %vm1498 = vcmp.ge.f32.partialorder %v1312, 0.0
      %vm1499 = vcmp.ge.f32.partialorder %v1315, 0.0
      %vm1500 = vcmp.ge.f32.partialorder %v1320, 0.0
      %vm1501 = vcmp.ge.f32.partialorder %v1323, 0.0
      %vm1502 = vcmp.ge.f32.partialorder %v1328, 0.0
      %vm1503 = vcmp.ge.f32.partialorder %v1331, 0.0
      %vm1504 = vcmp.ge.f32.partialorder %v1336, 0.0
      %vm1505 = vcmp.ge.f32.partialorder %v1339, 0.0
      %vm1506 = vcmp.ge.f32.partialorder %v1344, 0.0
      %vm1507 = vcmp.ge.f32.partialorder %v1347, 0.0
      %vm1508 = vcmp.ge.f32.partialorder %v1352, 0.0
      %vm1509 = vcmp.ge.f32.partialorder %v1355, 0.0
      %vm1510 = vcmp.ge.f32.partialorder %v1360, 0.0
      %vm1511 = vcmp.ge.f32.partialorder %v1363, 0.0
      %vm1512 = vcmp.ge.f32.partialorder %v1368, 0.0
      %vm1513 = vcmp.ge.f32.partialorder %v1371, 0.0
      %vm1514 = vcmp.ge.f32.partialorder %v1376, 0.0
      %vm1515 = vcmp.ge.f32.partialorder %v1379, 0.0
      %vm1516 = vcmp.ge.f32.partialorder %v1384, 0.0
      %vm1517 = vcmp.ge.f32.partialorder %v1387, 0.0
      %v1518 = vmul.f32 %v880, 0.2
      %v1519 = vmul.f32 %v883, 0.2
      %v1520 = vmul.f32 %v888, 0.2
      %v1521 = vmul.f32 %v891, 0.2
      %v1522 = vmul.f32 %v896, 0.2
      %v1523 = vmul.f32 %v899, 0.2
      %v1524 = vmul.f32 %v904, 0.2
      %v1525 = vmul.f32 %v907, 0.2
      %v1526 = vmul.f32 %v912, 0.2
      %v1527 = vmul.f32 %v915, 0.2
      %v1528 = vmul.f32 %v920, 0.2
      %v1529 = vmul.f32 %v923, 0.2
      %v1530 = vmul.f32 %v928, 0.2
      %v1531 = vmul.f32 %v931, 0.2
      %v1532 = vmul.f32 %v936, 0.2
      %v1533 = vmul.f32 %v939, 0.2
      %v1534 = vmul.f32 %v944, 0.2
      %v1535 = vmul.f32 %v947, 0.2
      %v1536 = vmul.f32 %v952, 0.2
      %v1537 = vmul.f32 %v955, 0.2
      %v1538 = vmul.f32 %v960, 0.2
      %v1539 = vmul.f32 %v963, 0.2
      %v1540 = vmul.f32 %v968, 0.2
      %v1541 = vmul.f32 %v971, 0.2
      %v1542 = vmul.f32 %v976, 0.2
      %v1543 = vmul.f32 %v979, 0.2
      %v1544 = vmul.f32 %v984, 0.2
      %v1545 = vmul.f32 %v987, 0.2
      %v1546 = vmul.f32 %v992, 0.2
      %v1547 = vmul.f32 %v995, 0.2
      %v1548 = vmul.f32 %v1000, 0.2
      %v1549 = vmul.f32 %v1003, 0.2
      %v1550 = vmul.f32 %v1008, 0.2
      %v1551 = vmul.f32 %v1011, 0.2
      %v1552 = vmul.f32 %v1016, 0.2
      %v1553 = vmul.f32 %v1019, 0.2
      %v1554 = vmul.f32 %v1024, 0.2
      %v1555 = vmul.f32 %v1027, 0.2
      %v1556 = vmul.f32 %v1032, 0.2
      %v1557 = vmul.f32 %v1035, 0.2
      %v1558 = vmul.f32 %v1040, 0.2
      %v1559 = vmul.f32 %v1043, 0.2
      %v1560 = vmul.f32 %v1048, 0.2
      %v1561 = vmul.f32 %v1051, 0.2
      %v1562 = vmul.f32 %v1056, 0.2
      %v1563 = vmul.f32 %v1059, 0.2
      %v1564 = vmul.f32 %v1064, 0.2
      %v1565 = vmul.f32 %v1067, 0.2
      %v1566 = vmul.f32 %v1072, 0.2
      %v1567 = vmul.f32 %v1075, 0.2
      %v1568 = vmul.f32 %v1080, 0.2
      %v1569 = vmul.f32 %v1083, 0.2
      %v1570 = vmul.f32 %v1088, 0.2
      %v1571 = vmul.f32 %v1091, 0.2
      %v1572 = vmul.f32 %v1096, 0.2
      %v1573 = vmul.f32 %v1099, 0.2
      %v1574 = vmul.f32 %v1104, 0.2
      %v1575 = vmul.f32 %v1107, 0.2
      %v1576 = vmul.f32 %v1112, 0.2
      %v1577 = vmul.f32 %v1115, 0.2
      %v1578 = vmul.f32 %v1120, 0.2
      %v1579 = vmul.f32 %v1123, 0.2
      %v1580 = vmul.f32 %v1128, 0.2
      %v1581 = vmul.f32 %v1131, 0.2
      %v1582 = vmul.f32 %v1136, 0.2
      %v1583 = vmul.f32 %v1139, 0.2
      %v1584 = vmul.f32 %v1144, 0.2
      %v1585 = vmul.f32 %v1147, 0.2
      %v1586 = vmul.f32 %v1152, 0.2
      %v1587 = vmul.f32 %v1155, 0.2
      %v1588 = vmul.f32 %v1160, 0.2
      %v1589 = vmul.f32 %v1163, 0.2
      %v1590 = vmul.f32 %v1168, 0.2
      %v1591 = vmul.f32 %v1171, 0.2
      %v1592 = vmul.f32 %v1176, 0.2
      %v1593 = vmul.f32 %v1179, 0.2
      %v1594 = vmul.f32 %v1184, 0.2
      %v1595 = vmul.f32 %v1187, 0.2
      %v1596 = vmul.f32 %v1192, 0.2
      %v1597 = vmul.f32 %v1195, 0.2
      %v1598 = vmul.f32 %v1200, 0.2
      %v1599 = vmul.f32 %v1203, 0.2
      %v1600 = vmul.f32 %v1208, 0.2
      %v1601 = vmul.f32 %v1211, 0.2
      %v1602 = vmul.f32 %v1216, 0.2
      %v1603 = vmul.f32 %v1219, 0.2
      %v1604 = vmul.f32 %v1224, 0.2
      %v1605 = vmul.f32 %v1227, 0.2
      %v1606 = vmul.f32 %v1232, 0.2
      %v1607 = vmul.f32 %v1235, 0.2
      %v1608 = vmul.f32 %v1240, 0.2
      %v1609 = vmul.f32 %v1243, 0.2
      %v1610 = vmul.f32 %v1248, 0.2
      %v1611 = vmul.f32 %v1251, 0.2
      %v1612 = vmul.f32 %v1256, 0.2
      %v1613 = vmul.f32 %v1259, 0.2
      %v1614 = vmul.f32 %v1264, 0.2
      %v1615 = vmul.f32 %v1267, 0.2
      %v1616 = vmul.f32 %v1272, 0.2
      %v1617 = vmul.f32 %v1275, 0.2
      %v1618 = vmul.f32 %v1280, 0.2
      %v1619 = vmul.f32 %v1283, 0.2
      %v1620 = vmul.f32 %v1288, 0.2
      %v1621 = vmul.f32 %v1291, 0.2
      %v1622 = vmul.f32 %v1296, 0.2
      %v1623 = vmul.f32 %v1299, 0.2
      %v1624 = vmul.f32 %v1304, 0.2
      %v1625 = vmul.f32 %v1307, 0.2
      %v1626 = vmul.f32 %v1312, 0.2
      %v1627 = vmul.f32 %v1315, 0.2
      %v1628 = vmul.f32 %v1320, 0.2
      %v1629 = vmul.f32 %v1323, 0.2
      %v1630 = vmul.f32 %v1328, 0.2
      %v1631 = vmul.f32 %v1331, 0.2
      %v1632 = vmul.f32 %v1336, 0.2
      %v1633 = vmul.f32 %v1339, 0.2
      %v1634 = vmul.f32 %v1344, 0.2
      %v1635 = vmul.f32 %v1347, 0.2
      %v1636 = vmul.f32 %v1352, 0.2
      %v1637 = vmul.f32 %v1355, 0.2
      %v1638 = vmul.f32 %v1360, 0.2
      %v1639 = vmul.f32 %v1363, 0.2
      %v1640 = vmul.f32 %v1368, 0.2
      %v1641 = vmul.f32 %v1371, 0.2
      %v1642 = vmul.f32 %v1376, 0.2
      %v1643 = vmul.f32 %v1379, 0.2
      %v1644 = vmul.f32 %v1384, 0.2
      %v1645 = vmul.f32 %v1387, 0.2
      %v1646 = vsel %vm1390, %v880, %v1518
      %v1647 = vsel %vm1391, %v883, %v1519
      %v1648 = vsel %vm1392, %v888, %v1520
      %v1649 = vsel %vm1393, %v891, %v1521
      %v1650 = vsel %vm1394, %v896, %v1522
      %v1651 = vsel %vm1395, %v899, %v1523
      %v1652 = vsel %vm1396, %v904, %v1524
      %v1653 = vsel %vm1397, %v907, %v1525
      %v1654 = vsel %vm1398, %v912, %v1526
      %v1655 = vsel %vm1399, %v915, %v1527
      %v1656 = vsel %vm1400, %v920, %v1528
      %v1657 = vsel %vm1401, %v923, %v1529
      %v1658 = vsel %vm1402, %v928, %v1530
      %v1659 = vsel %vm1403, %v931, %v1531
      %v1660 = vsel %vm1404, %v936, %v1532
      %v1661 = vsel %vm1405, %v939, %v1533
      %v1662 = vsel %vm1406, %v944, %v1534
      %v1663 = vsel %vm1407, %v947, %v1535
      %v1664 = vsel %vm1408, %v952, %v1536
      %v1665 = vsel %vm1409, %v955, %v1537
      %v1666 = vsel %vm1410, %v960, %v1538
      %v1667 = vsel %vm1411, %v963, %v1539
      %v1668 = vsel %vm1412, %v968, %v1540
      %v1669 = vsel %vm1413, %v971, %v1541
      %v1670 = vsel %vm1414, %v976, %v1542
      %v1671 = vsel %vm1415, %v979, %v1543
      %v1672 = vsel %vm1416, %v984, %v1544
      %v1673 = vsel %vm1417, %v987, %v1545
      %v1674 = vsel %vm1418, %v992, %v1546
      %v1675 = vsel %vm1419, %v995, %v1547
      %v1676 = vsel %vm1420, %v1000, %v1548
      %v1677 = vsel %vm1421, %v1003, %v1549
      %v1678 = vsel %vm1422, %v1008, %v1550
      %v1679 = vsel %vm1423, %v1011, %v1551
      %v1680 = vsel %vm1424, %v1016, %v1552
      %v1681 = vsel %vm1425, %v1019, %v1553
      %v1682 = vsel %vm1426, %v1024, %v1554
      %v1683 = vsel %vm1427, %v1027, %v1555
      %v1684 = vsel %vm1428, %v1032, %v1556
      %v1685 = vsel %vm1429, %v1035, %v1557
      %v1686 = vsel %vm1430, %v1040, %v1558
      %v1687 = vsel %vm1431, %v1043, %v1559
      %v1688 = vsel %vm1432, %v1048, %v1560
      %v1689 = vsel %vm1433, %v1051, %v1561
      %v1690 = vsel %vm1434, %v1056, %v1562
      %v1691 = vsel %vm1435, %v1059, %v1563
      %v1692 = vsel %vm1436, %v1064, %v1564
      %v1693 = vsel %vm1437, %v1067, %v1565
      %v1694 = vsel %vm1438, %v1072, %v1566
      %v1695 = vsel %vm1439, %v1075, %v1567
      %v1696 = vsel %vm1440, %v1080, %v1568
      %v1697 = vsel %vm1441, %v1083, %v1569
      %v1698 = vsel %vm1442, %v1088, %v1570
      %v1699 = vsel %vm1443, %v1091, %v1571
      %v1700 = vsel %vm1444, %v1096, %v1572
      %v1701 = vsel %vm1445, %v1099, %v1573
      %v1702 = vsel %vm1446, %v1104, %v1574
      %v1703 = vsel %vm1447, %v1107, %v1575
      %v1704 = vsel %vm1448, %v1112, %v1576
      %v1705 = vsel %vm1449, %v1115, %v1577
      %v1706 = vsel %vm1450, %v1120, %v1578
      %v1707 = vsel %vm1451, %v1123, %v1579
      %v1708 = vsel %vm1452, %v1128, %v1580
      %v1709 = vsel %vm1453, %v1131, %v1581
      %v1710 = vsel %vm1454, %v1136, %v1582
      %v1711 = vsel %vm1455, %v1139, %v1583
      %v1712 = vsel %vm1456, %v1144, %v1584
      %v1713 = vsel %vm1457, %v1147, %v1585
      %v1714 = vsel %vm1458, %v1152, %v1586
      %v1715 = vsel %vm1459, %v1155, %v1587
      %v1716 = vsel %vm1460, %v1160, %v1588
      %v1717 = vsel %vm1461, %v1163, %v1589
      %v1718 = vsel %vm1462, %v1168, %v1590
      %v1719 = vsel %vm1463, %v1171, %v1591
      %v1720 = vsel %vm1464, %v1176, %v1592
      %v1721 = vsel %vm1465, %v1179, %v1593
      %v1722 = vsel %vm1466, %v1184, %v1594
      %v1723 = vsel %vm1467, %v1187, %v1595
      %v1724 = vsel %vm1468, %v1192, %v1596
      %v1725 = vsel %vm1469, %v1195, %v1597
      %v1726 = vsel %vm1470, %v1200, %v1598
      %v1727 = vsel %vm1471, %v1203, %v1599
      %v1728 = vsel %vm1472, %v1208, %v1600
      %v1729 = vsel %vm1473, %v1211, %v1601
      %v1730 = vsel %vm1474, %v1216, %v1602
      %v1731 = vsel %vm1475, %v1219, %v1603
      %v1732 = vsel %vm1476, %v1224, %v1604
      %v1733 = vsel %vm1477, %v1227, %v1605
      %v1734 = vsel %vm1478, %v1232, %v1606
      %v1735 = vsel %vm1479, %v1235, %v1607
      %v1736 = vsel %vm1480, %v1240, %v1608
      %v1737 = vsel %vm1481, %v1243, %v1609
      %v1738 = vsel %vm1482, %v1248, %v1610
      %v1739 = vsel %vm1483, %v1251, %v1611
      %v1740 = vsel %vm1484, %v1256, %v1612
      %v1741 = vsel %vm1485, %v1259, %v1613
      %v1742 = vsel %vm1486, %v1264, %v1614
      %v1743 = vsel %vm1487, %v1267, %v1615
      %v1744 = vsel %vm1488, %v1272, %v1616
      %v1745 = vsel %vm1489, %v1275, %v1617
      %v1746 = vsel %vm1490, %v1280, %v1618
      %v1747 = vsel %vm1491, %v1283, %v1619
      %v1748 = vsel %vm1492, %v1288, %v1620
      %v1749 = vsel %vm1493, %v1291, %v1621
      %v1750 = vsel %vm1494, %v1296, %v1622
      %v1751 = vsel %vm1495, %v1299, %v1623
      %v1752 = vsel %vm1496, %v1304, %v1624
      %v1753 = vsel %vm1497, %v1307, %v1625
      %v1754 = vsel %vm1498, %v1312, %v1626
      %v1755 = vsel %vm1499, %v1315, %v1627
      %v1756 = vsel %vm1500, %v1320, %v1628
      %v1757 = vsel %vm1501, %v1323, %v1629
      %v1758 = vsel %vm1502, %v1328, %v1630
      %v1759 = vsel %vm1503, %v1331, %v1631
      %v1760 = vsel %vm1504, %v1336, %v1632
      %v1761 = vsel %vm1505, %v1339, %v1633
      %v1762 = vsel %vm1506, %v1344, %v1634
      %v1763 = vsel %vm1507, %v1347, %v1635
      %v1764 = vsel %vm1508, %v1352, %v1636
      %v1765 = vsel %vm1509, %v1355, %v1637
      %v1766 = vsel %vm1510, %v1360, %v1638
      %v1767 = vsel %vm1511, %v1363, %v1639
      %v1768 = vsel %vm1512, %v1368, %v1640
      %v1769 = vsel %vm1513, %v1371, %v1641
      %v1770 = vsel %vm1514, %v1376, %v1642
      %v1771 = vsel %vm1515, %v1379, %v1643
      %v1772 = vsel %vm1516, %v1384, %v1644
      %v1773 = vsel %vm1517, %v1387, %v1645
      %v1774 = vpack.c.bf16 %v1647, %v1646
      %v1775 = vpack.c.bf16 %v1649, %v1648
      %v1776 = vpack.c.bf16 %v1651, %v1650
      %v1777 = vpack.c.bf16 %v1653, %v1652
      %v1778 = vpack.c.bf16 %v1655, %v1654
      %v1779 = vpack.c.bf16 %v1657, %v1656
      %v1780 = vpack.c.bf16 %v1659, %v1658
      %v1781 = vpack.c.bf16 %v1661, %v1660
      %v1782 = vpack.c.bf16 %v1663, %v1662
      %v1783 = vpack.c.bf16 %v1665, %v1664
      %v1784 = vpack.c.bf16 %v1667, %v1666
      %v1785 = vpack.c.bf16 %v1669, %v1668
      %v1786 = vpack.c.bf16 %v1671, %v1670
      %v1787 = vpack.c.bf16 %v1673, %v1672
      %v1788 = vpack.c.bf16 %v1675, %v1674
      %v1789 = vpack.c.bf16 %v1677, %v1676
      %v1790 = vpack.c.bf16 %v1679, %v1678
      %v1791 = vpack.c.bf16 %v1681, %v1680
      %v1792 = vpack.c.bf16 %v1683, %v1682
      %v1793 = vpack.c.bf16 %v1685, %v1684
      %v1794 = vpack.c.bf16 %v1687, %v1686
      %v1795 = vpack.c.bf16 %v1689, %v1688
      %v1796 = vpack.c.bf16 %v1691, %v1690
      %v1797 = vpack.c.bf16 %v1693, %v1692
      %v1798 = vpack.c.bf16 %v1695, %v1694
      %v1799 = vpack.c.bf16 %v1697, %v1696
      %v1800 = vpack.c.bf16 %v1699, %v1698
      %v1801 = vpack.c.bf16 %v1701, %v1700
      %v1802 = vpack.c.bf16 %v1703, %v1702
      %v1803 = vpack.c.bf16 %v1705, %v1704
      %v1804 = vpack.c.bf16 %v1707, %v1706
      %v1805 = vpack.c.bf16 %v1709, %v1708
      %v1806 = vpack.c.bf16 %v1711, %v1710
      %v1807 = vpack.c.bf16 %v1713, %v1712
      %v1808 = vpack.c.bf16 %v1715, %v1714
      %v1809 = vpack.c.bf16 %v1717, %v1716
      %v1810 = vpack.c.bf16 %v1719, %v1718
      %v1811 = vpack.c.bf16 %v1721, %v1720
      %v1812 = vpack.c.bf16 %v1723, %v1722
      %v1813 = vpack.c.bf16 %v1725, %v1724
      %v1814 = vpack.c.bf16 %v1727, %v1726
      %v1815 = vpack.c.bf16 %v1729, %v1728
      %v1816 = vpack.c.bf16 %v1731, %v1730
      %v1817 = vpack.c.bf16 %v1733, %v1732
      %v1818 = vpack.c.bf16 %v1735, %v1734
      %v1819 = vpack.c.bf16 %v1737, %v1736
      %v1820 = vpack.c.bf16 %v1739, %v1738
      %v1821 = vpack.c.bf16 %v1741, %v1740
      %v1822 = vpack.c.bf16 %v1743, %v1742
      %v1823 = vpack.c.bf16 %v1745, %v1744
      %v1824 = vpack.c.bf16 %v1747, %v1746
      %v1825 = vpack.c.bf16 %v1749, %v1748
      %v1826 = vpack.c.bf16 %v1751, %v1750
      %v1827 = vpack.c.bf16 %v1753, %v1752
      %v1828 = vpack.c.bf16 %v1755, %v1754
      %v1829 = vpack.c.bf16 %v1757, %v1756
      %v1830 = vpack.c.bf16 %v1759, %v1758
      %v1831 = vpack.c.bf16 %v1761, %v1760
      %v1832 = vpack.c.bf16 %v1763, %v1762
      %v1833 = vpack.c.bf16 %v1765, %v1764
      %v1834 = vpack.c.bf16 %v1767, %v1766
      %v1835 = vpack.c.bf16 %v1769, %v1768
      %v1836 = vpack.c.bf16 %v1771, %v1770
      %v1837 = vpack.c.bf16 %v1773, %v1772
      %v1902 = vunpack.c.l.b16 %v1774
      %v1903 = vunpack.c.h.b16 %v1774
      %v1904 = vunpack.c.l.b16 %v1775
      %v1905 = vunpack.c.h.b16 %v1775
      %v1906 = vunpack.c.l.b16 %v1776
      %v1907 = vunpack.c.h.b16 %v1776
      %v1908 = vunpack.c.l.b16 %v1777
      %v1909 = vunpack.c.h.b16 %v1777
      %v1910 = vunpack.c.l.b16 %v1778
      %v1911 = vunpack.c.h.b16 %v1778
      %v1912 = vunpack.c.l.b16 %v1779
      %v1913 = vunpack.c.h.b16 %v1779
      %v1914 = vunpack.c.l.b16 %v1780
      %v1915 = vunpack.c.h.b16 %v1780
      %v1916 = vunpack.c.l.b16 %v1781
      %v1917 = vunpack.c.h.b16 %v1781
      %v1918 = vunpack.c.l.b16 %v1782
      %v1919 = vunpack.c.h.b16 %v1782
      %v1920 = vunpack.c.l.b16 %v1783
      %v1921 = vunpack.c.h.b16 %v1783
      %v1922 = vunpack.c.l.b16 %v1784
      %v1923 = vunpack.c.h.b16 %v1784
      %v1924 = vunpack.c.l.b16 %v1785
      %v1925 = vunpack.c.h.b16 %v1785
      %v1926 = vunpack.c.l.b16 %v1786
      %v1927 = vunpack.c.h.b16 %v1786
      %v1928 = vunpack.c.l.b16 %v1787
      %v1929 = vunpack.c.h.b16 %v1787
      %v1930 = vunpack.c.l.b16 %v1788
      %v1931 = vunpack.c.h.b16 %v1788
      %v1932 = vunpack.c.l.b16 %v1789
      %v1933 = vunpack.c.h.b16 %v1789
      %v1934 = vunpack.c.l.b16 %v1790
      %v1935 = vunpack.c.h.b16 %v1790
      %v1936 = vunpack.c.l.b16 %v1791
      %v1937 = vunpack.c.h.b16 %v1791
      %v1938 = vunpack.c.l.b16 %v1792
      %v1939 = vunpack.c.h.b16 %v1792
      %v1940 = vunpack.c.l.b16 %v1793
      %v1941 = vunpack.c.h.b16 %v1793
      %v1942 = vunpack.c.l.b16 %v1794
      %v1943 = vunpack.c.h.b16 %v1794
      %v1944 = vunpack.c.l.b16 %v1795
      %v1945 = vunpack.c.h.b16 %v1795
      %v1946 = vunpack.c.l.b16 %v1796
      %v1947 = vunpack.c.h.b16 %v1796
      %v1948 = vunpack.c.l.b16 %v1797
      %v1949 = vunpack.c.h.b16 %v1797
      %v1950 = vunpack.c.l.b16 %v1798
      %v1951 = vunpack.c.h.b16 %v1798
      %v1952 = vunpack.c.l.b16 %v1799
      %v1953 = vunpack.c.h.b16 %v1799
      %v1954 = vunpack.c.l.b16 %v1800
      %v1955 = vunpack.c.h.b16 %v1800
      %v1956 = vunpack.c.l.b16 %v1801
      %v1957 = vunpack.c.h.b16 %v1801
      %v1958 = vunpack.c.l.b16 %v1802
      %v1959 = vunpack.c.h.b16 %v1802
      %v1960 = vunpack.c.l.b16 %v1803
      %v1961 = vunpack.c.h.b16 %v1803
      %v1962 = vunpack.c.l.b16 %v1804
      %v1963 = vunpack.c.h.b16 %v1804
      %v1964 = vunpack.c.l.b16 %v1805
      %v1965 = vunpack.c.h.b16 %v1805
      %v1966 = vunpack.c.l.b16 %v1806
      %v1967 = vunpack.c.h.b16 %v1806
      %v1968 = vunpack.c.l.b16 %v1807
      %v1969 = vunpack.c.h.b16 %v1807
      %v1970 = vunpack.c.l.b16 %v1808
      %v1971 = vunpack.c.h.b16 %v1808
      %v1972 = vunpack.c.l.b16 %v1809
      %v1973 = vunpack.c.h.b16 %v1809
      %v1974 = vunpack.c.l.b16 %v1810
      %v1975 = vunpack.c.h.b16 %v1810
      %v1976 = vunpack.c.l.b16 %v1811
      %v1977 = vunpack.c.h.b16 %v1811
      %v1978 = vunpack.c.l.b16 %v1812
      %v1979 = vunpack.c.h.b16 %v1812
      %v1980 = vunpack.c.l.b16 %v1813
      %v1981 = vunpack.c.h.b16 %v1813
      %v1982 = vunpack.c.l.b16 %v1814
      %v1983 = vunpack.c.h.b16 %v1814
      %v1984 = vunpack.c.l.b16 %v1815
      %v1985 = vunpack.c.h.b16 %v1815
      %v1986 = vunpack.c.l.b16 %v1816
      %v1987 = vunpack.c.h.b16 %v1816
      %v1988 = vunpack.c.l.b16 %v1817
      %v1989 = vunpack.c.h.b16 %v1817
      %v1990 = vunpack.c.l.b16 %v1818
      %v1991 = vunpack.c.h.b16 %v1818
      %v1992 = vunpack.c.l.b16 %v1819
      %v1993 = vunpack.c.h.b16 %v1819
      %v1994 = vunpack.c.l.b16 %v1820
      %v1995 = vunpack.c.h.b16 %v1820
      %v1996 = vunpack.c.l.b16 %v1821
      %v1997 = vunpack.c.h.b16 %v1821
      %v1998 = vunpack.c.l.b16 %v1822
      %v1999 = vunpack.c.h.b16 %v1822
      %v2000 = vunpack.c.l.b16 %v1823
      %v2001 = vunpack.c.h.b16 %v1823
      %v2002 = vunpack.c.l.b16 %v1824
      %v2003 = vunpack.c.h.b16 %v1824
      %v2004 = vunpack.c.l.b16 %v1825
      %v2005 = vunpack.c.h.b16 %v1825
      %v2006 = vunpack.c.l.b16 %v1826
      %v2007 = vunpack.c.h.b16 %v1826
      %v2008 = vunpack.c.l.b16 %v1827
      %v2009 = vunpack.c.h.b16 %v1827
      %v2010 = vunpack.c.l.b16 %v1828
      %v2011 = vunpack.c.h.b16 %v1828
      %v2012 = vunpack.c.l.b16 %v1829
      %v2013 = vunpack.c.h.b16 %v1829
      %v2014 = vunpack.c.l.b16 %v1830
      %v2015 = vunpack.c.h.b16 %v1830
      %v2016 = vunpack.c.l.b16 %v1831
      %v2017 = vunpack.c.h.b16 %v1831
      %v2018 = vunpack.c.l.b16 %v1832
      %v2019 = vunpack.c.h.b16 %v1832
      %v2020 = vunpack.c.l.b16 %v1833
      %v2021 = vunpack.c.h.b16 %v1833
      %v2022 = vunpack.c.l.b16 %v1834
      %v2023 = vunpack.c.h.b16 %v1834
      %v2024 = vunpack.c.l.b16 %v1835
      %v2025 = vunpack.c.h.b16 %v1835
      %v2026 = vunpack.c.l.b16 %v1836
      %v2027 = vunpack.c.h.b16 %v1836
      %v2028 = vunpack.c.l.b16 %v1837
      %v2029 = vunpack.c.h.b16 %v1837
      %v2030 = vpack.c.b16 %v1902, %v1902
      %v2031 = vpack.c.b16 %v1903, %v1903
      %v2032 = vpack.c.b16 %v1904, %v1904
      %v2033 = vpack.c.b16 %v1905, %v1905
      %v2034 = vpack.c.b16 %v1906, %v1906
      %v2035 = vpack.c.b16 %v1907, %v1907
      %v2036 = vpack.c.b16 %v1908, %v1908
      %v2037 = vpack.c.b16 %v1909, %v1909
      %v2038 = vpack.c.b16 %v1910, %v1910
      %v2039 = vpack.c.b16 %v1911, %v1911
      %v2040 = vpack.c.b16 %v1912, %v1912
      %v2041 = vpack.c.b16 %v1913, %v1913
      %v2042 = vpack.c.b16 %v1914, %v1914
      %v2043 = vpack.c.b16 %v1915, %v1915
      %v2044 = vpack.c.b16 %v1916, %v1916
      %v2045 = vpack.c.b16 %v1917, %v1917
      %v2046 = vpack.c.b16 %v1918, %v1918
      %v2047 = vpack.c.b16 %v1919, %v1919
      %v2048 = vpack.c.b16 %v1920, %v1920
      %v2049 = vpack.c.b16 %v1921, %v1921
      %v2050 = vpack.c.b16 %v1922, %v1922
      %v2051 = vpack.c.b16 %v1923, %v1923
      %v2052 = vpack.c.b16 %v1924, %v1924
      %v2053 = vpack.c.b16 %v1925, %v1925
      %v2054 = vpack.c.b16 %v1926, %v1926
      %v2055 = vpack.c.b16 %v1927, %v1927
      %v2056 = vpack.c.b16 %v1928, %v1928
      %v2057 = vpack.c.b16 %v1929, %v1929
      %v2058 = vpack.c.b16 %v1930, %v1930
      %v2059 = vpack.c.b16 %v1931, %v1931
      %v2060 = vpack.c.b16 %v1932, %v1932
      %v2061 = vpack.c.b16 %v1933, %v1933
      %v2062 = vpack.c.b16 %v1934, %v1934
      %v2063 = vpack.c.b16 %v1935, %v1935
      %v2064 = vpack.c.b16 %v1936, %v1936
      %v2065 = vpack.c.b16 %v1937, %v1937
      %v2066 = vpack.c.b16 %v1938, %v1938
      %v2067 = vpack.c.b16 %v1939, %v1939
      %v2068 = vpack.c.b16 %v1940, %v1940
      %v2069 = vpack.c.b16 %v1941, %v1941
      %v2070 = vpack.c.b16 %v1942, %v1942
      %v2071 = vpack.c.b16 %v1943, %v1943
      %v2072 = vpack.c.b16 %v1944, %v1944
      %v2073 = vpack.c.b16 %v1945, %v1945
      %v2074 = vpack.c.b16 %v1946, %v1946
      %v2075 = vpack.c.b16 %v1947, %v1947
      %v2076 = vpack.c.b16 %v1948, %v1948
      %v2077 = vpack.c.b16 %v1949, %v1949
      %v2078 = vpack.c.b16 %v1950, %v1950
      %v2079 = vpack.c.b16 %v1951, %v1951
      %v2080 = vpack.c.b16 %v1952, %v1952
      %v2081 = vpack.c.b16 %v1953, %v1953
      %v2082 = vpack.c.b16 %v1954, %v1954
      %v2083 = vpack.c.b16 %v1955, %v1955
      %v2084 = vpack.c.b16 %v1956, %v1956
      %v2085 = vpack.c.b16 %v1957, %v1957
      %v2086 = vpack.c.b16 %v1958, %v1958
      %v2087 = vpack.c.b16 %v1959, %v1959
      %v2088 = vpack.c.b16 %v1960, %v1960
      %v2089 = vpack.c.b16 %v1961, %v1961
      %v2090 = vpack.c.b16 %v1962, %v1962
      %v2091 = vpack.c.b16 %v1963, %v1963
      %v2092 = vpack.c.b16 %v1964, %v1964
      %v2093 = vpack.c.b16 %v1965, %v1965
      %v2094 = vpack.c.b16 %v1966, %v1966
      %v2095 = vpack.c.b16 %v1967, %v1967
      %v2096 = vpack.c.b16 %v1968, %v1968
      %v2097 = vpack.c.b16 %v1969, %v1969
      %v2098 = vpack.c.b16 %v1970, %v1970
      %v2099 = vpack.c.b16 %v1971, %v1971
      %v2100 = vpack.c.b16 %v1972, %v1972
      %v2101 = vpack.c.b16 %v1973, %v1973
      %v2102 = vpack.c.b16 %v1974, %v1974
      %v2103 = vpack.c.b16 %v1975, %v1975
      %v2104 = vpack.c.b16 %v1976, %v1976
      %v2105 = vpack.c.b16 %v1977, %v1977
      %v2106 = vpack.c.b16 %v1978, %v1978
      %v2107 = vpack.c.b16 %v1979, %v1979
      %v2108 = vpack.c.b16 %v1980, %v1980
      %v2109 = vpack.c.b16 %v1981, %v1981
      %v2110 = vpack.c.b16 %v1982, %v1982
      %v2111 = vpack.c.b16 %v1983, %v1983
      %v2112 = vpack.c.b16 %v1984, %v1984
      %v2113 = vpack.c.b16 %v1985, %v1985
      %v2114 = vpack.c.b16 %v1986, %v1986
      %v2115 = vpack.c.b16 %v1987, %v1987
      %v2116 = vpack.c.b16 %v1988, %v1988
      %v2117 = vpack.c.b16 %v1989, %v1989
      %v2118 = vpack.c.b16 %v1990, %v1990
      %v2119 = vpack.c.b16 %v1991, %v1991
      %v2120 = vpack.c.b16 %v1992, %v1992
      %v2121 = vpack.c.b16 %v1993, %v1993
      %v2122 = vpack.c.b16 %v1994, %v1994
      %v2123 = vpack.c.b16 %v1995, %v1995
      %v2124 = vpack.c.b16 %v1996, %v1996
      %v2125 = vpack.c.b16 %v1997, %v1997
      %v2126 = vpack.c.b16 %v1998, %v1998
      %v2127 = vpack.c.b16 %v1999, %v1999
      %v2128 = vpack.c.b16 %v2000, %v2000
      %v2129 = vpack.c.b16 %v2001, %v2001
      %v2130 = vpack.c.b16 %v2002, %v2002
      %v2131 = vpack.c.b16 %v2003, %v2003
      %v2132 = vpack.c.b16 %v2004, %v2004
      %v2133 = vpack.c.b16 %v2005, %v2005
      %v2134 = vpack.c.b16 %v2006, %v2006
      %v2135 = vpack.c.b16 %v2007, %v2007
      %v2136 = vpack.c.b16 %v2008, %v2008
      %v2137 = vpack.c.b16 %v2009, %v2009
      %v2138 = vpack.c.b16 %v2010, %v2010
      %v2139 = vpack.c.b16 %v2011, %v2011
      %v2140 = vpack.c.b16 %v2012, %v2012
      %v2141 = vpack.c.b16 %v2013, %v2013
      %v2142 = vpack.c.b16 %v2014, %v2014
      %v2143 = vpack.c.b16 %v2015, %v2015
      %v2144 = vpack.c.b16 %v2016, %v2016
      %v2145 = vpack.c.b16 %v2017, %v2017
      %v2146 = vpack.c.b16 %v2018, %v2018
      %v2147 = vpack.c.b16 %v2019, %v2019
      %v2148 = vpack.c.b16 %v2020, %v2020
      %v2149 = vpack.c.b16 %v2021, %v2021
      %v2150 = vpack.c.b16 %v2022, %v2022
      %v2151 = vpack.c.b16 %v2023, %v2023
      %v2152 = vpack.c.b16 %v2024, %v2024
      %v2153 = vpack.c.b16 %v2025, %v2025
      %v2154 = vpack.c.b16 %v2026, %v2026
      %v2155 = vpack.c.b16 %v2027, %v2027
      %v2156 = vpack.c.b16 %v2028, %v2028
      %v2157 = vpack.c.b16 %v2029, %v2029
      %vm2286 = vcmask 257024
      %2287 = vst.msk [vmem:[%s172] sm:$0xf] %vm2286, %v2030
      %2288 = vst.msk [vmem:[%s172 + $0x4] sm:$0xf] %vm2286, %v2031
      %2289 = vst.msk [vmem:[%s172 + $0x8] sm:$0xf] %vm2286, %v2032
      %2290 = vst.msk [vmem:[%s172 + $0xc] sm:$0xf] %vm2286, %v2033
      %2291 = vst.msk [vmem:[%s172 + $0x10] sm:$0xf] %vm2286, %v2034
      %2292 = vst.msk [vmem:[%s172 + $0x14] sm:$0xf] %vm2286, %v2035
      %2293 = vst.msk [vmem:[%s172 + $0x18] sm:$0xf] %vm2286, %v2036
      %2294 = vst.msk [vmem:[%s172 + $0x1c] sm:$0xf] %vm2286, %v2037
      %2295 = vst.msk [vmem:[%s172 + $0x20] sm:$0xf] %vm2286, %v2038
      %2296 = vst.msk [vmem:[%s172 + $0x24] sm:$0xf] %vm2286, %v2039
      %2297 = vst.msk [vmem:[%s172 + $0x28] sm:$0xf] %vm2286, %v2040
      %2298 = vst.msk [vmem:[%s172 + $0x2c] sm:$0xf] %vm2286, %v2041
      %2299 = vst.msk [vmem:[%s172 + $0x30] sm:$0xf] %vm2286, %v2042
      %2300 = vst.msk [vmem:[%s172 + $0x34] sm:$0xf] %vm2286, %v2043
      %2301 = vst.msk [vmem:[%s172 + $0x38] sm:$0xf] %vm2286, %v2044
      %2302 = vst.msk [vmem:[%s172 + $0x3c] sm:$0xf] %vm2286, %v2045
      %2303 = vst.msk [vmem:[%s172 + $0x40] sm:$0xf] %vm2286, %v2046
      %2304 = vst.msk [vmem:[%s172 + $0x44] sm:$0xf] %vm2286, %v2047
      %2305 = vst.msk [vmem:[%s172 + $0x48] sm:$0xf] %vm2286, %v2048
      %2306 = vst.msk [vmem:[%s172 + $0x4c] sm:$0xf] %vm2286, %v2049
      %2307 = vst.msk [vmem:[%s172 + $0x50] sm:$0xf] %vm2286, %v2050
      %2308 = vst.msk [vmem:[%s172 + $0x54] sm:$0xf] %vm2286, %v2051
      %2309 = vst.msk [vmem:[%s172 + $0x58] sm:$0xf] %vm2286, %v2052
      %2310 = vst.msk [vmem:[%s172 + $0x5c] sm:$0xf] %vm2286, %v2053
      %2311 = vst.msk [vmem:[%s172 + $0x60] sm:$0xf] %vm2286, %v2054
      %2312 = vst.msk [vmem:[%s172 + $0x64] sm:$0xf] %vm2286, %v2055
      %2313 = vst.msk [vmem:[%s172 + $0x68] sm:$0xf] %vm2286, %v2056
      %2314 = vst.msk [vmem:[%s172 + $0x6c] sm:$0xf] %vm2286, %v2057
      %2315 = vst.msk [vmem:[%s172 + $0x70] sm:$0xf] %vm2286, %v2058
      %2316 = vst.msk [vmem:[%s172 + $0x74] sm:$0xf] %vm2286, %v2059
      %2317 = vst.msk [vmem:[%s172 + $0x78] sm:$0xf] %vm2286, %v2060
      %2318 = vst.msk [vmem:[%s172 + $0x7c] sm:$0xf] %vm2286, %v2061
      %2319 = vst.msk [vmem:[%s172 + $0x80] sm:$0xf] %vm2286, %v2062
      %2320 = vst.msk [vmem:[%s172 + $0x84] sm:$0xf] %vm2286, %v2063
      %2321 = vst.msk [vmem:[%s172 + $0x88] sm:$0xf] %vm2286, %v2064
      %2322 = vst.msk [vmem:[%s172 + $0x8c] sm:$0xf] %vm2286, %v2065
      %2323 = vst.msk [vmem:[%s172 + $0x90] sm:$0xf] %vm2286, %v2066
      %2324 = vst.msk [vmem:[%s172 + $0x94] sm:$0xf] %vm2286, %v2067
      %2325 = vst.msk [vmem:[%s172 + $0x98] sm:$0xf] %vm2286, %v2068
      %2326 = vst.msk [vmem:[%s172 + $0x9c] sm:$0xf] %vm2286, %v2069
      %2327 = vst.msk [vmem:[%s172 + $0xa0] sm:$0xf] %vm2286, %v2070
      %2328 = vst.msk [vmem:[%s172 + $0xa4] sm:$0xf] %vm2286, %v2071
      %2329 = vst.msk [vmem:[%s172 + $0xa8] sm:$0xf] %vm2286, %v2072
      %2330 = vst.msk [vmem:[%s172 + $0xac] sm:$0xf] %vm2286, %v2073
      %2331 = vst.msk [vmem:[%s172 + $0xb0] sm:$0xf] %vm2286, %v2074
      %2332 = vst.msk [vmem:[%s172 + $0xb4] sm:$0xf] %vm2286, %v2075
      %2333 = vst.msk [vmem:[%s172 + $0xb8] sm:$0xf] %vm2286, %v2076
      %2334 = vst.msk [vmem:[%s172 + $0xbc] sm:$0xf] %vm2286, %v2077
      %2335 = vst.msk [vmem:[%s172 + $0xc0] sm:$0xf] %vm2286, %v2078
      %2336 = vst.msk [vmem:[%s172 + $0xc4] sm:$0xf] %vm2286, %v2079
      %2337 = vst.msk [vmem:[%s172 + $0xc8] sm:$0xf] %vm2286, %v2080
      %2338 = vst.msk [vmem:[%s172 + $0xcc] sm:$0xf] %vm2286, %v2081
      %2339 = vst.msk [vmem:[%s172 + $0xd0] sm:$0xf] %vm2286, %v2082
      %2340 = vst.msk [vmem:[%s172 + $0xd4] sm:$0xf] %vm2286, %v2083
      %2341 = vst.msk [vmem:[%s172 + $0xd8] sm:$0xf] %vm2286, %v2084
      %2342 = vst.msk [vmem:[%s172 + $0xdc] sm:$0xf] %vm2286, %v2085
      %2343 = vst.msk [vmem:[%s172 + $0xe0] sm:$0xf] %vm2286, %v2086
      %2344 = vst.msk [vmem:[%s172 + $0xe4] sm:$0xf] %vm2286, %v2087
      %2345 = vst.msk [vmem:[%s172 + $0xe8] sm:$0xf] %vm2286, %v2088
      %2346 = vst.msk [vmem:[%s172 + $0xec] sm:$0xf] %vm2286, %v2089
      %2347 = vst.msk [vmem:[%s172 + $0xf0] sm:$0xf] %vm2286, %v2090
      %2348 = vst.msk [vmem:[%s172 + $0xf4] sm:$0xf] %vm2286, %v2091
      %2349 = vst.msk [vmem:[%s172 + $0xf8] sm:$0xf] %vm2286, %v2092
      %2350 = vst.msk [vmem:[%s172 + $0xfc] sm:$0xf] %vm2286, %v2093
      %2351 = vst.msk [vmem:[%s172 + $0x100] sm:$0xf] %vm2286, %v2094
      %2352 = vst.msk [vmem:[%s172 + $0x104] sm:$0xf] %vm2286, %v2095
      %2353 = vst.msk [vmem:[%s172 + $0x108] sm:$0xf] %vm2286, %v2096
      %2354 = vst.msk [vmem:[%s172 + $0x10c] sm:$0xf] %vm2286, %v2097
      %2355 = vst.msk [vmem:[%s172 + $0x110] sm:$0xf] %vm2286, %v2098
      %2356 = vst.msk [vmem:[%s172 + $0x114] sm:$0xf] %vm2286, %v2099
      %2357 = vst.msk [vmem:[%s172 + $0x118] sm:$0xf] %vm2286, %v2100
      %2358 = vst.msk [vmem:[%s172 + $0x11c] sm:$0xf] %vm2286, %v2101
      %2359 = vst.msk [vmem:[%s172 + $0x120] sm:$0xf] %vm2286, %v2102
      %2360 = vst.msk [vmem:[%s172 + $0x124] sm:$0xf] %vm2286, %v2103
      %2361 = vst.msk [vmem:[%s172 + $0x128] sm:$0xf] %vm2286, %v2104
      %2362 = vst.msk [vmem:[%s172 + $0x12c] sm:$0xf] %vm2286, %v2105
      %2363 = vst.msk [vmem:[%s172 + $0x130] sm:$0xf] %vm2286, %v2106
      %2364 = vst.msk [vmem:[%s172 + $0x134] sm:$0xf] %vm2286, %v2107
      %2365 = vst.msk [vmem:[%s172 + $0x138] sm:$0xf] %vm2286, %v2108
      %2366 = vst.msk [vmem:[%s172 + $0x13c] sm:$0xf] %vm2286, %v2109
      %2367 = vst.msk [vmem:[%s172 + $0x140] sm:$0xf] %vm2286, %v2110
      %2368 = vst.msk [vmem:[%s172 + $0x144] sm:$0xf] %vm2286, %v2111
      %2369 = vst.msk [vmem:[%s172 + $0x148] sm:$0xf] %vm2286, %v2112
      %2370 = vst.msk [vmem:[%s172 + $0x14c] sm:$0xf] %vm2286, %v2113
      %2371 = vst.msk [vmem:[%s172 + $0x150] sm:$0xf] %vm2286, %v2114
      %2372 = vst.msk [vmem:[%s172 + $0x154] sm:$0xf] %vm2286, %v2115
      %2373 = vst.msk [vmem:[%s172 + $0x158] sm:$0xf] %vm2286, %v2116
      %2374 = vst.msk [vmem:[%s172 + $0x15c] sm:$0xf] %vm2286, %v2117
      %2375 = vst.msk [vmem:[%s172 + $0x160] sm:$0xf] %vm2286, %v2118
      %2376 = vst.msk [vmem:[%s172 + $0x164] sm:$0xf] %vm2286, %v2119
      %2377 = vst.msk [vmem:[%s172 + $0x168] sm:$0xf] %vm2286, %v2120
      %2378 = vst.msk [vmem:[%s172 + $0x16c] sm:$0xf] %vm2286, %v2121
      %2379 = vst.msk [vmem:[%s172 + $0x170] sm:$0xf] %vm2286, %v2122
      %2380 = vst.msk [vmem:[%s172 + $0x174] sm:$0xf] %vm2286, %v2123
      %2381 = vst.msk [vmem:[%s172 + $0x178] sm:$0xf] %vm2286, %v2124
      %2382 = vst.msk [vmem:[%s172 + $0x17c] sm:$0xf] %vm2286, %v2125
      %2383 = vst.msk [vmem:[%s172 + $0x180] sm:$0xf] %vm2286, %v2126
      %2384 = vst.msk [vmem:[%s172 + $0x184] sm:$0xf] %vm2286, %v2127
      %2385 = vst.msk [vmem:[%s172 + $0x188] sm:$0xf] %vm2286, %v2128
      %2386 = vst.msk [vmem:[%s172 + $0x18c] sm:$0xf] %vm2286, %v2129
      %2387 = vst.msk [vmem:[%s172 + $0x190] sm:$0xf] %vm2286, %v2130
      %2388 = vst.msk [vmem:[%s172 + $0x194] sm:$0xf] %vm2286, %v2131
      %2389 = vst.msk [vmem:[%s172 + $0x198] sm:$0xf] %vm2286, %v2132
      %2390 = vst.msk [vmem:[%s172 + $0x19c] sm:$0xf] %vm2286, %v2133
      %2391 = vst.msk [vmem:[%s172 + $0x1a0] sm:$0xf] %vm2286, %v2134
      %2392 = vst.msk [vmem:[%s172 + $0x1a4] sm:$0xf] %vm2286, %v2135
      %2393 = vst.msk [vmem:[%s172 + $0x1a8] sm:$0xf] %vm2286, %v2136
      %2394 = vst.msk [vmem:[%s172 + $0x1ac] sm:$0xf] %vm2286, %v2137
      %2395 = vst.msk [vmem:[%s172 + $0x1b0] sm:$0xf] %vm2286, %v2138
      %2396 = vst.msk [vmem:[%s172 + $0x1b4] sm:$0xf] %vm2286, %v2139
      %2397 = vst.msk [vmem:[%s172 + $0x1b8] sm:$0xf] %vm2286, %v2140
      %2398 = vst.msk [vmem:[%s172 + $0x1bc] sm:$0xf] %vm2286, %v2141
      %2399 = vst.msk [vmem:[%s172 + $0x1c0] sm:$0xf] %vm2286, %v2142
      %2400 = vst.msk [vmem:[%s172 + $0x1c4] sm:$0xf] %vm2286, %v2143
      %2401 = vst.msk [vmem:[%s172 + $0x1c8] sm:$0xf] %vm2286, %v2144
      %2402 = vst.msk [vmem:[%s172 + $0x1cc] sm:$0xf] %vm2286, %v2145
      %2403 = vst.msk [vmem:[%s172 + $0x1d0] sm:$0xf] %vm2286, %v2146
      %2404 = vst.msk [vmem:[%s172 + $0x1d4] sm:$0xf] %vm2286, %v2147
      %2405 = vst.msk [vmem:[%s172 + $0x1d8] sm:$0xf] %vm2286, %v2148
      %2406 = vst.msk [vmem:[%s172 + $0x1dc] sm:$0xf] %vm2286, %v2149
      %2407 = vst.msk [vmem:[%s172 + $0x1e0] sm:$0xf] %vm2286, %v2150
      %2408 = vst.msk [vmem:[%s172 + $0x1e4] sm:$0xf] %vm2286, %v2151
      %2409 = vst.msk [vmem:[%s172 + $0x1e8] sm:$0xf] %vm2286, %v2152
      %2410 = vst.msk [vmem:[%s172 + $0x1ec] sm:$0xf] %vm2286, %v2153
      %2411 = vst.msk [vmem:[%s172 + $0x1f0] sm:$0xf] %vm2286, %v2154
      %2412 = vst.msk [vmem:[%s172 + $0x1f4] sm:$0xf] %vm2286, %v2155
      %2413 = vst.msk [vmem:[%s172 + $0x1f8] sm:$0xf] %vm2286, %v2156
      %2414 = vst.msk [vmem:[%s172 + $0x1fc] sm:$0xf] %vm2286, %v2157
      %s2415 = smul.u32 128, %s14
      %p2416 = scmp.lt.s32.totalorder %s2415, 255
      %s2417 = scalar_select %p2416, %s2415, 255
      %s2418 = smul.addr %s2417, 4
      %s2419 = scalar_lea.vmem %s3, %s2418
      // Predicated region
      $region33: #{encoder_forward.4} parent=31 // pred_check
        %p2420 = pneg %p100
      $region34: #{encoder_forward.4} parent=31 // pred_check_branch
        %2422 = sbr.rel (%p2420) target = $region36
      $region35: #{encoder_forward.4} parent=31 // pred_region
        %s2423 = smul.u32 128, %s14
      $region36: #{encoder_forward.4} parent=31 // pred_fallthru
        _
    $region32: #{encoder_forward.4} parent=5 // pred_fallthru
      _
    %p2424 = scmp.le.s32.totalorder 2, %s9
    // Predicated region
    $region37: #{encoder_forward.4} parent=5 // pred_check
      %p2425 = pneg %p2424
    $region38: #{encoder_forward.4} parent=5 // pred_check_branch
      %2427 = sbr.rel (%p2425) target = $region40
    $region39: #{encoder_forward.4} parent=5 // pred_region
      %s2428 = ssub.s32 %s9, 2
      // Predicated region
      $region41: #{encoder_forward.4} parent=39 // pred_check
        %p2429 = pneg %p106
      $region42: #{encoder_forward.4} parent=39 // pred_check_branch
        %2431 = sbr.rel (%p2429) target = $region44
      $region43: #{encoder_forward.4} parent=39 // pred_region
        %s2432 = smul.u32 128, %s15
        %p2433 = scmp.lt.s32.totalorder %s2432, 255
        %s2434 = scalar_select %p2433, %s2432, 255
        %s2435 = smul.addr %s2434, 4
        %s2436 = scalar_lea.vmem %s3, %s2435
      $region44: #{encoder_forward.4} parent=39 // pred_fallthru
        _
    $region40: #{encoder_forward.4} parent=5 // pred_fallthru
      _
  $region6: #{encoder_forward.4} parent=0 // loop_footer
    %s13 = sadd.s32 1, %s9
  $region7: #{encoder_forward.4} parent=0 // loop_footer_branch
    %8 = sbr.rel target = $region3
  $region8: #{encoder_forward.4} parent=0 // loop_exit
    _

// kernel: encoder_forward.5
$region0: #{encoder_forward.5}
  #allocation0 [shape = 'u32[]', space=smem, size = 0x4, offset = 0x4, fixed_abs, tag = 'smem constant byte address 0x4 - core index']
  #allocation1 [shape = 'u32[144,128]{1,0:T(1,128)}', space=vmem, size = 0x12000, scoped, tag = 'internal scratch']
  %s0 = inlined_call_operand.vmem [shape: bf16[512,288], index: 0, kind: input, shape index: {}]
  %s1 = inlined_call_operand.vmem [shape: bf16[288,16], index: 1, kind: input, shape index: {}]
  %s2 = inlined_call_operand.vmem [shape: f32[1,16], index: 2, kind: input, shape index: {}]
  %s3 = inlined_call_operand.vmem [shape: bf16[512,16], index: 3, kind: output, shape index: {}]
  %s4 = sld [smem:[#allocation0]]
  $region45: #{encoder_forward.5} parent=0
    _
  %s6 = ssub.s32 1, %s4
  %s7 = scalar_select 0, %s6, %s4
  loop: start=0, step=1, limit=4
  $region2: #{encoder_forward.5} parent=0 // loop_pre_header
    _
  $region3: #{encoder_forward.5} parent=0 // loop_header
    %s9 = sphi 0, %s13
    %p10 = scmp.ge.s32.totalorder %s9, 4
    %s19 = sphi 0, %s21
    %s22 = sphi 0, %s19
    %s23 = sphi 0, %s22
    %s39 = sphi 0, %s23
    %s43 = sphi 0, %s43
    %s45 = sphi 0, %s43
    %s46 = sphi 0, %s45
    %s60 = sphi 0, %s46
    %s64 = sphi 0, %s64
    %s66 = sphi 0, %s64
    %s67 = sphi 0, %s66
    %s81 = sphi 0, %s67
    %s87 = sphi 0, %s89
    %s90 = sphi 0, %s87
    %s91 = sphi 0, %s90
    %s107 = sphi 0, %s91
  $region4: #{encoder_forward.5} parent=0 // loop_header_branch
    %12 = sbr.rel (%p10) target = $region8
  $region5: #{encoder_forward.5} parent=0 // loop_body
    %s14 = ssub.s32 %s9, 1
    %s15 = ssub.s32 %s9, 2
    %s16 = sadd.s32 %s9, 1
    %s17 = ssub.s32 %s9, %s16
    %p18 = scmp.eq.s32.totalorder %s17, 0
    %s20 = sadd.s32 %s19, 1
    %s21 = scalar_select %p18, %s19, %s20
    %p24 = pneg %p18
    %p25 = scmp.eq.s32.totalorder %s9, 1
    %p26 = por %p24, %p25
    %p27 = scmp.ne.s32.totalorder %s19, %s22
    %p28 = scmp.eq.s32.totalorder %s9, 0
    %p29 = por %p27, %p28
    %p30 = scmp.ne.s32.totalorder %s19, %s22
    %p31 = scmp.eq.s32.totalorder %s14, 1
    %p32 = por %p30, %p31
    %p33 = scmp.ne.s32.totalorder %s22, %s23
    %p34 = scmp.eq.s32.totalorder %s14, 0
    %p35 = por %p33, %p34
    %p36 = scmp.ne.s32.totalorder %s22, %s23
    %p37 = scmp.eq.s32.totalorder %s15, 1
    %p38 = por %p36, %p37
    %p40 = scmp.ne.s32.totalorder %s23, %s39
    %p41 = scmp.eq.s32.totalorder %s15, 0
    %p42 = por %p40, %p41
    %s44 = sadd.s32 %s43, 1
    %p47 = scmp.eq.s32.totalorder %s9, 1
    %p48 = scmp.ne.s32.totalorder %s43, %s45
    %p49 = scmp.eq.s32.totalorder %s9, 0
    %p50 = por %p48, %p49
    %p51 = scmp.ne.s32.totalorder %s43, %s45
    %p52 = scmp.eq.s32.totalorder %s14, 1
    %p53 = por %p51, %p52
    %p54 = scmp.ne.s32.totalorder %s45, %s46
    %p55 = scmp.eq.s32.totalorder %s14, 0
    %p56 = por %p54, %p55
    %p57 = scmp.ne.s32.totalorder %s45, %s46
    %p58 = scmp.eq.s32.totalorder %s15, 1
    %p59 = por %p57, %p58
    %p61 = scmp.ne.s32.totalorder %s46, %s60
    %p62 = scmp.eq.s32.totalorder %s15, 0
    %p63 = por %p61, %p62
    %s65 = sadd.s32 %s64, 1
    %p68 = scmp.eq.s32.totalorder %s9, 1
    %p69 = scmp.ne.s32.totalorder %s64, %s66
    %p70 = scmp.eq.s32.totalorder %s9, 0
    %p71 = por %p69, %p70
    %p72 = scmp.ne.s32.totalorder %s64, %s66
    %p73 = scmp.eq.s32.totalorder %s14, 1
    %p74 = por %p72, %p73
    %p75 = scmp.ne.s32.totalorder %s66, %s67
    %p76 = scmp.eq.s32.totalorder %s14, 0
    %p77 = por %p75, %p76
    %p78 = scmp.ne.s32.totalorder %s66, %s67
    %p79 = scmp.eq.s32.totalorder %s15, 1
    %p80 = por %p78, %p79
    %p82 = scmp.ne.s32.totalorder %s67, %s81
    %p83 = scmp.eq.s32.totalorder %s15, 0
    %p84 = por %p82, %p83
    %s85 = ssub.s32 %s9, %s16
    %p86 = scmp.eq.s32.totalorder %s85, 0
    %s88 = sadd.s32 %s87, 1
    %s89 = scalar_select %p86, %s87, %s88
    %p92 = pneg %p86
    %p93 = scmp.eq.s32.totalorder %s9, 1
    %p94 = por %p92, %p93
    %p95 = scmp.ne.s32.totalorder %s87, %s90
    %p96 = scmp.eq.s32.totalorder %s9, 0
    %p97 = por %p95, %p96
    %p98 = scmp.ne.s32.totalorder %s87, %s90
    %p99 = scmp.eq.s32.totalorder %s14, 1
    %p100 = por %p98, %p99
    %p101 = scmp.ne.s32.totalorder %s90, %s91
    %p102 = scmp.eq.s32.totalorder %s14, 0
    %p103 = por %p101, %p102
    %p104 = scmp.ne.s32.totalorder %s90, %s91
    %p105 = scmp.eq.s32.totalorder %s15, 1
    %p106 = por %p104, %p105
    %p108 = scmp.ne.s32.totalorder %s91, %s107
    %p109 = scmp.eq.s32.totalorder %s15, 0
    %p110 = por %p108, %p109
    %p111 = scmp.le.s32.totalorder 1, %s9
    %p112 = scmp.lt.s32.totalorder %s9, 3
    %p113 = pnand %p111, %p112
    %p114 = pneg %p113
    // Predicated region
    $region9: #{encoder_forward.5} parent=5 // pred_check
      _
    $region10: #{encoder_forward.5} parent=5 // pred_check_branch
      %116 = sbr.rel (%p113) target = $region12
    $region11: #{encoder_forward.5} parent=5 // pred_region
      %s117 = ssub.s32 %s9, 1
      // Predicated region
      $region13: #{encoder_forward.5} parent=11 // pred_check
        %p118 = pneg %p56
      $region14: #{encoder_forward.5} parent=11 // pred_check_branch
        %120 = sbr.rel (%p118) target = $region16
      $region15: #{encoder_forward.5} parent=11 // pred_region
        _
      $region16: #{encoder_forward.5} parent=11 // pred_fallthru
        _
      // Predicated region
      $region17: #{encoder_forward.5} parent=11 // pred_check
        %p121 = pneg %p77
      $region18: #{encoder_forward.5} parent=11 // pred_check_branch
        %123 = sbr.rel (%p121) target = $region20
      $region19: #{encoder_forward.5} parent=11 // pred_region
        _
      $region20: #{encoder_forward.5} parent=11 // pred_fallthru
        _
    $region12: #{encoder_forward.5} parent=5 // pred_fallthru
      _
    %p124 = scmp.lt.s32.totalorder %s9, 2
    // Predicated region
    $region21: #{encoder_forward.5} parent=5 // pred_check
      %p125 = pneg %p124
    $region22: #{encoder_forward.5} parent=5 // pred_check_branch
      %127 = sbr.rel (%p125) target = $region24
    $region23: #{encoder_forward.5} parent=5 // pred_region
      // Predicated region
      $region25: #{encoder_forward.5} parent=23 // pred_check
        %p128 = pneg %p29
      $region26: #{encoder_forward.5} parent=23 // pred_check_branch
        %130 = sbr.rel (%p128) target = $region28
      $region27: #{encoder_forward.5} parent=23 // pred_region
        %s131 = smul.u32 32, %s9
        %p132 = scmp.lt.s32.totalorder %s131, 63
        %s133 = scalar_select %p132, %s131, 63
        %s134 = smul.addr %s133, 3
        %s135 = smul.addr %s134, 4
        %s136 = scalar_lea.vmem %s0, %s135
        %s137 = smul.u32 32, %s9
      $region28: #{encoder_forward.5} parent=23 // pred_fallthru
        _
    $region24: #{encoder_forward.5} parent=5 // pred_fallthru
      _
    %p138 = scmp.le.s32.totalorder 1, %s9
    %p139 = scmp.lt.s32.totalorder %s9, 3
    %p140 = pnand %p138, %p139
    %p141 = pneg %p140
    // Predicated region
    $region29: #{encoder_forward.5} parent=5 // pred_check
      _
    $region30: #{encoder_forward.5} parent=5 // pred_check_branch
      %143 = sbr.rel (%p140) target = $region32
    $region31: #{encoder_forward.5} parent=5 // pred_region
      %s144 = ssub.s32 %s9, 1
      %s145 = smul.u32 32, %s14
      %p146 = scmp.lt.s32.totalorder %s145, 63
      %s147 = scalar_select %p146, %s145, 63
      %s148 = smul.addr %s147, 3
      %s149 = smul.addr %s148, 4
      %s150 = scalar_lea.vmem %s0, %s149
      %p151 = pneg %p35
      %p152 = pneg %p32
      %p153 = pneg %p56
      %p154 = pneg %p53
      %p155 = pneg %p77
      %p156 = pneg %p74
      %p157 = pneg %p103
      %p158 = pneg %p100
      %s159 = smul.u32 32, %s14
      %p160 = scmp.lt.s32.totalorder %s159, 63
      %s161 = scalar_select %p160, %s159, 63
      %s162 = smul.addr %s161, 4
      %s163 = scalar_lea.vmem %s3, %s162
      %s164 = smul.u32 32, %s14
      %p165 = scmp.lt.s32.totalorder %s164, 63
      %s166 = scalar_select %p165, %s164, 63
      %s167 = smul.addr %s166, 3
      %s168 = smul.addr %s167, 4
      %s169 = scalar_lea.vmem %s0, %s168
      %s170 = smul.u32 32, %s14
      %s171 = smul.u32 32, %s14
      %p172 = scmp.lt.s32.totalorder %s171, 63
      %s173 = scalar_select %p172, %s171, 63
      %s174 = smul.addr %s173, 4
      %s175 = scalar_lea.vmem %s3, %s174
      %s176 = smul.u32 32, %s14
      %v178 = vld [vmem:[%s169] sm:$0xff]
      %v179 = vld [vmem:[%s169 + $0x8] sm:$0xf]
      %v180 = vld [vmem:[%s169 + $0xc] sm:$0xff]
      %v181 = vld [vmem:[%s169 + $0x14] sm:$0xf]
      %v182 = vld [vmem:[%s169 + $0x18] sm:$0xff]
      %v183 = vld [vmem:[%s169 + $0x20] sm:$0xf]
      %v184 = vld [vmem:[%s169 + $0x24] sm:$0xff]
      %v185 = vld [vmem:[%s169 + $0x2c] sm:$0xf]
      %v186 = vld [vmem:[%s169 + $0x30] sm:$0xff]
      %v187 = vld [vmem:[%s169 + $0x38] sm:$0xf]
      %v188 = vld [vmem:[%s169 + $0x3c] sm:$0xff]
      %v189 = vld [vmem:[%s169 + $0x44] sm:$0xf]
      %v190 = vld [vmem:[%s169 + $0x48] sm:$0xff]
      %v191 = vld [vmem:[%s169 + $0x50] sm:$0xf]
      %v192 = vld [vmem:[%s169 + $0x54] sm:$0xff]
      %v193 = vld [vmem:[%s169 + $0x5c] sm:$0xf]
      %v194 = vld [vmem:[%s169 + $0x60] sm:$0xff]
      %v195 = vld [vmem:[%s169 + $0x68] sm:$0xf]
      %v196 = vld [vmem:[%s169 + $0x6c] sm:$0xff]
      %v197 = vld [vmem:[%s169 + $0x74] sm:$0xf]
      %v198 = vld [vmem:[%s169 + $0x78] sm:$0xff]
      %v199 = vld [vmem:[%s169 + $0x80] sm:$0xf]
      %v200 = vld [vmem:[%s169 + $0x84] sm:$0xff]
      %v201 = vld [vmem:[%s169 + $0x8c] sm:$0xf]
      %v202 = vld [vmem:[%s169 + $0x90] sm:$0xff]
      %v203 = vld [vmem:[%s169 + $0x98] sm:$0xf]
      %v204 = vld [vmem:[%s169 + $0x9c] sm:$0xff]
      %v205 = vld [vmem:[%s169 + $0xa4] sm:$0xf]
      %v206 = vld [vmem:[%s169 + $0xa8] sm:$0xff]
      %v207 = vld [vmem:[%s169 + $0xb0] sm:$0xf]
      %v208 = vld [vmem:[%s169 + $0xb4] sm:$0xff]
      %v209 = vld [vmem:[%s169 + $0xbc] sm:$0xf]
      %v210 = vld [vmem:[%s169 + $0xc0] sm:$0xff]
      %v211 = vld [vmem:[%s169 + $0xc8] sm:$0xf]
      %v212 = vld [vmem:[%s169 + $0xcc] sm:$0xff]
      %v213 = vld [vmem:[%s169 + $0xd4] sm:$0xf]
      %v214 = vld [vmem:[%s169 + $0xd8] sm:$0xff]
      %v215 = vld [vmem:[%s169 + $0xe0] sm:$0xf]
      %v216 = vld [vmem:[%s169 + $0xe4] sm:$0xff]
      %v217 = vld [vmem:[%s169 + $0xec] sm:$0xf]
      %v218 = vld [vmem:[%s169 + $0xf0] sm:$0xff]
      %v219 = vld [vmem:[%s169 + $0xf8] sm:$0xf]
      %v220 = vld [vmem:[%s169 + $0xfc] sm:$0xff]
      %v221 = vld [vmem:[%s169 + $0x104] sm:$0xf]
      %v222 = vld [vmem:[%s169 + $0x108] sm:$0xff]
      %v223 = vld [vmem:[%s169 + $0x110] sm:$0xf]
      %v224 = vld [vmem:[%s169 + $0x114] sm:$0xff]
      %v225 = vld [vmem:[%s169 + $0x11c] sm:$0xf]
      %v226 = vld [vmem:[%s169 + $0x120] sm:$0xff]
      %v227 = vld [vmem:[%s169 + $0x128] sm:$0xf]
      %v228 = vld [vmem:[%s169 + $0x12c] sm:$0xff]
      %v229 = vld [vmem:[%s169 + $0x134] sm:$0xf]
      %v230 = vld [vmem:[%s169 + $0x138] sm:$0xff]
      %v231 = vld [vmem:[%s169 + $0x140] sm:$0xf]
      %v232 = vld [vmem:[%s169 + $0x144] sm:$0xff]
      %v233 = vld [vmem:[%s169 + $0x14c] sm:$0xf]
      %v234 = vld [vmem:[%s169 + $0x150] sm:$0xff]
      %v235 = vld [vmem:[%s169 + $0x158] sm:$0xf]
      %v236 = vld [vmem:[%s169 + $0x15c] sm:$0xff]
      %v237 = vld [vmem:[%s169 + $0x164] sm:$0xf]
      %v238 = vld [vmem:[%s169 + $0x168] sm:$0xff]
      %v239 = vld [vmem:[%s169 + $0x170] sm:$0xf]
      %v240 = vld [vmem:[%s169 + $0x174] sm:$0xff]
      %v241 = vld [vmem:[%s169 + $0x17c] sm:$0xf]
      %v242 = vld [vmem:[%s1] sm:$0xf]
      %v243 = vld [vmem:[%s1 + $0x4] sm:$0xf]
      %v244 = vld [vmem:[%s1 + $0x8] sm:$0xf]
      %v245 = vld [vmem:[%s1 + $0xc] sm:$0xf]
      %v246 = vld [vmem:[%s1 + $0x10] sm:$0xf]
      %v247 = vld [vmem:[%s1 + $0x14] sm:$0xf]
      %v248 = vld [vmem:[%s1 + $0x18] sm:$0xf]
      %v249 = vld [vmem:[%s1 + $0x1c] sm:$0xf]
      %v250 = vld [vmem:[%s1 + $0x20] sm:$0xf]
      %v251 = vld [vmem:[%s1 + $0x24] sm:$0xf]
      %v252 = vld [vmem:[%s1 + $0x28] sm:$0xf]
      %v253 = vld [vmem:[%s1 + $0x2c] sm:$0xf]
      %v254 = vld [vmem:[%s1 + $0x30] sm:$0xf]
      %v255 = vld [vmem:[%s1 + $0x34] sm:$0xf]
      %v256 = vld [vmem:[%s1 + $0x38] sm:$0xf]
      %v257 = vld [vmem:[%s1 + $0x3c] sm:$0xf]
      %v258 = vld [vmem:[%s1 + $0x40] sm:$0xf]
      %v259 = vld [vmem:[%s1 + $0x44] sm:$0xf]
      %v260 = vld [vmem:[%s1 + $0x48] sm:$0xf]
      %v261 = vld [vmem:[%s1 + $0x4c] sm:$0xf]
      %v262 = vld [vmem:[%s1 + $0x50] sm:$0xf]
      %v263 = vld [vmem:[%s1 + $0x54] sm:$0xf]
      %v264 = vld [vmem:[%s1 + $0x58] sm:$0xf]
      %v265 = vld [vmem:[%s1 + $0x5c] sm:$0xf]
      %v266 = vld [vmem:[%s1 + $0x60] sm:$0xf]
      %v267 = vld [vmem:[%s1 + $0x64] sm:$0xf]
      %v268 = vld [vmem:[%s1 + $0x68] sm:$0xf]
      %v269 = vld [vmem:[%s1 + $0x6c] sm:$0xf]
      %v270 = vld [vmem:[%s1 + $0x70] sm:$0xf]
      %v271 = vld [vmem:[%s1 + $0x74] sm:$0xf]
      %v272 = vld [vmem:[%s1 + $0x78] sm:$0xf]
      %v273 = vld [vmem:[%s1 + $0x7c] sm:$0xf]
      %v274 = vld [vmem:[%s1 + $0x80] sm:$0xf]
      %v275 = vld [vmem:[%s1 + $0x84] sm:$0xf]
      %v276 = vld [vmem:[%s1 + $0x88] sm:$0xf]
      %v277 = vld [vmem:[%s1 + $0x8c] sm:$0xf]
      %v278 = vld [vmem:[%s2] sm:$0x1]
      %v280 = vlaneseq
      %v281 = vshrl.u32 %v280, 7
      %v282 = vsub.s32 0, %v281
      %v283 = vrot.slane %v278, %v282
      %v349 = vunpack.c.l.b16 %v178
      %v350 = vunpack.c.h.b16 %v178
      %v351 = vunpack.c.l.b16 %v179
      %v352 = vunpack.c.l.b16 %v180
      %v353 = vunpack.c.h.b16 %v180
      %v354 = vunpack.c.l.b16 %v181
      %v355 = vunpack.c.l.b16 %v182
      %v356 = vunpack.c.h.b16 %v182
      %v357 = vunpack.c.l.b16 %v183
      %v358 = vunpack.c.l.b16 %v184
      %v359 = vunpack.c.h.b16 %v184
      %v360 = vunpack.c.l.b16 %v185
      %v361 = vunpack.c.l.b16 %v186
      %v362 = vunpack.c.h.b16 %v186
      %v363 = vunpack.c.l.b16 %v187
      %v364 = vunpack.c.l.b16 %v188
      %v365 = vunpack.c.h.b16 %v188
      %v366 = vunpack.c.l.b16 %v189
      %v367 = vunpack.c.l.b16 %v190
      %v368 = vunpack.c.h.b16 %v190
      %v369 = vunpack.c.l.b16 %v191
      %v370 = vunpack.c.l.b16 %v192
      %v371 = vunpack.c.h.b16 %v192
      %v372 = vunpack.c.l.b16 %v193
      %v373 = vunpack.c.l.b16 %v194
      %v374 = vunpack.c.h.b16 %v194
      %v375 = vunpack.c.l.b16 %v195
      %v376 = vunpack.c.l.b16 %v196
      %v377 = vunpack.c.h.b16 %v196
      %v378 = vunpack.c.l.b16 %v197
      %v379 = vunpack.c.l.b16 %v198
      %v380 = vunpack.c.h.b16 %v198
      %v381 = vunpack.c.l.b16 %v199
      %v382 = vunpack.c.l.b16 %v200
      %v383 = vunpack.c.h.b16 %v200
      %v384 = vunpack.c.l.b16 %v201
      %v385 = vunpack.c.l.b16 %v202
      %v386 = vunpack.c.h.b16 %v202
      %v387 = vunpack.c.l.b16 %v203
      %v388 = vunpack.c.l.b16 %v204
      %v389 = vunpack.c.h.b16 %v204
      %v390 = vunpack.c.l.b16 %v205
      %v391 = vunpack.c.l.b16 %v206
      %v392 = vunpack.c.h.b16 %v206
      %v393 = vunpack.c.l.b16 %v207
      %v394 = vunpack.c.l.b16 %v208
      %v395 = vunpack.c.h.b16 %v208
      %v396 = vunpack.c.l.b16 %v209
      %v397 = vunpack.c.l.b16 %v210
      %v398 = vunpack.c.h.b16 %v210
      %v399 = vunpack.c.l.b16 %v211
      %v400 = vunpack.c.l.b16 %v212
      %v401 = vunpack.c.h.b16 %v212
      %v402 = vunpack.c.l.b16 %v213
      %v403 = vunpack.c.l.b16 %v214
      %v404 = vunpack.c.h.b16 %v214
      %v405 = vunpack.c.l.b16 %v215
      %v406 = vunpack.c.l.b16 %v216
      %v407 = vunpack.c.h.b16 %v216
      %v408 = vunpack.c.l.b16 %v217
      %v409 = vunpack.c.l.b16 %v218
      %v410 = vunpack.c.h.b16 %v218
      %v411 = vunpack.c.l.b16 %v219
      %v412 = vunpack.c.l.b16 %v220
      %v413 = vunpack.c.h.b16 %v220
      %v414 = vunpack.c.l.b16 %v221
      %v415 = vunpack.c.l.b16 %v222
      %v416 = vunpack.c.h.b16 %v222
      %v417 = vunpack.c.l.b16 %v223
      %v418 = vunpack.c.l.b16 %v224
      %v419 = vunpack.c.h.b16 %v224
      %v420 = vunpack.c.l.b16 %v225
      %v421 = vunpack.c.l.b16 %v226
      %v422 = vunpack.c.h.b16 %v226
      %v423 = vunpack.c.l.b16 %v227
      %v424 = vunpack.c.l.b16 %v228
      %v425 = vunpack.c.h.b16 %v228
      %v426 = vunpack.c.l.b16 %v229
      %v427 = vunpack.c.l.b16 %v230
      %v428 = vunpack.c.h.b16 %v230
      %v429 = vunpack.c.l.b16 %v231
      %v430 = vunpack.c.l.b16 %v232
      %v431 = vunpack.c.h.b16 %v232
      %v432 = vunpack.c.l.b16 %v233
      %v433 = vunpack.c.l.b16 %v234
      %v434 = vunpack.c.h.b16 %v234
      %v435 = vunpack.c.l.b16 %v235
      %v436 = vunpack.c.l.b16 %v236
      %v437 = vunpack.c.h.b16 %v236
      %v438 = vunpack.c.l.b16 %v237
      %v439 = vunpack.c.l.b16 %v238
      %v440 = vunpack.c.h.b16 %v238
      %v441 = vunpack.c.l.b16 %v239
      %v442 = vunpack.c.l.b16 %v240
      %v443 = vunpack.c.h.b16 %v240
      %v444 = vunpack.c.l.b16 %v241
      %v445 = vpack.c.b16 %v352, %v349
      %v446 = vpack.c.b16 %v353, %v350
      %v447 = vpack.c.b16 %v354, %v351
      %v448 = vpack.c.b16 %v358, %v355
      %v449 = vpack.c.b16 %v359, %v356
      %v450 = vpack.c.b16 %v360, %v357
      %v451 = vpack.c.b16 %v364, %v361
      %v452 = vpack.c.b16 %v365, %v362
      %v453 = vpack.c.b16 %v366, %v363
      %v454 = vpack.c.b16 %v370, %v367
      %v455 = vpack.c.b16 %v371, %v368
      %v456 = vpack.c.b16 %v372, %v369
      %v457 = vpack.c.b16 %v376, %v373
      %v458 = vpack.c.b16 %v377, %v374
      %v459 = vpack.c.b16 %v378, %v375
      %v460 = vpack.c.b16 %v382, %v379
      %v461 = vpack.c.b16 %v383, %v380
      %v462 = vpack.c.b16 %v384, %v381
      %v463 = vpack.c.b16 %v388, %v385
      %v464 = vpack.c.b16 %v389, %v386
      %v465 = vpack.c.b16 %v390, %v387
      %v466 = vpack.c.b16 %v394, %v391
      %v467 = vpack.c.b16 %v395, %v392
      %v468 = vpack.c.b16 %v396, %v393
      %v469 = vpack.c.b16 %v400, %v397
      %v470 = vpack.c.b16 %v401, %v398
      %v471 = vpack.c.b16 %v402, %v399
      %v472 = vpack.c.b16 %v406, %v403
      %v473 = vpack.c.b16 %v407, %v404
      %v474 = vpack.c.b16 %v408, %v405
      %v475 = vpack.c.b16 %v412, %v409
      %v476 = vpack.c.b16 %v413, %v410
      %v477 = vpack.c.b16 %v414, %v411
      %v478 = vpack.c.b16 %v418, %v415
      %v479 = vpack.c.b16 %v419, %v416
      %v480 = vpack.c.b16 %v420, %v417
      %v481 = vpack.c.b16 %v424, %v421
      %v482 = vpack.c.b16 %v425, %v422
      %v483 = vpack.c.b16 %v426, %v423
      %v484 = vpack.c.b16 %v430, %v427
      %v485 = vpack.c.b16 %v431, %v428
      %v486 = vpack.c.b16 %v432, %v429
      %v487 = vpack.c.b16 %v436, %v433
      %v488 = vpack.c.b16 %v437, %v434
      %v489 = vpack.c.b16 %v438, %v435
      %v490 = vpack.c.b16 %v442, %v439
      %v491 = vpack.c.b16 %v443, %v440
      %v492 = vpack.c.b16 %v444, %v441
      %v561 = vunpack.c.l.b16 %v242
      %v562 = vunpack.c.l.b16 %v243
      %v563 = vunpack.c.l.b16 %v244
      %v564 = vunpack.c.l.b16 %v245
      %v565 = vunpack.c.l.b16 %v246
      %v566 = vunpack.c.l.b16 %v247
      %v567 = vunpack.c.l.b16 %v248
      %v568 = vunpack.c.l.b16 %v249
      %v569 = vunpack.c.l.b16 %v250
      %v570 = vunpack.c.l.b16 %v251
      %v571 = vunpack.c.l.b16 %v252
      %v572 = vunpack.c.l.b16 %v253
      %v573 = vunpack.c.l.b16 %v254
      %v574 = vunpack.c.l.b16 %v255
      %v575 = vunpack.c.l.b16 %v256
      %v576 = vunpack.c.l.b16 %v257
      %v577 = vunpack.c.l.b16 %v258
      %v578 = vunpack.c.l.b16 %v259
      %v579 = vunpack.c.l.b16 %v260
      %v580 = vunpack.c.l.b16 %v261
      %v581 = vunpack.c.l.b16 %v262
      %v582 = vunpack.c.l.b16 %v263
      %v583 = vunpack.c.l.b16 %v264
      %v584 = vunpack.c.l.b16 %v265
      %v585 = vunpack.c.l.b16 %v266
      %v586 = vunpack.c.l.b16 %v267
      %v587 = vunpack.c.l.b16 %v268
      %v588 = vunpack.c.l.b16 %v269
      %v589 = vunpack.c.l.b16 %v270
      %v590 = vunpack.c.l.b16 %v271
      %v591 = vunpack.c.l.b16 %v272
      %v592 = vunpack.c.l.b16 %v273
      %v593 = vunpack.c.l.b16 %v274
      %v594 = vunpack.c.l.b16 %v275
      %v595 = vunpack.c.l.b16 %v276
      %v596 = vunpack.c.l.b16 %v277
      %v597 = vpack.c.b16 %v562, %v561
      %v598 = vpack.c.b16 %v564, %v563
      %v599 = vpack.c.b16 %v566, %v565
      %v600 = vpack.c.b16 %v568, %v567
      %v601 = vpack.c.b16 %v570, %v569
      %v602 = vpack.c.b16 %v572, %v571
      %v603 = vpack.c.b16 %v574, %v573
      %v604 = vpack.c.b16 %v576, %v575
      %v605 = vpack.c.b16 %v578, %v577
      %v606 = vpack.c.b16 %v580, %v579
      %v607 = vpack.c.b16 %v582, %v581
      %v608 = vpack.c.b16 %v584, %v583
      %v609 = vpack.c.b16 %v586, %v585
      %v610 = vpack.c.b16 %v588, %v587
      %v611 = vpack.c.b16 %v590, %v589
      %v612 = vpack.c.b16 %v592, %v591
      %v613 = vpack.c.b16 %v594, %v593
      %v614 = vpack.c.b16 %v596, %v595
      %vm633 = vcmask 261120
      %v635 = vsel %vm633, %v447, 0
      %v638 = vsel %vm633, %v450, 0
      %v641 = vsel %vm633, %v453, 0
      %v644 = vsel %vm633, %v456, 0
      %v647 = vsel %vm633, %v459, 0
      %v650 = vsel %vm633, %v462, 0
      %v653 = vsel %vm633, %v465, 0
      %v656 = vsel %vm633, %v468, 0
      %v659 = vsel %vm633, %v471, 0
      %v662 = vsel %vm633, %v474, 0
      %v665 = vsel %vm633, %v477, 0
      %v668 = vsel %vm633, %v480, 0
      %v671 = vsel %vm633, %v483, 0
      %v674 = vsel %vm633, %v486, 0
      %v677 = vsel %vm633, %v489, 0
      %v680 = vsel %vm633, %v492, 0
      %682 = vmatprep.subr.bf16.mxu0 0
      %683 = vmatpush1.bf16.msra.mxu0 %v597
      %684 = vmatprep.subr.bf16.mxu0 0
      %685 = vmatpush1.bf16.msra.mxu0 %v598
      %686 = vmatprep.subr.bf16.mxu0 0
      %687 = vmatpush1.bf16.msra.mxu0 %v599
      %688 = vmatprep.subr.bf16.mxu0 0
      %689 = vmatpush1.bf16.msra.mxu0 %v600
      %690 = vmatprep.subr.bf16.mxu0 0
      %691 = vmatpush1.bf16.msra.mxu0 %v601
      %692 = vmatprep.subr.bf16.mxu0 0
      %693 = vmatpush1.bf16.msra.mxu0 %v602
      %694 = vmatprep.subr.bf16.mxu0 0
      %695 = vmatpush1.bf16.msra.mxu0 %v603
      %696 = vmatprep.subr.bf16.mxu0 0
      %697 = vmatpush1.bf16.msra.mxu0 %v604
      %698 = vmatprep.subr.bf16.mxu0 0
      %699 = vmatpush1.bf16.msra.mxu0 %v605
      %700 = vmatprep.subr.bf16.mxu0 0
      %701 = vmatpush1.bf16.msra.mxu0 %v606
      %702 = vmatprep.subr.bf16.mxu0 0
      %703 = vmatpush1.bf16.msra.mxu0 %v607
      %704 = vmatprep.subr.bf16.mxu0 0
      %705 = vmatpush1.bf16.msra.mxu0 %v608
      %706 = vmatprep.subr.bf16.mxu0 0
      %707 = vmatpush1.bf16.msra.mxu0 %v609
      %708 = vmatprep.subr.bf16.mxu0 0
      %709 = vmatpush1.bf16.msra.mxu0 %v610
      %710 = vmatprep.subr.bf16.mxu0 0
      %711 = vmatpush1.bf16.msra.mxu0 %v611
      %712 = vmatprep.subr.bf16.mxu0 0
      %713 = vmatpush1.bf16.msra.mxu0 %v612
      %714 = vmatprep.mubr.bf16.mxu0 %v446
      %715 = vmatmul.mubr.bf16.gmra.mrb[0].mxu0 %v445
      %v716 = vpop.f32.mrb[0].mxu0
      %v717 = vadd.f32 %v283, %v716
      %v718 = vpop.f32.mrb[0].mxu0
      %v719 = vpop.f32.mrb[0].mxu0
      %v720 = vadd.f32 %v283, %v719
      %v721 = vpop.f32.mrb[0].mxu0
      %722 = vmatprep.mubr.bf16.mxu0 %v449
      %723 = vmatmul.mubr.bf16.gmra.mrb[0].mxu0 %v448
      %v724 = vpop.f32.mrb[0].mxu0
      %v725 = vadd.f32 %v283, %v724
      %v726 = vpop.f32.mrb[0].mxu0
      %v727 = vpop.f32.mrb[0].mxu0
      %v728 = vadd.f32 %v283, %v727
      %v729 = vpop.f32.mrb[0].mxu0
      %730 = vmatprep.mubr.bf16.mxu0 %v452
      %731 = vmatmul.mubr.bf16.gmra.mrb[0].mxu0 %v451
      %v732 = vpop.f32.mrb[0].mxu0
      %v733 = vadd.f32 %v283, %v732
      %v734 = vpop.f32.mrb[0].mxu0
      %v735 = vpop.f32.mrb[0].mxu0
      %v736 = vadd.f32 %v283, %v735
      %v737 = vpop.f32.mrb[0].mxu0
      %738 = vmatprep.mubr.bf16.mxu0 %v455
      %739 = vmatmul.mubr.bf16.gmra.mrb[0].mxu0 %v454
      %v740 = vpop.f32.mrb[0].mxu0
      %v741 = vadd.f32 %v283, %v740
      %v742 = vpop.f32.mrb[0].mxu0
      %v743 = vpop.f32.mrb[0].mxu0
      %v744 = vadd.f32 %v283, %v743
      %v745 = vpop.f32.mrb[0].mxu0
      %746 = vmatprep.mubr.bf16.mxu0 %v458
      %747 = vmatmul.mubr.bf16.gmra.mrb[0].mxu0 %v457
      %v748 = vpop.f32.mrb[0].mxu0
      %v749 = vadd.f32 %v283, %v748
      %v750 = vpop.f32.mrb[0].mxu0
      %v751 = vpop.f32.mrb[0].mxu0
      %v752 = vadd.f32 %v283, %v751
      %v753 = vpop.f32.mrb[0].mxu0
      %754 = vmatprep.mubr.bf16.mxu0 %v461
      %755 = vmatmul.mubr.bf16.gmra.mrb[0].mxu0 %v460
      %v756 = vpop.f32.mrb[0].mxu0
      %v757 = vadd.f32 %v283, %v756
      %v758 = vpop.f32.mrb[0].mxu0
      %v759 = vpop.f32.mrb[0].mxu0
      %v760 = vadd.f32 %v283, %v759
      %v761 = vpop.f32.mrb[0].mxu0
      %762 = vmatprep.mubr.bf16.mxu0 %v464
      %763 = vmatmul.mubr.bf16.gmra.mrb[0].mxu0 %v463
      %v764 = vpop.f32.mrb[0].mxu0
      %v765 = vadd.f32 %v283, %v764
      %v766 = vpop.f32.mrb[0].mxu0
      %v767 = vpop.f32.mrb[0].mxu0
      %v768 = vadd.f32 %v283, %v767
      %v769 = vpop.f32.mrb[0].mxu0
      %770 = vmatprep.mubr.bf16.mxu0 %v467
      %771 = vmatmul.mubr.bf16.gmra.mrb[0].mxu0 %v466
      %v772 = vpop.f32.mrb[0].mxu0
      %v773 = vadd.f32 %v283, %v772
      %v774 = vpop.f32.mrb[0].mxu0
      %v775 = vpop.f32.mrb[0].mxu0
      %v776 = vadd.f32 %v283, %v775
      %v777 = vpop.f32.mrb[0].mxu0
      %778 = vmatprep.mubr.bf16.mxu0 %v470
      %779 = vmatmul.mubr.bf16.gmra.mrb[0].mxu0 %v469
      %v780 = vpop.f32.mrb[0].mxu0
      %v781 = vadd.f32 %v283, %v780
      %v782 = vpop.f32.mrb[0].mxu0
      %v783 = vpop.f32.mrb[0].mxu0
      %v784 = vadd.f32 %v283, %v783
      %v785 = vpop.f32.mrb[0].mxu0
      %786 = vmatprep.mubr.bf16.mxu0 %v473
      %787 = vmatmul.mubr.bf16.gmra.mrb[0].mxu0 %v472
      %v788 = vpop.f32.mrb[0].mxu0
      %v789 = vadd.f32 %v283, %v788
      %v790 = vpop.f32.mrb[0].mxu0
      %v791 = vpop.f32.mrb[0].mxu0
      %v792 = vadd.f32 %v283, %v791
      %v793 = vpop.f32.mrb[0].mxu0
      %794 = vmatprep.mubr.bf16.mxu0 %v476
      %795 = vmatmul.mubr.bf16.gmra.mrb[0].mxu0 %v475
      %v796 = vpop.f32.mrb[0].mxu0
      %v797 = vadd.f32 %v283, %v796
      %v798 = vpop.f32.mrb[0].mxu0
      %v799 = vpop.f32.mrb[0].mxu0
      %v800 = vadd.f32 %v283, %v799
      %v801 = vpop.f32.mrb[0].mxu0
      %802 = vmatprep.mubr.bf16.mxu0 %v479
      %803 = vmatmul.mubr.bf16.gmra.mrb[0].mxu0 %v478
      %v804 = vpop.f32.mrb[0].mxu0
      %v805 = vadd.f32 %v283, %v804
      %v806 = vpop.f32.mrb[0].mxu0
      %v807 = vpop.f32.mrb[0].mxu0
      %v808 = vadd.f32 %v283, %v807
      %v809 = vpop.f32.mrb[0].mxu0
      %810 = vmatprep.mubr.bf16.mxu0 %v482
      %811 = vmatmul.mubr.bf16.gmra.mrb[0].mxu0 %v481
      %v812 = vpop.f32.mrb[0].mxu0
      %v813 = vadd.f32 %v283, %v812
      %v814 = vpop.f32.mrb[0].mxu0
      %v815 = vpop.f32.mrb[0].mxu0
      %v816 = vadd.f32 %v283, %v815
      %v817 = vpop.f32.mrb[0].mxu0
      %818 = vmatprep.mubr.bf16.mxu0 %v485
      %819 = vmatmul.mubr.bf16.gmra.mrb[0].mxu0 %v484
      %v820 = vpop.f32.mrb[0].mxu0
      %v821 = vadd.f32 %v283, %v820
      %v822 = vpop.f32.mrb[0].mxu0
      %v823 = vpop.f32.mrb[0].mxu0
      %v824 = vadd.f32 %v283, %v823
      %v825 = vpop.f32.mrb[0].mxu0
      %826 = vmatprep.mubr.bf16.mxu0 %v488
      %827 = vmatmul.mubr.bf16.gmra.mrb[0].mxu0 %v487
      %v828 = vpop.f32.mrb[0].mxu0
      %v829 = vadd.f32 %v283, %v828
      %v830 = vpop.f32.mrb[0].mxu0
      %v831 = vpop.f32.mrb[0].mxu0
      %v832 = vadd.f32 %v283, %v831
      %v833 = vpop.f32.mrb[0].mxu0
      %834 = vmatprep.mubr.bf16.mxu0 %v491
      %835 = vmatmul.mubr.bf16.gmra.mrb[0].mxu0 %v490
      %v836 = vpop.f32.mrb[0].mxu0
      %v837 = vadd.f32 %v283, %v836
      %v838 = vpop.f32.mrb[0].mxu0
      %v839 = vpop.f32.mrb[0].mxu0
      %v840 = vadd.f32 %v283, %v839
      %v841 = vpop.f32.mrb[0].mxu0
      %842 = vdwg.mxu0
      %843 = vmatprep.subr.bf16.mxu0 0
      %844 = vmatpush1.bf16.msra.mxu0 %v613
      %845 = vmatprep.subr.bf16.mxu0 0
      %846 = vmatpush1.bf16.msra.mxu0 %v614
      %847 = vmatprep.subr.bf16.mxu0 0
      %848 = vmatpush1.bf16.msra.mxu0 0
      %849 = vmatprep.subr.bf16.mxu0 0
      %850 = vmatpush1.bf16.msra.mxu0 0
      %851 = vmatprep.subr.bf16.mxu0 0
      %852 = vmatpush1.bf16.msra.mxu0 0
      %853 = vmatprep.subr.bf16.mxu0 0
      %854 = vmatpush1.bf16.msra.mxu0 0
      %855 = vmatprep.subr.bf16.mxu0 0
      %856 = vmatpush1.bf16.msra.mxu0 0
      %857 = vmatprep.subr.bf16.mxu0 0
      %858 = vmatpush1.bf16.msra.mxu0 0
      %859 = vmatprep.subr.bf16.mxu0 0
      %860 = vmatpush1.bf16.msra.mxu0 0
      %861 = vmatprep.subr.bf16.mxu0 0
      %862 = vmatpush1.bf16.msra.mxu0 0
      %863 = vmatprep.subr.bf16.mxu0 0
      %864 = vmatpush1.bf16.msra.mxu0 0
      %865 = vmatprep.subr.bf16.mxu0 0
      %866 = vmatpush1.bf16.msra.mxu0 0
      %867 = vmatprep.subr.bf16.mxu0 0
      %868 = vmatpush1.bf16.msra.mxu0 0
      %869 = vmatprep.subr.bf16.mxu0 0
      %870 = vmatpush1.bf16.msra.mxu0 0
      %871 = vmatprep.subr.bf16.mxu0 0
      %872 = vmatpush1.bf16.msra.mxu0 0
      %873 = vmatprep.subr.bf16.mxu0 0
      %874 = vmatpush1.bf16.msra.mxu0 0
      %875 = vmatprep.mubr.bf16.mxu0 0
      %876 = vmatmul.mubr.bf16.gmra.mrb[0].mxu0 %v635
      %v877 = vpop.f32.mrb[0].mxu0
      %v878 = vadd.f32 %v717, %v877
      %v879 = vpop.f32.mrb[0].mxu0
      %v880 = vpop.f32.mrb[0].mxu0
      %v881 = vadd.f32 %v720, %v880
      %v882 = vpop.f32.mrb[0].mxu0
      %883 = vmatprep.mubr.bf16.mxu0 0
      %884 = vmatmul.mubr.bf16.gmra.mrb[0].mxu0 %v638
      %v885 = vpop.f32.mrb[0].mxu0
      %v886 = vadd.f32 %v725, %v885
      %v887 = vpop.f32.mrb[0].mxu0
      %v888 = vpop.f32.mrb[0].mxu0
      %v889 = vadd.f32 %v728, %v888
      %v890 = vpop.f32.mrb[0].mxu0
      %891 = vmatprep.mubr.bf16.mxu0 0
      %892 = vmatmul.mubr.bf16.gmra.mrb[0].mxu0 %v641
      %v893 = vpop.f32.mrb[0].mxu0
      %v894 = vadd.f32 %v733, %v893
      %v895 = vpop.f32.mrb[0].mxu0
      %v896 = vpop.f32.mrb[0].mxu0
      %v897 = vadd.f32 %v736, %v896
      %v898 = vpop.f32.mrb[0].mxu0
      %899 = vmatprep.mubr.bf16.mxu0 0
      %900 = vmatmul.mubr.bf16.gmra.mrb[0].mxu0 %v644
      %v901 = vpop.f32.mrb[0].mxu0
      %v902 = vadd.f32 %v741, %v901
      %v903 = vpop.f32.mrb[0].mxu0
      %v904 = vpop.f32.mrb[0].mxu0
      %v905 = vadd.f32 %v744, %v904
      %v906 = vpop.f32.mrb[0].mxu0
      %907 = vmatprep.mubr.bf16.mxu0 0
      %908 = vmatmul.mubr.bf16.gmra.mrb[0].mxu0 %v647
      %v909 = vpop.f32.mrb[0].mxu0
      %v910 = vadd.f32 %v749, %v909
      %v911 = vpop.f32.mrb[0].mxu0
      %v912 = vpop.f32.mrb[0].mxu0
      %v913 = vadd.f32 %v752, %v912
      %v914 = vpop.f32.mrb[0].mxu0
      %915 = vmatprep.mubr.bf16.mxu0 0
      %916 = vmatmul.mubr.bf16.gmra.mrb[0].mxu0 %v650
      %v917 = vpop.f32.mrb[0].mxu0
      %v918 = vadd.f32 %v757, %v917
      %v919 = vpop.f32.mrb[0].mxu0
      %v920 = vpop.f32.mrb[0].mxu0
      %v921 = vadd.f32 %v760, %v920
      %v922 = vpop.f32.mrb[0].mxu0
      %923 = vmatprep.mubr.bf16.mxu0 0
      %924 = vmatmul.mubr.bf16.gmra.mrb[0].mxu0 %v653
      %v925 = vpop.f32.mrb[0].mxu0
      %v926 = vadd.f32 %v765, %v925
      %v927 = vpop.f32.mrb[0].mxu0
      %v928 = vpop.f32.mrb[0].mxu0
      %v929 = vadd.f32 %v768, %v928
      %v930 = vpop.f32.mrb[0].mxu0
      %931 = vmatprep.mubr.bf16.mxu0 0
      %932 = vmatmul.mubr.bf16.gmra.mrb[0].mxu0 %v656
      %v933 = vpop.f32.mrb[0].mxu0
      %v934 = vadd.f32 %v773, %v933
      %v935 = vpop.f32.mrb[0].mxu0
      %v936 = vpop.f32.mrb[0].mxu0
      %v937 = vadd.f32 %v776, %v936
      %v938 = vpop.f32.mrb[0].mxu0
      %939 = vmatprep.mubr.bf16.mxu0 0
      %940 = vmatmul.mubr.bf16.gmra.mrb[0].mxu0 %v659
      %v941 = vpop.f32.mrb[0].mxu0
      %v942 = vadd.f32 %v781, %v941
      %v943 = vpop.f32.mrb[0].mxu0
      %v944 = vpop.f32.mrb[0].mxu0
      %v945 = vadd.f32 %v784, %v944
      %v946 = vpop.f32.mrb[0].mxu0
      %947 = vmatprep.mubr.bf16.mxu0 0
      %948 = vmatmul.mubr.bf16.gmra.mrb[0].mxu0 %v662
      %v949 = vpop.f32.mrb[0].mxu0
      %v950 = vadd.f32 %v789, %v949
      %v951 = vpop.f32.mrb[0].mxu0
      %v952 = vpop.f32.mrb[0].mxu0
      %v953 = vadd.f32 %v792, %v952
      %v954 = vpop.f32.mrb[0].mxu0
      %955 = vmatprep.mubr.bf16.mxu0 0
      %956 = vmatmul.mubr.bf16.gmra.mrb[0].mxu0 %v665
      %v957 = vpop.f32.mrb[0].mxu0
      %v958 = vadd.f32 %v797, %v957
      %v959 = vpop.f32.mrb[0].mxu0
      %v960 = vpop.f32.mrb[0].mxu0
      %v961 = vadd.f32 %v800, %v960
      %v962 = vpop.f32.mrb[0].mxu0
      %963 = vmatprep.mubr.bf16.mxu0 0
      %964 = vmatmul.mubr.bf16.gmra.mrb[0].mxu0 %v668
      %v965 = vpop.f32.mrb[0].mxu0
      %v966 = vadd.f32 %v805, %v965
      %v967 = vpop.f32.mrb[0].mxu0
      %v968 = vpop.f32.mrb[0].mxu0
      %v969 = vadd.f32 %v808, %v968
      %v970 = vpop.f32.mrb[0].mxu0
      %971 = vmatprep.mubr.bf16.mxu0 0
      %972 = vmatmul.mubr.bf16.gmra.mrb[0].mxu0 %v671
      %v973 = vpop.f32.mrb[0].mxu0
      %v974 = vadd.f32 %v813, %v973
      %v975 = vpop.f32.mrb[0].mxu0
      %v976 = vpop.f32.mrb[0].mxu0
      %v977 = vadd.f32 %v816, %v976
      %v978 = vpop.f32.mrb[0].mxu0
      %979 = vmatprep.mubr.bf16.mxu0 0
      %980 = vmatmul.mubr.bf16.gmra.mrb[0].mxu0 %v674
      %v981 = vpop.f32.mrb[0].mxu0
      %v982 = vadd.f32 %v821, %v981
      %v983 = vpop.f32.mrb[0].mxu0
      %v984 = vpop.f32.mrb[0].mxu0
      %v985 = vadd.f32 %v824, %v984
      %v986 = vpop.f32.mrb[0].mxu0
      %987 = vmatprep.mubr.bf16.mxu0 0
      %988 = vmatmul.mubr.bf16.gmra.mrb[0].mxu0 %v677
      %v989 = vpop.f32.mrb[0].mxu0
      %v990 = vadd.f32 %v829, %v989
      %v991 = vpop.f32.mrb[0].mxu0
      %v992 = vpop.f32.mrb[0].mxu0
      %v993 = vadd.f32 %v832, %v992
      %v994 = vpop.f32.mrb[0].mxu0
      %995 = vmatprep.mubr.bf16.mxu0 0
      %996 = vmatmul.mubr.bf16.gmra.mrb[0].mxu0 %v680
      %v997 = vpop.f32.mrb[0].mxu0
      %v998 = vadd.f32 %v837, %v997
      %v999 = vpop.f32.mrb[0].mxu0
      %v1000 = vpop.f32.mrb[0].mxu0
      %v1001 = vadd.f32 %v840, %v1000
      %v1002 = vpop.f32.mrb[0].mxu0
      %1003 = vdwg.mxu0
      %vm1004 = vcmp.ge.f32.partialorder %v878, 0.0
      %vm1005 = vcmp.ge.f32.partialorder %v881, 0.0
      %vm1006 = vcmp.ge.f32.partialorder %v886, 0.0
      %vm1007 = vcmp.ge.f32.partialorder %v889, 0.0
      %vm1008 = vcmp.ge.f32.partialorder %v894, 0.0
      %vm1009 = vcmp.ge.f32.partialorder %v897, 0.0
      %vm1010 = vcmp.ge.f32.partialorder %v902, 0.0
      %vm1011 = vcmp.ge.f32.partialorder %v905, 0.0
      %vm1012 = vcmp.ge.f32.partialorder %v910, 0.0
      %vm1013 = vcmp.ge.f32.partialorder %v913, 0.0
      %vm1014 = vcmp.ge.f32.partialorder %v918, 0.0
      %vm1015 = vcmp.ge.f32.partialorder %v921, 0.0
      %vm1016 = vcmp.ge.f32.partialorder %v926, 0.0
      %vm1017 = vcmp.ge.f32.partialorder %v929, 0.0
      %vm1018 = vcmp.ge.f32.partialorder %v934, 0.0
      %vm1019 = vcmp.ge.f32.partialorder %v937, 0.0
      %vm1020 = vcmp.ge.f32.partialorder %v942, 0.0
      %vm1021 = vcmp.ge.f32.partialorder %v945, 0.0
      %vm1022 = vcmp.ge.f32.partialorder %v950, 0.0
      %vm1023 = vcmp.ge.f32.partialorder %v953, 0.0
      %vm1024 = vcmp.ge.f32.partialorder %v958, 0.0
      %vm1025 = vcmp.ge.f32.partialorder %v961, 0.0
      %vm1026 = vcmp.ge.f32.partialorder %v966, 0.0
      %vm1027 = vcmp.ge.f32.partialorder %v969, 0.0
      %vm1028 = vcmp.ge.f32.partialorder %v974, 0.0
      %vm1029 = vcmp.ge.f32.partialorder %v977, 0.0
      %vm1030 = vcmp.ge.f32.partialorder %v982, 0.0
      %vm1031 = vcmp.ge.f32.partialorder %v985, 0.0
      %vm1032 = vcmp.ge.f32.partialorder %v990, 0.0
      %vm1033 = vcmp.ge.f32.partialorder %v993, 0.0
      %vm1034 = vcmp.ge.f32.partialorder %v998, 0.0
      %vm1035 = vcmp.ge.f32.partialorder %v1001, 0.0
      %v1036 = vmul.f32 %v878, 0.2
      %v1037 = vmul.f32 %v881, 0.2
      %v1038 = vmul.f32 %v886, 0.2
      %v1039 = vmul.f32 %v889, 0.2
      %v1040 = vmul.f32 %v894, 0.2
      %v1041 = vmul.f32 %v897, 0.2
      %v1042 = vmul.f32 %v902, 0.2
      %v1043 = vmul.f32 %v905, 0.2
      %v1044 = vmul.f32 %v910, 0.2
      %v1045 = vmul.f32 %v913, 0.2
      %v1046 = vmul.f32 %v918, 0.2
      %v1047 = vmul.f32 %v921, 0.2
      %v1048 = vmul.f32 %v926, 0.2
      %v1049 = vmul.f32 %v929, 0.2
      %v1050 = vmul.f32 %v934, 0.2
      %v1051 = vmul.f32 %v937, 0.2
      %v1052 = vmul.f32 %v942, 0.2
      %v1053 = vmul.f32 %v945, 0.2
      %v1054 = vmul.f32 %v950, 0.2
      %v1055 = vmul.f32 %v953, 0.2
      %v1056 = vmul.f32 %v958, 0.2
      %v1057 = vmul.f32 %v961, 0.2
      %v1058 = vmul.f32 %v966, 0.2
      %v1059 = vmul.f32 %v969, 0.2
      %v1060 = vmul.f32 %v974, 0.2
      %v1061 = vmul.f32 %v977, 0.2
      %v1062 = vmul.f32 %v982, 0.2
      %v1063 = vmul.f32 %v985, 0.2
      %v1064 = vmul.f32 %v990, 0.2
      %v1065 = vmul.f32 %v993, 0.2
      %v1066 = vmul.f32 %v998, 0.2
      %v1067 = vmul.f32 %v1001, 0.2
      %v1068 = vsel %vm1004, %v878, %v1036
      %v1069 = vsel %vm1005, %v881, %v1037
      %v1070 = vsel %vm1006, %v886, %v1038
      %v1071 = vsel %vm1007, %v889, %v1039
      %v1072 = vsel %vm1008, %v894, %v1040
      %v1073 = vsel %vm1009, %v897, %v1041
      %v1074 = vsel %vm1010, %v902, %v1042
      %v1075 = vsel %vm1011, %v905, %v1043
      %v1076 = vsel %vm1012, %v910, %v1044
      %v1077 = vsel %vm1013, %v913, %v1045
      %v1078 = vsel %vm1014, %v918, %v1046
      %v1079 = vsel %vm1015, %v921, %v1047
      %v1080 = vsel %vm1016, %v926, %v1048
      %v1081 = vsel %vm1017, %v929, %v1049
      %v1082 = vsel %vm1018, %v934, %v1050
      %v1083 = vsel %vm1019, %v937, %v1051
      %v1084 = vsel %vm1020, %v942, %v1052
      %v1085 = vsel %vm1021, %v945, %v1053
      %v1086 = vsel %vm1022, %v950, %v1054
      %v1087 = vsel %vm1023, %v953, %v1055
      %v1088 = vsel %vm1024, %v958, %v1056
      %v1089 = vsel %vm1025, %v961, %v1057
      %v1090 = vsel %vm1026, %v966, %v1058
      %v1091 = vsel %vm1027, %v969, %v1059
      %v1092 = vsel %vm1028, %v974, %v1060
      %v1093 = vsel %vm1029, %v977, %v1061
      %v1094 = vsel %vm1030, %v982, %v1062
      %v1095 = vsel %vm1031, %v985, %v1063
      %v1096 = vsel %vm1032, %v990, %v1064
      %v1097 = vsel %vm1033, %v993, %v1065
      %v1098 = vsel %vm1034, %v998, %v1066
      %v1099 = vsel %vm1035, %v1001, %v1067
      %v1100 = vpack.c.bf16 %v1069, %v1068
      %v1101 = vpack.c.bf16 %v1071, %v1070
      %v1102 = vpack.c.bf16 %v1073, %v1072
      %v1103 = vpack.c.bf16 %v1075, %v1074
      %v1104 = vpack.c.bf16 %v1077, %v1076
      %v1105 = vpack.c.bf16 %v1079, %v1078
      %v1106 = vpack.c.bf16 %v1081, %v1080
      %v1107 = vpack.c.bf16 %v1083, %v1082
      %v1108 = vpack.c.bf16 %v1085, %v1084
      %v1109 = vpack.c.bf16 %v1087, %v1086
      %v1110 = vpack.c.bf16 %v1089, %v1088
      %v1111 = vpack.c.bf16 %v1091, %v1090
      %v1112 = vpack.c.bf16 %v1093, %v1092
      %v1113 = vpack.c.bf16 %v1095, %v1094
      %v1114 = vpack.c.bf16 %v1097, %v1096
      %v1115 = vpack.c.bf16 %v1099, %v1098
      %v1132 = vunpack.c.l.b16 %v1100
      %v1133 = vunpack.c.h.b16 %v1100
      %v1134 = vunpack.c.l.b16 %v1101
      %v1135 = vunpack.c.h.b16 %v1101
      %v1136 = vunpack.c.l.b16 %v1102
      %v1137 = vunpack.c.h.b16 %v1102
      %v1138 = vunpack.c.l.b16 %v1103
      %v1139 = vunpack.c.h.b16 %v1103
      %v1140 = vunpack.c.l.b16 %v1104
      %v1141 = vunpack.c.h.b16 %v1104
      %v1142 = vunpack.c.l.b16 %v1105
      %v1143 = vunpack.c.h.b16 %v1105
      %v1144 = vunpack.c.l.b16 %v1106
      %v1145 = vunpack.c.h.b16 %v1106
      %v1146 = vunpack.c.l.b16 %v1107
      %v1147 = vunpack.c.h.b16 %v1107
      %v1148 = vunpack.c.l.b16 %v1108
      %v1149 = vunpack.c.h.b16 %v1108
      %v1150 = vunpack.c.l.b16 %v1109
      %v1151 = vunpack.c.h.b16 %v1109
      %v1152 = vunpack.c.l.b16 %v1110
      %v1153 = vunpack.c.h.b16 %v1110
      %v1154 = vunpack.c.l.b16 %v1111
      %v1155 = vunpack.c.h.b16 %v1111
      %v1156 = vunpack.c.l.b16 %v1112
      %v1157 = vunpack.c.h.b16 %v1112
      %v1158 = vunpack.c.l.b16 %v1113
      %v1159 = vunpack.c.h.b16 %v1113
      %v1160 = vunpack.c.l.b16 %v1114
      %v1161 = vunpack.c.h.b16 %v1114
      %v1162 = vunpack.c.l.b16 %v1115
      %v1163 = vunpack.c.h.b16 %v1115
      %v1164 = vpack.c.b16 %v1132, %v1132
      %v1165 = vpack.c.b16 %v1133, %v1133
      %v1166 = vpack.c.b16 %v1134, %v1134
      %v1167 = vpack.c.b16 %v1135, %v1135
      %v1168 = vpack.c.b16 %v1136, %v1136
      %v1169 = vpack.c.b16 %v1137, %v1137
      %v1170 = vpack.c.b16 %v1138, %v1138
      %v1171 = vpack.c.b16 %v1139, %v1139
      %v1172 = vpack.c.b16 %v1140, %v1140
      %v1173 = vpack.c.b16 %v1141, %v1141
      %v1174 = vpack.c.b16 %v1142, %v1142
      %v1175 = vpack.c.b16 %v1143, %v1143
      %v1176 = vpack.c.b16 %v1144, %v1144
      %v1177 = vpack.c.b16 %v1145, %v1145
      %v1178 = vpack.c.b16 %v1146, %v1146
      %v1179 = vpack.c.b16 %v1147, %v1147
      %v1180 = vpack.c.b16 %v1148, %v1148
      %v1181 = vpack.c.b16 %v1149, %v1149
      %v1182 = vpack.c.b16 %v1150, %v1150
      %v1183 = vpack.c.b16 %v1151, %v1151
      %v1184 = vpack.c.b16 %v1152, %v1152
      %v1185 = vpack.c.b16 %v1153, %v1153
      %v1186 = vpack.c.b16 %v1154, %v1154
      %v1187 = vpack.c.b16 %v1155, %v1155
      %v1188 = vpack.c.b16 %v1156, %v1156
      %v1189 = vpack.c.b16 %v1157, %v1157
      %v1190 = vpack.c.b16 %v1158, %v1158
      %v1191 = vpack.c.b16 %v1159, %v1159
      %v1192 = vpack.c.b16 %v1160, %v1160
      %v1193 = vpack.c.b16 %v1161, %v1161
      %v1194 = vpack.c.b16 %v1162, %v1162
      %v1195 = vpack.c.b16 %v1163, %v1163
      %vm1228 = vcmask 125952
      %1229 = vst.msk [vmem:[%s175] sm:$0xf] %vm1228, %v1164
      %1230 = vst.msk [vmem:[%s175 + $0x4] sm:$0xf] %vm1228, %v1165
      %1231 = vst.msk [vmem:[%s175 + $0x8] sm:$0xf] %vm1228, %v1166
      %1232 = vst.msk [vmem:[%s175 + $0xc] sm:$0xf] %vm1228, %v1167
      %1233 = vst.msk [vmem:[%s175 + $0x10] sm:$0xf] %vm1228, %v1168
      %1234 = vst.msk [vmem:[%s175 + $0x14] sm:$0xf] %vm1228, %v1169
      %1235 = vst.msk [vmem:[%s175 + $0x18] sm:$0xf] %vm1228, %v1170
      %1236 = vst.msk [vmem:[%s175 + $0x1c] sm:$0xf] %vm1228, %v1171
      %1237 = vst.msk [vmem:[%s175 + $0x20] sm:$0xf] %vm1228, %v1172
      %1238 = vst.msk [vmem:[%s175 + $0x24] sm:$0xf] %vm1228, %v1173
      %1239 = vst.msk [vmem:[%s175 + $0x28] sm:$0xf] %vm1228, %v1174
      %1240 = vst.msk [vmem:[%s175 + $0x2c] sm:$0xf] %vm1228, %v1175
      %1241 = vst.msk [vmem:[%s175 + $0x30] sm:$0xf] %vm1228, %v1176
      %1242 = vst.msk [vmem:[%s175 + $0x34] sm:$0xf] %vm1228, %v1177
      %1243 = vst.msk [vmem:[%s175 + $0x38] sm:$0xf] %vm1228, %v1178
      %1244 = vst.msk [vmem:[%s175 + $0x3c] sm:$0xf] %vm1228, %v1179
      %1245 = vst.msk [vmem:[%s175 + $0x40] sm:$0xf] %vm1228, %v1180
      %1246 = vst.msk [vmem:[%s175 + $0x44] sm:$0xf] %vm1228, %v1181
      %1247 = vst.msk [vmem:[%s175 + $0x48] sm:$0xf] %vm1228, %v1182
      %1248 = vst.msk [vmem:[%s175 + $0x4c] sm:$0xf] %vm1228, %v1183
      %1249 = vst.msk [vmem:[%s175 + $0x50] sm:$0xf] %vm1228, %v1184
      %1250 = vst.msk [vmem:[%s175 + $0x54] sm:$0xf] %vm1228, %v1185
      %1251 = vst.msk [vmem:[%s175 + $0x58] sm:$0xf] %vm1228, %v1186
      %1252 = vst.msk [vmem:[%s175 + $0x5c] sm:$0xf] %vm1228, %v1187
      %1253 = vst.msk [vmem:[%s175 + $0x60] sm:$0xf] %vm1228, %v1188
      %1254 = vst.msk [vmem:[%s175 + $0x64] sm:$0xf] %vm1228, %v1189
      %1255 = vst.msk [vmem:[%s175 + $0x68] sm:$0xf] %vm1228, %v1190
      %1256 = vst.msk [vmem:[%s175 + $0x6c] sm:$0xf] %vm1228, %v1191
      %1257 = vst.msk [vmem:[%s175 + $0x70] sm:$0xf] %vm1228, %v1192
      %1258 = vst.msk [vmem:[%s175 + $0x74] sm:$0xf] %vm1228, %v1193
      %1259 = vst.msk [vmem:[%s175 + $0x78] sm:$0xf] %vm1228, %v1194
      %1260 = vst.msk [vmem:[%s175 + $0x7c] sm:$0xf] %vm1228, %v1195
      %s1261 = smul.u32 32, %s14
      %p1262 = scmp.lt.s32.totalorder %s1261, 63
      %s1263 = scalar_select %p1262, %s1261, 63
      %s1264 = smul.addr %s1263, 4
      %s1265 = scalar_lea.vmem %s3, %s1264
      // Predicated region
      $region33: #{encoder_forward.5} parent=31 // pred_check
        %p1266 = pneg %p100
      $region34: #{encoder_forward.5} parent=31 // pred_check_branch
        %1268 = sbr.rel (%p1266) target = $region36
      $region35: #{encoder_forward.5} parent=31 // pred_region
        %s1269 = smul.u32 32, %s14
      $region36: #{encoder_forward.5} parent=31 // pred_fallthru
        _
    $region32: #{encoder_forward.5} parent=5 // pred_fallthru
      _
    %p1270 = scmp.le.s32.totalorder 2, %s9
    // Predicated region
    $region37: #{encoder_forward.5} parent=5 // pred_check
      %p1271 = pneg %p1270
    $region38: #{encoder_forward.5} parent=5 // pred_check_branch
      %1273 = sbr.rel (%p1271) target = $region40
    $region39: #{encoder_forward.5} parent=5 // pred_region
      %s1274 = ssub.s32 %s9, 2
      // Predicated region
      $region41: #{encoder_forward.5} parent=39 // pred_check
        %p1275 = pneg %p106
      $region42: #{encoder_forward.5} parent=39 // pred_check_branch
        %1277 = sbr.rel (%p1275) target = $region44
      $region43: #{encoder_forward.5} parent=39 // pred_region
        %s1278 = smul.u32 32, %s15
        %p1279 = scmp.lt.s32.totalorder %s1278, 63
        %s1280 = scalar_select %p1279, %s1278, 63
        %s1281 = smul.addr %s1280, 4
        %s1282 = scalar_lea.vmem %s3, %s1281
      $region44: #{encoder_forward.5} parent=39 // pred_fallthru
        _
    $region40: #{encoder_forward.5} parent=5 // pred_fallthru
      _
  $region6: #{encoder_forward.5} parent=0 // loop_footer
    %s13 = sadd.s32 1, %s9
  $region7: #{encoder_forward.5} parent=0 // loop_footer_branch
    %8 = sbr.rel target = $region3
  $region8: #{encoder_forward.5} parent=0 // loop_exit
    _

// kernel: encoder_forward.6
$region0: #{encoder_forward.6}
  #allocation0 [shape = 'u32[]', space=smem, size = 0x4, offset = 0x4, fixed_abs, tag = 'smem constant byte address 0x4 - core index']
  #allocation1 [shape = 'u32[144,128]{1,0:T(1,128)}', space=vmem, size = 0x12000, scoped, tag = 'internal scratch']
  %s0 = inlined_call_operand.vmem [shape: bf16[392,144], index: 0, kind: input, shape index: {}]
  %s1 = inlined_call_operand.vmem [shape: bf16[144,240], index: 1, kind: input, shape index: {}]
  %s2 = inlined_call_operand.vmem [shape: f32[1,240], index: 2, kind: input, shape index: {}]
  %s3 = inlined_call_operand.vmem [shape: bf16[392,240], index: 3, kind: output, shape index: {}]
  %s4 = sld [smem:[#allocation0]]
  $region22: #{encoder_forward.6} parent=0
    _
  %s6 = ssub.s32 1, %s4
  %s7 = scalar_select 0, %s6, %s4
  // Predicated region
  $region2: #{encoder_forward.6} parent=0 // pred_check
    _
  $region3: #{encoder_forward.6} parent=0 // pred_check_branch
    %9 = sbr.rel (0) target = $region5
  $region4: #{encoder_forward.6} parent=0 // pred_region
    _
  $region5: #{encoder_forward.6} parent=0 // pred_fallthru
    _
  // Predicated region
  $region6: #{encoder_forward.6} parent=0 // pred_check
    _
  $region7: #{encoder_forward.6} parent=0 // pred_check_branch
    %11 = sbr.rel (0) target = $region9
  $region8: #{encoder_forward.6} parent=0 // pred_region
    _
  $region9: #{encoder_forward.6} parent=0 // pred_fallthru
    _
  // Predicated region
  $region10: #{encoder_forward.6} parent=0 // pred_check
    _
  $region11: #{encoder_forward.6} parent=0 // pred_check_branch
    %13 = sbr.rel (0) target = $region13
  $region12: #{encoder_forward.6} parent=0 // pred_region
    _
  $region13: #{encoder_forward.6} parent=0 // pred_fallthru
    _
  %v15 = vld [vmem:[%s0] sm:$0xff]
  %v16 = vld [vmem:[%s0 + $0x8] sm:$0xff]
  %v17 = vld [vmem:[%s0 + $0x10] sm:$0xff]
  %v18 = vld [vmem:[%s0 + $0x18] sm:$0xff]
  %v19 = vld [vmem:[%s0 + $0x20] sm:$0xff]
  %v20 = vld [vmem:[%s0 + $0x28] sm:$0xff]
  %v21 = vld [vmem:[%s0 + $0x30] sm:$0xff]
  %v22 = vld [vmem:[%s0 + $0x38] sm:$0xff]
  %v23 = vld [vmem:[%s0 + $0x40] sm:$0xff]
  %v24 = vld [vmem:[%s0 + $0x48] sm:$0xff]
  %v25 = vld [vmem:[%s0 + $0x50] sm:$0xff]
  %v26 = vld [vmem:[%s0 + $0x58] sm:$0xff]
  %v27 = vld [vmem:[%s0 + $0x60] sm:$0xff]
  %v28 = vld [vmem:[%s0 + $0x68] sm:$0xff]
  %v29 = vld [vmem:[%s0 + $0x70] sm:$0xff]
  %v30 = vld [vmem:[%s0 + $0x78] sm:$0xff]
  %v31 = vld [vmem:[%s0 + $0x80] sm:$0xff]
  %v32 = vld [vmem:[%s0 + $0x88] sm:$0xff]
  %v33 = vld [vmem:[%s0 + $0x90] sm:$0xff]
  %v34 = vld [vmem:[%s0 + $0x98] sm:$0xff]
  %v35 = vld [vmem:[%s0 + $0xa0] sm:$0xff]
  %v36 = vld [vmem:[%s0 + $0xa8] sm:$0xff]
  %v37 = vld [vmem:[%s0 + $0xb0] sm:$0xff]
  %v38 = vld [vmem:[%s0 + $0xb8] sm:$0xff]
  %v39 = vld [vmem:[%s0 + $0xc0] sm:$0xff]
  %v40 = vld [vmem:[%s0 + $0xc8] sm:$0xff]
  %v41 = vld [vmem:[%s0 + $0xd0] sm:$0xff]
  %v42 = vld [vmem:[%s0 + $0xd8] sm:$0xff]
  %v43 = vld [vmem:[%s0 + $0xe0] sm:$0xff]
  %v44 = vld [vmem:[%s0 + $0xe8] sm:$0xff]
  %v45 = vld [vmem:[%s0 + $0xf0] sm:$0xff]
  %v46 = vld [vmem:[%s0 + $0xf8] sm:$0xff]
  %v47 = vld [vmem:[%s0 + $0x100] sm:$0xff]
  %v48 = vld [vmem:[%s0 + $0x108] sm:$0xff]
  %v49 = vld [vmem:[%s0 + $0x110] sm:$0xff]
  %v50 = vld [vmem:[%s0 + $0x118] sm:$0xff]
  %v51 = vld [vmem:[%s0 + $0x120] sm:$0xff]
  %v52 = vld [vmem:[%s0 + $0x128] sm:$0xff]
  %v53 = vld [vmem:[%s0 + $0x130] sm:$0xff]
  %v54 = vld [vmem:[%s0 + $0x138] sm:$0xff]
  %v55 = vld [vmem:[%s0 + $0x140] sm:$0xff]
  %v56 = vld [vmem:[%s0 + $0x148] sm:$0xff]
  %v57 = vld [vmem:[%s0 + $0x150] sm:$0xff]
  %v58 = vld [vmem:[%s0 + $0x158] sm:$0xff]
  %v59 = vld [vmem:[%s0 + $0x160] sm:$0xff]
  %v60 = vld [vmem:[%s0 + $0x168] sm:$0xff]
  %v61 = vld [vmem:[%s0 + $0x170] sm:$0xff]
  %v62 = vld [vmem:[%s0 + $0x178] sm:$0xff]
  %v63 = vld [vmem:[%s0 + $0x180] sm:$0xff]
  %v64 = vld [vmem:[%s1] sm:$0xff]
  %v65 = vld [vmem:[%s1 + $0x8] sm:$0xff]
  %v66 = vld [vmem:[%s1 + $0x10] sm:$0xff]
  %v67 = vld [vmem:[%s1 + $0x18] sm:$0xff]
  %v68 = vld [vmem:[%s1 + $0x20] sm:$0xff]
  %v69 = vld [vmem:[%s1 + $0x28] sm:$0xff]
  %v70 = vld [vmem:[%s1 + $0x30] sm:$0xff]
  %v71 = vld [vmem:[%s1 + $0x38] sm:$0xff]
  %v72 = vld [vmem:[%s1 + $0x40] sm:$0xff]
  %v73 = vld [vmem:[%s1 + $0x48] sm:$0xff]
  %v74 = vld [vmem:[%s1 + $0x50] sm:$0xff]
  %v75 = vld [vmem:[%s1 + $0x58] sm:$0xff]
  %v76 = vld [vmem:[%s1 + $0x60] sm:$0xff]
  %v77 = vld [vmem:[%s1 + $0x68] sm:$0xff]
  %v78 = vld [vmem:[%s1 + $0x70] sm:$0xff]
  %v79 = vld [vmem:[%s1 + $0x78] sm:$0xff]
  %v80 = vld [vmem:[%s1 + $0x80] sm:$0xff]
  %v81 = vld [vmem:[%s1 + $0x88] sm:$0xff]
  %v82 = vld [vmem:[%s2] sm:$0x3]
  %v84 = vlaneseq
  %v85 = vshrl.u32 %v84, 7
  %v86 = vsub.s32 0, %v85
  %v87 = vrot.slane %v82, %v86
  %v88 = vlaneseq
  %v89 = vshrl.u32 %v88, 7
  %v90 = vsub.s32 1, %v89
  %v91 = vrot.slane %v82, %v90
  %v143 = vunpack.c.l.b16 %v15
  %v144 = vunpack.c.h.b16 %v15
  %v145 = vunpack.c.l.b16 %v16
  %v146 = vunpack.c.h.b16 %v16
  %v147 = vunpack.c.l.b16 %v17
  %v148 = vunpack.c.h.b16 %v17
  %v149 = vunpack.c.l.b16 %v18
  %v150 = vunpack.c.h.b16 %v18
  %v151 = vunpack.c.l.b16 %v19
  %v152 = vunpack.c.h.b16 %v19
  %v153 = vunpack.c.l.b16 %v20
  %v154 = vunpack.c.h.b16 %v20
  %v155 = vunpack.c.l.b16 %v21
  %v156 = vunpack.c.h.b16 %v21
  %v157 = vunpack.c.l.b16 %v22
  %v158 = vunpack.c.h.b16 %v22
  %v159 = vunpack.c.l.b16 %v23
  %v160 = vunpack.c.h.b16 %v23
  %v161 = vunpack.c.l.b16 %v24
  %v162 = vunpack.c.h.b16 %v24
  %v163 = vunpack.c.l.b16 %v25
  %v164 = vunpack.c.h.b16 %v25
  %v165 = vunpack.c.l.b16 %v26
  %v166 = vunpack.c.h.b16 %v26
  %v167 = vunpack.c.l.b16 %v27
  %v168 = vunpack.c.h.b16 %v27
  %v169 = vunpack.c.l.b16 %v28
  %v170 = vunpack.c.h.b16 %v28
  %v171 = vunpack.c.l.b16 %v29
  %v172 = vunpack.c.h.b16 %v29
  %v173 = vunpack.c.l.b16 %v30
  %v174 = vunpack.c.h.b16 %v30
  %v175 = vunpack.c.l.b16 %v31
  %v176 = vunpack.c.h.b16 %v31
  %v177 = vunpack.c.l.b16 %v32
  %v178 = vunpack.c.h.b16 %v32
  %v179 = vunpack.c.l.b16 %v33
  %v180 = vunpack.c.h.b16 %v33
  %v181 = vunpack.c.l.b16 %v34
  %v182 = vunpack.c.h.b16 %v34
  %v183 = vunpack.c.l.b16 %v35
  %v184 = vunpack.c.h.b16 %v35
  %v185 = vunpack.c.l.b16 %v36
  %v186 = vunpack.c.h.b16 %v36
  %v187 = vunpack.c.l.b16 %v37
  %v188 = vunpack.c.h.b16 %v37
  %v189 = vunpack.c.l.b16 %v38
  %v190 = vunpack.c.h.b16 %v38
  %v191 = vunpack.c.l.b16 %v39
  %v192 = vunpack.c.h.b16 %v39
  %v193 = vunpack.c.l.b16 %v40
  %v194 = vunpack.c.h.b16 %v40
  %v195 = vunpack.c.l.b16 %v41
  %v196 = vunpack.c.h.b16 %v41
  %v197 = vunpack.c.l.b16 %v42
  %v198 = vunpack.c.h.b16 %v42
  %v199 = vunpack.c.l.b16 %v43
  %v200 = vunpack.c.h.b16 %v43
  %v201 = vunpack.c.l.b16 %v44
  %v202 = vunpack.c.h.b16 %v44
  %v203 = vunpack.c.l.b16 %v45
  %v204 = vunpack.c.h.b16 %v45
  %v205 = vunpack.c.l.b16 %v46
  %v206 = vunpack.c.h.b16 %v46
  %v207 = vunpack.c.l.b16 %v47
  %v208 = vunpack.c.h.b16 %v47
  %v209 = vunpack.c.l.b16 %v48
  %v210 = vunpack.c.h.b16 %v48
  %v211 = vunpack.c.l.b16 %v49
  %v212 = vunpack.c.h.b16 %v49
  %v213 = vunpack.c.l.b16 %v50
  %v214 = vunpack.c.h.b16 %v50
  %v215 = vunpack.c.l.b16 %v51
  %v216 = vunpack.c.h.b16 %v51
  %v217 = vunpack.c.l.b16 %v52
  %v218 = vunpack.c.h.b16 %v52
  %v219 = vunpack.c.l.b16 %v53
  %v220 = vunpack.c.h.b16 %v53
  %v221 = vunpack.c.l.b16 %v54
  %v222 = vunpack.c.h.b16 %v54
  %v223 = vunpack.c.l.b16 %v55
  %v224 = vunpack.c.h.b16 %v55
  %v225 = vunpack.c.l.b16 %v56
  %v226 = vunpack.c.h.b16 %v56
  %v227 = vunpack.c.l.b16 %v57
  %v228 = vunpack.c.h.b16 %v57
  %v229 = vunpack.c.l.b16 %v58
  %v230 = vunpack.c.h.b16 %v58
  %v231 = vunpack.c.l.b16 %v59
  %v232 = vunpack.c.h.b16 %v59
  %v233 = vunpack.c.l.b16 %v60
  %v234 = vunpack.c.h.b16 %v60
  %v235 = vunpack.c.l.b16 %v61
  %v236 = vunpack.c.h.b16 %v61
  %v237 = vunpack.c.l.b16 %v62
  %v238 = vunpack.c.h.b16 %v62
  %v239 = vunpack.c.l.b16 %v63
  %v240 = vunpack.c.h.b16 %v63
  %v241 = vpack.c.b16 %v145, %v143
  %v242 = vpack.c.b16 %v146, %v144
  %v243 = vpack.c.b16 %v149, %v147
  %v244 = vpack.c.b16 %v150, %v148
  %v245 = vpack.c.b16 %v153, %v151
  %v246 = vpack.c.b16 %v154, %v152
  %v247 = vpack.c.b16 %v157, %v155
  %v248 = vpack.c.b16 %v158, %v156
  %v249 = vpack.c.b16 %v161, %v159
  %v250 = vpack.c.b16 %v162, %v160
  %v251 = vpack.c.b16 %v165, %v163
  %v252 = vpack.c.b16 %v166, %v164
  %v253 = vpack.c.b16 %v169, %v167
  %v254 = vpack.c.b16 %v170, %v168
  %v255 = vpack.c.b16 %v173, %v171
  %v256 = vpack.c.b16 %v174, %v172
  %v257 = vpack.c.b16 %v177, %v175
  %v258 = vpack.c.b16 %v178, %v176
  %v259 = vpack.c.b16 %v181, %v179
  %v260 = vpack.c.b16 %v182, %v180
  %v261 = vpack.c.b16 %v185, %v183
  %v262 = vpack.c.b16 %v186, %v184
  %v263 = vpack.c.b16 %v189, %v187
  %v264 = vpack.c.b16 %v190, %v188
  %v265 = vpack.c.b16 %v193, %v191
  %v266 = vpack.c.b16 %v194, %v192
  %v267 = vpack.c.b16 %v197, %v195
  %v268 = vpack.c.b16 %v198, %v196
  %v269 = vpack.c.b16 %v201, %v199
  %v270 = vpack.c.b16 %v202, %v200
  %v271 = vpack.c.b16 %v205, %v203
  %v272 = vpack.c.b16 %v206, %v204
  %v273 = vpack.c.b16 %v209, %v207
  %v274 = vpack.c.b16 %v210, %v208
  %v275 = vpack.c.b16 %v213, %v211
  %v276 = vpack.c.b16 %v214, %v212
  %v277 = vpack.c.b16 %v217, %v215
  %v278 = vpack.c.b16 %v218, %v216
  %v279 = vpack.c.b16 %v221, %v219
  %v280 = vpack.c.b16 %v222, %v220
  %v281 = vpack.c.b16 %v225, %v223
  %v282 = vpack.c.b16 %v226, %v224
  %v283 = vpack.c.b16 %v229, %v227
  %v284 = vpack.c.b16 %v230, %v228
  %v285 = vpack.c.b16 %v233, %v231
  %v286 = vpack.c.b16 %v234, %v232
  %v287 = vpack.c.b16 %v237, %v235
  %v288 = vpack.c.b16 %v238, %v236
  %v289 = vpack.c.b16 %v239, %v239
  %v290 = vpack.c.b16 %v240, %v240
  %v334 = vunpack.c.l.b16 %v64
  %v335 = vunpack.c.h.b16 %v64
  %v336 = vunpack.c.l.b16 %v65
  %v337 = vunpack.c.h.b16 %v65
  %v338 = vunpack.c.l.b16 %v66
  %v339 = vunpack.c.h.b16 %v66
  %v340 = vunpack.c.l.b16 %v67
  %v341 = vunpack.c.h.b16 %v67
  %v342 = vunpack.c.l.b16 %v68
  %v343 = vunpack.c.h.b16 %v68
  %v344 = vunpack.c.l.b16 %v69
  %v345 = vunpack.c.h.b16 %v69
  %v346 = vunpack.c.l.b16 %v70
  %v347 = vunpack.c.h.b16 %v70
  %v348 = vunpack.c.l.b16 %v71
  %v349 = vunpack.c.h.b16 %v71
  %v350 = vunpack.c.l.b16 %v72
  %v351 = vunpack.c.h.b16 %v72
  %v352 = vunpack.c.l.b16 %v73
  %v353 = vunpack.c.h.b16 %v73
  %v354 = vunpack.c.l.b16 %v74
  %v355 = vunpack.c.h.b16 %v74
  %v356 = vunpack.c.l.b16 %v75
  %v357 = vunpack.c.h.b16 %v75
  %v358 = vunpack.c.l.b16 %v76
  %v359 = vunpack.c.h.b16 %v76
  %v360 = vunpack.c.l.b16 %v77
  %v361 = vunpack.c.h.b16 %v77
  %v362 = vunpack.c.l.b16 %v78
  %v363 = vunpack.c.h.b16 %v78
  %v364 = vunpack.c.l.b16 %v79
  %v365 = vunpack.c.h.b16 %v79
  %v366 = vunpack.c.l.b16 %v80
  %v367 = vunpack.c.h.b16 %v80
  %v368 = vunpack.c.l.b16 %v81
  %v369 = vunpack.c.h.b16 %v81
  %v370 = vpack.c.b16 %v336, %v334
  %v371 = vpack.c.b16 %v337, %v335
  %v372 = vpack.c.b16 %v340, %v338
  %v373 = vpack.c.b16 %v341, %v339
  %v374 = vpack.c.b16 %v344, %v342
  %v375 = vpack.c.b16 %v345, %v343
  %v376 = vpack.c.b16 %v348, %v346
  %v377 = vpack.c.b16 %v349, %v347
  %v378 = vpack.c.b16 %v352, %v350
  %v379 = vpack.c.b16 %v353, %v351
  %v380 = vpack.c.b16 %v356, %v354
  %v381 = vpack.c.b16 %v357, %v355
  %v382 = vpack.c.b16 %v360, %v358
  %v383 = vpack.c.b16 %v361, %v359
  %v384 = vpack.c.b16 %v364, %v362
  %v385 = vpack.c.b16 %v365, %v363
  %v386 = vpack.c.b16 %v368, %v366
  %v387 = vpack.c.b16 %v369, %v367
  %vm406 = vcmask 130048
  %v408 = vsel %vm406, %v242, 0
  %v411 = vsel %vm406, %v244, 0
  %v414 = vsel %vm406, %v246, 0
  %v417 = vsel %vm406, %v248, 0
  %v420 = vsel %vm406, %v250, 0
  %v423 = vsel %vm406, %v252, 0
  %v426 = vsel %vm406, %v254, 0
  %v429 = vsel %vm406, %v256, 0
  %v432 = vsel %vm406, %v258, 0
  %v435 = vsel %vm406, %v260, 0
  %v438 = vsel %vm406, %v262, 0
  %v441 = vsel %vm406, %v264, 0
  %v444 = vsel %vm406, %v266, 0
  %v447 = vsel %vm406, %v268, 0
  %v450 = vsel %vm406, %v270, 0
  %v453 = vsel %vm406, %v272, 0
  %v456 = vsel %vm406, %v274, 0
  %v459 = vsel %vm406, %v276, 0
  %v462 = vsel %vm406, %v278, 0
  %v465 = vsel %vm406, %v280, 0
  %v468 = vsel %vm406, %v282, 0
  %v471 = vsel %vm406, %v284, 0
  %v474 = vsel %vm406, %v286, 0
  %v477 = vsel %vm406, %v288, 0
  %v480 = vsel %vm406, %v290, 0
  %482 = vmatprep.subr.bf16.mxu0 %v371
  %483 = vmatpush1.bf16.msra.mxu0 %v370
  %484 = vmatprep.subr.bf16.mxu0 %v373
  %485 = vmatpush1.bf16.msra.mxu0 %v372
  %486 = vmatprep.subr.bf16.mxu0 %v375
  %487 = vmatpush1.bf16.msra.mxu0 %v374
  %488 = vmatprep.subr.bf16.mxu0 %v377
  %489 = vmatpush1.bf16.msra.mxu0 %v376
  %490 = vmatprep.subr.bf16.mxu0 %v379
  %491 = vmatpush1.bf16.msra.mxu0 %v378
  %492 = vmatprep.subr.bf16.mxu0 %v381
  %493 = vmatpush1.bf16.msra.mxu0 %v380
  %494 = vmatprep.subr.bf16.mxu0 %v383
  %495 = vmatpush1.bf16.msra.mxu0 %v382
  %496 = vmatprep.subr.bf16.mxu0 %v385
  %497 = vmatpush1.bf16.msra.mxu0 %v384
  %498 = vmatprep.subr.bf16.mxu0 %v387
  %499 = vmatpush1.bf16.msra.mxu0 %v386
  %500 = vmatprep.subr.bf16.mxu0 0
  %501 = vmatpush1.bf16.msra.mxu0 0
  %502 = vmatprep.subr.bf16.mxu0 0
  %503 = vmatpush1.bf16.msra.mxu0 0
  %504 = vmatprep.subr.bf16.mxu0 0
  %505 = vmatpush1.bf16.msra.mxu0 0
  %506 = vmatprep.subr.bf16.mxu0 0
  %507 = vmatpush1.bf16.msra.mxu0 0
  %508 = vmatprep.subr.bf16.mxu0 0
  %509 = vmatpush1.bf16.msra.mxu0 0
  %510 = vmatprep.subr.bf16.mxu0 0
  %511 = vmatpush1.bf16.msra.mxu0 0
  %512 = vmatprep.subr.bf16.mxu0 0
  %513 = vmatpush1.bf16.msra.mxu0 0
  %514 = vmatprep.mubr.bf16.mxu0 %v408
  %515 = vmatmul.mubr.bf16.gmra.mrb[0].mxu0 %v241
  %v516 = vpop.f32.mrb[0].mxu0
  %v517 = vadd.f32 %v87, %v516
  %v518 = vpop.f32.mrb[0].mxu0
  %v519 = vadd.f32 %v91, %v518
  %v520 = vpop.f32.mrb[0].mxu0
  %v521 = vadd.f32 %v87, %v520
  %v522 = vpop.f32.mrb[0].mxu0
  %v523 = vadd.f32 %v91, %v522
  %524 = vmatprep.mubr.bf16.mxu0 %v411
  %525 = vmatmul.mubr.bf16.gmra.mrb[0].mxu0 %v243
  %v526 = vpop.f32.mrb[0].mxu0
  %v527 = vadd.f32 %v87, %v526
  %v528 = vpop.f32.mrb[0].mxu0
  %v529 = vadd.f32 %v91, %v528
  %v530 = vpop.f32.mrb[0].mxu0
  %v531 = vadd.f32 %v87, %v530
  %v532 = vpop.f32.mrb[0].mxu0
  %v533 = vadd.f32 %v91, %v532
  %534 = vmatprep.mubr.bf16.mxu0 %v414
  %535 = vmatmul.mubr.bf16.gmra.mrb[0].mxu0 %v245
  %v536 = vpop.f32.mrb[0].mxu0
  %v537 = vadd.f32 %v87, %v536
  %v538 = vpop.f32.mrb[0].mxu0
  %v539 = vadd.f32 %v91, %v538
  %v540 = vpop.f32.mrb[0].mxu0
  %v541 = vadd.f32 %v87, %v540
  %v542 = vpop.f32.mrb[0].mxu0
  %v543 = vadd.f32 %v91, %v542
  %544 = vmatprep.mubr.bf16.mxu0 %v417
  %545 = vmatmul.mubr.bf16.gmra.mrb[0].mxu0 %v247
  %v546 = vpop.f32.mrb[0].mxu0
  %v547 = vadd.f32 %v87, %v546
  %v548 = vpop.f32.mrb[0].mxu0
  %v549 = vadd.f32 %v91, %v548
  %v550 = vpop.f32.mrb[0].mxu0
  %v551 = vadd.f32 %v87, %v550
  %v552 = vpop.f32.mrb[0].mxu0
  %v553 = vadd.f32 %v91, %v552
  %554 = vmatprep.mubr.bf16.mxu0 %v420
  %555 = vmatmul.mubr.bf16.gmra.mrb[0].mxu0 %v249
  %v556 = vpop.f32.mrb[0].mxu0
  %v557 = vadd.f32 %v87, %v556
  %v558 = vpop.f32.mrb[0].mxu0
  %v559 = vadd.f32 %v91, %v558
  %v560 = vpop.f32.mrb[0].mxu0
  %v561 = vadd.f32 %v87, %v560
  %v562 = vpop.f32.mrb[0].mxu0
  %v563 = vadd.f32 %v91, %v562
  %564 = vmatprep.mubr.bf16.mxu0 %v423
  %565 = vmatmul.mubr.bf16.gmra.mrb[0].mxu0 %v251
  %v566 = vpop.f32.mrb[0].mxu0
  %v567 = vadd.f32 %v87, %v566
  %v568 = vpop.f32.mrb[0].mxu0
  %v569 = vadd.f32 %v91, %v568
  %v570 = vpop.f32.mrb[0].mxu0
  %v571 = vadd.f32 %v87, %v570
  %v572 = vpop.f32.mrb[0].mxu0
  %v573 = vadd.f32 %v91, %v572
  %574 = vmatprep.mubr.bf16.mxu0 %v426
  %575 = vmatmul.mubr.bf16.gmra.mrb[0].mxu0 %v253
  %v576 = vpop.f32.mrb[0].mxu0
  %v577 = vadd.f32 %v87, %v576
  %v578 = vpop.f32.mrb[0].mxu0
  %v579 = vadd.f32 %v91, %v578
  %v580 = vpop.f32.mrb[0].mxu0
  %v581 = vadd.f32 %v87, %v580
  %v582 = vpop.f32.mrb[0].mxu0
  %v583 = vadd.f32 %v91, %v582
  %584 = vmatprep.mubr.bf16.mxu0 %v429
  %585 = vmatmul.mubr.bf16.gmra.mrb[0].mxu0 %v255
  %v586 = vpop.f32.mrb[0].mxu0
  %v587 = vadd.f32 %v87, %v586
  %v588 = vpop.f32.mrb[0].mxu0
  %v589 = vadd.f32 %v91, %v588
  %v590 = vpop.f32.mrb[0].mxu0
  %v591 = vadd.f32 %v87, %v590
  %v592 = vpop.f32.mrb[0].mxu0
  %v593 = vadd.f32 %v91, %v592
  %594 = vmatprep.mubr.bf16.mxu0 %v432
  %595 = vmatmul.mubr.bf16.gmra.mrb[0].mxu0 %v257
  %v596 = vpop.f32.mrb[0].mxu0
  %v597 = vadd.f32 %v87, %v596
  %v598 = vpop.f32.mrb[0].mxu0
  %v599 = vadd.f32 %v91, %v598
  %v600 = vpop.f32.mrb[0].mxu0
  %v601 = vadd.f32 %v87, %v600
  %v602 = vpop.f32.mrb[0].mxu0
  %v603 = vadd.f32 %v91, %v602
  %604 = vmatprep.mubr.bf16.mxu0 %v435
  %605 = vmatmul.mubr.bf16.gmra.mrb[0].mxu0 %v259
  %v606 = vpop.f32.mrb[0].mxu0
  %v607 = vadd.f32 %v87, %v606
  %v608 = vpop.f32.mrb[0].mxu0
  %v609 = vadd.f32 %v91, %v608
  %v610 = vpop.f32.mrb[0].mxu0
  %v611 = vadd.f32 %v87, %v610
  %v612 = vpop.f32.mrb[0].mxu0
  %v613 = vadd.f32 %v91, %v612
  %614 = vmatprep.mubr.bf16.mxu0 %v438
  %615 = vmatmul.mubr.bf16.gmra.mrb[0].mxu0 %v261
  %v616 = vpop.f32.mrb[0].mxu0
  %v617 = vadd.f32 %v87, %v616
  %v618 = vpop.f32.mrb[0].mxu0
  %v619 = vadd.f32 %v91, %v618
  %v620 = vpop.f32.mrb[0].mxu0
  %v621 = vadd.f32 %v87, %v620
  %v622 = vpop.f32.mrb[0].mxu0
  %v623 = vadd.f32 %v91, %v622
  %624 = vmatprep.mubr.bf16.mxu0 %v441
  %625 = vmatmul.mubr.bf16.gmra.mrb[0].mxu0 %v263
  %v626 = vpop.f32.mrb[0].mxu0
  %v627 = vadd.f32 %v87, %v626
  %v628 = vpop.f32.mrb[0].mxu0
  %v629 = vadd.f32 %v91, %v628
  %v630 = vpop.f32.mrb[0].mxu0
  %v631 = vadd.f32 %v87, %v630
  %v632 = vpop.f32.mrb[0].mxu0
  %v633 = vadd.f32 %v91, %v632
  %634 = vmatprep.mubr.bf16.mxu0 %v444
  %635 = vmatmul.mubr.bf16.gmra.mrb[0].mxu0 %v265
  %v636 = vpop.f32.mrb[0].mxu0
  %v637 = vadd.f32 %v87, %v636
  %v638 = vpop.f32.mrb[0].mxu0
  %v639 = vadd.f32 %v91, %v638
  %v640 = vpop.f32.mrb[0].mxu0
  %v641 = vadd.f32 %v87, %v640
  %v642 = vpop.f32.mrb[0].mxu0
  %v643 = vadd.f32 %v91, %v642
  %644 = vmatprep.mubr.bf16.mxu0 %v447
  %645 = vmatmul.mubr.bf16.gmra.mrb[0].mxu0 %v267
  %v646 = vpop.f32.mrb[0].mxu0
  %v647 = vadd.f32 %v87, %v646
  %v648 = vpop.f32.mrb[0].mxu0
  %v649 = vadd.f32 %v91, %v648
  %v650 = vpop.f32.mrb[0].mxu0
  %v651 = vadd.f32 %v87, %v650
  %v652 = vpop.f32.mrb[0].mxu0
  %v653 = vadd.f32 %v91, %v652
  %654 = vmatprep.mubr.bf16.mxu0 %v450
  %655 = vmatmul.mubr.bf16.gmra.mrb[0].mxu0 %v269
  %v656 = vpop.f32.mrb[0].mxu0
  %v657 = vadd.f32 %v87, %v656
  %v658 = vpop.f32.mrb[0].mxu0
  %v659 = vadd.f32 %v91, %v658
  %v660 = vpop.f32.mrb[0].mxu0
  %v661 = vadd.f32 %v87, %v660
  %v662 = vpop.f32.mrb[0].mxu0
  %v663 = vadd.f32 %v91, %v662
  %664 = vmatprep.mubr.bf16.mxu0 %v453
  %665 = vmatmul.mubr.bf16.gmra.mrb[0].mxu0 %v271
  %v666 = vpop.f32.mrb[0].mxu0
  %v667 = vadd.f32 %v87, %v666
  %v668 = vpop.f32.mrb[0].mxu0
  %v669 = vadd.f32 %v91, %v668
  %v670 = vpop.f32.mrb[0].mxu0
  %v671 = vadd.f32 %v87, %v670
  %v672 = vpop.f32.mrb[0].mxu0
  %v673 = vadd.f32 %v91, %v672
  %674 = vmatprep.mubr.bf16.mxu0 %v456
  %675 = vmatmul.mubr.bf16.gmra.mrb[0].mxu0 %v273
  %v676 = vpop.f32.mrb[0].mxu0
  %v677 = vadd.f32 %v87, %v676
  %v678 = vpop.f32.mrb[0].mxu0
  %v679 = vadd.f32 %v91, %v678
  %v680 = vpop.f32.mrb[0].mxu0
  %v681 = vadd.f32 %v87, %v680
  %v682 = vpop.f32.mrb[0].mxu0
  %v683 = vadd.f32 %v91, %v682
  %684 = vmatprep.mubr.bf16.mxu0 %v459
  %685 = vmatmul.mubr.bf16.gmra.mrb[0].mxu0 %v275
  %v686 = vpop.f32.mrb[0].mxu0
  %v687 = vadd.f32 %v87, %v686
  %v688 = vpop.f32.mrb[0].mxu0
  %v689 = vadd.f32 %v91, %v688
  %v690 = vpop.f32.mrb[0].mxu0
  %v691 = vadd.f32 %v87, %v690
  %v692 = vpop.f32.mrb[0].mxu0
  %v693 = vadd.f32 %v91, %v692
  %694 = vmatprep.mubr.bf16.mxu0 %v462
  %695 = vmatmul.mubr.bf16.gmra.mrb[0].mxu0 %v277
  %v696 = vpop.f32.mrb[0].mxu0
  %v697 = vadd.f32 %v87, %v696
  %v698 = vpop.f32.mrb[0].mxu0
  %v699 = vadd.f32 %v91, %v698
  %v700 = vpop.f32.mrb[0].mxu0
  %v701 = vadd.f32 %v87, %v700
  %v702 = vpop.f32.mrb[0].mxu0
  %v703 = vadd.f32 %v91, %v702
  %704 = vmatprep.mubr.bf16.mxu0 %v465
  %705 = vmatmul.mubr.bf16.gmra.mrb[0].mxu0 %v279
  %v706 = vpop.f32.mrb[0].mxu0
  %v707 = vadd.f32 %v87, %v706
  %v708 = vpop.f32.mrb[0].mxu0
  %v709 = vadd.f32 %v91, %v708
  %v710 = vpop.f32.mrb[0].mxu0
  %v711 = vadd.f32 %v87, %v710
  %v712 = vpop.f32.mrb[0].mxu0
  %v713 = vadd.f32 %v91, %v712
  %714 = vmatprep.mubr.bf16.mxu0 %v468
  %715 = vmatmul.mubr.bf16.gmra.mrb[0].mxu0 %v281
  %v716 = vpop.f32.mrb[0].mxu0
  %v717 = vadd.f32 %v87, %v716
  %v718 = vpop.f32.mrb[0].mxu0
  %v719 = vadd.f32 %v91, %v718
  %v720 = vpop.f32.mrb[0].mxu0
  %v721 = vadd.f32 %v87, %v720
  %v722 = vpop.f32.mrb[0].mxu0
  %v723 = vadd.f32 %v91, %v722
  %724 = vmatprep.mubr.bf16.mxu0 %v471
  %725 = vmatmul.mubr.bf16.gmra.mrb[0].mxu0 %v283
  %v726 = vpop.f32.mrb[0].mxu0
  %v727 = vadd.f32 %v87, %v726
  %v728 = vpop.f32.mrb[0].mxu0
  %v729 = vadd.f32 %v91, %v728
  %v730 = vpop.f32.mrb[0].mxu0
  %v731 = vadd.f32 %v87, %v730
  %v732 = vpop.f32.mrb[0].mxu0
  %v733 = vadd.f32 %v91, %v732
  %734 = vmatprep.mubr.bf16.mxu0 %v474
  %735 = vmatmul.mubr.bf16.gmra.mrb[0].mxu0 %v285
  %v736 = vpop.f32.mrb[0].mxu0
  %v737 = vadd.f32 %v87, %v736
  %v738 = vpop.f32.mrb[0].mxu0
  %v739 = vadd.f32 %v91, %v738
  %v740 = vpop.f32.mrb[0].mxu0
  %v741 = vadd.f32 %v87, %v740
  %v742 = vpop.f32.mrb[0].mxu0
  %v743 = vadd.f32 %v91, %v742
  %744 = vmatprep.mubr.bf16.mxu0 %v477
  %745 = vmatmul.mubr.bf16.gmra.mrb[0].mxu0 %v287
  %v746 = vpop.f32.mrb[0].mxu0
  %v747 = vadd.f32 %v87, %v746
  %v748 = vpop.f32.mrb[0].mxu0
  %v749 = vadd.f32 %v91, %v748
  %v750 = vpop.f32.mrb[0].mxu0
  %v751 = vadd.f32 %v87, %v750
  %v752 = vpop.f32.mrb[0].mxu0
  %v753 = vadd.f32 %v91, %v752
  %754 = vmatprep.mubr.bf16.mxu0 %v480
  %755 = vmatmul.mubr.bf16.gmra.mrb[0].mxu0 %v289
  %v756 = vpop.f32.mrb[0].mxu0
  %v757 = vadd.f32 %v87, %v756
  %v758 = vpop.f32.mrb[0].mxu0
  %v759 = vadd.f32 %v91, %v758
  %v760 = vpop.f32.mrb[0].mxu0
  %v761 = vpop.f32.mrb[0].mxu0
  %762 = vdwg.mxu0
  %vm763 = vcmp.ge.f32.partialorder %v517, 0.0
  %vm764 = vcmp.ge.f32.partialorder %v519, 0.0
  %vm765 = vcmp.ge.f32.partialorder %v521, 0.0
  %vm766 = vcmp.ge.f32.partialorder %v523, 0.0
  %vm767 = vcmp.ge.f32.partialorder %v527, 0.0
  %vm768 = vcmp.ge.f32.partialorder %v529, 0.0
  %vm769 = vcmp.ge.f32.partialorder %v531, 0.0
  %vm770 = vcmp.ge.f32.partialorder %v533, 0.0
  %vm771 = vcmp.ge.f32.partialorder %v537, 0.0
  %vm772 = vcmp.ge.f32.partialorder %v539, 0.0
  %vm773 = vcmp.ge.f32.partialorder %v541, 0.0
  %vm774 = vcmp.ge.f32.partialorder %v543, 0.0
  %vm775 = vcmp.ge.f32.partialorder %v547, 0.0
  %vm776 = vcmp.ge.f32.partialorder %v549, 0.0
  %vm777 = vcmp.ge.f32.partialorder %v551, 0.0
  %vm778 = vcmp.ge.f32.partialorder %v553, 0.0
  %vm779 = vcmp.ge.f32.partialorder %v557, 0.0
  %vm780 = vcmp.ge.f32.partialorder %v559, 0.0
  %vm781 = vcmp.ge.f32.partialorder %v561, 0.0
  %vm782 = vcmp.ge.f32.partialorder %v563, 0.0
  %vm783 = vcmp.ge.f32.partialorder %v567, 0.0
  %vm784 = vcmp.ge.f32.partialorder %v569, 0.0
  %vm785 = vcmp.ge.f32.partialorder %v571, 0.0
  %vm786 = vcmp.ge.f32.partialorder %v573, 0.0
  %vm787 = vcmp.ge.f32.partialorder %v577, 0.0
  %vm788 = vcmp.ge.f32.partialorder %v579, 0.0
  %vm789 = vcmp.ge.f32.partialorder %v581, 0.0
  %vm790 = vcmp.ge.f32.partialorder %v583, 0.0
  %vm791 = vcmp.ge.f32.partialorder %v587, 0.0
  %vm792 = vcmp.ge.f32.partialorder %v589, 0.0
  %vm793 = vcmp.ge.f32.partialorder %v591, 0.0
  %vm794 = vcmp.ge.f32.partialorder %v593, 0.0
  %vm795 = vcmp.ge.f32.partialorder %v597, 0.0
  %vm796 = vcmp.ge.f32.partialorder %v599, 0.0
  %vm797 = vcmp.ge.f32.partialorder %v601, 0.0
  %vm798 = vcmp.ge.f32.partialorder %v603, 0.0
  %vm799 = vcmp.ge.f32.partialorder %v607, 0.0
  %vm800 = vcmp.ge.f32.partialorder %v609, 0.0
  %vm801 = vcmp.ge.f32.partialorder %v611, 0.0
  %vm802 = vcmp.ge.f32.partialorder %v613, 0.0
  %vm803 = vcmp.ge.f32.partialorder %v617, 0.0
  %vm804 = vcmp.ge.f32.partialorder %v619, 0.0
  %vm805 = vcmp.ge.f32.partialorder %v621, 0.0
  %vm806 = vcmp.ge.f32.partialorder %v623, 0.0
  %vm807 = vcmp.ge.f32.partialorder %v627, 0.0
  %vm808 = vcmp.ge.f32.partialorder %v629, 0.0
  %vm809 = vcmp.ge.f32.partialorder %v631, 0.0
  %vm810 = vcmp.ge.f32.partialorder %v633, 0.0
  %vm811 = vcmp.ge.f32.partialorder %v637, 0.0
  %vm812 = vcmp.ge.f32.partialorder %v639, 0.0
  %vm813 = vcmp.ge.f32.partialorder %v641, 0.0
  %vm814 = vcmp.ge.f32.partialorder %v643, 0.0
  %vm815 = vcmp.ge.f32.partialorder %v647, 0.0
  %vm816 = vcmp.ge.f32.partialorder %v649, 0.0
  %vm817 = vcmp.ge.f32.partialorder %v651, 0.0
  %vm818 = vcmp.ge.f32.partialorder %v653, 0.0
  %vm819 = vcmp.ge.f32.partialorder %v657, 0.0
  %vm820 = vcmp.ge.f32.partialorder %v659, 0.0
  %vm821 = vcmp.ge.f32.partialorder %v661, 0.0
  %vm822 = vcmp.ge.f32.partialorder %v663, 0.0
  %vm823 = vcmp.ge.f32.partialorder %v667, 0.0
  %vm824 = vcmp.ge.f32.partialorder %v669, 0.0
  %vm825 = vcmp.ge.f32.partialorder %v671, 0.0
  %vm826 = vcmp.ge.f32.partialorder %v673, 0.0
  %vm827 = vcmp.ge.f32.partialorder %v677, 0.0
  %vm828 = vcmp.ge.f32.partialorder %v679, 0.0
  %vm829 = vcmp.ge.f32.partialorder %v681, 0.0
  %vm830 = vcmp.ge.f32.partialorder %v683, 0.0
  %vm831 = vcmp.ge.f32.partialorder %v687, 0.0
  %vm832 = vcmp.ge.f32.partialorder %v689, 0.0
  %vm833 = vcmp.ge.f32.partialorder %v691, 0.0
  %vm834 = vcmp.ge.f32.partialorder %v693, 0.0
  %vm835 = vcmp.ge.f32.partialorder %v697, 0.0
  %vm836 = vcmp.ge.f32.partialorder %v699, 0.0
  %vm837 = vcmp.ge.f32.partialorder %v701, 0.0
  %vm838 = vcmp.ge.f32.partialorder %v703, 0.0
  %vm839 = vcmp.ge.f32.partialorder %v707, 0.0
  %vm840 = vcmp.ge.f32.partialorder %v709, 0.0
  %vm841 = vcmp.ge.f32.partialorder %v711, 0.0
  %vm842 = vcmp.ge.f32.partialorder %v713, 0.0
  %vm843 = vcmp.ge.f32.partialorder %v717, 0.0
  %vm844 = vcmp.ge.f32.partialorder %v719, 0.0
  %vm845 = vcmp.ge.f32.partialorder %v721, 0.0
  %vm846 = vcmp.ge.f32.partialorder %v723, 0.0
  %vm847 = vcmp.ge.f32.partialorder %v727, 0.0
  %vm848 = vcmp.ge.f32.partialorder %v729, 0.0
  %vm849 = vcmp.ge.f32.partialorder %v731, 0.0
  %vm850 = vcmp.ge.f32.partialorder %v733, 0.0
  %vm851 = vcmp.ge.f32.partialorder %v737, 0.0
  %vm852 = vcmp.ge.f32.partialorder %v739, 0.0
  %vm853 = vcmp.ge.f32.partialorder %v741, 0.0
  %vm854 = vcmp.ge.f32.partialorder %v743, 0.0
  %vm855 = vcmp.ge.f32.partialorder %v747, 0.0
  %vm856 = vcmp.ge.f32.partialorder %v749, 0.0
  %vm857 = vcmp.ge.f32.partialorder %v751, 0.0
  %vm858 = vcmp.ge.f32.partialorder %v753, 0.0
  %vm859 = vcmp.ge.f32.partialorder %v757, 0.0
  %vm860 = vcmp.ge.f32.partialorder %v759, 0.0
  %v861 = vmul.f32 %v517, 0.2
  %v862 = vmul.f32 %v519, 0.2
  %v863 = vmul.f32 %v521, 0.2
  %v864 = vmul.f32 %v523, 0.2
  %v865 = vmul.f32 %v527, 0.2
  %v866 = vmul.f32 %v529, 0.2
  %v867 = vmul.f32 %v531, 0.2
  %v868 = vmul.f32 %v533, 0.2
  %v869 = vmul.f32 %v537, 0.2
  %v870 = vmul.f32 %v539, 0.2
  %v871 = vmul.f32 %v541, 0.2
  %v872 = vmul.f32 %v543, 0.2
  %v873 = vmul.f32 %v547, 0.2
  %v874 = vmul.f32 %v549, 0.2
  %v875 = vmul.f32 %v551, 0.2
  %v876 = vmul.f32 %v553, 0.2
  %v877 = vmul.f32 %v557, 0.2
  %v878 = vmul.f32 %v559, 0.2
  %v879 = vmul.f32 %v561, 0.2
  %v880 = vmul.f32 %v563, 0.2
  %v881 = vmul.f32 %v567, 0.2
  %v882 = vmul.f32 %v569, 0.2
  %v883 = vmul.f32 %v571, 0.2
  %v884 = vmul.f32 %v573, 0.2
  %v885 = vmul.f32 %v577, 0.2
  %v886 = vmul.f32 %v579, 0.2
  %v887 = vmul.f32 %v581, 0.2
  %v888 = vmul.f32 %v583, 0.2
  %v889 = vmul.f32 %v587, 0.2
  %v890 = vmul.f32 %v589, 0.2
  %v891 = vmul.f32 %v591, 0.2
  %v892 = vmul.f32 %v593, 0.2
  %v893 = vmul.f32 %v597, 0.2
  %v894 = vmul.f32 %v599, 0.2
  %v895 = vmul.f32 %v601, 0.2
  %v896 = vmul.f32 %v603, 0.2
  %v897 = vmul.f32 %v607, 0.2
  %v898 = vmul.f32 %v609, 0.2
  %v899 = vmul.f32 %v611, 0.2
  %v900 = vmul.f32 %v613, 0.2
  %v901 = vmul.f32 %v617, 0.2
  %v902 = vmul.f32 %v619, 0.2
  %v903 = vmul.f32 %v621, 0.2
  %v904 = vmul.f32 %v623, 0.2
  %v905 = vmul.f32 %v627, 0.2
  %v906 = vmul.f32 %v629, 0.2
  %v907 = vmul.f32 %v631, 0.2
  %v908 = vmul.f32 %v633, 0.2
  %v909 = vmul.f32 %v637, 0.2
  %v910 = vmul.f32 %v639, 0.2
  %v911 = vmul.f32 %v641, 0.2
  %v912 = vmul.f32 %v643, 0.2
  %v913 = vmul.f32 %v647, 0.2
  %v914 = vmul.f32 %v649, 0.2
  %v915 = vmul.f32 %v651, 0.2
  %v916 = vmul.f32 %v653, 0.2
  %v917 = vmul.f32 %v657, 0.2
  %v918 = vmul.f32 %v659, 0.2
  %v919 = vmul.f32 %v661, 0.2
  %v920 = vmul.f32 %v663, 0.2
  %v921 = vmul.f32 %v667, 0.2
  %v922 = vmul.f32 %v669, 0.2
  %v923 = vmul.f32 %v671, 0.2
  %v924 = vmul.f32 %v673, 0.2
  %v925 = vmul.f32 %v677, 0.2
  %v926 = vmul.f32 %v679, 0.2
  %v927 = vmul.f32 %v681, 0.2
  %v928 = vmul.f32 %v683, 0.2
  %v929 = vmul.f32 %v687, 0.2
  %v930 = vmul.f32 %v689, 0.2
  %v931 = vmul.f32 %v691, 0.2
  %v932 = vmul.f32 %v693, 0.2
  %v933 = vmul.f32 %v697, 0.2
  %v934 = vmul.f32 %v699, 0.2
  %v935 = vmul.f32 %v701, 0.2
  %v936 = vmul.f32 %v703, 0.2
  %v937 = vmul.f32 %v707, 0.2
  %v938 = vmul.f32 %v709, 0.2
  %v939 = vmul.f32 %v711, 0.2
  %v940 = vmul.f32 %v713, 0.2
  %v941 = vmul.f32 %v717, 0.2
  %v942 = vmul.f32 %v719, 0.2
  %v943 = vmul.f32 %v721, 0.2
  %v944 = vmul.f32 %v723, 0.2
  %v945 = vmul.f32 %v727, 0.2
  %v946 = vmul.f32 %v729, 0.2
  %v947 = vmul.f32 %v731, 0.2
  %v948 = vmul.f32 %v733, 0.2
  %v949 = vmul.f32 %v737, 0.2
  %v950 = vmul.f32 %v739, 0.2
  %v951 = vmul.f32 %v741, 0.2
  %v952 = vmul.f32 %v743, 0.2
  %v953 = vmul.f32 %v747, 0.2
  %v954 = vmul.f32 %v749, 0.2
  %v955 = vmul.f32 %v751, 0.2
  %v956 = vmul.f32 %v753, 0.2
  %v957 = vmul.f32 %v757, 0.2
  %v958 = vmul.f32 %v759, 0.2
  %v959 = vsel %vm763, %v517, %v861
  %v960 = vsel %vm764, %v519, %v862
  %v961 = vsel %vm765, %v521, %v863
  %v962 = vsel %vm766, %v523, %v864
  %v963 = vsel %vm767, %v527, %v865
  %v964 = vsel %vm768, %v529, %v866
  %v965 = vsel %vm769, %v531, %v867
  %v966 = vsel %vm770, %v533, %v868
  %v967 = vsel %vm771, %v537, %v869
  %v968 = vsel %vm772, %v539, %v870
  %v969 = vsel %vm773, %v541, %v871
  %v970 = vsel %vm774, %v543, %v872
  %v971 = vsel %vm775, %v547, %v873
  %v972 = vsel %vm776, %v549, %v874
  %v973 = vsel %vm777, %v551, %v875
  %v974 = vsel %vm778, %v553, %v876
  %v975 = vsel %vm779, %v557, %v877
  %v976 = vsel %vm780, %v559, %v878
  %v977 = vsel %vm781, %v561, %v879
  %v978 = vsel %vm782, %v563, %v880
  %v979 = vsel %vm783, %v567, %v881
  %v980 = vsel %vm784, %v569, %v882
  %v981 = vsel %vm785, %v571, %v883
  %v982 = vsel %vm786, %v573, %v884
  %v983 = vsel %vm787, %v577, %v885
  %v984 = vsel %vm788, %v579, %v886
  %v985 = vsel %vm789, %v581, %v887
  %v986 = vsel %vm790, %v583, %v888
  %v987 = vsel %vm791, %v587, %v889
  %v988 = vsel %vm792, %v589, %v890
  %v989 = vsel %vm793, %v591, %v891
  %v990 = vsel %vm794, %v593, %v892
  %v991 = vsel %vm795, %v597, %v893
  %v992 = vsel %vm796, %v599, %v894
  %v993 = vsel %vm797, %v601, %v895
  %v994 = vsel %vm798, %v603, %v896
  %v995 = vsel %vm799, %v607, %v897
  %v996 = vsel %vm800, %v609, %v898
  %v997 = vsel %vm801, %v611, %v899
  %v998 = vsel %vm802, %v613, %v900
  %v999 = vsel %vm803, %v617, %v901
  %v1000 = vsel %vm804, %v619, %v902
  %v1001 = vsel %vm805, %v621, %v903
  %v1002 = vsel %vm806, %v623, %v904
  %v1003 = vsel %vm807, %v627, %v905
  %v1004 = vsel %vm808, %v629, %v906
  %v1005 = vsel %vm809, %v631, %v907
  %v1006 = vsel %vm810, %v633, %v908
  %v1007 = vsel %vm811, %v637, %v909
  %v1008 = vsel %vm812, %v639, %v910
  %v1009 = vsel %vm813, %v641, %v911
  %v1010 = vsel %vm814, %v643, %v912
  %v1011 = vsel %vm815, %v647, %v913
  %v1012 = vsel %vm816, %v649, %v914
  %v1013 = vsel %vm817, %v651, %v915
  %v1014 = vsel %vm818, %v653, %v916
  %v1015 = vsel %vm819, %v657, %v917
  %v1016 = vsel %vm820, %v659, %v918
  %v1017 = vsel %vm821, %v661, %v919
  %v1018 = vsel %vm822, %v663, %v920
  %v1019 = vsel %vm823, %v667, %v921
  %v1020 = vsel %vm824, %v669, %v922
  %v1021 = vsel %vm825, %v671, %v923
  %v1022 = vsel %vm826, %v673, %v924
  %v1023 = vsel %vm827, %v677, %v925
  %v1024 = vsel %vm828, %v679, %v926
  %v1025 = vsel %vm829, %v681, %v927
  %v1026 = vsel %vm830, %v683, %v928
  %v1027 = vsel %vm831, %v687, %v929
  %v1028 = vsel %vm832, %v689, %v930
  %v1029 = vsel %vm833, %v691, %v931
  %v1030 = vsel %vm834, %v693, %v932
  %v1031 = vsel %vm835, %v697, %v933
  %v1032 = vsel %vm836, %v699, %v934
  %v1033 = vsel %vm837, %v701, %v935
  %v1034 = vsel %vm838, %v703, %v936
  %v1035 = vsel %vm839, %v707, %v937
  %v1036 = vsel %vm840, %v709, %v938
  %v1037 = vsel %vm841, %v711, %v939
  %v1038 = vsel %vm842, %v713, %v940
  %v1039 = vsel %vm843, %v717, %v941
  %v1040 = vsel %vm844, %v719, %v942
  %v1041 = vsel %vm845, %v721, %v943
  %v1042 = vsel %vm846, %v723, %v944
  %v1043 = vsel %vm847, %v727, %v945
  %v1044 = vsel %vm848, %v729, %v946
  %v1045 = vsel %vm849, %v731, %v947
  %v1046 = vsel %vm850, %v733, %v948
  %v1047 = vsel %vm851, %v737, %v949
  %v1048 = vsel %vm852, %v739, %v950
  %v1049 = vsel %vm853, %v741, %v951
  %v1050 = vsel %vm854, %v743, %v952
  %v1051 = vsel %vm855, %v747, %v953
  %v1052 = vsel %vm856, %v749, %v954
  %v1053 = vsel %vm857, %v751, %v955
  %v1054 = vsel %vm858, %v753, %v956
  %v1055 = vsel %vm859, %v757, %v957
  %v1056 = vsel %vm860, %v759, %v958
  %v1057 = vpack.c.bf16 %v961, %v959
  %v1058 = vpack.c.bf16 %v962, %v960
  %v1059 = vpack.c.bf16 %v965, %v963
  %v1060 = vpack.c.bf16 %v966, %v964
  %v1061 = vpack.c.bf16 %v969, %v967
  %v1062 = vpack.c.bf16 %v970, %v968
  %v1063 = vpack.c.bf16 %v973, %v971
  %v1064 = vpack.c.bf16 %v974, %v972
  %v1065 = vpack.c.bf16 %v977, %v975
  %v1066 = vpack.c.bf16 %v978, %v976
  %v1067 = vpack.c.bf16 %v981, %v979
  %v1068 = vpack.c.bf16 %v982, %v980
  %v1069 = vpack.c.bf16 %v985, %v983
  %v1070 = vpack.c.bf16 %v986, %v984
  %v1071 = vpack.c.bf16 %v989, %v987
  %v1072 = vpack.c.bf16 %v990, %v988
  %v1073 = vpack.c.bf16 %v993, %v991
  %v1074 = vpack.c.bf16 %v994, %v992
  %v1075 = vpack.c.bf16 %v997, %v995
  %v1076 = vpack.c.bf16 %v998, %v996
  %v1077 = vpack.c.bf16 %v1001, %v999
  %v1078 = vpack.c.bf16 %v1002, %v1000
  %v1079 = vpack.c.bf16 %v1005, %v1003
  %v1080 = vpack.c.bf16 %v1006, %v1004
  %v1081 = vpack.c.bf16 %v1009, %v1007
  %v1082 = vpack.c.bf16 %v1010, %v1008
  %v1083 = vpack.c.bf16 %v1013, %v1011
  %v1084 = vpack.c.bf16 %v1014, %v1012
  %v1085 = vpack.c.bf16 %v1017, %v1015
  %v1086 = vpack.c.bf16 %v1018, %v1016
  %v1087 = vpack.c.bf16 %v1021, %v1019
  %v1088 = vpack.c.bf16 %v1022, %v1020
  %v1089 = vpack.c.bf16 %v1025, %v1023
  %v1090 = vpack.c.bf16 %v1026, %v1024
  %v1091 = vpack.c.bf16 %v1029, %v1027
  %v1092 = vpack.c.bf16 %v1030, %v1028
  %v1093 = vpack.c.bf16 %v1033, %v1031
  %v1094 = vpack.c.bf16 %v1034, %v1032
  %v1095 = vpack.c.bf16 %v1037, %v1035
  %v1096 = vpack.c.bf16 %v1038, %v1036
  %v1097 = vpack.c.bf16 %v1041, %v1039
  %v1098 = vpack.c.bf16 %v1042, %v1040
  %v1099 = vpack.c.bf16 %v1045, %v1043
  %v1100 = vpack.c.bf16 %v1046, %v1044
  %v1101 = vpack.c.bf16 %v1049, %v1047
  %v1102 = vpack.c.bf16 %v1050, %v1048
  %v1103 = vpack.c.bf16 %v1053, %v1051
  %v1104 = vpack.c.bf16 %v1054, %v1052
  %v1105 = vpack.c.bf16 %v1055, %v1055
  %v1106 = vpack.c.bf16 %v1056, %v1056
  %v1157 = vunpack.c.l.b16 %v1057
  %v1158 = vunpack.c.l.b16 %v1058
  %v1159 = vunpack.c.h.b16 %v1057
  %v1160 = vunpack.c.h.b16 %v1058
  %v1161 = vunpack.c.l.b16 %v1059
  %v1162 = vunpack.c.l.b16 %v1060
  %v1163 = vunpack.c.h.b16 %v1059
  %v1164 = vunpack.c.h.b16 %v1060
  %v1165 = vunpack.c.l.b16 %v1061
  %v1166 = vunpack.c.l.b16 %v1062
  %v1167 = vunpack.c.h.b16 %v1061
  %v1168 = vunpack.c.h.b16 %v1062
  %v1169 = vunpack.c.l.b16 %v1063
  %v1170 = vunpack.c.l.b16 %v1064
  %v1171 = vunpack.c.h.b16 %v1063
  %v1172 = vunpack.c.h.b16 %v1064
  %v1173 = vunpack.c.l.b16 %v1065
  %v1174 = vunpack.c.l.b16 %v1066
  %v1175 = vunpack.c.h.b16 %v1065
  %v1176 = vunpack.c.h.b16 %v1066
  %v1177 = vunpack.c.l.b16 %v1067
  %v1178 = vunpack.c.l.b16 %v1068
  %v1179 = vunpack.c.h.b16 %v1067
  %v1180 = vunpack.c.h.b16 %v1068
  %v1181 = vunpack.c.l.b16 %v1069
  %v1182 = vunpack.c.l.b16 %v1070
  %v1183 = vunpack.c.h.b16 %v1069
  %v1184 = vunpack.c.h.b16 %v1070
  %v1185 = vunpack.c.l.b16 %v1071
  %v1186 = vunpack.c.l.b16 %v1072
  %v1187 = vunpack.c.h.b16 %v1071
  %v1188 = vunpack.c.h.b16 %v1072
  %v1189 = vunpack.c.l.b16 %v1073
  %v1190 = vunpack.c.l.b16 %v1074
  %v1191 = vunpack.c.h.b16 %v1073
  %v1192 = vunpack.c.h.b16 %v1074
  %v1193 = vunpack.c.l.b16 %v1075
  %v1194 = vunpack.c.l.b16 %v1076
  %v1195 = vunpack.c.h.b16 %v1075
  %v1196 = vunpack.c.h.b16 %v1076
  %v1197 = vunpack.c.l.b16 %v1077
  %v1198 = vunpack.c.l.b16 %v1078
  %v1199 = vunpack.c.h.b16 %v1077
  %v1200 = vunpack.c.h.b16 %v1078
  %v1201 = vunpack.c.l.b16 %v1079
  %v1202 = vunpack.c.l.b16 %v1080
  %v1203 = vunpack.c.h.b16 %v1079
  %v1204 = vunpack.c.h.b16 %v1080
  %v1205 = vunpack.c.l.b16 %v1081
  %v1206 = vunpack.c.l.b16 %v1082
  %v1207 = vunpack.c.h.b16 %v1081
  %v1208 = vunpack.c.h.b16 %v1082
  %v1209 = vunpack.c.l.b16 %v1083
  %v1210 = vunpack.c.l.b16 %v1084
  %v1211 = vunpack.c.h.b16 %v1083
  %v1212 = vunpack.c.h.b16 %v1084
  %v1213 = vunpack.c.l.b16 %v1085
  %v1214 = vunpack.c.l.b16 %v1086
  %v1215 = vunpack.c.h.b16 %v1085
  %v1216 = vunpack.c.h.b16 %v1086
  %v1217 = vunpack.c.l.b16 %v1087
  %v1218 = vunpack.c.l.b16 %v1088
  %v1219 = vunpack.c.h.b16 %v1087
  %v1220 = vunpack.c.h.b16 %v1088
  %v1221 = vunpack.c.l.b16 %v1089
  %v1222 = vunpack.c.l.b16 %v1090
  %v1223 = vunpack.c.h.b16 %v1089
  %v1224 = vunpack.c.h.b16 %v1090
  %v1225 = vunpack.c.l.b16 %v1091
  %v1226 = vunpack.c.l.b16 %v1092
  %v1227 = vunpack.c.h.b16 %v1091
  %v1228 = vunpack.c.h.b16 %v1092
  %v1229 = vunpack.c.l.b16 %v1093
  %v1230 = vunpack.c.l.b16 %v1094
  %v1231 = vunpack.c.h.b16 %v1093
  %v1232 = vunpack.c.h.b16 %v1094
  %v1233 = vunpack.c.l.b16 %v1095
  %v1234 = vunpack.c.l.b16 %v1096
  %v1235 = vunpack.c.h.b16 %v1095
  %v1236 = vunpack.c.h.b16 %v1096
  %v1237 = vunpack.c.l.b16 %v1097
  %v1238 = vunpack.c.l.b16 %v1098
  %v1239 = vunpack.c.h.b16 %v1097
  %v1240 = vunpack.c.h.b16 %v1098
  %v1241 = vunpack.c.l.b16 %v1099
  %v1242 = vunpack.c.l.b16 %v1100
  %v1243 = vunpack.c.h.b16 %v1099
  %v1244 = vunpack.c.h.b16 %v1100
  %v1245 = vunpack.c.l.b16 %v1101
  %v1246 = vunpack.c.l.b16 %v1102
  %v1247 = vunpack.c.h.b16 %v1101
  %v1248 = vunpack.c.h.b16 %v1102
  %v1249 = vunpack.c.l.b16 %v1103
  %v1250 = vunpack.c.l.b16 %v1104
  %v1251 = vunpack.c.h.b16 %v1103
  %v1252 = vunpack.c.h.b16 %v1104
  %v1253 = vunpack.c.l.b16 %v1105
  %v1254 = vunpack.c.l.b16 %v1106
  %v1255 = vpack.c.b16 %v1158, %v1157
  %v1256 = vpack.c.b16 %v1160, %v1159
  %v1257 = vpack.c.b16 %v1162, %v1161
  %v1258 = vpack.c.b16 %v1164, %v1163
  %v1259 = vpack.c.b16 %v1166, %v1165
  %v1260 = vpack.c.b16 %v1168, %v1167
  %v1261 = vpack.c.b16 %v1170, %v1169
  %v1262 = vpack.c.b16 %v1172, %v1171
  %v1263 = vpack.c.b16 %v1174, %v1173
  %v1264 = vpack.c.b16 %v1176, %v1175
  %v1265 = vpack.c.b16 %v1178, %v1177
  %v1266 = vpack.c.b16 %v1180, %v1179
  %v1267 = vpack.c.b16 %v1182, %v1181
  %v1268 = vpack.c.b16 %v1184, %v1183
  %v1269 = vpack.c.b16 %v1186, %v1185
  %v1270 = vpack.c.b16 %v1188, %v1187
  %v1271 = vpack.c.b16 %v1190, %v1189
  %v1272 = vpack.c.b16 %v1192, %v1191
  %v1273 = vpack.c.b16 %v1194, %v1193
  %v1274 = vpack.c.b16 %v1196, %v1195
  %v1275 = vpack.c.b16 %v1198, %v1197
  %v1276 = vpack.c.b16 %v1200, %v1199
  %v1277 = vpack.c.b16 %v1202, %v1201
  %v1278 = vpack.c.b16 %v1204, %v1203
  %v1279 = vpack.c.b16 %v1206, %v1205
  %v1280 = vpack.c.b16 %v1208, %v1207
  %v1281 = vpack.c.b16 %v1210, %v1209
  %v1282 = vpack.c.b16 %v1212, %v1211
  %v1283 = vpack.c.b16 %v1214, %v1213
  %v1284 = vpack.c.b16 %v1216, %v1215
  %v1285 = vpack.c.b16 %v1218, %v1217
  %v1286 = vpack.c.b16 %v1220, %v1219
  %v1287 = vpack.c.b16 %v1222, %v1221
  %v1288 = vpack.c.b16 %v1224, %v1223
  %v1289 = vpack.c.b16 %v1226, %v1225
  %v1290 = vpack.c.b16 %v1228, %v1227
  %v1291 = vpack.c.b16 %v1230, %v1229
  %v1292 = vpack.c.b16 %v1232, %v1231
  %v1293 = vpack.c.b16 %v1234, %v1233
  %v1294 = vpack.c.b16 %v1236, %v1235
  %v1295 = vpack.c.b16 %v1238, %v1237
  %v1296 = vpack.c.b16 %v1240, %v1239
  %v1297 = vpack.c.b16 %v1242, %v1241
  %v1298 = vpack.c.b16 %v1244, %v1243
  %v1299 = vpack.c.b16 %v1246, %v1245
  %v1300 = vpack.c.b16 %v1248, %v1247
  %v1301 = vpack.c.b16 %v1250, %v1249
  %v1302 = vpack.c.b16 %v1252, %v1251
  %v1303 = vpack.c.b16 %v1254, %v1253
  %vm1353 = vcmask 1043456
  %vm1354 = vcmask 916484
  %vm1355 = vmor %vm1354, %vm1353
  %1356 = vst.msk [vmem:[%s3] sm:$0xff] %vm1355, %v1255
  %1357 = vst.msk [vmem:[%s3 + $0x8] sm:$0xff] %vm1355, %v1256
  %1358 = vst.msk [vmem:[%s3 + $0x10] sm:$0xff] %vm1355, %v1257
  %1359 = vst.msk [vmem:[%s3 + $0x18] sm:$0xff] %vm1355, %v1258
  %1360 = vst.msk [vmem:[%s3 + $0x20] sm:$0xff] %vm1355, %v1259
  %1361 = vst.msk [vmem:[%s3 + $0x28] sm:$0xff] %vm1355, %v1260
  %1362 = vst.msk [vmem:[%s3 + $0x30] sm:$0xff] %vm1355, %v1261
  %1363 = vst.msk [vmem:[%s3 + $0x38] sm:$0xff] %vm1355, %v1262
  %1364 = vst.msk [vmem:[%s3 + $0x40] sm:$0xff] %vm1355, %v1263
  %1365 = vst.msk [vmem:[%s3 + $0x48] sm:$0xff] %vm1355, %v1264
  %1366 = vst.msk [vmem:[%s3 + $0x50] sm:$0xff] %vm1355, %v1265
  %1367 = vst.msk [vmem:[%s3 + $0x58] sm:$0xff] %vm1355, %v1266
  %1368 = vst.msk [vmem:[%s3 + $0x60] sm:$0xff] %vm1355, %v1267
  %1369 = vst.msk [vmem:[%s3 + $0x68] sm:$0xff] %vm1355, %v1268
  %1370 = vst.msk [vmem:[%s3 + $0x70] sm:$0xff] %vm1355, %v1269
  %1371 = vst.msk [vmem:[%s3 + $0x78] sm:$0xff] %vm1355, %v1270
  %1372 = vst.msk [vmem:[%s3 + $0x80] sm:$0xff] %vm1355, %v1271
  %1373 = vst.msk [vmem:[%s3 + $0x88] sm:$0xff] %vm1355, %v1272
  %1374 = vst.msk [vmem:[%s3 + $0x90] sm:$0xff] %vm1355, %v1273
  %1375 = vst.msk [vmem:[%s3 + $0x98] sm:$0xff] %vm1355, %v1274
  %1376 = vst.msk [vmem:[%s3 + $0xa0] sm:$0xff] %vm1355, %v1275
  %1377 = vst.msk [vmem:[%s3 + $0xa8] sm:$0xff] %vm1355, %v1276
  %1378 = vst.msk [vmem:[%s3 + $0xb0] sm:$0xff] %vm1355, %v1277
  %1379 = vst.msk [vmem:[%s3 + $0xb8] sm:$0xff] %vm1355, %v1278
  %1380 = vst.msk [vmem:[%s3 + $0xc0] sm:$0xff] %vm1355, %v1279
  %1381 = vst.msk [vmem:[%s3 + $0xc8] sm:$0xff] %vm1355, %v1280
  %1382 = vst.msk [vmem:[%s3 + $0xd0] sm:$0xff] %vm1355, %v1281
  %1383 = vst.msk [vmem:[%s3 + $0xd8] sm:$0xff] %vm1355, %v1282
  %1384 = vst.msk [vmem:[%s3 + $0xe0] sm:$0xff] %vm1355, %v1283
  %1385 = vst.msk [vmem:[%s3 + $0xe8] sm:$0xff] %vm1355, %v1284
  %1386 = vst.msk [vmem:[%s3 + $0xf0] sm:$0xff] %vm1355, %v1285
  %1387 = vst.msk [vmem:[%s3 + $0xf8] sm:$0xff] %vm1355, %v1286
  %1388 = vst.msk [vmem:[%s3 + $0x100] sm:$0xff] %vm1355, %v1287
  %1389 = vst.msk [vmem:[%s3 + $0x108] sm:$0xff] %vm1355, %v1288
  %1390 = vst.msk [vmem:[%s3 + $0x110] sm:$0xff] %vm1355, %v1289
  %1391 = vst.msk [vmem:[%s3 + $0x118] sm:$0xff] %vm1355, %v1290
  %1392 = vst.msk [vmem:[%s3 + $0x120] sm:$0xff] %vm1355, %v1291
  %1393 = vst.msk [vmem:[%s3 + $0x128] sm:$0xff] %vm1355, %v1292
  %1394 = vst.msk [vmem:[%s3 + $0x130] sm:$0xff] %vm1355, %v1293
  %1395 = vst.msk [vmem:[%s3 + $0x138] sm:$0xff] %vm1355, %v1294
  %1396 = vst.msk [vmem:[%s3 + $0x140] sm:$0xff] %vm1355, %v1295
  %1397 = vst.msk [vmem:[%s3 + $0x148] sm:$0xff] %vm1355, %v1296
  %1398 = vst.msk [vmem:[%s3 + $0x150] sm:$0xff] %vm1355, %v1297
  %1399 = vst.msk [vmem:[%s3 + $0x158] sm:$0xff] %vm1355, %v1298
  %1400 = vst.msk [vmem:[%s3 + $0x160] sm:$0xff] %vm1355, %v1299
  %1401 = vst.msk [vmem:[%s3 + $0x168] sm:$0xff] %vm1355, %v1300
  %1402 = vst.msk [vmem:[%s3 + $0x170] sm:$0xff] %vm1355, %v1301
  %1403 = vst.msk [vmem:[%s3 + $0x178] sm:$0xff] %vm1355, %v1302
  %1404 = vst.msk [vmem:[%s3 + $0x180] sm:$0xff] %vm1355, %v1303
  // Predicated region
  $region14: #{encoder_forward.6} parent=0 // pred_check
    _
  $region15: #{encoder_forward.6} parent=0 // pred_check_branch
    %1406 = sbr.rel (0) target = $region17
  $region16: #{encoder_forward.6} parent=0 // pred_region
    _
  $region17: #{encoder_forward.6} parent=0 // pred_fallthru
    _
  // Predicated region
  $region18: #{encoder_forward.6} parent=0 // pred_check
    _
  $region19: #{encoder_forward.6} parent=0 // pred_check_branch
    %1408 = sbr.rel (0) target = $region21
  $region20: #{encoder_forward.6} parent=0 // pred_region
    _
  $region21: #{encoder_forward.6} parent=0 // pred_fallthru
    _

// kernel: encoder_forward.7
$region0: #{encoder_forward.7}
  #allocation0 [shape = 'u32[]', space=smem, size = 0x4, offset = 0x4, fixed_abs, tag = 'smem constant byte address 0x4 - core index']
  #allocation1 [shape = 'u32[144,128]{1,0:T(1,128)}', space=vmem, size = 0x12000, scoped, tag = 'internal scratch']
  %s0 = inlined_call_operand.vmem [shape: bf16[96,2160], index: 0, kind: input, shape index: {}]
  %s1 = inlined_call_operand.vmem [shape: bf16[2160,240], index: 1, kind: input, shape index: {}]
  %s2 = inlined_call_operand.vmem [shape: f32[1,240], index: 2, kind: input, shape index: {}]
  %s3 = inlined_call_operand.vmem [shape: f32[24,240], index: 3, kind: output, shape index: {}]
  %s4 = sld [smem:[#allocation0]]
  $region22: #{encoder_forward.7} parent=0
    _
  %s6 = ssub.s32 1, %s4
  %s7 = scalar_select 0, %s6, %s4
  // Predicated region
  $region2: #{encoder_forward.7} parent=0 // pred_check
    _
  $region3: #{encoder_forward.7} parent=0 // pred_check_branch
    %9 = sbr.rel (0) target = $region5
  $region4: #{encoder_forward.7} parent=0 // pred_region
    _
  $region5: #{encoder_forward.7} parent=0 // pred_fallthru
    _
  // Predicated region
  $region6: #{encoder_forward.7} parent=0 // pred_check
    _
  $region7: #{encoder_forward.7} parent=0 // pred_check_branch
    %11 = sbr.rel (0) target = $region9
  $region8: #{encoder_forward.7} parent=0 // pred_region
    _
  $region9: #{encoder_forward.7} parent=0 // pred_fallthru
    _
  // Predicated region
  $region10: #{encoder_forward.7} parent=0 // pred_check
    _
  $region11: #{encoder_forward.7} parent=0 // pred_check_branch
    %13 = sbr.rel (0) target = $region13
  $region12: #{encoder_forward.7} parent=0 // pred_region
    _
  $region13: #{encoder_forward.7} parent=0 // pred_fallthru
    _
  %v15 = vld [vmem:[%s0] sm:$0xff]
  %v16 = vld [vmem:[%s0 + $0x8] sm:$0xff]
  %v17 = vld [vmem:[%s0 + $0x10] sm:$0xff]
  %v18 = vld [vmem:[%s0 + $0x18] sm:$0xff]
  %v19 = vld [vmem:[%s0 + $0x20] sm:$0xff]
  %v20 = vld [vmem:[%s0 + $0x28] sm:$0xff]
  %v21 = vld [vmem:[%s0 + $0x30] sm:$0xff]
  %v22 = vld [vmem:[%s0 + $0x38] sm:$0xff]
  %v23 = vld [vmem:[%s0 + $0x40] sm:$0xf]
  %v24 = vld [vmem:[%s0 + $0x44] sm:$0xff]
  %v25 = vld [vmem:[%s0 + $0x4c] sm:$0xff]
  %v26 = vld [vmem:[%s0 + $0x54] sm:$0xff]
  %v27 = vld [vmem:[%s0 + $0x5c] sm:$0xff]
  %v28 = vld [vmem:[%s0 + $0x64] sm:$0xff]
  %v29 = vld [vmem:[%s0 + $0x6c] sm:$0xff]
  %v30 = vld [vmem:[%s0 + $0x74] sm:$0xff]
  %v31 = vld [vmem:[%s0 + $0x7c] sm:$0xff]
  %v32 = vld [vmem:[%s0 + $0x84] sm:$0xf]
  %v33 = vld [vmem:[%s0 + $0x88] sm:$0xff]
  %v34 = vld [vmem:[%s0 + $0x90] sm:$0xff]
  %v35 = vld [vmem:[%s0 + $0x98] sm:$0xff]
  %v36 = vld [vmem:[%s0 + $0xa0] sm:$0xff]
  %v37 = vld [vmem:[%s0 + $0xa8] sm:$0xff]
  %v38 = vld [vmem:[%s0 + $0xb0] sm:$0xff]
  %v39 = vld [vmem:[%s0 + $0xb8] sm:$0xff]
  %v40 = vld [vmem:[%s0 + $0xc0] sm:$0xff]
  %v41 = vld [vmem:[%s0 + $0xc8] sm:$0xf]
  %v42 = vld [vmem:[%s0 + $0xcc] sm:$0xff]
  %v43 = vld [vmem:[%s0 + $0xd4] sm:$0xff]
  %v44 = vld [vmem:[%s0 + $0xdc] sm:$0xff]
  %v45 = vld [vmem:[%s0 + $0xe4] sm:$0xff]
  %v46 = vld [vmem:[%s0 + $0xec] sm:$0xff]
  %v47 = vld [vmem:[%s0 + $0xf4] sm:$0xff]
  %v48 = vld [vmem:[%s0 + $0xfc] sm:$0xff]
  %v49 = vld [vmem:[%s0 + $0x104] sm:$0xff]
  %v50 = vld [vmem:[%s0 + $0x10c] sm:$0xf]
  %v51 = vld [vmem:[%s0 + $0x110] sm:$0xff]
  %v52 = vld [vmem:[%s0 + $0x118] sm:$0xff]
  %v53 = vld [vmem:[%s0 + $0x120] sm:$0xff]
  %v54 = vld [vmem:[%s0 + $0x128] sm:$0xff]
  %v55 = vld [vmem:[%s0 + $0x130] sm:$0xff]
  %v56 = vld [vmem:[%s0 + $0x138] sm:$0xff]
  %v57 = vld [vmem:[%s0 + $0x140] sm:$0xff]
  %v58 = vld [vmem:[%s0 + $0x148] sm:$0xff]
  %v59 = vld [vmem:[%s0 + $0x150] sm:$0xf]
  %v60 = vld [vmem:[%s0 + $0x154] sm:$0xff]
  %v61 = vld [vmem:[%s0 + $0x15c] sm:$0xff]
  %v62 = vld [vmem:[%s0 + $0x164] sm:$0xff]
  %v63 = vld [vmem:[%s0 + $0x16c] sm:$0xff]
  %v64 = vld [vmem:[%s0 + $0x174] sm:$0xff]
  %v65 = vld [vmem:[%s0 + $0x17c] sm:$0xff]
  %v66 = vld [vmem:[%s0 + $0x184] sm:$0xff]
  %v67 = vld [vmem:[%s0 + $0x18c] sm:$0xff]
  %v68 = vld [vmem:[%s0 + $0x194] sm:$0xf]
  %v69 = vld [vmem:[%s0 + $0x198] sm:$0xff]
  %v70 = vld [vmem:[%s0 + $0x1a0] sm:$0xff]
  %v71 = vld [vmem:[%s0 + $0x1a8] sm:$0xff]
  %v72 = vld [vmem:[%s0 + $0x1b0] sm:$0xff]
  %v73 = vld [vmem:[%s0 + $0x1b8] sm:$0xff]
  %v74 = vld [vmem:[%s0 + $0x1c0] sm:$0xff]
  %v75 = vld [vmem:[%s0 + $0x1c8] sm:$0xff]
  %v76 = vld [vmem:[%s0 + $0x1d0] sm:$0xff]
  %v77 = vld [vmem:[%s0 + $0x1d8] sm:$0xf]
  %v78 = vld [vmem:[%s0 + $0x1dc] sm:$0xff]
  %v79 = vld [vmem:[%s0 + $0x1e4] sm:$0xff]
  %v80 = vld [vmem:[%s0 + $0x1ec] sm:$0xff]
  %v81 = vld [vmem:[%s0 + $0x1f4] sm:$0xff]
  %v82 = vld [vmem:[%s0 + $0x1fc] sm:$0xff]
  %v83 = vld [vmem:[%s0 + $0x204] sm:$0xff]
  %v84 = vld [vmem:[%s0 + $0x20c] sm:$0xff]
  %v85 = vld [vmem:[%s0 + $0x214] sm:$0xff]
  %v86 = vld [vmem:[%s0 + $0x21c] sm:$0xf]
  %v87 = vld [vmem:[%s0 + $0x220] sm:$0xff]
  %v88 = vld [vmem:[%s0 + $0x228] sm:$0xff]
  %v89 = vld [vmem:[%s0 + $0x230] sm:$0xff]
  %v90 = vld [vmem:[%s0 + $0x238] sm:$0xff]
  %v91 = vld [vmem:[%s0 + $0x240] sm:$0xff]
  %v92 = vld [vmem:[%s0 + $0x248] sm:$0xff]
  %v93 = vld [vmem:[%s0 + $0x250] sm:$0xff]
  %v94 = vld [vmem:[%s0 + $0x258] sm:$0xff]
  %v95 = vld [vmem:[%s0 + $0x260] sm:$0xf]
  %v96 = vld [vmem:[%s0 + $0x264] sm:$0xff]
  %v97 = vld [vmem:[%s0 + $0x26c] sm:$0xff]
  %v98 = vld [vmem:[%s0 + $0x274] sm:$0xff]
  %v99 = vld [vmem:[%s0 + $0x27c] sm:$0xff]
  %v100 = vld [vmem:[%s0 + $0x284] sm:$0xff]
  %v101 = vld [vmem:[%s0 + $0x28c] sm:$0xff]
  %v102 = vld [vmem:[%s0 + $0x294] sm:$0xff]
  %v103 = vld [vmem:[%s0 + $0x29c] sm:$0xff]
  %v104 = vld [vmem:[%s0 + $0x2a4] sm:$0xf]
  %v105 = vld [vmem:[%s0 + $0x2a8] sm:$0xff]
  %v106 = vld [vmem:[%s0 + $0x2b0] sm:$0xff]
  %v107 = vld [vmem:[%s0 + $0x2b8] sm:$0xff]
  %v108 = vld [vmem:[%s0 + $0x2c0] sm:$0xff]
  %v109 = vld [vmem:[%s0 + $0x2c8] sm:$0xff]
  %v110 = vld [vmem:[%s0 + $0x2d0] sm:$0xff]
  %v111 = vld [vmem:[%s0 + $0x2d8] sm:$0xff]
  %v112 = vld [vmem:[%s0 + $0x2e0] sm:$0xff]
  %v113 = vld [vmem:[%s0 + $0x2e8] sm:$0xf]
  %v114 = vld [vmem:[%s0 + $0x2ec] sm:$0xff]
  %v115 = vld [vmem:[%s0 + $0x2f4] sm:$0xff]
  %v116 = vld [vmem:[%s0 + $0x2fc] sm:$0xff]
  %v117 = vld [vmem:[%s0 + $0x304] sm:$0xff]
  %v118 = vld [vmem:[%s0 + $0x30c] sm:$0xff]
  %v119 = vld [vmem:[%s0 + $0x314] sm:$0xff]
  %v120 = vld [vmem:[%s0 + $0x31c] sm:$0xff]
  %v121 = vld [vmem:[%s0 + $0x324] sm:$0xff]
  %v122 = vld [vmem:[%s0 + $0x32c] sm:$0xf]
  %v123 = vld [vmem:[%s1] sm:$0xff]
  %v124 = vld [vmem:[%s1 + $0x8] sm:$0xff]
  %v125 = vld [vmem:[%s1 + $0x10] sm:$0xff]
  %v126 = vld [vmem:[%s1 + $0x18] sm:$0xff]
  %v127 = vld [vmem:[%s1 + $0x20] sm:$0xff]
  %v128 = vld [vmem:[%s1 + $0x28] sm:$0xff]
  %v129 = vld [vmem:[%s1 + $0x30] sm:$0xff]
  %v130 = vld [vmem:[%s1 + $0x38] sm:$0xff]
  %v131 = vld [vmem:[%s1 + $0x40] sm:$0xff]
  %v132 = vld [vmem:[%s1 + $0x48] sm:$0xff]
  %v133 = vld [vmem:[%s1 + $0x50] sm:$0xff]
  %v134 = vld [vmem:[%s1 + $0x58] sm:$0xff]
  %v135 = vld [vmem:[%s1 + $0x60] sm:$0xff]
  %v136 = vld [vmem:[%s1 + $0x68] sm:$0xff]
  %v137 = vld [vmem:[%s1 + $0x70] sm:$0xff]
  %v138 = vld [vmem:[%s1 + $0x78] sm:$0xff]
  %v139 = vld [vmem:[%s1 + $0x80] sm:$0xff]
  %v140 = vld [vmem:[%s1 + $0x88] sm:$0xff]
  %v141 = vld [vmem:[%s1 + $0x90] sm:$0xff]
  %v142 = vld [vmem:[%s1 + $0x98] sm:$0xff]
  %v143 = vld [vmem:[%s1 + $0xa0] sm:$0xff]
  %v144 = vld [vmem:[%s1 + $0xa8] sm:$0xff]
  %v145 = vld [vmem:[%s1 + $0xb0] sm:$0xff]
  %v146 = vld [vmem:[%s1 + $0xb8] sm:$0xff]
  %v147 = vld [vmem:[%s1 + $0xc0] sm:$0xff]
  %v148 = vld [vmem:[%s1 + $0xc8] sm:$0xff]
  %v149 = vld [vmem:[%s1 + $0xd0] sm:$0xff]
  %v150 = vld [vmem:[%s1 + $0xd8] sm:$0xff]
  %v151 = vld [vmem:[%s1 + $0xe0] sm:$0xff]
  %v152 = vld [vmem:[%s1 + $0xe8] sm:$0xff]
  %v153 = vld [vmem:[%s1 + $0xf0] sm:$0xff]
  %v154 = vld [vmem:[%s1 + $0xf8] sm:$0xff]
  %v155 = vld [vmem:[%s1 + $0x100] sm:$0xff]
  %v156 = vld [vmem:[%s1 + $0x108] sm:$0xff]
  %v157 = vld [vmem:[%s1 + $0x110] sm:$0xff]
  %v158 = vld [vmem:[%s1 + $0x118] sm:$0xff]
  %v159 = vld [vmem:[%s1 + $0x120] sm:$0xff]
  %v160 = vld [vmem:[%s1 + $0x128] sm:$0xff]
  %v161 = vld [vmem:[%s1 + $0x130] sm:$0xff]
  %v162 = vld [vmem:[%s1 + $0x138] sm:$0xff]
  %v163 = vld [vmem:[%s1 + $0x140] sm:$0xff]
  %v164 = vld [vmem:[%s1 + $0x148] sm:$0xff]
  %v165 = vld [vmem:[%s1 + $0x150] sm:$0xff]
  %v166 = vld [vmem:[%s1 + $0x158] sm:$0xff]
  %v167 = vld [vmem:[%s1 + $0x160] sm:$0xff]
  %v168 = vld [vmem:[%s1 + $0x168] sm:$0xff]
  %v169 = vld [vmem:[%s1 + $0x170] sm:$0xff]
  %v170 = vld [vmem:[%s1 + $0x178] sm:$0xff]
  %v171 = vld [vmem:[%s1 + $0x180] sm:$0xff]
  %v172 = vld [vmem:[%s1 + $0x188] sm:$0xff]
  %v173 = vld [vmem:[%s1 + $0x190] sm:$0xff]
  %v174 = vld [vmem:[%s1 + $0x198] sm:$0xff]
  %v175 = vld [vmem:[%s1 + $0x1a0] sm:$0xff]
  %v176 = vld [vmem:[%s1 + $0x1a8] sm:$0xff]
  %v177 = vld [vmem:[%s1 + $0x1b0] sm:$0xff]
  %v178 = vld [vmem:[%s1 + $0x1b8] sm:$0xff]
  %v179 = vld [vmem:[%s1 + $0x1c0] sm:$0xff]
  %v180 = vld [vmem:[%s1 + $0x1c8] sm:$0xff]
  %v181 = vld [vmem:[%s1 + $0x1d0] sm:$0xff]
  %v182 = vld [vmem:[%s1 + $0x1d8] sm:$0xff]
  %v183 = vld [vmem:[%s1 + $0x1e0] sm:$0xff]
  %v184 = vld [vmem:[%s1 + $0x1e8] sm:$0xff]
  %v185 = vld [vmem:[%s1 + $0x1f0] sm:$0xff]
  %v186 = vld [vmem:[%s1 + $0x1f8] sm:$0xff]
  %v187 = vld [vmem:[%s1 + $0x200] sm:$0xff]
  %v188 = vld [vmem:[%s1 + $0x208] sm:$0xff]
  %v189 = vld [vmem:[%s1 + $0x210] sm:$0xff]
  %v190 = vld [vmem:[%s1 + $0x218] sm:$0xff]
  %v191 = vld [vmem:[%s1 + $0x220] sm:$0xff]
  %v192 = vld [vmem:[%s1 + $0x228] sm:$0xff]
  %v193 = vld [vmem:[%s1 + $0x230] sm:$0xff]
  %v194 = vld [vmem:[%s1 + $0x238] sm:$0xff]
  %v195 = vld [vmem:[%s1 + $0x240] sm:$0xff]
  %v196 = vld [vmem:[%s1 + $0x248] sm:$0xff]
  %v197 = vld [vmem:[%s1 + $0x250] sm:$0xff]
  %v198 = vld [vmem:[%s1 + $0x258] sm:$0xff]
  %v199 = vld [vmem:[%s1 + $0x260] sm:$0xff]
  %v200 = vld [vmem:[%s1 + $0x268] sm:$0xff]
  %v201 = vld [vmem:[%s1 + $0x270] sm:$0xff]
  %v202 = vld [vmem:[%s1 + $0x278] sm:$0xff]
  %v203 = vld [vmem:[%s1 + $0x280] sm:$0xff]
  %v204 = vld [vmem:[%s1 + $0x288] sm:$0xff]
  %v205 = vld [vmem:[%s1 + $0x290] sm:$0xff]
  %v206 = vld [vmem:[%s1 + $0x298] sm:$0xff]
  %v207 = vld [vmem:[%s1 + $0x2a0] sm:$0xff]
  %v208 = vld [vmem:[%s1 + $0x2a8] sm:$0xff]
  %v209 = vld [vmem:[%s1 + $0x2b0] sm:$0xff]
  %v210 = vld [vmem:[%s1 + $0x2b8] sm:$0xff]
  %v211 = vld [vmem:[%s1 + $0x2c0] sm:$0xff]
  %v212 = vld [vmem:[%s1 + $0x2c8] sm:$0xff]
  %v213 = vld [vmem:[%s1 + $0x2d0] sm:$0xff]
  %v214 = vld [vmem:[%s1 + $0x2d8] sm:$0xff]
  %v215 = vld [vmem:[%s1 + $0x2e0] sm:$0xff]
  %v216 = vld [vmem:[%s1 + $0x2e8] sm:$0xff]
  %v217 = vld [vmem:[%s1 + $0x2f0] sm:$0xff]
  %v218 = vld [vmem:[%s1 + $0x2f8] sm:$0xff]
  %v219 = vld [vmem:[%s1 + $0x300] sm:$0xff]
  %v220 = vld [vmem:[%s1 + $0x308] sm:$0xff]
  %v221 = vld [vmem:[%s1 + $0x310] sm:$0xff]
  %v222 = vld [vmem:[%s1 + $0x318] sm:$0xff]
  %v223 = vld [vmem:[%s1 + $0x320] sm:$0xff]
  %v224 = vld [vmem:[%s1 + $0x328] sm:$0xff]
  %v225 = vld [vmem:[%s1 + $0x330] sm:$0xff]
  %v226 = vld [vmem:[%s1 + $0x338] sm:$0xff]
  %v227 = vld [vmem:[%s1 + $0x340] sm:$0xff]
  %v228 = vld [vmem:[%s1 + $0x348] sm:$0xff]
  %v229 = vld [vmem:[%s1 + $0x350] sm:$0xff]
  %v230 = vld [vmem:[%s1 + $0x358] sm:$0xff]
  %v231 = vld [vmem:[%s1 + $0x360] sm:$0xff]
  %v232 = vld [vmem:[%s1 + $0x368] sm:$0xff]
  %v233 = vld [vmem:[%s1 + $0x370] sm:$0xff]
  %v234 = vld [vmem:[%s1 + $0x378] sm:$0xff]
  %v235 = vld [vmem:[%s1 + $0x380] sm:$0xff]
  %v236 = vld [vmem:[%s1 + $0x388] sm:$0xff]
  %v237 = vld [vmem:[%s1 + $0x390] sm:$0xff]
  %v238 = vld [vmem:[%s1 + $0x398] sm:$0xff]
  %v239 = vld [vmem:[%s1 + $0x3a0] sm:$0xff]
  %v240 = vld [vmem:[%s1 + $0x3a8] sm:$0xff]
  %v241 = vld [vmem:[%s1 + $0x3b0] sm:$0xff]
  %v242 = vld [vmem:[%s1 + $0x3b8] sm:$0xff]
  %v243 = vld [vmem:[%s1 + $0x3c0] sm:$0xff]
  %v244 = vld [vmem:[%s1 + $0x3c8] sm:$0xff]
  %v245 = vld [vmem:[%s1 + $0x3d0] sm:$0xff]
  %v246 = vld [vmem:[%s1 + $0x3d8] sm:$0xff]
  %v247 = vld [vmem:[%s1 + $0x3e0] sm:$0xff]
  %v248 = vld [vmem:[%s1 + $0x3e8] sm:$0xff]
  %v249 = vld [vmem:[%s1 + $0x3f0] sm:$0xff]
  %v250 = vld [vmem:[%s1 + $0x3f8] sm:$0xff]
  %v251 = vld [vmem:[%s1 + $0x400] sm:$0xff]
  %v252 = vld [vmem:[%s1 + $0x408] sm:$0xff]
  %v253 = vld [vmem:[%s1 + $0x410] sm:$0xff]
  %v254 = vld [vmem:[%s1 + $0x418] sm:$0xff]
  %v255 = vld [vmem:[%s1 + $0x420] sm:$0xff]
  %v256 = vld [vmem:[%s1 + $0x428] sm:$0xff]
  %v257 = vld [vmem:[%s1 + $0x430] sm:$0xff]
  %v258 = vld [vmem:[%s1 + $0x438] sm:$0xff]
  %v259 = vld [vmem:[%s1 + $0x440] sm:$0xff]
  %v260 = vld [vmem:[%s1 + $0x448] sm:$0xff]
  %v261 = vld [vmem:[%s1 + $0x450] sm:$0xff]
  %v262 = vld [vmem:[%s1 + $0x458] sm:$0xff]
  %v263 = vld [vmem:[%s1 + $0x460] sm:$0xff]
  %v264 = vld [vmem:[%s1 + $0x468] sm:$0xff]
  %v265 = vld [vmem:[%s1 + $0x470] sm:$0xff]
  %v266 = vld [vmem:[%s1 + $0x478] sm:$0xff]
  %v267 = vld [vmem:[%s1 + $0x480] sm:$0xff]
  %v268 = vld [vmem:[%s1 + $0x488] sm:$0xff]
  %v269 = vld [vmem:[%s1 + $0x490] sm:$0xff]
  %v270 = vld [vmem:[%s1 + $0x498] sm:$0xff]
  %v271 = vld [vmem:[%s1 + $0x4a0] sm:$0xff]
  %v272 = vld [vmem:[%s1 + $0x4a8] sm:$0xff]
  %v273 = vld [vmem:[%s1 + $0x4b0] sm:$0xff]
  %v274 = vld [vmem:[%s1 + $0x4b8] sm:$0xff]
  %v275 = vld [vmem:[%s1 + $0x4c0] sm:$0xff]
  %v276 = vld [vmem:[%s1 + $0x4c8] sm:$0xff]
  %v277 = vld [vmem:[%s1 + $0x4d0] sm:$0xff]
  %v278 = vld [vmem:[%s1 + $0x4d8] sm:$0xff]
  %v279 = vld [vmem:[%s1 + $0x4e0] sm:$0xff]
  %v280 = vld [vmem:[%s1 + $0x4e8] sm:$0xff]
  %v281 = vld [vmem:[%s1 + $0x4f0] sm:$0xff]
  %v282 = vld [vmem:[%s1 + $0x4f8] sm:$0xff]
  %v283 = vld [vmem:[%s1 + $0x500] sm:$0xff]
  %v284 = vld [vmem:[%s1 + $0x508] sm:$0xff]
  %v285 = vld [vmem:[%s1 + $0x510] sm:$0xff]
  %v286 = vld [vmem:[%s1 + $0x518] sm:$0xff]
  %v287 = vld [vmem:[%s1 + $0x520] sm:$0xff]
  %v288 = vld [vmem:[%s1 + $0x528] sm:$0xff]
  %v289 = vld [vmem:[%s1 + $0x530] sm:$0xff]
  %v290 = vld [vmem:[%s1 + $0x538] sm:$0xff]
  %v291 = vld [vmem:[%s1 + $0x540] sm:$0xff]
  %v292 = vld [vmem:[%s1 + $0x548] sm:$0xff]
  %v293 = vld [vmem:[%s1 + $0x550] sm:$0xff]
  %v294 = vld [vmem:[%s1 + $0x558] sm:$0xff]
  %v295 = vld [vmem:[%s1 + $0x560] sm:$0xff]
  %v296 = vld [vmem:[%s1 + $0x568] sm:$0xff]
  %v297 = vld [vmem:[%s1 + $0x570] sm:$0xff]
  %v298 = vld [vmem:[%s1 + $0x578] sm:$0xff]
  %v299 = vld [vmem:[%s1 + $0x580] sm:$0xff]
  %v300 = vld [vmem:[%s1 + $0x588] sm:$0xff]
  %v301 = vld [vmem:[%s1 + $0x590] sm:$0xff]
  %v302 = vld [vmem:[%s1 + $0x598] sm:$0xff]
  %v303 = vld [vmem:[%s1 + $0x5a0] sm:$0xff]
  %v304 = vld [vmem:[%s1 + $0x5a8] sm:$0xff]
  %v305 = vld [vmem:[%s1 + $0x5b0] sm:$0xff]
  %v306 = vld [vmem:[%s1 + $0x5b8] sm:$0xff]
  %v307 = vld [vmem:[%s1 + $0x5c0] sm:$0xff]
  %v308 = vld [vmem:[%s1 + $0x5c8] sm:$0xff]
  %v309 = vld [vmem:[%s1 + $0x5d0] sm:$0xff]
  %v310 = vld [vmem:[%s1 + $0x5d8] sm:$0xff]
  %v311 = vld [vmem:[%s1 + $0x5e0] sm:$0xff]
  %v312 = vld [vmem:[%s1 + $0x5e8] sm:$0xff]
  %v313 = vld [vmem:[%s1 + $0x5f0] sm:$0xff]
  %v314 = vld [vmem:[%s1 + $0x5f8] sm:$0xff]
  %v315 = vld [vmem:[%s1 + $0x600] sm:$0xff]
  %v316 = vld [vmem:[%s1 + $0x608] sm:$0xff]
  %v317 = vld [vmem:[%s1 + $0x610] sm:$0xff]
  %v318 = vld [vmem:[%s1 + $0x618] sm:$0xff]
  %v319 = vld [vmem:[%s1 + $0x620] sm:$0xff]
  %v320 = vld [vmem:[%s1 + $0x628] sm:$0xff]
  %v321 = vld [vmem:[%s1 + $0x630] sm:$0xff]
  %v322 = vld [vmem:[%s1 + $0x638] sm:$0xff]
  %v323 = vld [vmem:[%s1 + $0x640] sm:$0xff]
  %v324 = vld [vmem:[%s1 + $0x648] sm:$0xff]
  %v325 = vld [vmem:[%s1 + $0x650] sm:$0xff]
  %v326 = vld [vmem:[%s1 + $0x658] sm:$0xff]
  %v327 = vld [vmem:[%s1 + $0x660] sm:$0xff]
  %v328 = vld [vmem:[%s1 + $0x668] sm:$0xff]
  %v329 = vld [vmem:[%s1 + $0x670] sm:$0xff]
  %v330 = vld [vmem:[%s1 + $0x678] sm:$0xff]
  %v331 = vld [vmem:[%s1 + $0x680] sm:$0xff]
  %v332 = vld [vmem:[%s1 + $0x688] sm:$0xff]
  %v333 = vld [vmem:[%s1 + $0x690] sm:$0xff]
  %v334 = vld [vmem:[%s1 + $0x698] sm:$0xff]
  %v335 = vld [vmem:[%s1 + $0x6a0] sm:$0xff]
  %v336 = vld [vmem:[%s1 + $0x6a8] sm:$0xff]
  %v337 = vld [vmem:[%s1 + $0x6b0] sm:$0xff]
  %v338 = vld [vmem:[%s1 + $0x6b8] sm:$0xff]
  %v339 = vld [vmem:[%s1 + $0x6c0] sm:$0xff]
  %v340 = vld [vmem:[%s1 + $0x6c8] sm:$0xff]
  %v341 = vld [vmem:[%s1 + $0x6d0] sm:$0xff]
  %v342 = vld [vmem:[%s1 + $0x6d8] sm:$0xff]
  %v343 = vld [vmem:[%s1 + $0x6e0] sm:$0xff]
  %v344 = vld [vmem:[%s1 + $0x6e8] sm:$0xff]
  %v345 = vld [vmem:[%s1 + $0x6f0] sm:$0xff]
  %v346 = vld [vmem:[%s1 + $0x6f8] sm:$0xff]
  %v347 = vld [vmem:[%s1 + $0x700] sm:$0xff]
  %v348 = vld [vmem:[%s1 + $0x708] sm:$0xff]
  %v349 = vld [vmem:[%s1 + $0x710] sm:$0xff]
  %v350 = vld [vmem:[%s1 + $0x718] sm:$0xff]
  %v351 = vld [vmem:[%s1 + $0x720] sm:$0xff]
  %v352 = vld [vmem:[%s1 + $0x728] sm:$0xff]
  %v353 = vld [vmem:[%s1 + $0x730] sm:$0xff]
  %v354 = vld [vmem:[%s1 + $0x738] sm:$0xff]
  %v355 = vld [vmem:[%s1 + $0x740] sm:$0xff]
  %v356 = vld [vmem:[%s1 + $0x748] sm:$0xff]
  %v357 = vld [vmem:[%s1 + $0x750] sm:$0xff]
  %v358 = vld [vmem:[%s1 + $0x758] sm:$0xff]
  %v359 = vld [vmem:[%s1 + $0x760] sm:$0xff]
  %v360 = vld [vmem:[%s1 + $0x768] sm:$0xff]
  %v361 = vld [vmem:[%s1 + $0x770] sm:$0xff]
  %v362 = vld [vmem:[%s1 + $0x778] sm:$0xff]
  %v363 = vld [vmem:[%s1 + $0x780] sm:$0xff]
  %v364 = vld [vmem:[%s1 + $0x788] sm:$0xff]
  %v365 = vld [vmem:[%s1 + $0x790] sm:$0xff]
  %v366 = vld [vmem:[%s1 + $0x798] sm:$0xff]
  %v367 = vld [vmem:[%s1 + $0x7a0] sm:$0xff]
  %v368 = vld [vmem:[%s1 + $0x7a8] sm:$0xff]
  %v369 = vld [vmem:[%s1 + $0x7b0] sm:$0xff]
  %v370 = vld [vmem:[%s1 + $0x7b8] sm:$0xff]
  %v371 = vld [vmem:[%s1 + $0x7c0] sm:$0xff]
  %v372 = vld [vmem:[%s1 + $0x7c8] sm:$0xff]
  %v373 = vld [vmem:[%s1 + $0x7d0] sm:$0xff]
  %v374 = vld [vmem:[%s1 + $0x7d8] sm:$0xff]
  %v375 = vld [vmem:[%s1 + $0x7e0] sm:$0xff]
  %v376 = vld [vmem:[%s1 + $0x7e8] sm:$0xff]
  %v377 = vld [vmem:[%s1 + $0x7f0] sm:$0xff]
  %v378 = vld [vmem:[%s1 + $0x7f8] sm:$0xff]
  %v379 = vld [vmem:[%s1 + $0x800] sm:$0xff]
  %v380 = vld [vmem:[%s1 + $0x808] sm:$0xff]
  %v381 = vld [vmem:[%s1 + $0x810] sm:$0xff]
  %v382 = vld [vmem:[%s1 + $0x818] sm:$0xff]
  %v383 = vld [vmem:[%s1 + $0x820] sm:$0xff]
  %v384 = vld [vmem:[%s1 + $0x828] sm:$0xff]
  %v385 = vld [vmem:[%s1 + $0x830] sm:$0xff]
  %v386 = vld [vmem:[%s1 + $0x838] sm:$0xff]
  %v387 = vld [vmem:[%s1 + $0x840] sm:$0xff]
  %v388 = vld [vmem:[%s1 + $0x848] sm:$0xff]
  %v389 = vld [vmem:[%s1 + $0x850] sm:$0xff]
  %v390 = vld [vmem:[%s1 + $0x858] sm:$0xff]
  %v391 = vld [vmem:[%s1 + $0x860] sm:$0xff]
  %v392 = vld [vmem:[%s1 + $0x868] sm:$0xff]
  %v393 = vld [vmem:[%s2] sm:$0x3]
  %v395 = vlaneseq
  %v396 = vshrl.u32 %v395, 7
  %v397 = vsub.s32 0, %v396
  %v398 = vrot.slane %v393, %v397
  %v399 = vlaneseq
  %v400 = vshrl.u32 %v399, 7
  %v401 = vsub.s32 1, %v400
  %v402 = vrot.slane %v393, %v401
  %v513 = vunpack.c.l.b16 %v15
  %v514 = vunpack.c.h.b16 %v15
  %v515 = vunpack.c.l.b16 %v16
  %v516 = vunpack.c.h.b16 %v16
  %v517 = vunpack.c.l.b16 %v17
  %v518 = vunpack.c.h.b16 %v17
  %v519 = vunpack.c.l.b16 %v18
  %v520 = vunpack.c.h.b16 %v18
  %v521 = vunpack.c.l.b16 %v19
  %v522 = vunpack.c.h.b16 %v19
  %v523 = vunpack.c.l.b16 %v20
  %v524 = vunpack.c.h.b16 %v20
  %v525 = vunpack.c.l.b16 %v21
  %v526 = vunpack.c.h.b16 %v21
  %v527 = vunpack.c.l.b16 %v22
  %v528 = vunpack.c.h.b16 %v22
  %v529 = vunpack.c.l.b16 %v23
  %v530 = vunpack.c.l.b16 %v24
  %v531 = vunpack.c.h.b16 %v24
  %v532 = vunpack.c.l.b16 %v25
  %v533 = vunpack.c.h.b16 %v25
  %v534 = vunpack.c.l.b16 %v26
  %v535 = vunpack.c.h.b16 %v26
  %v536 = vunpack.c.l.b16 %v27
  %v537 = vunpack.c.h.b16 %v27
  %v538 = vunpack.c.l.b16 %v28
  %v539 = vunpack.c.h.b16 %v28
  %v540 = vunpack.c.l.b16 %v29
  %v541 = vunpack.c.h.b16 %v29
  %v542 = vunpack.c.l.b16 %v30
  %v543 = vunpack.c.h.b16 %v30
  %v544 = vunpack.c.l.b16 %v31
  %v545 = vunpack.c.h.b16 %v31
  %v546 = vunpack.c.l.b16 %v32
  %v547 = vunpack.c.l.b16 %v33
  %v548 = vunpack.c.h.b16 %v33
  %v549 = vunpack.c.l.b16 %v34
  %v550 = vunpack.c.h.b16 %v34
  %v551 = vunpack.c.l.b16 %v35
  %v552 = vunpack.c.h.b16 %v35
  %v553 = vunpack.c.l.b16 %v36
  %v554 = vunpack.c.h.b16 %v36
  %v555 = vunpack.c.l.b16 %v37
  %v556 = vunpack.c.h.b16 %v37
  %v557 = vunpack.c.l.b16 %v38
  %v558 = vunpack.c.h.b16 %v38
  %v559 = vunpack.c.l.b16 %v39
  %v560 = vunpack.c.h.b16 %v39
  %v561 = vunpack.c.l.b16 %v40
  %v562 = vunpack.c.h.b16 %v40
  %v563 = vunpack.c.l.b16 %v41
  %v564 = vunpack.c.l.b16 %v42
  %v565 = vunpack.c.h.b16 %v42
  %v566 = vunpack.c.l.b16 %v43
  %v567 = vunpack.c.h.b16 %v43
  %v568 = vunpack.c.l.b16 %v44
  %v569 = vunpack.c.h.b16 %v44
  %v570 = vunpack.c.l.b16 %v45
  %v571 = vunpack.c.h.b16 %v45
  %v572 = vunpack.c.l.b16 %v46
  %v573 = vunpack.c.h.b16 %v46
  %v574 = vunpack.c.l.b16 %v47
  %v575 = vunpack.c.h.b16 %v47
  %v576 = vunpack.c.l.b16 %v48
  %v577 = vunpack.c.h.b16 %v48
  %v578 = vunpack.c.l.b16 %v49
  %v579 = vunpack.c.h.b16 %v49
  %v580 = vunpack.c.l.b16 %v50
  %v581 = vunpack.c.l.b16 %v51
  %v582 = vunpack.c.h.b16 %v51
  %v583 = vunpack.c.l.b16 %v52
  %v584 = vunpack.c.h.b16 %v52
  %v585 = vunpack.c.l.b16 %v53
  %v586 = vunpack.c.h.b16 %v53
  %v587 = vunpack.c.l.b16 %v54
  %v588 = vunpack.c.h.b16 %v54
  %v589 = vunpack.c.l.b16 %v55
  %v590 = vunpack.c.h.b16 %v55
  %v591 = vunpack.c.l.b16 %v56
  %v592 = vunpack.c.h.b16 %v56
  %v593 = vunpack.c.l.b16 %v57
  %v594 = vunpack.c.h.b16 %v57
  %v595 = vunpack.c.l.b16 %v58
  %v596 = vunpack.c.h.b16 %v58
  %v597 = vunpack.c.l.b16 %v59
  %v598 = vunpack.c.l.b16 %v60
  %v599 = vunpack.c.h.b16 %v60
  %v600 = vunpack.c.l.b16 %v61
  %v601 = vunpack.c.h.b16 %v61
  %v602 = vunpack.c.l.b16 %v62
  %v603 = vunpack.c.h.b16 %v62
  %v604 = vunpack.c.l.b16 %v63
  %v605 = vunpack.c.h.b16 %v63
  %v606 = vunpack.c.l.b16 %v64
  %v607 = vunpack.c.h.b16 %v64
  %v608 = vunpack.c.l.b16 %v65
  %v609 = vunpack.c.h.b16 %v65
  %v610 = vunpack.c.l.b16 %v66
  %v611 = vunpack.c.h.b16 %v66
  %v612 = vunpack.c.l.b16 %v67
  %v613 = vunpack.c.h.b16 %v67
  %v614 = vunpack.c.l.b16 %v68
  %v615 = vunpack.c.l.b16 %v69
  %v616 = vunpack.c.h.b16 %v69
  %v617 = vunpack.c.l.b16 %v70
  %v618 = vunpack.c.h.b16 %v70
  %v619 = vunpack.c.l.b16 %v71
  %v620 = vunpack.c.h.b16 %v71
  %v621 = vunpack.c.l.b16 %v72
  %v622 = vunpack.c.h.b16 %v72
  %v623 = vunpack.c.l.b16 %v73
  %v624 = vunpack.c.h.b16 %v73
  %v625 = vunpack.c.l.b16 %v74
  %v626 = vunpack.c.h.b16 %v74
  %v627 = vunpack.c.l.b16 %v75
  %v628 = vunpack.c.h.b16 %v75
  %v629 = vunpack.c.l.b16 %v76
  %v630 = vunpack.c.h.b16 %v76
  %v631 = vunpack.c.l.b16 %v77
  %v632 = vunpack.c.l.b16 %v78
  %v633 = vunpack.c.h.b16 %v78
  %v634 = vunpack.c.l.b16 %v79
  %v635 = vunpack.c.h.b16 %v79
  %v636 = vunpack.c.l.b16 %v80
  %v637 = vunpack.c.h.b16 %v80
  %v638 = vunpack.c.l.b16 %v81
  %v639 = vunpack.c.h.b16 %v81
  %v640 = vunpack.c.l.b16 %v82
  %v641 = vunpack.c.h.b16 %v82
  %v642 = vunpack.c.l.b16 %v83
  %v643 = vunpack.c.h.b16 %v83
  %v644 = vunpack.c.l.b16 %v84
  %v645 = vunpack.c.h.b16 %v84
  %v646 = vunpack.c.l.b16 %v85
  %v647 = vunpack.c.h.b16 %v85
  %v648 = vunpack.c.l.b16 %v86
  %v649 = vunpack.c.l.b16 %v87
  %v650 = vunpack.c.h.b16 %v87
  %v651 = vunpack.c.l.b16 %v88
  %v652 = vunpack.c.h.b16 %v88
  %v653 = vunpack.c.l.b16 %v89
  %v654 = vunpack.c.h.b16 %v89
  %v655 = vunpack.c.l.b16 %v90
  %v656 = vunpack.c.h.b16 %v90
  %v657 = vunpack.c.l.b16 %v91
  %v658 = vunpack.c.h.b16 %v91
  %v659 = vunpack.c.l.b16 %v92
  %v660 = vunpack.c.h.b16 %v92
  %v661 = vunpack.c.l.b16 %v93
  %v662 = vunpack.c.h.b16 %v93
  %v663 = vunpack.c.l.b16 %v94
  %v664 = vunpack.c.h.b16 %v94
  %v665 = vunpack.c.l.b16 %v95
  %v666 = vunpack.c.l.b16 %v96
  %v667 = vunpack.c.h.b16 %v96
  %v668 = vunpack.c.l.b16 %v97
  %v669 = vunpack.c.h.b16 %v97
  %v670 = vunpack.c.l.b16 %v98
  %v671 = vunpack.c.h.b16 %v98
  %v672 = vunpack.c.l.b16 %v99
  %v673 = vunpack.c.h.b16 %v99
  %v674 = vunpack.c.l.b16 %v100
  %v675 = vunpack.c.h.b16 %v100
  %v676 = vunpack.c.l.b16 %v101
  %v677 = vunpack.c.h.b16 %v101
  %v678 = vunpack.c.l.b16 %v102
  %v679 = vunpack.c.h.b16 %v102
  %v680 = vunpack.c.l.b16 %v103
  %v681 = vunpack.c.h.b16 %v103
  %v682 = vunpack.c.l.b16 %v104
  %v683 = vunpack.c.l.b16 %v105
  %v684 = vunpack.c.h.b16 %v105
  %v685 = vunpack.c.l.b16 %v106
  %v686 = vunpack.c.h.b16 %v106
  %v687 = vunpack.c.l.b16 %v107
  %v688 = vunpack.c.h.b16 %v107
  %v689 = vunpack.c.l.b16 %v108
  %v690 = vunpack.c.h.b16 %v108
  %v691 = vunpack.c.l.b16 %v109
  %v692 = vunpack.c.h.b16 %v109
  %v693 = vunpack.c.l.b16 %v110
  %v694 = vunpack.c.h.b16 %v110
  %v695 = vunpack.c.l.b16 %v111
  %v696 = vunpack.c.h.b16 %v111
  %v697 = vunpack.c.l.b16 %v112
  %v698 = vunpack.c.h.b16 %v112
  %v699 = vunpack.c.l.b16 %v113
  %v700 = vunpack.c.l.b16 %v114
  %v701 = vunpack.c.h.b16 %v114
  %v702 = vunpack.c.l.b16 %v115
  %v703 = vunpack.c.h.b16 %v115
  %v704 = vunpack.c.l.b16 %v116
  %v705 = vunpack.c.h.b16 %v116
  %v706 = vunpack.c.l.b16 %v117
  %v707 = vunpack.c.h.b16 %v117
  %v708 = vunpack.c.l.b16 %v118
  %v709 = vunpack.c.h.b16 %v118
  %v710 = vunpack.c.l.b16 %v119
  %v711 = vunpack.c.h.b16 %v119
  %v712 = vunpack.c.l.b16 %v120
  %v713 = vunpack.c.h.b16 %v120
  %v714 = vunpack.c.l.b16 %v121
  %v715 = vunpack.c.h.b16 %v121
  %v716 = vunpack.c.l.b16 %v122
  %v717 = vpack.c.b16 %v530, %v513
  %v718 = vpack.c.b16 %v531, %v514
  %v719 = vpack.c.b16 %v532, %v515
  %v720 = vpack.c.b16 %v533, %v516
  %v721 = vpack.c.b16 %v534, %v517
  %v722 = vpack.c.b16 %v535, %v518
  %v723 = vpack.c.b16 %v536, %v519
  %v724 = vpack.c.b16 %v537, %v520
  %v725 = vpack.c.b16 %v538, %v521
  %v726 = vpack.c.b16 %v539, %v522
  %v727 = vpack.c.b16 %v540, %v523
  %v728 = vpack.c.b16 %v541, %v524
  %v729 = vpack.c.b16 %v542, %v525
  %v730 = vpack.c.b16 %v543, %v526
  %v731 = vpack.c.b16 %v544, %v527
  %v732 = vpack.c.b16 %v545, %v528
  %v733 = vpack.c.b16 %v546, %v529
  %v734 = vpack.c.b16 %v564, %v547
  %v735 = vpack.c.b16 %v565, %v548
  %v736 = vpack.c.b16 %v566, %v549
  %v737 = vpack.c.b16 %v567, %v550
  %v738 = vpack.c.b16 %v568, %v551
  %v739 = vpack.c.b16 %v569, %v552
  %v740 = vpack.c.b16 %v570, %v553
  %v741 = vpack.c.b16 %v571, %v554
  %v742 = vpack.c.b16 %v572, %v555
  %v743 = vpack.c.b16 %v573, %v556
  %v744 = vpack.c.b16 %v574, %v557
  %v745 = vpack.c.b16 %v575, %v558
  %v746 = vpack.c.b16 %v576, %v559
  %v747 = vpack.c.b16 %v577, %v560
  %v748 = vpack.c.b16 %v578, %v561
  %v749 = vpack.c.b16 %v579, %v562
  %v750 = vpack.c.b16 %v580, %v563
  %v751 = vpack.c.b16 %v598, %v581
  %v752 = vpack.c.b16 %v599, %v582
  %v753 = vpack.c.b16 %v600, %v583
  %v754 = vpack.c.b16 %v601, %v584
  %v755 = vpack.c.b16 %v602, %v585
  %v756 = vpack.c.b16 %v603, %v586
  %v757 = vpack.c.b16 %v604, %v587
  %v758 = vpack.c.b16 %v605, %v588
  %v759 = vpack.c.b16 %v606, %v589
  %v760 = vpack.c.b16 %v607, %v590
  %v761 = vpack.c.b16 %v608, %v591
  %v762 = vpack.c.b16 %v609, %v592
  %v763 = vpack.c.b16 %v610, %v593
  %v764 = vpack.c.b16 %v611, %v594
  %v765 = vpack.c.b16 %v612, %v595
  %v766 = vpack.c.b16 %v613, %v596
  %v767 = vpack.c.b16 %v614, %v597
  %v768 = vpack.c.b16 %v632, %v615
  %v769 = vpack.c.b16 %v633, %v616
  %v770 = vpack.c.b16 %v634, %v617
  %v771 = vpack.c.b16 %v635, %v618
  %v772 = vpack.c.b16 %v636, %v619
  %v773 = vpack.c.b16 %v637, %v620
  %v774 = vpack.c.b16 %v638, %v621
  %v775 = vpack.c.b16 %v639, %v622
  %v776 = vpack.c.b16 %v640, %v623
  %v777 = vpack.c.b16 %v641, %v624
  %v778 = vpack.c.b16 %v642, %v625
  %v779 = vpack.c.b16 %v643, %v626
  %v780 = vpack.c.b16 %v644, %v627
  %v781 = vpack.c.b16 %v645, %v628
  %v782 = vpack.c.b16 %v646, %v629
  %v783 = vpack.c.b16 %v647, %v630
  %v784 = vpack.c.b16 %v648, %v631
  %v785 = vpack.c.b16 %v666, %v649
  %v786 = vpack.c.b16 %v667, %v650
  %v787 = vpack.c.b16 %v668, %v651
  %v788 = vpack.c.b16 %v669, %v652
  %v789 = vpack.c.b16 %v670, %v653
  %v790 = vpack.c.b16 %v671, %v654
  %v791 = vpack.c.b16 %v672, %v655
  %v792 = vpack.c.b16 %v673, %v656
  %v793 = vpack.c.b16 %v674, %v657
  %v794 = vpack.c.b16 %v675, %v658
  %v795 = vpack.c.b16 %v676, %v659
  %v796 = vpack.c.b16 %v677, %v660
  %v797 = vpack.c.b16 %v678, %v661
  %v798 = vpack.c.b16 %v679, %v662
  %v799 = vpack.c.b16 %v680, %v663
  %v800 = vpack.c.b16 %v681, %v664
  %v801 = vpack.c.b16 %v682, %v665
  %v802 = vpack.c.b16 %v700, %v683
  %v803 = vpack.c.b16 %v701, %v684
  %v804 = vpack.c.b16 %v702, %v685
  %v805 = vpack.c.b16 %v703, %v686
  %v806 = vpack.c.b16 %v704, %v687
  %v807 = vpack.c.b16 %v705, %v688
  %v808 = vpack.c.b16 %v706, %v689
  %v809 = vpack.c.b16 %v707, %v690
  %v810 = vpack.c.b16 %v708, %v691
  %v811 = vpack.c.b16 %v709, %v692
  %v812 = vpack.c.b16 %v710, %v693
  %v813 = vpack.c.b16 %v711, %v694
  %v814 = vpack.c.b16 %v712, %v695
  %v815 = vpack.c.b16 %v713, %v696
  %v816 = vpack.c.b16 %v714, %v697
  %v817 = vpack.c.b16 %v715, %v698
  %v818 = vpack.c.b16 %v716, %v699
  %v1185 = vunpack.c.l.b16 %v123
  %v1186 = vunpack.c.h.b16 %v123
  %v1187 = vunpack.c.l.b16 %v124
  %v1188 = vunpack.c.h.b16 %v124
  %v1189 = vunpack.c.l.b16 %v125
  %v1190 = vunpack.c.h.b16 %v125
  %v1191 = vunpack.c.l.b16 %v126
  %v1192 = vunpack.c.h.b16 %v126
  %v1193 = vunpack.c.l.b16 %v127
  %v1194 = vunpack.c.h.b16 %v127
  %v1195 = vunpack.c.l.b16 %v128
  %v1196 = vunpack.c.h.b16 %v128
  %v1197 = vunpack.c.l.b16 %v129
  %v1198 = vunpack.c.h.b16 %v129
  %v1199 = vunpack.c.l.b16 %v130
  %v1200 = vunpack.c.h.b16 %v130
  %v1201 = vunpack.c.l.b16 %v131
  %v1202 = vunpack.c.h.b16 %v131
  %v1203 = vunpack.c.l.b16 %v132
  %v1204 = vunpack.c.h.b16 %v132
  %v1205 = vunpack.c.l.b16 %v133
  %v1206 = vunpack.c.h.b16 %v133
  %v1207 = vunpack.c.l.b16 %v134
  %v1208 = vunpack.c.h.b16 %v134
  %v1209 = vunpack.c.l.b16 %v135
  %v1210 = vunpack.c.h.b16 %v135
  %v1211 = vunpack.c.l.b16 %v136
  %v1212 = vunpack.c.h.b16 %v136
  %v1213 = vunpack.c.l.b16 %v137
  %v1214 = vunpack.c.h.b16 %v137
  %v1215 = vunpack.c.l.b16 %v138
  %v1216 = vunpack.c.h.b16 %v138
  %v1217 = vunpack.c.l.b16 %v139
  %v1218 = vunpack.c.h.b16 %v139
  %v1219 = vunpack.c.l.b16 %v140
  %v1220 = vunpack.c.h.b16 %v140
  %v1221 = vunpack.c.l.b16 %v141
  %v1222 = vunpack.c.h.b16 %v141
  %v1223 = vunpack.c.l.b16 %v142
  %v1224 = vunpack.c.h.b16 %v142
  %v1225 = vunpack.c.l.b16 %v143
  %v1226 = vunpack.c.h.b16 %v143
  %v1227 = vunpack.c.l.b16 %v144
  %v1228 = vunpack.c.h.b16 %v144
  %v1229 = vunpack.c.l.b16 %v145
  %v1230 = vunpack.c.h.b16 %v145
  %v1231 = vunpack.c.l.b16 %v146
  %v1232 = vunpack.c.h.b16 %v146
  %v1233 = vunpack.c.l.b16 %v147
  %v1234 = vunpack.c.h.b16 %v147
  %v1235 = vunpack.c.l.b16 %v148
  %v1236 = vunpack.c.h.b16 %v148
  %v1237 = vunpack.c.l.b16 %v149
  %v1238 = vunpack.c.h.b16 %v149
  %v1239 = vunpack.c.l.b16 %v150
  %v1240 = vunpack.c.h.b16 %v150
  %v1241 = vunpack.c.l.b16 %v151
  %v1242 = vunpack.c.h.b16 %v151
  %v1243 = vunpack.c.l.b16 %v152
  %v1244 = vunpack.c.h.b16 %v152
  %v1245 = vunpack.c.l.b16 %v153
  %v1246 = vunpack.c.h.b16 %v153
  %v1247 = vunpack.c.l.b16 %v154
  %v1248 = vunpack.c.h.b16 %v154
  %v1249 = vunpack.c.l.b16 %v155
  %v1250 = vunpack.c.h.b16 %v155
  %v1251 = vunpack.c.l.b16 %v156
  %v1252 = vunpack.c.h.b16 %v156
  %v1253 = vunpack.c.l.b16 %v157
  %v1254 = vunpack.c.h.b16 %v157
  %v1255 = vunpack.c.l.b16 %v158
  %v1256 = vunpack.c.h.b16 %v158
  %v1257 = vunpack.c.l.b16 %v159
  %v1258 = vunpack.c.h.b16 %v159
  %v1259 = vunpack.c.l.b16 %v160
  %v1260 = vunpack.c.h.b16 %v160
  %v1261 = vunpack.c.l.b16 %v161
  %v1262 = vunpack.c.h.b16 %v161
  %v1263 = vunpack.c.l.b16 %v162
  %v1264 = vunpack.c.h.b16 %v162
  %v1265 = vunpack.c.l.b16 %v163
  %v1266 = vunpack.c.h.b16 %v163
  %v1267 = vunpack.c.l.b16 %v164
  %v1268 = vunpack.c.h.b16 %v164
  %v1269 = vunpack.c.l.b16 %v165
  %v1270 = vunpack.c.h.b16 %v165
  %v1271 = vunpack.c.l.b16 %v166
  %v1272 = vunpack.c.h.b16 %v166
  %v1273 = vunpack.c.l.b16 %v167
  %v1274 = vunpack.c.h.b16 %v167
  %v1275 = vunpack.c.l.b16 %v168
  %v1276 = vunpack.c.h.b16 %v168
  %v1277 = vunpack.c.l.b16 %v169
  %v1278 = vunpack.c.h.b16 %v169
  %v1279 = vunpack.c.l.b16 %v170
  %v1280 = vunpack.c.h.b16 %v170
  %v1281 = vunpack.c.l.b16 %v171
  %v1282 = vunpack.c.h.b16 %v171
  %v1283 = vunpack.c.l.b16 %v172
  %v1284 = vunpack.c.h.b16 %v172
  %v1285 = vunpack.c.l.b16 %v173
  %v1286 = vunpack.c.h.b16 %v173
  %v1287 = vunpack.c.l.b16 %v174
  %v1288 = vunpack.c.h.b16 %v174
  %v1289 = vunpack.c.l.b16 %v175
  %v1290 = vunpack.c.h.b16 %v175
  %v1291 = vunpack.c.l.b16 %v176
  %v1292 = vunpack.c.h.b16 %v176
  %v1293 = vunpack.c.l.b16 %v177
  %v1294 = vunpack.c.h.b16 %v177
  %v1295 = vunpack.c.l.b16 %v178
  %v1296 = vunpack.c.h.b16 %v178
  %v1297 = vunpack.c.l.b16 %v179
  %v1298 = vunpack.c.h.b16 %v179
  %v1299 = vunpack.c.l.b16 %v180
  %v1300 = vunpack.c.h.b16 %v180
  %v1301 = vunpack.c.l.b16 %v181
  %v1302 = vunpack.c.h.b16 %v181
  %v1303 = vunpack.c.l.b16 %v182
  %v1304 = vunpack.c.h.b16 %v182
  %v1305 = vunpack.c.l.b16 %v183
  %v1306 = vunpack.c.h.b16 %v183
  %v1307 = vunpack.c.l.b16 %v184
  %v1308 = vunpack.c.h.b16 %v184
  %v1309 = vunpack.c.l.b16 %v185
  %v1310 = vunpack.c.h.b16 %v185
  %v1311 = vunpack.c.l.b16 %v186
  %v1312 = vunpack.c.h.b16 %v186
  %v1313 = vunpack.c.l.b16 %v187
  %v1314 = vunpack.c.h.b16 %v187
  %v1315 = vunpack.c.l.b16 %v188
  %v1316 = vunpack.c.h.b16 %v188
  %v1317 = vunpack.c.l.b16 %v189
  %v1318 = vunpack.c.h.b16 %v189
  %v1319 = vunpack.c.l.b16 %v190
  %v1320 = vunpack.c.h.b16 %v190
  %v1321 = vunpack.c.l.b16 %v191
  %v1322 = vunpack.c.h.b16 %v191
  %v1323 = vunpack.c.l.b16 %v192
  %v1324 = vunpack.c.h.b16 %v192
  %v1325 = vunpack.c.l.b16 %v193
  %v1326 = vunpack.c.h.b16 %v193
  %v1327 = vunpack.c.l.b16 %v194
  %v1328 = vunpack.c.h.b16 %v194
  %v1329 = vunpack.c.l.b16 %v195
  %v1330 = vunpack.c.h.b16 %v195
  %v1331 = vunpack.c.l.b16 %v196
  %v1332 = vunpack.c.h.b16 %v196
  %v1333 = vunpack.c.l.b16 %v197
  %v1334 = vunpack.c.h.b16 %v197
  %v1335 = vunpack.c.l.b16 %v198
  %v1336 = vunpack.c.h.b16 %v198
  %v1337 = vunpack.c.l.b16 %v199
  %v1338 = vunpack.c.h.b16 %v199
  %v1339 = vunpack.c.l.b16 %v200
  %v1340 = vunpack.c.h.b16 %v200
  %v1341 = vunpack.c.l.b16 %v201
  %v1342 = vunpack.c.h.b16 %v201
  %v1343 = vunpack.c.l.b16 %v202
  %v1344 = vunpack.c.h.b16 %v202
  %v1345 = vunpack.c.l.b16 %v203
  %v1346 = vunpack.c.h.b16 %v203
  %v1347 = vunpack.c.l.b16 %v204
  %v1348 = vunpack.c.h.b16 %v204
  %v1349 = vunpack.c.l.b16 %v205
  %v1350 = vunpack.c.h.b16 %v205
  %v1351 = vunpack.c.l.b16 %v206
  %v1352 = vunpack.c.h.b16 %v206
  %v1353 = vunpack.c.l.b16 %v207
  %v1354 = vunpack.c.h.b16 %v207
  %v1355 = vunpack.c.l.b16 %v208
  %v1356 = vunpack.c.h.b16 %v208
  %v1357 = vunpack.c.l.b16 %v209
  %v1358 = vunpack.c.h.b16 %v209
  %v1359 = vunpack.c.l.b16 %v210
  %v1360 = vunpack.c.h.b16 %v210
  %v1361 = vunpack.c.l.b16 %v211
  %v1362 = vunpack.c.h.b16 %v211
  %v1363 = vunpack.c.l.b16 %v212
  %v1364 = vunpack.c.h.b16 %v212
  %v1365 = vunpack.c.l.b16 %v213
  %v1366 = vunpack.c.h.b16 %v213
  %v1367 = vunpack.c.l.b16 %v214
  %v1368 = vunpack.c.h.b16 %v214
  %v1369 = vunpack.c.l.b16 %v215
  %v1370 = vunpack.c.h.b16 %v215
  %v1371 = vunpack.c.l.b16 %v216
  %v1372 = vunpack.c.h.b16 %v216
  %v1373 = vunpack.c.l.b16 %v217
  %v1374 = vunpack.c.h.b16 %v217
  %v1375 = vunpack.c.l.b16 %v218
  %v1376 = vunpack.c.h.b16 %v218
  %v1377 = vunpack.c.l.b16 %v219
  %v1378 = vunpack.c.h.b16 %v219
  %v1379 = vunpack.c.l.b16 %v220
  %v1380 = vunpack.c.h.b16 %v220
  %v1381 = vunpack.c.l.b16 %v221
  %v1382 = vunpack.c.h.b16 %v221
  %v1383 = vunpack.c.l.b16 %v222
  %v1384 = vunpack.c.h.b16 %v222
  %v1385 = vunpack.c.l.b16 %v223
  %v1386 = vunpack.c.h.b16 %v223
  %v1387 = vunpack.c.l.b16 %v224
  %v1388 = vunpack.c.h.b16 %v224
  %v1389 = vunpack.c.l.b16 %v225
  %v1390 = vunpack.c.h.b16 %v225
  %v1391 = vunpack.c.l.b16 %v226
  %v1392 = vunpack.c.h.b16 %v226
  %v1393 = vunpack.c.l.b16 %v227
  %v1394 = vunpack.c.h.b16 %v227
  %v1395 = vunpack.c.l.b16 %v228
  %v1396 = vunpack.c.h.b16 %v228
  %v1397 = vunpack.c.l.b16 %v229
  %v1398 = vunpack.c.h.b16 %v229
  %v1399 = vunpack.c.l.b16 %v230
  %v1400 = vunpack.c.h.b16 %v230
  %v1401 = vunpack.c.l.b16 %v231
  %v1402 = vunpack.c.h.b16 %v231
  %v1403 = vunpack.c.l.b16 %v232
  %v1404 = vunpack.c.h.b16 %v232
  %v1405 = vunpack.c.l.b16 %v233
  %v1406 = vunpack.c.h.b16 %v233
  %v1407 = vunpack.c.l.b16 %v234
  %v1408 = vunpack.c.h.b16 %v234
  %v1409 = vunpack.c.l.b16 %v235
  %v1410 = vunpack.c.h.b16 %v235
  %v1411 = vunpack.c.l.b16 %v236
  %v1412 = vunpack.c.h.b16 %v236
  %v1413 = vunpack.c.l.b16 %v237
  %v1414 = vunpack.c.h.b16 %v237
  %v1415 = vunpack.c.l.b16 %v238
  %v1416 = vunpack.c.h.b16 %v238
  %v1417 = vunpack.c.l.b16 %v239
  %v1418 = vunpack.c.h.b16 %v239
  %v1419 = vunpack.c.l.b16 %v240
  %v1420 = vunpack.c.h.b16 %v240
  %v1421 = vunpack.c.l.b16 %v241
  %v1422 = vunpack.c.h.b16 %v241
  %v1423 = vunpack.c.l.b16 %v242
  %v1424 = vunpack.c.h.b16 %v242
  %v1425 = vunpack.c.l.b16 %v243
  %v1426 = vunpack.c.h.b16 %v243
  %v1427 = vunpack.c.l.b16 %v244
  %v1428 = vunpack.c.h.b16 %v244
  %v1429 = vunpack.c.l.b16 %v245
  %v1430 = vunpack.c.h.b16 %v245
  %v1431 = vunpack.c.l.b16 %v246
  %v1432 = vunpack.c.h.b16 %v246
  %v1433 = vunpack.c.l.b16 %v247
  %v1434 = vunpack.c.h.b16 %v247
  %v1435 = vunpack.c.l.b16 %v248
  %v1436 = vunpack.c.h.b16 %v248
  %v1437 = vunpack.c.l.b16 %v249
  %v1438 = vunpack.c.h.b16 %v249
  %v1439 = vunpack.c.l.b16 %v250
  %v1440 = vunpack.c.h.b16 %v250
  %v1441 = vunpack.c.l.b16 %v251
  %v1442 = vunpack.c.h.b16 %v251
  %v1443 = vunpack.c.l.b16 %v252
  %v1444 = vunpack.c.h.b16 %v252
  %v1445 = vunpack.c.l.b16 %v253
  %v1446 = vunpack.c.h.b16 %v253
  %v1447 = vunpack.c.l.b16 %v254
  %v1448 = vunpack.c.h.b16 %v254
  %v1449 = vunpack.c.l.b16 %v255
  %v1450 = vunpack.c.h.b16 %v255
  %v1451 = vunpack.c.l.b16 %v256
  %v1452 = vunpack.c.h.b16 %v256
  %v1453 = vunpack.c.l.b16 %v257
  %v1454 = vunpack.c.h.b16 %v257
  %v1455 = vunpack.c.l.b16 %v258
  %v1456 = vunpack.c.h.b16 %v258
  %v1457 = vunpack.c.l.b16 %v259
  %v1458 = vunpack.c.h.b16 %v259
  %v1459 = vunpack.c.l.b16 %v260
  %v1460 = vunpack.c.h.b16 %v260
  %v1461 = vunpack.c.l.b16 %v261
  %v1462 = vunpack.c.h.b16 %v261
  %v1463 = vunpack.c.l.b16 %v262
  %v1464 = vunpack.c.h.b16 %v262
  %v1465 = vunpack.c.l.b16 %v263
  %v1466 = vunpack.c.h.b16 %v263
  %v1467 = vunpack.c.l.b16 %v264
  %v1468 = vunpack.c.h.b16 %v264
  %v1469 = vunpack.c.l.b16 %v265
  %v1470 = vunpack.c.h.b16 %v265
  %v1471 = vunpack.c.l.b16 %v266
  %v1472 = vunpack.c.h.b16 %v266
  %v1473 = vunpack.c.l.b16 %v267
  %v1474 = vunpack.c.h.b16 %v267
  %v1475 = vunpack.c.l.b16 %v268
  %v1476 = vunpack.c.h.b16 %v268
  %v1477 = vunpack.c.l.b16 %v269
  %v1478 = vunpack.c.h.b16 %v269
  %v1479 = vunpack.c.l.b16 %v270
  %v1480 = vunpack.c.h.b16 %v270
  %v1481 = vunpack.c.l.b16 %v271
  %v1482 = vunpack.c.h.b16 %v271
  %v1483 = vunpack.c.l.b16 %v272
  %v1484 = vunpack.c.h.b16 %v272
  %v1485 = vunpack.c.l.b16 %v273
  %v1486 = vunpack.c.h.b16 %v273
  %v1487 = vunpack.c.l.b16 %v274
  %v1488 = vunpack.c.h.b16 %v274
  %v1489 = vunpack.c.l.b16 %v275
  %v1490 = vunpack.c.h.b16 %v275
  %v1491 = vunpack.c.l.b16 %v276
  %v1492 = vunpack.c.h.b16 %v276
  %v1493 = vunpack.c.l.b16 %v277
  %v1494 = vunpack.c.h.b16 %v277
  %v1495 = vunpack.c.l.b16 %v278
  %v1496 = vunpack.c.h.b16 %v278
  %v1497 = vunpack.c.l.b16 %v279
  %v1498 = vunpack.c.h.b16 %v279
  %v1499 = vunpack.c.l.b16 %v280
  %v1500 = vunpack.c.h.b16 %v280
  %v1501 = vunpack.c.l.b16 %v281
  %v1502 = vunpack.c.h.b16 %v281
  %v1503 = vunpack.c.l.b16 %v282
  %v1504 = vunpack.c.h.b16 %v282
  %v1505 = vunpack.c.l.b16 %v283
  %v1506 = vunpack.c.h.b16 %v283
  %v1507 = vunpack.c.l.b16 %v284
  %v1508 = vunpack.c.h.b16 %v284
  %v1509 = vunpack.c.l.b16 %v285
  %v1510 = vunpack.c.h.b16 %v285
  %v1511 = vunpack.c.l.b16 %v286
  %v1512 = vunpack.c.h.b16 %v286
  %v1513 = vunpack.c.l.b16 %v287
  %v1514 = vunpack.c.h.b16 %v287
  %v1515 = vunpack.c.l.b16 %v288
  %v1516 = vunpack.c.h.b16 %v288
  %v1517 = vunpack.c.l.b16 %v289
  %v1518 = vunpack.c.h.b16 %v289
  %v1519 = vunpack.c.l.b16 %v290
  %v1520 = vunpack.c.h.b16 %v290
  %v1521 = vunpack.c.l.b16 %v291
  %v1522 = vunpack.c.h.b16 %v291
  %v1523 = vunpack.c.l.b16 %v292
  %v1524 = vunpack.c.h.b16 %v292
  %v1525 = vunpack.c.l.b16 %v293
  %v1526 = vunpack.c.h.b16 %v293
  %v1527 = vunpack.c.l.b16 %v294
  %v1528 = vunpack.c.h.b16 %v294
  %v1529 = vunpack.c.l.b16 %v295
  %v1530 = vunpack.c.h.b16 %v295
  %v1531 = vunpack.c.l.b16 %v296
  %v1532 = vunpack.c.h.b16 %v296
  %v1533 = vunpack.c.l.b16 %v297
  %v1534 = vunpack.c.h.b16 %v297
  %v1535 = vunpack.c.l.b16 %v298
  %v1536 = vunpack.c.h.b16 %v298
  %v1537 = vunpack.c.l.b16 %v299
  %v1538 = vunpack.c.h.b16 %v299
  %v1539 = vunpack.c.l.b16 %v300
  %v1540 = vunpack.c.h.b16 %v300
  %v1541 = vunpack.c.l.b16 %v301
  %v1542 = vunpack.c.h.b16 %v301
  %v1543 = vunpack.c.l.b16 %v302
  %v1544 = vunpack.c.h.b16 %v302
  %v1545 = vunpack.c.l.b16 %v303
  %v1546 = vunpack.c.h.b16 %v303
  %v1547 = vunpack.c.l.b16 %v304
  %v1548 = vunpack.c.h.b16 %v304
  %v1549 = vunpack.c.l.b16 %v305
  %v1550 = vunpack.c.h.b16 %v305
  %v1551 = vunpack.c.l.b16 %v306
  %v1552 = vunpack.c.h.b16 %v306
  %v1553 = vunpack.c.l.b16 %v307
  %v1554 = vunpack.c.h.b16 %v307
  %v1555 = vunpack.c.l.b16 %v308
  %v1556 = vunpack.c.h.b16 %v308
  %v1557 = vunpack.c.l.b16 %v309
  %v1558 = vunpack.c.h.b16 %v309
  %v1559 = vunpack.c.l.b16 %v310
  %v1560 = vunpack.c.h.b16 %v310
  %v1561 = vunpack.c.l.b16 %v311
  %v1562 = vunpack.c.h.b16 %v311
  %v1563 = vunpack.c.l.b16 %v312
  %v1564 = vunpack.c.h.b16 %v312
  %v1565 = vunpack.c.l.b16 %v313
  %v1566 = vunpack.c.h.b16 %v313
  %v1567 = vunpack.c.l.b16 %v314
  %v1568 = vunpack.c.h.b16 %v314
  %v1569 = vunpack.c.l.b16 %v315
  %v1570 = vunpack.c.h.b16 %v315
  %v1571 = vunpack.c.l.b16 %v316
  %v1572 = vunpack.c.h.b16 %v316
  %v1573 = vunpack.c.l.b16 %v317
  %v1574 = vunpack.c.h.b16 %v317
  %v1575 = vunpack.c.l.b16 %v318
  %v1576 = vunpack.c.h.b16 %v318
  %v1577 = vunpack.c.l.b16 %v319
  %v1578 = vunpack.c.h.b16 %v319
  %v1579 = vunpack.c.l.b16 %v320
  %v1580 = vunpack.c.h.b16 %v320
  %v1581 = vunpack.c.l.b16 %v321
  %v1582 = vunpack.c.h.b16 %v321
  %v1583 = vunpack.c.l.b16 %v322
  %v1584 = vunpack.c.h.b16 %v322
  %v1585 = vunpack.c.l.b16 %v323
  %v1586 = vunpack.c.h.b16 %v323
  %v1587 = vunpack.c.l.b16 %v324
  %v1588 = vunpack.c.h.b16 %v324
  %v1589 = vunpack.c.l.b16 %v325
  %v1590 = vunpack.c.h.b16 %v325
  %v1591 = vunpack.c.l.b16 %v326
  %v1592 = vunpack.c.h.b16 %v326
  %v1593 = vunpack.c.l.b16 %v327
  %v1594 = vunpack.c.h.b16 %v327
  %v1595 = vunpack.c.l.b16 %v328
  %v1596 = vunpack.c.h.b16 %v328
  %v1597 = vunpack.c.l.b16 %v329
  %v1598 = vunpack.c.h.b16 %v329
  %v1599 = vunpack.c.l.b16 %v330
  %v1600 = vunpack.c.h.b16 %v330
  %v1601 = vunpack.c.l.b16 %v331
  %v1602 = vunpack.c.h.b16 %v331
  %v1603 = vunpack.c.l.b16 %v332
  %v1604 = vunpack.c.h.b16 %v332
  %v1605 = vunpack.c.l.b16 %v333
  %v1606 = vunpack.c.h.b16 %v333
  %v1607 = vunpack.c.l.b16 %v334
  %v1608 = vunpack.c.h.b16 %v334
  %v1609 = vunpack.c.l.b16 %v335
  %v1610 = vunpack.c.h.b16 %v335
  %v1611 = vunpack.c.l.b16 %v336
  %v1612 = vunpack.c.h.b16 %v336
  %v1613 = vunpack.c.l.b16 %v337
  %v1614 = vunpack.c.h.b16 %v337
  %v1615 = vunpack.c.l.b16 %v338
  %v1616 = vunpack.c.h.b16 %v338
  %v1617 = vunpack.c.l.b16 %v339
  %v1618 = vunpack.c.h.b16 %v339
  %v1619 = vunpack.c.l.b16 %v340
  %v1620 = vunpack.c.h.b16 %v340
  %v1621 = vunpack.c.l.b16 %v341
  %v1622 = vunpack.c.h.b16 %v341
  %v1623 = vunpack.c.l.b16 %v342
  %v1624 = vunpack.c.h.b16 %v342
  %v1625 = vunpack.c.l.b16 %v343
  %v1626 = vunpack.c.h.b16 %v343
  %v1627 = vunpack.c.l.b16 %v344
  %v1628 = vunpack.c.h.b16 %v344
  %v1629 = vunpack.c.l.b16 %v345
  %v1630 = vunpack.c.h.b16 %v345
  %v1631 = vunpack.c.l.b16 %v346
  %v1632 = vunpack.c.h.b16 %v346
  %v1633 = vunpack.c.l.b16 %v347
  %v1634 = vunpack.c.h.b16 %v347
  %v1635 = vunpack.c.l.b16 %v348
  %v1636 = vunpack.c.h.b16 %v348
  %v1637 = vunpack.c.l.b16 %v349
  %v1638 = vunpack.c.h.b16 %v349
  %v1639 = vunpack.c.l.b16 %v350
  %v1640 = vunpack.c.h.b16 %v350
  %v1641 = vunpack.c.l.b16 %v351
  %v1642 = vunpack.c.h.b16 %v351
  %v1643 = vunpack.c.l.b16 %v352
  %v1644 = vunpack.c.h.b16 %v352
  %v1645 = vunpack.c.l.b16 %v353
  %v1646 = vunpack.c.h.b16 %v353
  %v1647 = vunpack.c.l.b16 %v354
  %v1648 = vunpack.c.h.b16 %v354
  %v1649 = vunpack.c.l.b16 %v355
  %v1650 = vunpack.c.h.b16 %v355
  %v1651 = vunpack.c.l.b16 %v356
  %v1652 = vunpack.c.h.b16 %v356
  %v1653 = vunpack.c.l.b16 %v357
  %v1654 = vunpack.c.h.b16 %v357
  %v1655 = vunpack.c.l.b16 %v358
  %v1656 = vunpack.c.h.b16 %v358
  %v1657 = vunpack.c.l.b16 %v359
  %v1658 = vunpack.c.h.b16 %v359
  %v1659 = vunpack.c.l.b16 %v360
  %v1660 = vunpack.c.h.b16 %v360
  %v1661 = vunpack.c.l.b16 %v361
  %v1662 = vunpack.c.h.b16 %v361
  %v1663 = vunpack.c.l.b16 %v362
  %v1664 = vunpack.c.h.b16 %v362
  %v1665 = vunpack.c.l.b16 %v363
  %v1666 = vunpack.c.h.b16 %v363
  %v1667 = vunpack.c.l.b16 %v364
  %v1668 = vunpack.c.h.b16 %v364
  %v1669 = vunpack.c.l.b16 %v365
  %v1670 = vunpack.c.h.b16 %v365
  %v1671 = vunpack.c.l.b16 %v366
  %v1672 = vunpack.c.h.b16 %v366
  %v1673 = vunpack.c.l.b16 %v367
  %v1674 = vunpack.c.h.b16 %v367
  %v1675 = vunpack.c.l.b16 %v368
  %v1676 = vunpack.c.h.b16 %v368
  %v1677 = vunpack.c.l.b16 %v369
  %v1678 = vunpack.c.h.b16 %v369
  %v1679 = vunpack.c.l.b16 %v370
  %v1680 = vunpack.c.h.b16 %v370
  %v1681 = vunpack.c.l.b16 %v371
  %v1682 = vunpack.c.h.b16 %v371
  %v1683 = vunpack.c.l.b16 %v372
  %v1684 = vunpack.c.h.b16 %v372
  %v1685 = vunpack.c.l.b16 %v373
  %v1686 = vunpack.c.h.b16 %v373
  %v1687 = vunpack.c.l.b16 %v374
  %v1688 = vunpack.c.h.b16 %v374
  %v1689 = vunpack.c.l.b16 %v375
  %v1690 = vunpack.c.h.b16 %v375
  %v1691 = vunpack.c.l.b16 %v376
  %v1692 = vunpack.c.h.b16 %v376
  %v1693 = vunpack.c.l.b16 %v377
  %v1694 = vunpack.c.h.b16 %v377
  %v1695 = vunpack.c.l.b16 %v378
  %v1696 = vunpack.c.h.b16 %v378
  %v1697 = vunpack.c.l.b16 %v379
  %v1698 = vunpack.c.h.b16 %v379
  %v1699 = vunpack.c.l.b16 %v380
  %v1700 = vunpack.c.h.b16 %v380
  %v1701 = vunpack.c.l.b16 %v381
  %v1702 = vunpack.c.h.b16 %v381
  %v1703 = vunpack.c.l.b16 %v382
  %v1704 = vunpack.c.h.b16 %v382
  %v1705 = vunpack.c.l.b16 %v383
  %v1706 = vunpack.c.h.b16 %v383
  %v1707 = vunpack.c.l.b16 %v384
  %v1708 = vunpack.c.h.b16 %v384
  %v1709 = vunpack.c.l.b16 %v385
  %v1710 = vunpack.c.h.b16 %v385
  %v1711 = vunpack.c.l.b16 %v386
  %v1712 = vunpack.c.h.b16 %v386
  %v1713 = vunpack.c.l.b16 %v387
  %v1714 = vunpack.c.h.b16 %v387
  %v1715 = vunpack.c.l.b16 %v388
  %v1716 = vunpack.c.h.b16 %v388
  %v1717 = vunpack.c.l.b16 %v389
  %v1718 = vunpack.c.h.b16 %v389
  %v1719 = vunpack.c.l.b16 %v390
  %v1720 = vunpack.c.h.b16 %v390
  %v1721 = vunpack.c.l.b16 %v391
  %v1722 = vunpack.c.h.b16 %v391
  %v1723 = vunpack.c.l.b16 %v392
  %v1724 = vunpack.c.h.b16 %v392
  %v1725 = vpack.c.b16 %v1187, %v1185
  %v1726 = vpack.c.b16 %v1188, %v1186
  %v1727 = vpack.c.b16 %v1191, %v1189
  %v1728 = vpack.c.b16 %v1192, %v1190
  %v1729 = vpack.c.b16 %v1195, %v1193
  %v1730 = vpack.c.b16 %v1196, %v1194
  %v1731 = vpack.c.b16 %v1199, %v1197
  %v1732 = vpack.c.b16 %v1200, %v1198
  %v1733 = vpack.c.b16 %v1203, %v1201
  %v1734 = vpack.c.b16 %v1204, %v1202
  %v1735 = vpack.c.b16 %v1207, %v1205
  %v1736 = vpack.c.b16 %v1208, %v1206
  %v1737 = vpack.c.b16 %v1211, %v1209
  %v1738 = vpack.c.b16 %v1212, %v1210
  %v1739 = vpack.c.b16 %v1215, %v1213
  %v1740 = vpack.c.b16 %v1216, %v1214
  %v1741 = vpack.c.b16 %v1219, %v1217
  %v1742 = vpack.c.b16 %v1220, %v1218
  %v1743 = vpack.c.b16 %v1223, %v1221
  %v1744 = vpack.c.b16 %v1224, %v1222
  %v1745 = vpack.c.b16 %v1227, %v1225
  %v1746 = vpack.c.b16 %v1228, %v1226
  %v1747 = vpack.c.b16 %v1231, %v1229
  %v1748 = vpack.c.b16 %v1232, %v1230
  %v1749 = vpack.c.b16 %v1235, %v1233
  %v1750 = vpack.c.b16 %v1236, %v1234
  %v1751 = vpack.c.b16 %v1239, %v1237
  %v1752 = vpack.c.b16 %v1240, %v1238
  %v1753 = vpack.c.b16 %v1243, %v1241
  %v1754 = vpack.c.b16 %v1244, %v1242
  %v1755 = vpack.c.b16 %v1247, %v1245
  %v1756 = vpack.c.b16 %v1248, %v1246
  %v1757 = vpack.c.b16 %v1251, %v1249
  %v1758 = vpack.c.b16 %v1252, %v1250
  %v1759 = vpack.c.b16 %v1255, %v1253
  %v1760 = vpack.c.b16 %v1256, %v1254
  %v1761 = vpack.c.b16 %v1259, %v1257
  %v1762 = vpack.c.b16 %v1260, %v1258
  %v1763 = vpack.c.b16 %v1263, %v1261
  %v1764 = vpack.c.b16 %v1264, %v1262
  %v1765 = vpack.c.b16 %v1267, %v1265
  %v1766 = vpack.c.b16 %v1268, %v1266
  %v1767 = vpack.c.b16 %v1271, %v1269
  %v1768 = vpack.c.b16 %v1272, %v1270
  %v1769 = vpack.c.b16 %v1275, %v1273
  %v1770 = vpack.c.b16 %v1276, %v1274
  %v1771 = vpack.c.b16 %v1279, %v1277
  %v1772 = vpack.c.b16 %v1280, %v1278
  %v1773 = vpack.c.b16 %v1283, %v1281
  %v1774 = vpack.c.b16 %v1284, %v1282
  %v1775 = vpack.c.b16 %v1287, %v1285
  %v1776 = vpack.c.b16 %v1288, %v1286
  %v1777 = vpack.c.b16 %v1291, %v1289
  %v1778 = vpack.c.b16 %v1292, %v1290
  %v1779 = vpack.c.b16 %v1295, %v1293
  %v1780 = vpack.c.b16 %v1296, %v1294
  %v1781 = vpack.c.b16 %v1299, %v1297
  %v1782 = vpack.c.b16 %v1300, %v1298
  %v1783 = vpack.c.b16 %v1303, %v1301
  %v1784 = vpack.c.b16 %v1304, %v1302
  %v1785 = vpack.c.b16 %v1307, %v1305
  %v1786 = vpack.c.b16 %v1308, %v1306
  %v1787 = vpack.c.b16 %v1311, %v1309
  %v1788 = vpack.c.b16 %v1312, %v1310
  %v1789 = vpack.c.b16 %v1315, %v1313
  %v1790 = vpack.c.b16 %v1316, %v1314
  %v1791 = vpack.c.b16 %v1319, %v1317
  %v1792 = vpack.c.b16 %v1320, %v1318
  %v1793 = vpack.c.b16 %v1323, %v1321
  %v1794 = vpack.c.b16 %v1324, %v1322
  %v1795 = vpack.c.b16 %v1327, %v1325
  %v1796 = vpack.c.b16 %v1328, %v1326
  %v1797 = vpack.c.b16 %v1331, %v1329
  %v1798 = vpack.c.b16 %v1332, %v1330
  %v1799 = vpack.c.b16 %v1335, %v1333
  %v1800 = vpack.c.b16 %v1336, %v1334
  %v1801 = vpack.c.b16 %v1339, %v1337
  %v1802 = vpack.c.b16 %v1340, %v1338
  %v1803 = vpack.c.b16 %v1343, %v1341
  %v1804 = vpack.c.b16 %v1344, %v1342
  %v1805 = vpack.c.b16 %v1347, %v1345
  %v1806 = vpack.c.b16 %v1348, %v1346
  %v1807 = vpack.c.b16 %v1351, %v1349
  %v1808 = vpack.c.b16 %v1352, %v1350
  %v1809 = vpack.c.b16 %v1355, %v1353
  %v1810 = vpack.c.b16 %v1356, %v1354
  %v1811 = vpack.c.b16 %v1359, %v1357
  %v1812 = vpack.c.b16 %v1360, %v1358
  %v1813 = vpack.c.b16 %v1363, %v1361
  %v1814 = vpack.c.b16 %v1364, %v1362
  %v1815 = vpack.c.b16 %v1367, %v1365
  %v1816 = vpack.c.b16 %v1368, %v1366
  %v1817 = vpack.c.b16 %v1371, %v1369
  %v1818 = vpack.c.b16 %v1372, %v1370
  %v1819 = vpack.c.b16 %v1375, %v1373
  %v1820 = vpack.c.b16 %v1376, %v1374
  %v1821 = vpack.c.b16 %v1379, %v1377
  %v1822 = vpack.c.b16 %v1380, %v1378
  %v1823 = vpack.c.b16 %v1383, %v1381
  %v1824 = vpack.c.b16 %v1384, %v1382
  %v1825 = vpack.c.b16 %v1387, %v1385
  %v1826 = vpack.c.b16 %v1388, %v1386
  %v1827 = vpack.c.b16 %v1391, %v1389
  %v1828 = vpack.c.b16 %v1392, %v1390
  %v1829 = vpack.c.b16 %v1395, %v1393
  %v1830 = vpack.c.b16 %v1396, %v1394
  %v1831 = vpack.c.b16 %v1399, %v1397
  %v1832 = vpack.c.b16 %v1400, %v1398
  %v1833 = vpack.c.b16 %v1403, %v1401
  %v1834 = vpack.c.b16 %v1404, %v1402
  %v1835 = vpack.c.b16 %v1407, %v1405
  %v1836 = vpack.c.b16 %v1408, %v1406
  %v1837 = vpack.c.b16 %v1411, %v1409
  %v1838 = vpack.c.b16 %v1412, %v1410
  %v1839 = vpack.c.b16 %v1415, %v1413
  %v1840 = vpack.c.b16 %v1416, %v1414
  %v1841 = vpack.c.b16 %v1419, %v1417
  %v1842 = vpack.c.b16 %v1420, %v1418
  %v1843 = vpack.c.b16 %v1423, %v1421
  %v1844 = vpack.c.b16 %v1424, %v1422
  %v1845 = vpack.c.b16 %v1427, %v1425
  %v1846 = vpack.c.b16 %v1428, %v1426
  %v1847 = vpack.c.b16 %v1431, %v1429
  %v1848 = vpack.c.b16 %v1432, %v1430
  %v1849 = vpack.c.b16 %v1435, %v1433
  %v1850 = vpack.c.b16 %v1436, %v1434
  %v1851 = vpack.c.b16 %v1439, %v1437
  %v1852 = vpack.c.b16 %v1440, %v1438
  %v1853 = vpack.c.b16 %v1443, %v1441
  %v1854 = vpack.c.b16 %v1444, %v1442
  %v1855 = vpack.c.b16 %v1447, %v1445
  %v1856 = vpack.c.b16 %v1448, %v1446
  %v1857 = vpack.c.b16 %v1451, %v1449
  %v1858 = vpack.c.b16 %v1452, %v1450
  %v1859 = vpack.c.b16 %v1455, %v1453
  %v1860 = vpack.c.b16 %v1456, %v1454
  %v1861 = vpack.c.b16 %v1459, %v1457
  %v1862 = vpack.c.b16 %v1460, %v1458
  %v1863 = vpack.c.b16 %v1463, %v1461
  %v1864 = vpack.c.b16 %v1464, %v1462
  %v1865 = vpack.c.b16 %v1467, %v1465
  %v1866 = vpack.c.b16 %v1468, %v1466
  %v1867 = vpack.c.b16 %v1471, %v1469
  %v1868 = vpack.c.b16 %v1472, %v1470
  %v1869 = vpack.c.b16 %v1475, %v1473
  %v1870 = vpack.c.b16 %v1476, %v1474
  %v1871 = vpack.c.b16 %v1479, %v1477
  %v1872 = vpack.c.b16 %v1480, %v1478
  %v1873 = vpack.c.b16 %v1483, %v1481
  %v1874 = vpack.c.b16 %v1484, %v1482
  %v1875 = vpack.c.b16 %v1487, %v1485
  %v1876 = vpack.c.b16 %v1488, %v1486
  %v1877 = vpack.c.b16 %v1491, %v1489
  %v1878 = vpack.c.b16 %v1492, %v1490
  %v1879 = vpack.c.b16 %v1495, %v1493
  %v1880 = vpack.c.b16 %v1496, %v1494
  %v1881 = vpack.c.b16 %v1499, %v1497
  %v1882 = vpack.c.b16 %v1500, %v1498
  %v1883 = vpack.c.b16 %v1503, %v1501
  %v1884 = vpack.c.b16 %v1504, %v1502
  %v1885 = vpack.c.b16 %v1507, %v1505
  %v1886 = vpack.c.b16 %v1508, %v1506
  %v1887 = vpack.c.b16 %v1511, %v1509
  %v1888 = vpack.c.b16 %v1512, %v1510
  %v1889 = vpack.c.b16 %v1515, %v1513
  %v1890 = vpack.c.b16 %v1516, %v1514
  %v1891 = vpack.c.b16 %v1519, %v1517
  %v1892 = vpack.c.b16 %v1520, %v1518
  %v1893 = vpack.c.b16 %v1523, %v1521
  %v1894 = vpack.c.b16 %v1524, %v1522
  %v1895 = vpack.c.b16 %v1527, %v1525
  %v1896 = vpack.c.b16 %v1528, %v1526
  %v1897 = vpack.c.b16 %v1531, %v1529
  %v1898 = vpack.c.b16 %v1532, %v1530
  %v1899 = vpack.c.b16 %v1535, %v1533
  %v1900 = vpack.c.b16 %v1536, %v1534
  %v1901 = vpack.c.b16 %v1539, %v1537
  %v1902 = vpack.c.b16 %v1540, %v1538
  %v1903 = vpack.c.b16 %v1543, %v1541
  %v1904 = vpack.c.b16 %v1544, %v1542
  %v1905 = vpack.c.b16 %v1547, %v1545
  %v1906 = vpack.c.b16 %v1548, %v1546
  %v1907 = vpack.c.b16 %v1551, %v1549
  %v1908 = vpack.c.b16 %v1552, %v1550
  %v1909 = vpack.c.b16 %v1555, %v1553
  %v1910 = vpack.c.b16 %v1556, %v1554
  %v1911 = vpack.c.b16 %v1559, %v1557
  %v1912 = vpack.c.b16 %v1560, %v1558
  %v1913 = vpack.c.b16 %v1563, %v1561
  %v1914 = vpack.c.b16 %v1564, %v1562
  %v1915 = vpack.c.b16 %v1567, %v1565
  %v1916 = vpack.c.b16 %v1568, %v1566
  %v1917 = vpack.c.b16 %v1571, %v1569
  %v1918 = vpack.c.b16 %v1572, %v1570
  %v1919 = vpack.c.b16 %v1575, %v1573
  %v1920 = vpack.c.b16 %v1576, %v1574
  %v1921 = vpack.c.b16 %v1579, %v1577
  %v1922 = vpack.c.b16 %v1580, %v1578
  %v1923 = vpack.c.b16 %v1583, %v1581
  %v1924 = vpack.c.b16 %v1584, %v1582
  %v1925 = vpack.c.b16 %v1587, %v1585
  %v1926 = vpack.c.b16 %v1588, %v1586
  %v1927 = vpack.c.b16 %v1591, %v1589
  %v1928 = vpack.c.b16 %v1592, %v1590
  %v1929 = vpack.c.b16 %v1595, %v1593
  %v1930 = vpack.c.b16 %v1596, %v1594
  %v1931 = vpack.c.b16 %v1599, %v1597
  %v1932 = vpack.c.b16 %v1600, %v1598
  %v1933 = vpack.c.b16 %v1603, %v1601
  %v1934 = vpack.c.b16 %v1604, %v1602
  %v1935 = vpack.c.b16 %v1607, %v1605
  %v1936 = vpack.c.b16 %v1608, %v1606
  %v1937 = vpack.c.b16 %v1611, %v1609
  %v1938 = vpack.c.b16 %v1612, %v1610
  %v1939 = vpack.c.b16 %v1615, %v1613
  %v1940 = vpack.c.b16 %v1616, %v1614
  %v1941 = vpack.c.b16 %v1619, %v1617
  %v1942 = vpack.c.b16 %v1620, %v1618
  %v1943 = vpack.c.b16 %v1623, %v1621
  %v1944 = vpack.c.b16 %v1624, %v1622
  %v1945 = vpack.c.b16 %v1627, %v1625
  %v1946 = vpack.c.b16 %v1628, %v1626
  %v1947 = vpack.c.b16 %v1631, %v1629
  %v1948 = vpack.c.b16 %v1632, %v1630
  %v1949 = vpack.c.b16 %v1635, %v1633
  %v1950 = vpack.c.b16 %v1636, %v1634
  %v1951 = vpack.c.b16 %v1639, %v1637
  %v1952 = vpack.c.b16 %v1640, %v1638
  %v1953 = vpack.c.b16 %v1643, %v1641
  %v1954 = vpack.c.b16 %v1644, %v1642
  %v1955 = vpack.c.b16 %v1647, %v1645
  %v1956 = vpack.c.b16 %v1648, %v1646
  %v1957 = vpack.c.b16 %v1651, %v1649
  %v1958 = vpack.c.b16 %v1652, %v1650
  %v1959 = vpack.c.b16 %v1655, %v1653
  %v1960 = vpack.c.b16 %v1656, %v1654
  %v1961 = vpack.c.b16 %v1659, %v1657
  %v1962 = vpack.c.b16 %v1660, %v1658
  %v1963 = vpack.c.b16 %v1663, %v1661
  %v1964 = vpack.c.b16 %v1664, %v1662
  %v1965 = vpack.c.b16 %v1667, %v1665
  %v1966 = vpack.c.b16 %v1668, %v1666
  %v1967 = vpack.c.b16 %v1671, %v1669
  %v1968 = vpack.c.b16 %v1672, %v1670
  %v1969 = vpack.c.b16 %v1675, %v1673
  %v1970 = vpack.c.b16 %v1676, %v1674
  %v1971 = vpack.c.b16 %v1679, %v1677
  %v1972 = vpack.c.b16 %v1680, %v1678
  %v1973 = vpack.c.b16 %v1683, %v1681
  %v1974 = vpack.c.b16 %v1684, %v1682
  %v1975 = vpack.c.b16 %v1687, %v1685
  %v1976 = vpack.c.b16 %v1688, %v1686
  %v1977 = vpack.c.b16 %v1691, %v1689
  %v1978 = vpack.c.b16 %v1692, %v1690
  %v1979 = vpack.c.b16 %v1695, %v1693
  %v1980 = vpack.c.b16 %v1696, %v1694
  %v1981 = vpack.c.b16 %v1699, %v1697
  %v1982 = vpack.c.b16 %v1700, %v1698
  %v1983 = vpack.c.b16 %v1703, %v1701
  %v1984 = vpack.c.b16 %v1704, %v1702
  %v1985 = vpack.c.b16 %v1707, %v1705
  %v1986 = vpack.c.b16 %v1708, %v1706
  %v1987 = vpack.c.b16 %v1711, %v1709
  %v1988 = vpack.c.b16 %v1712, %v1710
  %v1989 = vpack.c.b16 %v1715, %v1713
  %v1990 = vpack.c.b16 %v1716, %v1714
  %v1991 = vpack.c.b16 %v1719, %v1717
  %v1992 = vpack.c.b16 %v1720, %v1718
  %v1993 = vpack.c.b16 %v1723, %v1721
  %v1994 = vpack.c.b16 %v1724, %v1722
  %vm2265 = vcmask 916480
  %v2267 = vsel %vm2265, %v733, 0
  %v2270 = vsel %vm2265, %v750, 0
  %v2273 = vsel %vm2265, %v767, 0
  %v2276 = vsel %vm2265, %v784, 0
  %v2279 = vsel %vm2265, %v801, 0
  %v2282 = vsel %vm2265, %v818, 0
  %2284 = vmatprep.subr.bf16.mxu0 %v1726
  %2285 = vmatpush1.bf16.msra.mxu0 %v1725
  %2286 = vmatprep.subr.bf16.mxu0 %v1728
  %2287 = vmatpush1.bf16.msra.mxu0 %v1727
  %2288 = vmatprep.subr.bf16.mxu0 %v1730
  %2289 = vmatpush1.bf16.msra.mxu0 %v1729
  %2290 = vmatprep.subr.bf16.mxu0 %v1732
  %2291 = vmatpush1.bf16.msra.mxu0 %v1731
  %2292 = vmatprep.subr.bf16.mxu0 %v1734
  %2293 = vmatpush1.bf16.msra.mxu0 %v1733
  %2294 = vmatprep.subr.bf16.mxu0 %v1736
  %2295 = vmatpush1.bf16.msra.mxu0 %v1735
  %2296 = vmatprep.subr.bf16.mxu0 %v1738
  %2297 = vmatpush1.bf16.msra.mxu0 %v1737
  %2298 = vmatprep.subr.bf16.mxu0 %v1740
  %2299 = vmatpush1.bf16.msra.mxu0 %v1739
  %2300 = vmatprep.subr.bf16.mxu0 %v1742
  %2301 = vmatpush1.bf16.msra.mxu0 %v1741
  %2302 = vmatprep.subr.bf16.mxu0 %v1744
  %2303 = vmatpush1.bf16.msra.mxu0 %v1743
  %2304 = vmatprep.subr.bf16.mxu0 %v1746
  %2305 = vmatpush1.bf16.msra.mxu0 %v1745
  %2306 = vmatprep.subr.bf16.mxu0 %v1748
  %2307 = vmatpush1.bf16.msra.mxu0 %v1747
  %2308 = vmatprep.subr.bf16.mxu0 %v1750
  %2309 = vmatpush1.bf16.msra.mxu0 %v1749
  %2310 = vmatprep.subr.bf16.mxu0 %v1752
  %2311 = vmatpush1.bf16.msra.mxu0 %v1751
  %2312 = vmatprep.subr.bf16.mxu0 %v1754
  %2313 = vmatpush1.bf16.msra.mxu0 %v1753
  %2314 = vmatprep.subr.bf16.mxu0 %v1756
  %2315 = vmatpush1.bf16.msra.mxu0 %v1755
  %2316 = vmatprep.mubr.bf16.mxu0 %v718
  %2317 = vmatmul.mubr.bf16.gmra.mrb[0].mxu0 %v717
  %v2318 = vpop.f32.mrb[0].mxu0
  %v2319 = vadd.f32 %v398, %v2318
  %v2320 = vpop.f32.mrb[0].mxu0
  %v2321 = vadd.f32 %v402, %v2320
  %v2322 = vpop.f32.mrb[0].mxu0
  %v2323 = vadd.f32 %v398, %v2322
  %v2324 = vpop.f32.mrb[0].mxu0
  %v2325 = vadd.f32 %v402, %v2324
  %2326 = vmatprep.mubr.bf16.mxu0 %v735
  %2327 = vmatmul.mubr.bf16.gmra.mrb[0].mxu0 %v734
  %v2328 = vpop.f32.mrb[0].mxu0
  %v2329 = vadd.f32 %v398, %v2328
  %v2330 = vpop.f32.mrb[0].mxu0
  %v2331 = vadd.f32 %v402, %v2330
  %v2332 = vpop.f32.mrb[0].mxu0
  %v2333 = vadd.f32 %v398, %v2332
  %v2334 = vpop.f32.mrb[0].mxu0
  %v2335 = vadd.f32 %v402, %v2334
  %2336 = vmatprep.mubr.bf16.mxu0 %v752
  %2337 = vmatmul.mubr.bf16.gmra.mrb[0].mxu0 %v751
  %v2338 = vpop.f32.mrb[0].mxu0
  %v2339 = vadd.f32 %v398, %v2338
  %v2340 = vpop.f32.mrb[0].mxu0
  %v2341 = vadd.f32 %v402, %v2340
  %v2342 = vpop.f32.mrb[0].mxu0
  %v2343 = vadd.f32 %v398, %v2342
  %v2344 = vpop.f32.mrb[0].mxu0
  %v2345 = vadd.f32 %v402, %v2344
  %2346 = vmatprep.mubr.bf16.mxu0 %v769
  %2347 = vmatmul.mubr.bf16.gmra.mrb[0].mxu0 %v768
  %v2348 = vpop.f32.mrb[0].mxu0
  %v2349 = vadd.f32 %v398, %v2348
  %v2350 = vpop.f32.mrb[0].mxu0
  %v2351 = vadd.f32 %v402, %v2350
  %v2352 = vpop.f32.mrb[0].mxu0
  %v2353 = vadd.f32 %v398, %v2352
  %v2354 = vpop.f32.mrb[0].mxu0
  %v2355 = vadd.f32 %v402, %v2354
  %2356 = vmatprep.mubr.bf16.mxu0 %v786
  %2357 = vmatmul.mubr.bf16.gmra.mrb[0].mxu0 %v785
  %v2358 = vpop.f32.mrb[0].mxu0
  %v2359 = vadd.f32 %v398, %v2358
  %v2360 = vpop.f32.mrb[0].mxu0
  %v2361 = vadd.f32 %v402, %v2360
  %v2362 = vpop.f32.mrb[0].mxu0
  %v2363 = vadd.f32 %v398, %v2362
  %v2364 = vpop.f32.mrb[0].mxu0
  %v2365 = vadd.f32 %v402, %v2364
  %2366 = vmatprep.mubr.bf16.mxu0 %v803
  %2367 = vmatmul.mubr.bf16.gmra.mrb[0].mxu0 %v802
  %v2368 = vpop.f32.mrb[0].mxu0
  %v2369 = vadd.f32 %v398, %v2368
  %v2370 = vpop.f32.mrb[0].mxu0
  %v2371 = vadd.f32 %v402, %v2370
  %v2372 = vpop.f32.mrb[0].mxu0
  %v2373 = vadd.f32 %v398, %v2372
  %v2374 = vpop.f32.mrb[0].mxu0
  %v2375 = vadd.f32 %v402, %v2374
  %2376 = vdwg.mxu0
  %2377 = vmatprep.subr.bf16.mxu0 %v1758
  %2378 = vmatpush1.bf16.msra.mxu0 %v1757
  %2379 = vmatprep.subr.bf16.mxu0 %v1760
  %2380 = vmatpush1.bf16.msra.mxu0 %v1759
  %2381 = vmatprep.subr.bf16.mxu0 %v1762
  %2382 = vmatpush1.bf16.msra.mxu0 %v1761
  %2383 = vmatprep.subr.bf16.mxu0 %v1764
  %2384 = vmatpush1.bf16.msra.mxu0 %v1763
  %2385 = vmatprep.subr.bf16.mxu0 %v1766
  %2386 = vmatpush1.bf16.msra.mxu0 %v1765
  %2387 = vmatprep.subr.bf16.mxu0 %v1768
  %2388 = vmatpush1.bf16.msra.mxu0 %v1767
  %2389 = vmatprep.subr.bf16.mxu0 %v1770
  %2390 = vmatpush1.bf16.msra.mxu0 %v1769
  %2391 = vmatprep.subr.bf16.mxu0 %v1772
  %2392 = vmatpush1.bf16.msra.mxu0 %v1771
  %2393 = vmatprep.subr.bf16.mxu0 %v1774
  %2394 = vmatpush1.bf16.msra.mxu0 %v1773
  %2395 = vmatprep.subr.bf16.mxu0 %v1776
  %2396 = vmatpush1.bf16.msra.mxu0 %v1775
  %2397 = vmatprep.subr.bf16.mxu0 %v1778
  %2398 = vmatpush1.bf16.msra.mxu0 %v1777
  %2399 = vmatprep.subr.bf16.mxu0 %v1780
  %2400 = vmatpush1.bf16.msra.mxu0 %v1779
  %2401 = vmatprep.subr.bf16.mxu0 %v1782
  %2402 = vmatpush1.bf16.msra.mxu0 %v1781
  %2403 = vmatprep.subr.bf16.mxu0 %v1784
  %2404 = vmatpush1.bf16.msra.mxu0 %v1783
  %2405 = vmatprep.subr.bf16.mxu0 %v1786
  %2406 = vmatpush1.bf16.msra.mxu0 %v1785
  %2407 = vmatprep.subr.bf16.mxu0 %v1788
  %2408 = vmatpush1.bf16.msra.mxu0 %v1787
  %2409 = vmatprep.mubr.bf16.mxu0 %v720
  %2410 = vmatmul.mubr.bf16.gmra.mrb[0].mxu0 %v719
  %v2411 = vpop.f32.mrb[0].mxu0
  %v2412 = vadd.f32 %v2319, %v2411
  %v2413 = vpop.f32.mrb[0].mxu0
  %v2414 = vadd.f32 %v2321, %v2413
  %v2415 = vpop.f32.mrb[0].mxu0
  %v2416 = vadd.f32 %v2323, %v2415
  %v2417 = vpop.f32.mrb[0].mxu0
  %v2418 = vadd.f32 %v2325, %v2417
  %2419 = vmatprep.mubr.bf16.mxu0 %v737
  %2420 = vmatmul.mubr.bf16.gmra.mrb[0].mxu0 %v736
  %v2421 = vpop.f32.mrb[0].mxu0
  %v2422 = vadd.f32 %v2329, %v2421
  %v2423 = vpop.f32.mrb[0].mxu0
  %v2424 = vadd.f32 %v2331, %v2423
  %v2425 = vpop.f32.mrb[0].mxu0
  %v2426 = vadd.f32 %v2333, %v2425
  %v2427 = vpop.f32.mrb[0].mxu0
  %v2428 = vadd.f32 %v2335, %v2427
  %2429 = vmatprep.mubr.bf16.mxu0 %v754
  %2430 = vmatmul.mubr.bf16.gmra.mrb[0].mxu0 %v753
  %v2431 = vpop.f32.mrb[0].mxu0
  %v2432 = vadd.f32 %v2339, %v2431
  %v2433 = vpop.f32.mrb[0].mxu0
  %v2434 = vadd.f32 %v2341, %v2433
  %v2435 = vpop.f32.mrb[0].mxu0
  %v2436 = vadd.f32 %v2343, %v2435
  %v2437 = vpop.f32.mrb[0].mxu0
  %v2438 = vadd.f32 %v2345, %v2437
  %2439 = vmatprep.mubr.bf16.mxu0 %v771
  %2440 = vmatmul.mubr.bf16.gmra.mrb[0].mxu0 %v770
  %v2441 = vpop.f32.mrb[0].mxu0
  %v2442 = vadd.f32 %v2349, %v2441
  %v2443 = vpop.f32.mrb[0].mxu0
  %v2444 = vadd.f32 %v2351, %v2443
  %v2445 = vpop.f32.mrb[0].mxu0
  %v2446 = vadd.f32 %v2353, %v2445
  %v2447 = vpop.f32.mrb[0].mxu0
  %v2448 = vadd.f32 %v2355, %v2447
  %2449 = vmatprep.mubr.bf16.mxu0 %v788
  %2450 = vmatmul.mubr.bf16.gmra.mrb[0].mxu0 %v787
  %v2451 = vpop.f32.mrb[0].mxu0
  %v2452 = vadd.f32 %v2359, %v2451
  %v2453 = vpop.f32.mrb[0].mxu0
  %v2454 = vadd.f32 %v2361, %v2453
  %v2455 = vpop.f32.mrb[0].mxu0
  %v2456 = vadd.f32 %v2363, %v2455
  %v2457 = vpop.f32.mrb[0].mxu0
  %v2458 = vadd.f32 %v2365, %v2457
  %2459 = vmatprep.mubr.bf16.mxu0 %v805
  %2460 = vmatmul.mubr.bf16.gmra.mrb[0].mxu0 %v804
  %v2461 = vpop.f32.mrb[0].mxu0
  %v2462 = vadd.f32 %v2369, %v2461
  %v2463 = vpop.f32.mrb[0].mxu0
  %v2464 = vadd.f32 %v2371, %v2463
  %v2465 = vpop.f32.mrb[0].mxu0
  %v2466 = vadd.f32 %v2373, %v2465
  %v2467 = vpop.f32.mrb[0].mxu0
  %v2468 = vadd.f32 %v2375, %v2467
  %2469 = vdwg.mxu0
  %2470 = vmatprep.subr.bf16.mxu0 %v1790
  %2471 = vmatpush1.bf16.msra.mxu0 %v1789
  %2472 = vmatprep.subr.bf16.mxu0 %v1792
  %2473 = vmatpush1.bf16.msra.mxu0 %v1791
  %2474 = vmatprep.subr.bf16.mxu0 %v1794
  %2475 = vmatpush1.bf16.msra.mxu0 %v1793
  %2476 = vmatprep.subr.bf16.mxu0 %v1796
  %2477 = vmatpush1.bf16.msra.mxu0 %v1795
  %2478 = vmatprep.subr.bf16.mxu0 %v1798
  %2479 = vmatpush1.bf16.msra.mxu0 %v1797
  %2480 = vmatprep.subr.bf16.mxu0 %v1800
  %2481 = vmatpush1.bf16.msra.mxu0 %v1799
  %2482 = vmatprep.subr.bf16.mxu0 %v1802
  %2483 = vmatpush1.bf16.msra.mxu0 %v1801
  %2484 = vmatprep.subr.bf16.mxu0 %v1804
  %2485 = vmatpush1.bf16.msra.mxu0 %v1803
  %2486 = vmatprep.subr.bf16.mxu0 %v1806
  %2487 = vmatpush1.bf16.msra.mxu0 %v1805
  %2488 = vmatprep.subr.bf16.mxu0 %v1808
  %2489 = vmatpush1.bf16.msra.mxu0 %v1807
  %2490 = vmatprep.subr.bf16.mxu0 %v1810
  %2491 = vmatpush1.bf16.msra.mxu0 %v1809
  %2492 = vmatprep.subr.bf16.mxu0 %v1812
  %2493 = vmatpush1.bf16.msra.mxu0 %v1811
  %2494 = vmatprep.subr.bf16.mxu0 %v1814
  %2495 = vmatpush1.bf16.msra.mxu0 %v1813
  %2496 = vmatprep.subr.bf16.mxu0 %v1816
  %2497 = vmatpush1.bf16.msra.mxu0 %v1815
  %2498 = vmatprep.subr.bf16.mxu0 %v1818
  %2499 = vmatpush1.bf16.msra.mxu0 %v1817
  %2500 = vmatprep.subr.bf16.mxu0 %v1820
  %2501 = vmatpush1.bf16.msra.mxu0 %v1819
  %2502 = vmatprep.mubr.bf16.mxu0 %v722
  %2503 = vmatmul.mubr.bf16.gmra.mrb[0].mxu0 %v721
  %v2504 = vpop.f32.mrb[0].mxu0
  %v2505 = vadd.f32 %v2412, %v2504
  %v2506 = vpop.f32.mrb[0].mxu0
  %v2507 = vadd.f32 %v2414, %v2506
  %v2508 = vpop.f32.mrb[0].mxu0
  %v2509 = vadd.f32 %v2416, %v2508
  %v2510 = vpop.f32.mrb[0].mxu0
  %v2511 = vadd.f32 %v2418, %v2510
  %2512 = vmatprep.mubr.bf16.mxu0 %v739
  %2513 = vmatmul.mubr.bf16.gmra.mrb[0].mxu0 %v738
  %v2514 = vpop.f32.mrb[0].mxu0
  %v2515 = vadd.f32 %v2422, %v2514
  %v2516 = vpop.f32.mrb[0].mxu0
  %v2517 = vadd.f32 %v2424, %v2516
  %v2518 = vpop.f32.mrb[0].mxu0
  %v2519 = vadd.f32 %v2426, %v2518
  %v2520 = vpop.f32.mrb[0].mxu0
  %v2521 = vadd.f32 %v2428, %v2520
  %2522 = vmatprep.mubr.bf16.mxu0 %v756
  %2523 = vmatmul.mubr.bf16.gmra.mrb[0].mxu0 %v755
  %v2524 = vpop.f32.mrb[0].mxu0
  %v2525 = vadd.f32 %v2432, %v2524
  %v2526 = vpop.f32.mrb[0].mxu0
  %v2527 = vadd.f32 %v2434, %v2526
  %v2528 = vpop.f32.mrb[0].mxu0
  %v2529 = vadd.f32 %v2436, %v2528
  %v2530 = vpop.f32.mrb[0].mxu0
  %v2531 = vadd.f32 %v2438, %v2530
  %2532 = vmatprep.mubr.bf16.mxu0 %v773
  %2533 = vmatmul.mubr.bf16.gmra.mrb[0].mxu0 %v772
  %v2534 = vpop.f32.mrb[0].mxu0
  %v2535 = vadd.f32 %v2442, %v2534
  %v2536 = vpop.f32.mrb[0].mxu0
  %v2537 = vadd.f32 %v2444, %v2536
  %v2538 = vpop.f32.mrb[0].mxu0
  %v2539 = vadd.f32 %v2446, %v2538
  %v2540 = vpop.f32.mrb[0].mxu0
  %v2541 = vadd.f32 %v2448, %v2540
  %2542 = vmatprep.mubr.bf16.mxu0 %v790
  %2543 = vmatmul.mubr.bf16.gmra.mrb[0].mxu0 %v789
  %v2544 = vpop.f32.mrb[0].mxu0
  %v2545 = vadd.f32 %v2452, %v2544
  %v2546 = vpop.f32.mrb[0].mxu0
  %v2547 = vadd.f32 %v2454, %v2546
  %v2548 = vpop.f32.mrb[0].mxu0
  %v2549 = vadd.f32 %v2456, %v2548
  %v2550 = vpop.f32.mrb[0].mxu0
  %v2551 = vadd.f32 %v2458, %v2550
  %2552 = vmatprep.mubr.bf16.mxu0 %v807
  %2553 = vmatmul.mubr.bf16.gmra.mrb[0].mxu0 %v806
  %v2554 = vpop.f32.mrb[0].mxu0
  %v2555 = vadd.f32 %v2462, %v2554
  %v2556 = vpop.f32.mrb[0].mxu0
  %v2557 = vadd.f32 %v2464, %v2556
  %v2558 = vpop.f32.mrb[0].mxu0
  %v2559 = vadd.f32 %v2466, %v2558
  %v2560 = vpop.f32.mrb[0].mxu0
  %v2561 = vadd.f32 %v2468, %v2560
  %2562 = vdwg.mxu0
  %2563 = vmatprep.subr.bf16.mxu0 %v1822
  %2564 = vmatpush1.bf16.msra.mxu0 %v1821
  %2565 = vmatprep.subr.bf16.mxu0 %v1824
  %2566 = vmatpush1.bf16.msra.mxu0 %v1823
  %2567 = vmatprep.subr.bf16.mxu0 %v1826
  %2568 = vmatpush1.bf16.msra.mxu0 %v1825
  %2569 = vmatprep.subr.bf16.mxu0 %v1828
  %2570 = vmatpush1.bf16.msra.mxu0 %v1827
  %2571 = vmatprep.subr.bf16.mxu0 %v1830
  %2572 = vmatpush1.bf16.msra.mxu0 %v1829
  %2573 = vmatprep.subr.bf16.mxu0 %v1832
  %2574 = vmatpush1.bf16.msra.mxu0 %v1831
  %2575 = vmatprep.subr.bf16.mxu0 %v1834
  %2576 = vmatpush1.bf16.msra.mxu0 %v1833
  %2577 = vmatprep.subr.bf16.mxu0 %v1836
  %2578 = vmatpush1.bf16.msra.mxu0 %v1835
  %2579 = vmatprep.subr.bf16.mxu0 %v1838
  %2580 = vmatpush1.bf16.msra.mxu0 %v1837
  %2581 = vmatprep.subr.bf16.mxu0 %v1840
  %2582 = vmatpush1.bf16.msra.mxu0 %v1839
  %2583 = vmatprep.subr.bf16.mxu0 %v1842
  %2584 = vmatpush1.bf16.msra.mxu0 %v1841
  %2585 = vmatprep.subr.bf16.mxu0 %v1844
  %2586 = vmatpush1.bf16.msra.mxu0 %v1843
  %2587 = vmatprep.subr.bf16.mxu0 %v1846
  %2588 = vmatpush1.bf16.msra.mxu0 %v1845
  %2589 = vmatprep.subr.bf16.mxu0 %v1848
  %2590 = vmatpush1.bf16.msra.mxu0 %v1847
  %2591 = vmatprep.subr.bf16.mxu0 %v1850
  %2592 = vmatpush1.bf16.msra.mxu0 %v1849
  %2593 = vmatprep.subr.bf16.mxu0 %v1852
  %2594 = vmatpush1.bf16.msra.mxu0 %v1851
  %2595 = vmatprep.mubr.bf16.mxu0 %v724
  %2596 = vmatmul.mubr.bf16.gmra.mrb[0].mxu0 %v723
  %v2597 = vpop.f32.mrb[0].mxu0
  %v2598 = vadd.f32 %v2505, %v2597
  %v2599 = vpop.f32.mrb[0].mxu0
  %v2600 = vadd.f32 %v2507, %v2599
  %v2601 = vpop.f32.mrb[0].mxu0
  %v2602 = vadd.f32 %v2509, %v2601
  %v2603 = vpop.f32.mrb[0].mxu0
  %v2604 = vadd.f32 %v2511, %v2603
  %2605 = vmatprep.mubr.bf16.mxu0 %v741
  %2606 = vmatmul.mubr.bf16.gmra.mrb[0].mxu0 %v740
  %v2607 = vpop.f32.mrb[0].mxu0
  %v2608 = vadd.f32 %v2515, %v2607
  %v2609 = vpop.f32.mrb[0].mxu0
  %v2610 = vadd.f32 %v2517, %v2609
  %v2611 = vpop.f32.mrb[0].mxu0
  %v2612 = vadd.f32 %v2519, %v2611
  %v2613 = vpop.f32.mrb[0].mxu0
  %v2614 = vadd.f32 %v2521, %v2613
  %2615 = vmatprep.mubr.bf16.mxu0 %v758
  %2616 = vmatmul.mubr.bf16.gmra.mrb[0].mxu0 %v757
  %v2617 = vpop.f32.mrb[0].mxu0
  %v2618 = vadd.f32 %v2525, %v2617
  %v2619 = vpop.f32.mrb[0].mxu0
  %v2620 = vadd.f32 %v2527, %v2619
  %v2621 = vpop.f32.mrb[0].mxu0
  %v2622 = vadd.f32 %v2529, %v2621
  %v2623 = vpop.f32.mrb[0].mxu0
  %v2624 = vadd.f32 %v2531, %v2623
  %2625 = vmatprep.mubr.bf16.mxu0 %v775
  %2626 = vmatmul.mubr.bf16.gmra.mrb[0].mxu0 %v774
  %v2627 = vpop.f32.mrb[0].mxu0
  %v2628 = vadd.f32 %v2535, %v2627
  %v2629 = vpop.f32.mrb[0].mxu0
  %v2630 = vadd.f32 %v2537, %v2629
  %v2631 = vpop.f32.mrb[0].mxu0
  %v2632 = vadd.f32 %v2539, %v2631
  %v2633 = vpop.f32.mrb[0].mxu0
  %v2634 = vadd.f32 %v2541, %v2633
  %2635 = vmatprep.mubr.bf16.mxu0 %v792
  %2636 = vmatmul.mubr.bf16.gmra.mrb[0].mxu0 %v791
  %v2637 = vpop.f32.mrb[0].mxu0
  %v2638 = vadd.f32 %v2545, %v2637
  %v2639 = vpop.f32.mrb[0].mxu0
  %v2640 = vadd.f32 %v2547, %v2639
  %v2641 = vpop.f32.mrb[0].mxu0
  %v2642 = vadd.f32 %v2549, %v2641
  %v2643 = vpop.f32.mrb[0].mxu0
  %v2644 = vadd.f32 %v2551, %v2643
  %2645 = vmatprep.mubr.bf16.mxu0 %v809
  %2646 = vmatmul.mubr.bf16.gmra.mrb[0].mxu0 %v808
  %v2647 = vpop.f32.mrb[0].mxu0
  %v2648 = vadd.f32 %v2555, %v2647
  %v2649 = vpop.f32.mrb[0].mxu0
  %v2650 = vadd.f32 %v2557, %v2649
  %v2651 = vpop.f32.mrb[0].mxu0
  %v2652 = vadd.f32 %v2559, %v2651
  %v2653 = vpop.f32.mrb[0].mxu0
  %v2654 = vadd.f32 %v2561, %v2653
  %2655 = vdwg.mxu0
  %2656 = vmatprep.subr.bf16.mxu0 %v1854
  %2657 = vmatpush1.bf16.msra.mxu0 %v1853
  %2658 = vmatprep.subr.bf16.mxu0 %v1856
  %2659 = vmatpush1.bf16.msra.mxu0 %v1855
  %2660 = vmatprep.subr.bf16.mxu0 %v1858
  %2661 = vmatpush1.bf16.msra.mxu0 %v1857
  %2662 = vmatprep.subr.bf16.mxu0 %v1860
  %2663 = vmatpush1.bf16.msra.mxu0 %v1859
  %2664 = vmatprep.subr.bf16.mxu0 %v1862
  %2665 = vmatpush1.bf16.msra.mxu0 %v1861
  %2666 = vmatprep.subr.bf16.mxu0 %v1864
  %2667 = vmatpush1.bf16.msra.mxu0 %v1863
  %2668 = vmatprep.subr.bf16.mxu0 %v1866
  %2669 = vmatpush1.bf16.msra.mxu0 %v1865
  %2670 = vmatprep.subr.bf16.mxu0 %v1868
  %2671 = vmatpush1.bf16.msra.mxu0 %v1867
  %2672 = vmatprep.subr.bf16.mxu0 %v1870
  %2673 = vmatpush1.bf16.msra.mxu0 %v1869
  %2674 = vmatprep.subr.bf16.mxu0 %v1872
  %2675 = vmatpush1.bf16.msra.mxu0 %v1871
  %2676 = vmatprep.subr.bf16.mxu0 %v1874
  %2677 = vmatpush1.bf16.msra.mxu0 %v1873
  %2678 = vmatprep.subr.bf16.mxu0 %v1876
  %2679 = vmatpush1.bf16.msra.mxu0 %v1875
  %2680 = vmatprep.subr.bf16.mxu0 %v1878
  %2681 = vmatpush1.bf16.msra.mxu0 %v1877
  %2682 = vmatprep.subr.bf16.mxu0 %v1880
  %2683 = vmatpush1.bf16.msra.mxu0 %v1879
  %2684 = vmatprep.subr.bf16.mxu0 %v1882
  %2685 = vmatpush1.bf16.msra.mxu0 %v1881
  %2686 = vmatprep.subr.bf16.mxu0 %v1884
  %2687 = vmatpush1.bf16.msra.mxu0 %v1883
  %2688 = vmatprep.mubr.bf16.mxu0 %v726
  %2689 = vmatmul.mubr.bf16.gmra.mrb[0].mxu0 %v725
  %v2690 = vpop.f32.mrb[0].mxu0
  %v2691 = vadd.f32 %v2598, %v2690
  %v2692 = vpop.f32.mrb[0].mxu0
  %v2693 = vadd.f32 %v2600, %v2692
  %v2694 = vpop.f32.mrb[0].mxu0
  %v2695 = vadd.f32 %v2602, %v2694
  %v2696 = vpop.f32.mrb[0].mxu0
  %v2697 = vadd.f32 %v2604, %v2696
  %2698 = vmatprep.mubr.bf16.mxu0 %v743
  %2699 = vmatmul.mubr.bf16.gmra.mrb[0].mxu0 %v742
  %v2700 = vpop.f32.mrb[0].mxu0
  %v2701 = vadd.f32 %v2608, %v2700
  %v2702 = vpop.f32.mrb[0].mxu0
  %v2703 = vadd.f32 %v2610, %v2702
  %v2704 = vpop.f32.mrb[0].mxu0
  %v2705 = vadd.f32 %v2612, %v2704
  %v2706 = vpop.f32.mrb[0].mxu0
  %v2707 = vadd.f32 %v2614, %v2706
  %2708 = vmatprep.mubr.bf16.mxu0 %v760
  %2709 = vmatmul.mubr.bf16.gmra.mrb[0].mxu0 %v759
  %v2710 = vpop.f32.mrb[0].mxu0
  %v2711 = vadd.f32 %v2618, %v2710
  %v2712 = vpop.f32.mrb[0].mxu0
  %v2713 = vadd.f32 %v2620, %v2712
  %v2714 = vpop.f32.mrb[0].mxu0
  %v2715 = vadd.f32 %v2622, %v2714
  %v2716 = vpop.f32.mrb[0].mxu0
  %v2717 = vadd.f32 %v2624, %v2716
  %2718 = vmatprep.mubr.bf16.mxu0 %v777
  %2719 = vmatmul.mubr.bf16.gmra.mrb[0].mxu0 %v776
  %v2720 = vpop.f32.mrb[0].mxu0
  %v2721 = vadd.f32 %v2628, %v2720
  %v2722 = vpop.f32.mrb[0].mxu0
  %v2723 = vadd.f32 %v2630, %v2722
  %v2724 = vpop.f32.mrb[0].mxu0
  %v2725 = vadd.f32 %v2632, %v2724
  %v2726 = vpop.f32.mrb[0].mxu0
  %v2727 = vadd.f32 %v2634, %v2726
  %2728 = vmatprep.mubr.bf16.mxu0 %v794
  %2729 = vmatmul.mubr.bf16.gmra.mrb[0].mxu0 %v793
  %v2730 = vpop.f32.mrb[0].mxu0
  %v2731 = vadd.f32 %v2638, %v2730
  %v2732 = vpop.f32.mrb[0].mxu0
  %v2733 = vadd.f32 %v2640, %v2732
  %v2734 = vpop.f32.mrb[0].mxu0
  %v2735 = vadd.f32 %v2642, %v2734
  %v2736 = vpop.f32.mrb[0].mxu0
  %v2737 = vadd.f32 %v2644, %v2736
  %2738 = vmatprep.mubr.bf16.mxu0 %v811
  %2739 = vmatmul.mubr.bf16.gmra.mrb[0].mxu0 %v810
  %v2740 = vpop.f32.mrb[0].mxu0
  %v2741 = vadd.f32 %v2648, %v2740
  %v2742 = vpop.f32.mrb[0].mxu0
  %v2743 = vadd.f32 %v2650, %v2742
  %v2744 = vpop.f32.mrb[0].mxu0
  %v2745 = vadd.f32 %v2652, %v2744
  %v2746 = vpop.f32.mrb[0].mxu0
  %v2747 = vadd.f32 %v2654, %v2746
  %2748 = vdwg.mxu0
  %2749 = vmatprep.subr.bf16.mxu0 %v1886
  %2750 = vmatpush1.bf16.msra.mxu0 %v1885
  %2751 = vmatprep.subr.bf16.mxu0 %v1888
  %2752 = vmatpush1.bf16.msra.mxu0 %v1887
  %2753 = vmatprep.subr.bf16.mxu0 %v1890
  %2754 = vmatpush1.bf16.msra.mxu0 %v1889
  %2755 = vmatprep.subr.bf16.mxu0 %v1892
  %2756 = vmatpush1.bf16.msra.mxu0 %v1891
  %2757 = vmatprep.subr.bf16.mxu0 %v1894
  %2758 = vmatpush1.bf16.msra.mxu0 %v1893
  %2759 = vmatprep.subr.bf16.mxu0 %v1896
  %2760 = vmatpush1.bf16.msra.mxu0 %v1895
  %2761 = vmatprep.subr.bf16.mxu0 %v1898
  %2762 = vmatpush1.bf16.msra.mxu0 %v1897
  %2763 = vmatprep.subr.bf16.mxu0 %v1900
  %2764 = vmatpush1.bf16.msra.mxu0 %v1899
  %2765 = vmatprep.subr.bf16.mxu0 %v1902
  %2766 = vmatpush1.bf16.msra.mxu0 %v1901
  %2767 = vmatprep.subr.bf16.mxu0 %v1904
  %2768 = vmatpush1.bf16.msra.mxu0 %v1903
  %2769 = vmatprep.subr.bf16.mxu0 %v1906
  %2770 = vmatpush1.bf16.msra.mxu0 %v1905
  %2771 = vmatprep.subr.bf16.mxu0 %v1908
  %2772 = vmatpush1.bf16.msra.mxu0 %v1907
  %2773 = vmatprep.subr.bf16.mxu0 %v1910
  %2774 = vmatpush1.bf16.msra.mxu0 %v1909
  %2775 = vmatprep.subr.bf16.mxu0 %v1912
  %2776 = vmatpush1.bf16.msra.mxu0 %v1911
  %2777 = vmatprep.subr.bf16.mxu0 %v1914
  %2778 = vmatpush1.bf16.msra.mxu0 %v1913
  %2779 = vmatprep.subr.bf16.mxu0 %v1916
  %2780 = vmatpush1.bf16.msra.mxu0 %v1915
  %2781 = vmatprep.mubr.bf16.mxu0 %v728
  %2782 = vmatmul.mubr.bf16.gmra.mrb[0].mxu0 %v727
  %v2783 = vpop.f32.mrb[0].mxu0
  %v2784 = vadd.f32 %v2691, %v2783
  %v2785 = vpop.f32.mrb[0].mxu0
  %v2786 = vadd.f32 %v2693, %v2785
  %v2787 = vpop.f32.mrb[0].mxu0
  %v2788 = vadd.f32 %v2695, %v2787
  %v2789 = vpop.f32.mrb[0].mxu0
  %v2790 = vadd.f32 %v2697, %v2789
  %2791 = vmatprep.mubr.bf16.mxu0 %v745
  %2792 = vmatmul.mubr.bf16.gmra.mrb[0].mxu0 %v744
  %v2793 = vpop.f32.mrb[0].mxu0
  %v2794 = vadd.f32 %v2701, %v2793
  %v2795 = vpop.f32.mrb[0].mxu0
  %v2796 = vadd.f32 %v2703, %v2795
  %v2797 = vpop.f32.mrb[0].mxu0
  %v2798 = vadd.f32 %v2705, %v2797
  %v2799 = vpop.f32.mrb[0].mxu0
  %v2800 = vadd.f32 %v2707, %v2799
  %2801 = vmatprep.mubr.bf16.mxu0 %v762
  %2802 = vmatmul.mubr.bf16.gmra.mrb[0].mxu0 %v761
  %v2803 = vpop.f32.mrb[0].mxu0
  %v2804 = vadd.f32 %v2711, %v2803
  %v2805 = vpop.f32.mrb[0].mxu0
  %v2806 = vadd.f32 %v2713, %v2805
  %v2807 = vpop.f32.mrb[0].mxu0
  %v2808 = vadd.f32 %v2715, %v2807
  %v2809 = vpop.f32.mrb[0].mxu0
  %v2810 = vadd.f32 %v2717, %v2809
  %2811 = vmatprep.mubr.bf16.mxu0 %v779
  %2812 = vmatmul.mubr.bf16.gmra.mrb[0].mxu0 %v778
  %v2813 = vpop.f32.mrb[0].mxu0
  %v2814 = vadd.f32 %v2721, %v2813
  %v2815 = vpop.f32.mrb[0].mxu0
  %v2816 = vadd.f32 %v2723, %v2815
  %v2817 = vpop.f32.mrb[0].mxu0
  %v2818 = vadd.f32 %v2725, %v2817
  %v2819 = vpop.f32.mrb[0].mxu0
  %v2820 = vadd.f32 %v2727, %v2819
  %2821 = vmatprep.mubr.bf16.mxu0 %v796
  %2822 = vmatmul.mubr.bf16.gmra.mrb[0].mxu0 %v795
  %v2823 = vpop.f32.mrb[0].mxu0
  %v2824 = vadd.f32 %v2731, %v2823
  %v2825 = vpop.f32.mrb[0].mxu0
  %v2826 = vadd.f32 %v2733, %v2825
  %v2827 = vpop.f32.mrb[0].mxu0
  %v2828 = vadd.f32 %v2735, %v2827
  %v2829 = vpop.f32.mrb[0].mxu0
  %v2830 = vadd.f32 %v2737, %v2829
  %2831 = vmatprep.mubr.bf16.mxu0 %v813
  %2832 = vmatmul.mubr.bf16.gmra.mrb[0].mxu0 %v812
  %v2833 = vpop.f32.mrb[0].mxu0
  %v2834 = vadd.f32 %v2741, %v2833
  %v2835 = vpop.f32.mrb[0].mxu0
  %v2836 = vadd.f32 %v2743, %v2835
  %v2837 = vpop.f32.mrb[0].mxu0
  %v2838 = vadd.f32 %v2745, %v2837
  %v2839 = vpop.f32.mrb[0].mxu0
  %v2840 = vadd.f32 %v2747, %v2839
  %2841 = vdwg.mxu0
  %2842 = vmatprep.subr.bf16.mxu0 %v1918
  %2843 = vmatpush1.bf16.msra.mxu0 %v1917
  %2844 = vmatprep.subr.bf16.mxu0 %v1920
  %2845 = vmatpush1.bf16.msra.mxu0 %v1919
  %2846 = vmatprep.subr.bf16.mxu0 %v1922
  %2847 = vmatpush1.bf16.msra.mxu0 %v1921
  %2848 = vmatprep.subr.bf16.mxu0 %v1924
  %2849 = vmatpush1.bf16.msra.mxu0 %v1923
  %2850 = vmatprep.subr.bf16.mxu0 %v1926
  %2851 = vmatpush1.bf16.msra.mxu0 %v1925
  %2852 = vmatprep.subr.bf16.mxu0 %v1928
  %2853 = vmatpush1.bf16.msra.mxu0 %v1927
  %2854 = vmatprep.subr.bf16.mxu0 %v1930
  %2855 = vmatpush1.bf16.msra.mxu0 %v1929
  %2856 = vmatprep.subr.bf16.mxu0 %v1932
  %2857 = vmatpush1.bf16.msra.mxu0 %v1931
  %2858 = vmatprep.subr.bf16.mxu0 %v1934
  %2859 = vmatpush1.bf16.msra.mxu0 %v1933
  %2860 = vmatprep.subr.bf16.mxu0 %v1936
  %2861 = vmatpush1.bf16.msra.mxu0 %v1935
  %2862 = vmatprep.subr.bf16.mxu0 %v1938
  %2863 = vmatpush1.bf16.msra.mxu0 %v1937
  %2864 = vmatprep.subr.bf16.mxu0 %v1940
  %2865 = vmatpush1.bf16.msra.mxu0 %v1939
  %2866 = vmatprep.subr.bf16.mxu0 %v1942
  %2867 = vmatpush1.bf16.msra.mxu0 %v1941
  %2868 = vmatprep.subr.bf16.mxu0 %v1944
  %2869 = vmatpush1.bf16.msra.mxu0 %v1943
  %2870 = vmatprep.subr.bf16.mxu0 %v1946
  %2871 = vmatpush1.bf16.msra.mxu0 %v1945
  %2872 = vmatprep.subr.bf16.mxu0 %v1948
  %2873 = vmatpush1.bf16.msra.mxu0 %v1947
  %2874 = vmatprep.mubr.bf16.mxu0 %v730
  %2875 = vmatmul.mubr.bf16.gmra.mrb[0].mxu0 %v729
  %v2876 = vpop.f32.mrb[0].mxu0
  %v2877 = vadd.f32 %v2784, %v2876
  %v2878 = vpop.f32.mrb[0].mxu0
  %v2879 = vadd.f32 %v2786, %v2878
  %v2880 = vpop.f32.mrb[0].mxu0
  %v2881 = vadd.f32 %v2788, %v2880
  %v2882 = vpop.f32.mrb[0].mxu0
  %v2883 = vadd.f32 %v2790, %v2882
  %2884 = vmatprep.mubr.bf16.mxu0 %v747
  %2885 = vmatmul.mubr.bf16.gmra.mrb[0].mxu0 %v746
  %v2886 = vpop.f32.mrb[0].mxu0
  %v2887 = vadd.f32 %v2794, %v2886
  %v2888 = vpop.f32.mrb[0].mxu0
  %v2889 = vadd.f32 %v2796, %v2888
  %v2890 = vpop.f32.mrb[0].mxu0
  %v2891 = vadd.f32 %v2798, %v2890
  %v2892 = vpop.f32.mrb[0].mxu0
  %v2893 = vadd.f32 %v2800, %v2892
  %2894 = vmatprep.mubr.bf16.mxu0 %v764
  %2895 = vmatmul.mubr.bf16.gmra.mrb[0].mxu0 %v763
  %v2896 = vpop.f32.mrb[0].mxu0
  %v2897 = vadd.f32 %v2804, %v2896
  %v2898 = vpop.f32.mrb[0].mxu0
  %v2899 = vadd.f32 %v2806, %v2898
  %v2900 = vpop.f32.mrb[0].mxu0
  %v2901 = vadd.f32 %v2808, %v2900
  %v2902 = vpop.f32.mrb[0].mxu0
  %v2903 = vadd.f32 %v2810, %v2902
  %2904 = vmatprep.mubr.bf16.mxu0 %v781
  %2905 = vmatmul.mubr.bf16.gmra.mrb[0].mxu0 %v780
  %v2906 = vpop.f32.mrb[0].mxu0
  %v2907 = vadd.f32 %v2814, %v2906
  %v2908 = vpop.f32.mrb[0].mxu0
  %v2909 = vadd.f32 %v2816, %v2908
  %v2910 = vpop.f32.mrb[0].mxu0
  %v2911 = vadd.f32 %v2818, %v2910
  %v2912 = vpop.f32.mrb[0].mxu0
  %v2913 = vadd.f32 %v2820, %v2912
  %2914 = vmatprep.mubr.bf16.mxu0 %v798
  %2915 = vmatmul.mubr.bf16.gmra.mrb[0].mxu0 %v797
  %v2916 = vpop.f32.mrb[0].mxu0
  %v2917 = vadd.f32 %v2824, %v2916
  %v2918 = vpop.f32.mrb[0].mxu0
  %v2919 = vadd.f32 %v2826, %v2918
  %v2920 = vpop.f32.mrb[0].mxu0
  %v2921 = vadd.f32 %v2828, %v2920
  %v2922 = vpop.f32.mrb[0].mxu0
  %v2923 = vadd.f32 %v2830, %v2922
  %2924 = vmatprep.mubr.bf16.mxu0 %v815
  %2925 = vmatmul.mubr.bf16.gmra.mrb[0].mxu0 %v814
  %v2926 = vpop.f32.mrb[0].mxu0
  %v2927 = vadd.f32 %v2834, %v2926
  %v2928 = vpop.f32.mrb[0].mxu0
  %v2929 = vadd.f32 %v2836, %v2928
  %v2930 = vpop.f32.mrb[0].mxu0
  %v2931 = vadd.f32 %v2838, %v2930
  %v2932 = vpop.f32.mrb[0].mxu0
  %v2933 = vadd.f32 %v2840, %v2932
  %2934 = vdwg.mxu0
  %2935 = vmatprep.subr.bf16.mxu0 %v1950
  %2936 = vmatpush1.bf16.msra.mxu0 %v1949
  %2937 = vmatprep.subr.bf16.mxu0 %v1952
  %2938 = vmatpush1.bf16.msra.mxu0 %v1951
  %2939 = vmatprep.subr.bf16.mxu0 %v1954
  %2940 = vmatpush1.bf16.msra.mxu0 %v1953
  %2941 = vmatprep.subr.bf16.mxu0 %v1956
  %2942 = vmatpush1.bf16.msra.mxu0 %v1955
  %2943 = vmatprep.subr.bf16.mxu0 %v1958
  %2944 = vmatpush1.bf16.msra.mxu0 %v1957
  %2945 = vmatprep.subr.bf16.mxu0 %v1960
  %2946 = vmatpush1.bf16.msra.mxu0 %v1959
  %2947 = vmatprep.subr.bf16.mxu0 %v1962
  %2948 = vmatpush1.bf16.msra.mxu0 %v1961
  %2949 = vmatprep.subr.bf16.mxu0 %v1964
  %2950 = vmatpush1.bf16.msra.mxu0 %v1963
  %2951 = vmatprep.subr.bf16.mxu0 %v1966
  %2952 = vmatpush1.bf16.msra.mxu0 %v1965
  %2953 = vmatprep.subr.bf16.mxu0 %v1968
  %2954 = vmatpush1.bf16.msra.mxu0 %v1967
  %2955 = vmatprep.subr.bf16.mxu0 %v1970
  %2956 = vmatpush1.bf16.msra.mxu0 %v1969
  %2957 = vmatprep.subr.bf16.mxu0 %v1972
  %2958 = vmatpush1.bf16.msra.mxu0 %v1971
  %2959 = vmatprep.subr.bf16.mxu0 %v1974
  %2960 = vmatpush1.bf16.msra.mxu0 %v1973
  %2961 = vmatprep.subr.bf16.mxu0 %v1976
  %2962 = vmatpush1.bf16.msra.mxu0 %v1975
  %2963 = vmatprep.subr.bf16.mxu0 %v1978
  %2964 = vmatpush1.bf16.msra.mxu0 %v1977
  %2965 = vmatprep.subr.bf16.mxu0 %v1980
  %2966 = vmatpush1.bf16.msra.mxu0 %v1979
  %2967 = vmatprep.mubr.bf16.mxu0 %v732
  %2968 = vmatmul.mubr.bf16.gmra.mrb[0].mxu0 %v731
  %v2969 = vpop.f32.mrb[0].mxu0
  %v2970 = vadd.f32 %v2877, %v2969
  %v2971 = vpop.f32.mrb[0].mxu0
  %v2972 = vadd.f32 %v2879, %v2971
  %v2973 = vpop.f32.mrb[0].mxu0
  %v2974 = vadd.f32 %v2881, %v2973
  %v2975 = vpop.f32.mrb[0].mxu0
  %v2976 = vadd.f32 %v2883, %v2975
  %2977 = vmatprep.mubr.bf16.mxu0 %v749
  %2978 = vmatmul.mubr.bf16.gmra.mrb[0].mxu0 %v748
  %v2979 = vpop.f32.mrb[0].mxu0
  %v2980 = vadd.f32 %v2887, %v2979
  %v2981 = vpop.f32.mrb[0].mxu0
  %v2982 = vadd.f32 %v2889, %v2981
  %v2983 = vpop.f32.mrb[0].mxu0
  %v2984 = vadd.f32 %v2891, %v2983
  %v2985 = vpop.f32.mrb[0].mxu0
  %v2986 = vadd.f32 %v2893, %v2985
  %2987 = vmatprep.mubr.bf16.mxu0 %v766
  %2988 = vmatmul.mubr.bf16.gmra.mrb[0].mxu0 %v765
  %v2989 = vpop.f32.mrb[0].mxu0
  %v2990 = vadd.f32 %v2897, %v2989
  %v2991 = vpop.f32.mrb[0].mxu0
  %v2992 = vadd.f32 %v2899, %v2991
  %v2993 = vpop.f32.mrb[0].mxu0
  %v2994 = vadd.f32 %v2901, %v2993
  %v2995 = vpop.f32.mrb[0].mxu0
  %v2996 = vadd.f32 %v2903, %v2995
  %2997 = vmatprep.mubr.bf16.mxu0 %v783
  %2998 = vmatmul.mubr.bf16.gmra.mrb[0].mxu0 %v782
  %v2999 = vpop.f32.mrb[0].mxu0
  %v3000 = vadd.f32 %v2907, %v2999
  %v3001 = vpop.f32.mrb[0].mxu0
  %v3002 = vadd.f32 %v2909, %v3001
  %v3003 = vpop.f32.mrb[0].mxu0
  %v3004 = vadd.f32 %v2911, %v3003
  %v3005 = vpop.f32.mrb[0].mxu0
  %v3006 = vadd.f32 %v2913, %v3005
  %3007 = vmatprep.mubr.bf16.mxu0 %v800
  %3008 = vmatmul.mubr.bf16.gmra.mrb[0].mxu0 %v799
  %v3009 = vpop.f32.mrb[0].mxu0
  %v3010 = vadd.f32 %v2917, %v3009
  %v3011 = vpop.f32.mrb[0].mxu0
  %v3012 = vadd.f32 %v2919, %v3011
  %v3013 = vpop.f32.mrb[0].mxu0
  %v3014 = vadd.f32 %v2921, %v3013
  %v3015 = vpop.f32.mrb[0].mxu0
  %v3016 = vadd.f32 %v2923, %v3015
  %3017 = vmatprep.mubr.bf16.mxu0 %v817
  %3018 = vmatmul.mubr.bf16.gmra.mrb[0].mxu0 %v816
  %v3019 = vpop.f32.mrb[0].mxu0
  %v3020 = vadd.f32 %v2927, %v3019
  %v3021 = vpop.f32.mrb[0].mxu0
  %v3022 = vadd.f32 %v2929, %v3021
  %v3023 = vpop.f32.mrb[0].mxu0
  %v3024 = vadd.f32 %v2931, %v3023
  %v3025 = vpop.f32.mrb[0].mxu0
  %v3026 = vadd.f32 %v2933, %v3025
  %3027 = vdwg.mxu0
  %3028 = vmatprep.subr.bf16.mxu0 %v1982
  %3029 = vmatpush1.bf16.msra.mxu0 %v1981
  %3030 = vmatprep.subr.bf16.mxu0 %v1984
  %3031 = vmatpush1.bf16.msra.mxu0 %v1983
  %3032 = vmatprep.subr.bf16.mxu0 %v1986
  %3033 = vmatpush1.bf16.msra.mxu0 %v1985
  %3034 = vmatprep.subr.bf16.mxu0 %v1988
  %3035 = vmatpush1.bf16.msra.mxu0 %v1987
  %3036 = vmatprep.subr.bf16.mxu0 %v1990
  %3037 = vmatpush1.bf16.msra.mxu0 %v1989
  %3038 = vmatprep.subr.bf16.mxu0 %v1992
  %3039 = vmatpush1.bf16.msra.mxu0 %v1991
  %3040 = vmatprep.subr.bf16.mxu0 %v1994
  %3041 = vmatpush1.bf16.msra.mxu0 %v1993
  %3042 = vmatprep.subr.bf16.mxu0 0
  %3043 = vmatpush1.bf16.msra.mxu0 0
  %3044 = vmatprep.subr.bf16.mxu0 0
  %3045 = vmatpush1.bf16.msra.mxu0 0
  %3046 = vmatprep.subr.bf16.mxu0 0
  %3047 = vmatpush1.bf16.msra.mxu0 0
  %3048 = vmatprep.subr.bf16.mxu0 0
  %3049 = vmatpush1.bf16.msra.mxu0 0
  %3050 = vmatprep.subr.bf16.mxu0 0
  %3051 = vmatpush1.bf16.msra.mxu0 0
  %3052 = vmatprep.subr.bf16.mxu0 0
  %3053 = vmatpush1.bf16.msra.mxu0 0
  %3054 = vmatprep.subr.bf16.mxu0 0
  %3055 = vmatpush1.bf16.msra.mxu0 0
  %3056 = vmatprep.subr.bf16.mxu0 0
  %3057 = vmatpush1.bf16.msra.mxu0 0
  %3058 = vmatprep.subr.bf16.mxu0 0
  %3059 = vmatpush1.bf16.msra.mxu0 0
  %3060 = vmatprep.mubr.bf16.mxu0 0
  %3061 = vmatmul.mubr.bf16.gmra.mrb[0].mxu0 %v2267
  %v3062 = vpop.f32.mrb[0].mxu0
  %v3063 = vadd.f32 %v2970, %v3062
  %v3064 = vpop.f32.mrb[0].mxu0
  %v3065 = vadd.f32 %v2972, %v3064
  %v3066 = vpop.f32.mrb[0].mxu0
  %v3067 = vadd.f32 %v2974, %v3066
  %v3068 = vpop.f32.mrb[0].mxu0
  %v3069 = vadd.f32 %v2976, %v3068
  %3070 = vmatprep.mubr.bf16.mxu0 0
  %3071 = vmatmul.mubr.bf16.gmra.mrb[0].mxu0 %v2270
  %v3072 = vpop.f32.mrb[0].mxu0
  %v3073 = vadd.f32 %v2980, %v3072
  %v3074 = vpop.f32.mrb[0].mxu0
  %v3075 = vadd.f32 %v2982, %v3074
  %v3076 = vpop.f32.mrb[0].mxu0
  %v3077 = vadd.f32 %v2984, %v3076
  %v3078 = vpop.f32.mrb[0].mxu0
  %v3079 = vadd.f32 %v2986, %v3078
  %3080 = vmatprep.mubr.bf16.mxu0 0
  %3081 = vmatmul.mubr.bf16.gmra.mrb[0].mxu0 %v2273
  %v3082 = vpop.f32.mrb[0].mxu0
  %v3083 = vadd.f32 %v2990, %v3082
  %v3084 = vpop.f32.mrb[0].mxu0
  %v3085 = vadd.f32 %v2992, %v3084
  %v3086 = vpop.f32.mrb[0].mxu0
  %v3087 = vadd.f32 %v2994, %v3086
  %v3088 = vpop.f32.mrb[0].mxu0
  %v3089 = vadd.f32 %v2996, %v3088
  %3090 = vmatprep.mubr.bf16.mxu0 0
  %3091 = vmatmul.mubr.bf16.gmra.mrb[0].mxu0 %v2276
  %v3092 = vpop.f32.mrb[0].mxu0
  %v3093 = vadd.f32 %v3000, %v3092
  %v3094 = vpop.f32.mrb[0].mxu0
  %v3095 = vadd.f32 %v3002, %v3094
  %v3096 = vpop.f32.mrb[0].mxu0
  %v3097 = vadd.f32 %v3004, %v3096
  %v3098 = vpop.f32.mrb[0].mxu0
  %v3099 = vadd.f32 %v3006, %v3098
  %3100 = vmatprep.mubr.bf16.mxu0 0
  %3101 = vmatmul.mubr.bf16.gmra.mrb[0].mxu0 %v2279
  %v3102 = vpop.f32.mrb[0].mxu0
  %v3103 = vadd.f32 %v3010, %v3102
  %v3104 = vpop.f32.mrb[0].mxu0
  %v3105 = vadd.f32 %v3012, %v3104
  %v3106 = vpop.f32.mrb[0].mxu0
  %v3107 = vadd.f32 %v3014, %v3106
  %v3108 = vpop.f32.mrb[0].mxu0
  %v3109 = vadd.f32 %v3016, %v3108
  %3110 = vmatprep.mubr.bf16.mxu0 0
  %3111 = vmatmul.mubr.bf16.gmra.mrb[0].mxu0 %v2282
  %v3112 = vpop.f32.mrb[0].mxu0
  %v3113 = vadd.f32 %v3020, %v3112
  %v3114 = vpop.f32.mrb[0].mxu0
  %v3115 = vadd.f32 %v3022, %v3114
  %v3116 = vpop.f32.mrb[0].mxu0
  %v3117 = vadd.f32 %v3024, %v3116
  %v3118 = vpop.f32.mrb[0].mxu0
  %v3119 = vadd.f32 %v3026, %v3118
  %3120 = vdwg.mxu0
  %vm3121 = vcmp.ge.f32.partialorder %v3063, 0.0
  %vm3122 = vcmp.ge.f32.partialorder %v3065, 0.0
  %vm3123 = vcmp.ge.f32.partialorder %v3067, 0.0
  %vm3124 = vcmp.ge.f32.partialorder %v3069, 0.0
  %vm3125 = vcmp.ge.f32.partialorder %v3073, 0.0
  %vm3126 = vcmp.ge.f32.partialorder %v3075, 0.0
  %vm3127 = vcmp.ge.f32.partialorder %v3077, 0.0
  %vm3128 = vcmp.ge.f32.partialorder %v3079, 0.0
  %vm3129 = vcmp.ge.f32.partialorder %v3083, 0.0
  %vm3130 = vcmp.ge.f32.partialorder %v3085, 0.0
  %vm3131 = vcmp.ge.f32.partialorder %v3087, 0.0
  %vm3132 = vcmp.ge.f32.partialorder %v3089, 0.0
  %vm3133 = vcmp.ge.f32.partialorder %v3093, 0.0
  %vm3134 = vcmp.ge.f32.partialorder %v3095, 0.0
  %vm3135 = vcmp.ge.f32.partialorder %v3097, 0.0
  %vm3136 = vcmp.ge.f32.partialorder %v3099, 0.0
  %vm3137 = vcmp.ge.f32.partialorder %v3103, 0.0
  %vm3138 = vcmp.ge.f32.partialorder %v3105, 0.0
  %vm3139 = vcmp.ge.f32.partialorder %v3107, 0.0
  %vm3140 = vcmp.ge.f32.partialorder %v3109, 0.0
  %vm3141 = vcmp.ge.f32.partialorder %v3113, 0.0
  %vm3142 = vcmp.ge.f32.partialorder %v3115, 0.0
  %vm3143 = vcmp.ge.f32.partialorder %v3117, 0.0
  %vm3144 = vcmp.ge.f32.partialorder %v3119, 0.0
  %v3145 = vmul.f32 %v3063, 0.2
  %v3146 = vmul.f32 %v3065, 0.2
  %v3147 = vmul.f32 %v3067, 0.2
  %v3148 = vmul.f32 %v3069, 0.2
  %v3149 = vmul.f32 %v3073, 0.2
  %v3150 = vmul.f32 %v3075, 0.2
  %v3151 = vmul.f32 %v3077, 0.2
  %v3152 = vmul.f32 %v3079, 0.2
  %v3153 = vmul.f32 %v3083, 0.2
  %v3154 = vmul.f32 %v3085, 0.2
  %v3155 = vmul.f32 %v3087, 0.2
  %v3156 = vmul.f32 %v3089, 0.2
  %v3157 = vmul.f32 %v3093, 0.2
  %v3158 = vmul.f32 %v3095, 0.2
  %v3159 = vmul.f32 %v3097, 0.2
  %v3160 = vmul.f32 %v3099, 0.2
  %v3161 = vmul.f32 %v3103, 0.2
  %v3162 = vmul.f32 %v3105, 0.2
  %v3163 = vmul.f32 %v3107, 0.2
  %v3164 = vmul.f32 %v3109, 0.2
  %v3165 = vmul.f32 %v3113, 0.2
  %v3166 = vmul.f32 %v3115, 0.2
  %v3167 = vmul.f32 %v3117, 0.2
  %v3168 = vmul.f32 %v3119, 0.2
  %v3169 = vsel %vm3121, %v3063, %v3145
  %v3170 = vsel %vm3122, %v3065, %v3146
  %v3171 = vsel %vm3123, %v3067, %v3147
  %v3172 = vsel %vm3124, %v3069, %v3148
  %v3173 = vsel %vm3125, %v3073, %v3149
  %v3174 = vsel %vm3126, %v3075, %v3150
  %v3175 = vsel %vm3127, %v3077, %v3151
  %v3176 = vsel %vm3128, %v3079, %v3152
  %v3177 = vsel %vm3129, %v3083, %v3153
  %v3178 = vsel %vm3130, %v3085, %v3154
  %v3179 = vsel %vm3131, %v3087, %v3155
  %v3180 = vsel %vm3132, %v3089, %v3156
  %v3181 = vsel %vm3133, %v3093, %v3157
  %v3182 = vsel %vm3134, %v3095, %v3158
  %v3183 = vsel %vm3135, %v3097, %v3159
  %v3184 = vsel %vm3136, %v3099, %v3160
  %v3185 = vsel %vm3137, %v3103, %v3161
  %v3186 = vsel %vm3138, %v3105, %v3162
  %v3187 = vsel %vm3139, %v3107, %v3163
  %v3188 = vsel %vm3140, %v3109, %v3164
  %v3189 = vsel %vm3141, %v3113, %v3165
  %v3190 = vsel %vm3142, %v3115, %v3166
  %v3191 = vsel %vm3143, %v3117, %v3167
  %v3192 = vsel %vm3144, %v3119, %v3168
  %v3193 = vmax.f32 %v3169, %v3175
  %v3194 = vmax.f32 %v3170, %v3176
  %v3195 = vmax.f32 %v3171, %v3177
  %v3196 = vmax.f32 %v3172, %v3178
  %v3197 = vmax.f32 %v3173, %v3179
  %v3198 = vmax.f32 %v3174, %v3180
  %v3199 = vmax.f32 %v3181, %v3187
  %v3200 = vmax.f32 %v3182, %v3188
  %v3201 = vmax.f32 %v3183, %v3189
  %v3202 = vmax.f32 %v3184, %v3190
  %v3203 = vmax.f32 %v3185, %v3191
  %v3204 = vmax.f32 %v3186, %v3192
  %v3205 = vmax.f32 %v3193, %v3199
  %v3206 = vmax.f32 %v3194, %v3200
  %v3207 = vmax.f32 %v3195, %v3201
  %v3208 = vmax.f32 %v3196, %v3202
  %v3209 = vmax.f32 %v3197, %v3203
  %v3210 = vmax.f32 %v3198, %v3204
  %3211 = vst [vmem:[%s3] sm:$0xff] %v3205
  %3212 = vst.msk [vmem:[%s3 + $0x8] sm:$0xff] %vm2265, %v3206
  %3213 = vst [vmem:[%s3 + $0x10] sm:$0xff] %v3207
  %3214 = vst.msk [vmem:[%s3 + $0x18] sm:$0xff] %vm2265, %v3208
  %3215 = vst [vmem:[%s3 + $0x20] sm:$0xff] %v3209
  %3216 = vst.msk [vmem:[%s3 + $0x28] sm:$0xff] %vm2265, %v3210
  // Predicated region
  $region14: #{encoder_forward.7} parent=0 // pred_check
    _
  $region15: #{encoder_forward.7} parent=0 // pred_check_branch
    %3218 = sbr.rel (0) target = $region17
  $region16: #{encoder_forward.7} parent=0 // pred_region
    _
  $region17: #{encoder_forward.7} parent=0 // pred_fallthru
    _
  // Predicated region
  $region18: #{encoder_forward.7} parent=0 // pred_check
    _
  $region19: #{encoder_forward.7} parent=0 // pred_check_branch
    %3220 = sbr.rel (0) target = $region21
  $region20: #{encoder_forward.7} parent=0 // pred_region
    _
  $region21: #{encoder_forward.7} parent=0 // pred_fallthru
    _

</llo_original>
